<compile_context>
chip_gen: v7x
topology: tpu7x:2x2x1
jax: 0.10.0
libtpu: 0.0.40
codegen_flags: <defaults>
</compile_context>

<pallas_src>
import functools

import jax
import jax.numpy as jnp
from jax.experimental import pallas as pl
from jax.experimental.pallas import tpu as pltpu

IN_DIM = 512                  # hard-coded in the PyTorch module: nn.Linear(512, .)
ENC_HIDDEN = [256, 128]       # encoder_hidden_dims (exactly one BatchNorm1d)
DEC_HIDDEN = [128, 256, 512]  # decoder_hidden_dims
LATENT = 32                   # latent_dim
HEAD_OUT = max(128, ((2 * LATENT + 127) // 128) * 128)  # lane-dense fused head
NEG_SLOPE = 0.01              # nn.LeakyReLU default
BN_EPS = 1e-5                 # nn.BatchNorm1d default
TILE_M = 512                  # batch rows per grid step (85%+ of HBM roofline)
VMEM_LIMIT = 32 << 20         # resident weights + double-buffered tiles + headroom


def _leaky_relu(x):
    return jnp.where(x >= 0, x, NEG_SLOPE * x)


def _linear(x, w_ref, b_ref):
    w = w_ref[...]
    # Cast activations to the weight dtype (bf16 by default); always
    # accumulate in f32 on the MXU.  Bias add happens in f32.
    return jnp.dot(x.astype(w.dtype), w,
                   preferred_element_type=jnp.float32) + b_ref[...]


# --------------------------------------------------------------------------
# Stage 1: first encoder Linear + full-batch BatchNorm statistics.
# Sequential grid over batch tiles; writes h = x@W0+b0 per tile (consumed by
# stage 2, so x is only read from HBM once) and accumulates per-feature
# sum / sum(h^2) in VMEM scratch.  Padded rows are masked out of the stats.
# --------------------------------------------------------------------------
def enc0_stats_kernel(n_valid, inv_n, x_ref, w0_ref, b0_ref,
                      h_ref, stats_ref, sum_ref, sumsq_ref):
    t = pl.program_id(0)

    @pl.when(t == 0)
    def _init():
        sum_ref[...] = jnp.zeros_like(sum_ref)
        sumsq_ref[...] = jnp.zeros_like(sumsq_ref)

    h = _linear(x_ref[...], w0_ref, b0_ref)        # [tm, H0], f32 accumulation
    h16 = h.astype(h_ref.dtype)                    # stream dtype (bf16)
    h_ref[...] = h16                                # cache for stage 2
    hf = h16.astype(jnp.float32)                   # stats on exactly what stage 2 reads

    tm, h0 = hf.shape
    row = t * tm + jax.lax.broadcasted_iota(jnp.int32, (tm, h0), 0)
    hv = jnp.where(row < n_valid, hf, 0.0)         # mask zero-padded batch rows
    sum_ref[...] += jnp.sum(hv, axis=0, keepdims=True)
    sumsq_ref[...] += jnp.sum(hv * hv, axis=0, keepdims=True)

    @pl.when(t == pl.num_programs(0) - 1)
    def _finalize():
        mean = sum_ref[...] * inv_n
        # TODO(synk): single-pass E[h^2]-E[h]^2 can cancel for large-mean data;
        # switch to a shifted/Welford accumulation if trained weights need it.
        var = jnp.maximum(sumsq_ref[...] * inv_n - mean * mean, 0.0)
        rstd = jax.lax.rsqrt(var + BN_EPS)
        stats_ref[...] = jnp.concatenate([mean, rstd], axis=0)   # [2, H0]


# --------------------------------------------------------------------------
# Stage 2: the rest of the forward on one batch tile per grid step, starting
# from the cached h.  Batch tiles are independent -> "parallel" grid axis.
# --------------------------------------------------------------------------
def vae_fwd_kernel(n_enc_rest, n_dec, *refs):
    it = iter(refs)
    h_ref = next(it)
    eps_ref = next(it)
    stats_ref = next(it)
    enc = [(next(it), next(it)) for _ in range(n_enc_rest)]
    w_head, b_head = next(it), next(it)
    dec = [(next(it), next(it)) for _ in range(n_dec)]
    recon_ref, mulv_ref = next(it), next(it)

    # ---- rest of the encoder: [BN -> LeakyReLU -> Linear] (one layer here;
    #      full-batch training-mode BN stats come from the stage-1 pre-pass) --
    h = h_ref[...].astype(jnp.float32)
    mean = stats_ref[0:1, :]
    rstd = stats_ref[1:2, :]
    for w, b in enc:
        h = _leaky_relu((h - mean) * rstd)
        h = _linear(h, w, b)

    # ---- fused mu/log_var head, zero-padded to HEAD_OUT (128) lanes so the
    #      matmul is full MXU width and the store is unmasked ----------------
    mulv = _linear(h, w_head, b_head)        # [tm, 128] = mu | log_var | zeros
    mu = mulv[:, :LATENT]
    log_var = mulv[:, LATENT:2 * LATENT]

    # ---- reparameterize: z = eps * exp(0.5*logvar) + mu, L2-normalize ------
    # (no eps clamp: the reference module divides by .norm() with no clamp)
    z = eps_ref[...] * jnp.exp(0.5 * log_var) + mu
    z = z * jax.lax.rsqrt(jnp.sum(z * z, axis=-1, keepdims=True))

    # ---- decoder: Linear -> [LeakyReLU -> Linear]*, then L2-normalize ------
    d = z
    for i, (w, b) in enumerate(dec):
        if i > 0:
            d = _leaky_relu(d)
        d = _linear(d, w, b)
    d = d * jax.lax.rsqrt(jnp.sum(d * d, axis=-1, keepdims=True))

    recon_ref[...] = d.astype(recon_ref.dtype)
    mulv_ref[...] = mulv.astype(mulv_ref.dtype)


def vae_forward(x, eps, params, *, tile_m=TILE_M,
                matmul_dtype=jnp.bfloat16, stream_dtype=jnp.bfloat16):
    """Run the VAE forward with Pallas. Returns (reconstruction, mu, log_var)."""
    n = x.shape[0]
    assert x.shape == (n, IN_DIM) and eps.shape == (n, LATENT)
    assert len(params["encoder"]) == 2 and len(ENC_HIDDEN) == 2, (
        "stage-1 stats pre-pass assumes exactly one BatchNorm1d layer")
    # TODO(synk): deeper encoders (>1 BatchNorm) need one stats pre-pass per BN.

    # Batch tiling: pad to a multiple of the (sublane-aligned) tile and mask
    # padded rows in the stats kernel -- no more single-giant-tile fallback.
    tm = int(min(tile_m, n))
    if tm < n:
        tm = max(8, (tm // 8) * 8)
    n_pad = pl.cdiv(n, tm) * tm
    n_tiles = n_pad // tm
    if n_pad != n:
        pad = n_pad - n
        x = jnp.pad(x, ((0, pad), (0, 0)))
        eps = jnp.pad(eps, ((0, pad), (0, 0)))

    x = x.astype(stream_dtype)   # bf16 activation streaming: halves x bytes

    cast = lambda w: w.astype(matmul_dtype)   # bf16 MXU inputs, f32 accumulation
    enc = [(cast(w), b) for (w, b) in params["encoder"]]
    dec = [(cast(w), b) for (w, b) in params["decoder"]]
    w_mu, b_mu = params["fc_mu"]
    w_var, b_var = params["fc_var"]
    pad_cols = HEAD_OUT - 2 * LATENT
    w_head = cast(jnp.concatenate(
        [w_mu, w_var, jnp.zeros((w_mu.shape[0], pad_cols), w_mu.dtype)], axis=1))
    b_head = jnp.concatenate(
        [b_mu, b_var, jnp.zeros((1, pad_cols), b_mu.dtype)], axis=1)

    def const_spec(a):  # full-array block, constant index -> VMEM-resident
        return pl.BlockSpec(a.shape, lambda t: (0, 0))

    # ---- stage 1: first Linear (cached to HBM) + full-batch BN statistics --
    h0 = ENC_HIDDEN[0]
    w0, b0 = enc[0]
    h_cache, stats = pl.pallas_call(
        functools.partial(enc0_stats_kernel, n, 1.0 / n),
        out_shape=(jax.ShapeDtypeStruct((n_pad, h0), stream_dtype),
                   jax.ShapeDtypeStruct((2, h0), jnp.float32)),
        grid_spec=pltpu.PrefetchScalarGridSpec(
            num_scalar_prefetch=0,
            grid=(n_tiles,),
            in_specs=[pl.BlockSpec((tm, IN_DIM), lambda t: (t, 0)),
                      const_spec(w0), const_spec(b0)],
            out_specs=(pl.BlockSpec((tm, h0), lambda t: (t, 0)),
                       pl.BlockSpec((2, h0), lambda t: (0, 0))),
            scratch_shapes=[pltpu.VMEM((1, h0), jnp.float32),
                            pltpu.VMEM((1, h0), jnp.float32)]),
        compiler_params=pltpu.CompilerParams(
            dimension_semantics=("arbitrary",),       # cross-tile accumulation
            vmem_limit_bytes=VMEM_LIMIT),
    )(x, w0, b0)

    # ---- stage 2: rest of forward from cached h; batch tiles independent ---
    flat = [h_cache, eps, stats]
    specs = [pl.BlockSpec((tm, h0), lambda t: (t, 0)),
             pl.BlockSpec((tm, LATENT), lambda t: (t, 0)),
             const_spec(stats)]
    enc_rest = enc[1:]
    for w, b in enc_rest:
        flat += [w, b]; specs += [const_spec(w), const_spec(b)]
    flat += [w_head, b_head]; specs += [const_spec(w_head), const_spec(b_head)]
    for w, b in dec:
        flat += [w, b]; specs += [const_spec(w), const_spec(b)]

    kernel = functools.partial(vae_fwd_kernel, len(enc_rest), len(dec))
    recon, mulv = pl.pallas_call(
        kernel,
        out_shape=(jax.ShapeDtypeStruct((n_pad, DEC_HIDDEN[-1]), jnp.float32),
                   jax.ShapeDtypeStruct((n_pad, HEAD_OUT), jnp.float32)),
        grid_spec=pltpu.PrefetchScalarGridSpec(
            num_scalar_prefetch=0,
            grid=(n_tiles,),
            in_specs=specs,
            out_specs=(pl.BlockSpec((tm, DEC_HIDDEN[-1]), lambda t: (t, 0)),
                       pl.BlockSpec((tm, HEAD_OUT), lambda t: (t, 0)))),
        compiler_params=pltpu.CompilerParams(
            # TODO(synk): on v7x, pltpu.CORE_PARALLEL here would engage both
            # TensorCores; kept the portable "parallel" for v5e/v6e (1 TC).
            dimension_semantics=("parallel",),
            vmem_limit_bytes=VMEM_LIMIT),
    )(*flat)

    recon = recon[:n]
    mu = mulv[:n, :LATENT]
    log_var = mulv[:n, LATENT:2 * LATENT]
    return recon, mu, log_var


# --------------------------------------------------------------------------
# Parameter init (xavier-uniform weights, zero biases, as in init_weights()).
# --------------------------------------------------------------------------
def _xavier_uniform(key, fan_in, fan_out):
    bound = jnp.sqrt(6.0 / (fan_in + fan_out))
    return jax.random.uniform(key, (fan_in, fan_out), jnp.float32, -bound, bound)


def init_params(key):
    params = {"encoder": [], "decoder": []}

    def lin(k, fi, fo):
        return _xavier_uniform(k, fi, fo), jnp.zeros((1, fo), jnp.float32)

    dims = [IN_DIM] + ENC_HIDDEN
    for i in range(len(ENC_HIDDEN)):
        key, sub = jax.random.split(key)
        params["encoder"].append(lin(sub, dims[i], dims[i + 1]))

    key, sub = jax.random.split(key)
    params["fc_mu"] = lin(sub, ENC_HIDDEN[-1], LATENT)
    key, sub = jax.random.split(key)
    params["fc_var"] = lin(sub, ENC_HIDDEN[-1], LATENT)

    ddims = [LATENT] + DEC_HIDDEN
    for i in range(len(DEC_HIDDEN)):
        key, sub = jax.random.split(key)
        params["decoder"].append(lin(sub, ddims[i], ddims[i + 1]))
    return params


# Pure-JAX reference with the SAME precision policy as the kernel
# (bf16 matmul inputs / bf16 h round-trip, f32 accumulation + elementwise).
def _reference_forward(x, eps, params, *,
                       matmul_dtype=jnp.bfloat16, stream_dtype=jnp.bfloat16):
    def lin(a, w, b):
        w = w.astype(matmul_dtype)
        return jnp.dot(a.astype(w.dtype), w,
                       preferred_element_type=jnp.float32) + b

    (w0, b0) = params["encoder"][0]
    h = lin(x.astype(stream_dtype), w0, b0)
    h = h.astype(stream_dtype).astype(jnp.float32)   # h round-trips HBM in stream dtype
    for w, b in params["encoder"][1:]:
        mean = jnp.mean(h, axis=0, keepdims=True)
        var = jnp.mean((h - mean) ** 2, axis=0, keepdims=True)
        hn = (h - mean) * jax.lax.rsqrt(var + BN_EPS)
        hn = jnp.where(hn >= 0, hn, NEG_SLOPE * hn)
        h = lin(hn, w, b)
    mu = lin(h, *params["fc_mu"])
    logvar = lin(h, *params["fc_var"])
    z = eps * jnp.exp(0.5 * logvar) + mu
    z = z * jax.lax.rsqrt(jnp.sum(z * z, axis=-1, keepdims=True))
    d = z
    for i, (w, b) in enumerate(params["decoder"]):
        if i > 0:
            d = jnp.where(d >= 0, d, NEG_SLOPE * d)
        d = lin(d, w, b)
    d = d * jax.lax.rsqrt(jnp.sum(d * d, axis=-1, keepdims=True))
    return d, mu, logvar


if __name__ == "__main__":
    import numpy as np

    key = jax.random.PRNGKey(0)
    k_param, k_x, k_eps = jax.random.split(key, 3)

    # 768 rows -> two 512-row tiles with 256 zero-padded, stats-masked rows:
    # exercises multi-tile streaming, full-batch BN stats, and batch padding.
    batch = 768
    x = jax.random.normal(k_x, (batch, IN_DIM), jnp.float32)
    eps = jax.random.normal(k_eps, (batch, LATENT), jnp.float32)  # randn_like

    params = init_params(k_param)

    recon, mu, log_var = jax.jit(vae_forward)(x, eps, params)
    jax.block_until_ready((recon, mu, log_var))

    assert recon.shape == (batch, DEC_HIDDEN[-1])
    assert mu.shape == (batch, LATENT) and log_var.shape == (batch, LATENT)

    ref_recon, ref_mu, ref_lv = _reference_forward(x, eps, params)
    np.testing.assert_allclose(np.asarray(recon), np.asarray(ref_recon),
                               atol=1e-2, rtol=1e-2)
    np.testing.assert_allclose(np.asarray(mu), np.asarray(ref_mu),
                               atol=1e-2, rtol=1e-2)
    np.testing.assert_allclose(np.asarray(log_var), np.asarray(ref_lv),
                               atol=1e-2, rtol=1e-2)

    print("KERNEL_OK")
</pallas_src>

<mosaic_0001>
module attributes {stable_mosaic.version = 11 : i64} {
  func.func @enc0_stats_kernel(%arg0: i32, %arg1: memref<512x512xbf16, #tpu.memory_space<vmem>>, %arg2: memref<512x256xbf16, #tpu.memory_space<vmem>>, %arg3: memref<1x256xf32, #tpu.memory_space<vmem>>, %arg4: memref<512x256xbf16, #tpu.memory_space<vmem>>, %arg5: memref<2x256xf32, #tpu.memory_space<vmem>>, %arg6: memref<1x256xf32, #tpu.memory_space<vmem>>, %arg7: memref<1x256xf32, #tpu.memory_space<vmem>>) attributes {dimension_semantics = [#tpu.dimension_semantics<arbitrary>], iteration_bounds = array<i64: 2>, scalar_prefetch = 0 : i64, scratch_operands = 2 : i64, tpu.core_type = #tpu.core_type<tc>, window_params = [{transform_indices = @transform_0, window_bounds = array<i64: 512, 512>}, {pipeline_mode = #tpu.pipeline_mode<synchronous>, transform_indices = @transform_1, window_bounds = array<i64: 512, 256>}, {pipeline_mode = #tpu.pipeline_mode<synchronous>, transform_indices = @transform_2, window_bounds = array<i64: 1, 256>}, {transform_indices = @transform_3, window_bounds = array<i64: 512, 256>}, {pipeline_mode = #tpu.pipeline_mode<synchronous>, transform_indices = @transform_4, window_bounds = array<i64: 2, 256>}]} {
    %c0_i32 = arith.constant 0 : i32
    %0 = arith.cmpi eq, %arg0, %c0_i32 : i32
    %1 = arith.extui %0 : i1 to i32
    %c0_i32_0 = arith.constant 0 : i32
    %2 = arith.cmpi ne, %1, %c0_i32_0 : i32
    scf.if %2 {
      %cst_20 = arith.constant 0.000000e+00 : f32
      %34 = vector.broadcast %cst_20 : f32 to vector<1x256xf32>
      %c0_21 = arith.constant 0 : index
      %c0_22 = arith.constant 0 : index
      %35 = vector.load %arg6[%c0_21, %c0_22] : memref<1x256xf32, #tpu.memory_space<vmem>>, vector<1x256xf32>
      tpu.vector_store %arg6[%c0_21, %c0_22], %34 {strides = array<i32>} : memref<1x256xf32, #tpu.memory_space<vmem>>, vector<1x256xf32>,
      %cst_23 = arith.constant 0.000000e+00 : f32
      %36 = vector.broadcast %cst_23 : f32 to vector<1x256xf32>
      %c0_24 = arith.constant 0 : index
      %c0_25 = arith.constant 0 : index
      %37 = vector.load %arg7[%c0_24, %c0_25] : memref<1x256xf32, #tpu.memory_space<vmem>>, vector<1x256xf32>
      tpu.vector_store %arg7[%c0_24, %c0_25], %36 {strides = array<i32>} : memref<1x256xf32, #tpu.memory_space<vmem>>, vector<1x256xf32>,
    } else {
    }
    %c0 = arith.constant 0 : index
    %c0_1 = arith.constant 0 : index
    %3 = vector.load %arg1[%c0, %c0_1] : memref<512x512xbf16, #tpu.memory_space<vmem>>, vector<512x512xbf16>
    %c0_2 = arith.constant 0 : index
    %c0_3 = arith.constant 0 : index
    %4 = vector.load %arg2[%c0_2, %c0_3] : memref<512x256xbf16, #tpu.memory_space<vmem>>, vector<512x256xbf16>
    %cst = arith.constant dense<0.000000e+00> : vector<512x256xf32>
    %5 = tpu.matmul %3, %4, %cst {dimension_numbers = #tpu.dot_dimension_numbers<[1], [0], [0], [1], [0, 0, 1, 1], [], []>} : vector<512x512xbf16>, vector<512x256xbf16>, vector<512x256xf32> -> vector<512x256xf32>
    %c0_4 = arith.constant 0 : index
    %c0_5 = arith.constant 0 : index
    %6 = vector.load %arg3[%c0_4, %c0_5] : memref<1x256xf32, #tpu.memory_space<vmem>>, vector<1x256xf32>
    %7 = vector.broadcast %6 : vector<1x256xf32> to vector<512x256xf32>
    %8 = arith.addf %5, %7 : vector<512x256xf32>
    %9 = arith.truncf %8 : vector<512x256xf32> to vector<512x256xbf16>
    %c0_6 = arith.constant 0 : index
    %c0_7 = arith.constant 0 : index
    %10 = vector.load %arg4[%c0_6, %c0_7] : memref<512x256xbf16, #tpu.memory_space<vmem>>, vector<512x256xbf16>
    tpu.vector_store %arg4[%c0_6, %c0_7], %9 {strides = array<i32>} : memref<512x256xbf16, #tpu.memory_space<vmem>>, vector<512x256xbf16>,
    %11 = arith.extf %9 : vector<512x256xbf16> to vector<512x256xf32>
    %c512_i32 = arith.constant 512 : i32
    %12 = arith.muli %arg0, %c512_i32 : i32
    %13 = tpu.iota {dimensions = array<i32: 0>} : vector<512x256xi32>
    %14 = vector.broadcast %12 : i32 to vector<512x256xi32>
    %15 = arith.addi %14, %13 : vector<512x256xi32>
    %c768_i32 = arith.constant 768 : i32
    %16 = vector.broadcast %c768_i32 : i32 to vector<512x256xi32>
    %17 = arith.cmpi slt, %15, %16 : vector<512x256xi32>
    %cst_8 = arith.constant 0.000000e+00 : f32
    %18 = vector.broadcast %cst_8 : f32 to vector<512x256xf32>
    %19 = arith.select %17, %11, %18 : vector<512x256xi1>, vector<512x256xf32>
    %c0_9 = arith.constant 0 : index
    %c0_10 = arith.constant 0 : index
    %20 = vector.load %arg6[%c0_9, %c0_10] : memref<1x256xf32, #tpu.memory_space<vmem>>, vector<1x256xf32>
    %cst_11 = arith.constant dense<0.000000e+00> : vector<256xf32>
    %21 = vector.multi_reduction <add>, %19, %cst_11 [0] : vector<512x256xf32> to vector<256xf32>
    %22 = vector.shape_cast %21 : vector<256xf32> to vector<1x256xf32>
    %23 = arith.addf %20, %22 : vector<1x256xf32>
    %c0_12 = arith.constant 0 : index
    %c0_13 = arith.constant 0 : index
    %24 = vector.load %arg6[%c0_12, %c0_13] : memref<1x256xf32, #tpu.memory_space<vmem>>, vector<1x256xf32>
    tpu.vector_store %arg6[%c0_12, %c0_13], %23 {strides = array<i32>} : memref<1x256xf32, #tpu.memory_space<vmem>>, vector<1x256xf32>,
    %c0_14 = arith.constant 0 : index
    %c0_15 = arith.constant 0 : index
    %25 = vector.load %arg7[%c0_14, %c0_15] : memref<1x256xf32, #tpu.memory_space<vmem>>, vector<1x256xf32>
    %26 = arith.mulf %19, %19 : vector<512x256xf32>
    %cst_16 = arith.constant dense<0.000000e+00> : vector<256xf32>
    %27 = vector.multi_reduction <add>, %26, %cst_16 [0] : vector<512x256xf32> to vector<256xf32>
    %28 = vector.shape_cast %27 : vector<256xf32> to vector<1x256xf32>
    %29 = arith.addf %25, %28 : vector<1x256xf32>
    %c0_17 = arith.constant 0 : index
    %c0_18 = arith.constant 0 : index
    %30 = vector.load %arg7[%c0_17, %c0_18] : memref<1x256xf32, #tpu.memory_space<vmem>>, vector<1x256xf32>
    tpu.vector_store %arg7[%c0_17, %c0_18], %29 {strides = array<i32>} : memref<1x256xf32, #tpu.memory_space<vmem>>, vector<1x256xf32>,
    %c1_i32 = arith.constant 1 : i32
    %31 = arith.cmpi eq, %arg0, %c1_i32 : i32
    %32 = arith.extui %31 : i1 to i32
    %c0_i32_19 = arith.constant 0 : i32
    %33 = arith.cmpi ne, %32, %c0_i32_19 : i32
    scf.if %33 {
      %c0_20 = arith.constant 0 : index
      %c0_21 = arith.constant 0 : index
      %34 = vector.load %arg6[%c0_20, %c0_21] : memref<1x256xf32, #tpu.memory_space<vmem>>, vector<1x256xf32>
      %cst_22 = arith.constant 0.00130208337 : f32
      %35 = vector.broadcast %cst_22 : f32 to vector<1x256xf32>
      %36 = arith.mulf %34, %35 : vector<1x256xf32>
      %c0_23 = arith.constant 0 : index
      %c0_24 = arith.constant 0 : index
      %37 = vector.load %arg7[%c0_23, %c0_24] : memref<1x256xf32, #tpu.memory_space<vmem>>, vector<1x256xf32>
      %cst_25 = arith.constant 0.00130208337 : f32
      %38 = vector.broadcast %cst_25 : f32 to vector<1x256xf32>
      %39 = arith.mulf %37, %38 : vector<1x256xf32>
      %40 = arith.mulf %36, %36 : vector<1x256xf32>
      %41 = arith.subf %39, %40 : vector<1x256xf32>
      %cst_26 = arith.constant 0.000000e+00 : f32
      %42 = vector.broadcast %cst_26 : f32 to vector<1x256xf32>
      %43 = arith.maximumf %41, %42 : vector<1x256xf32>
      %cst_27 = arith.constant 9.99999974E-6 : f32
      %44 = vector.broadcast %cst_27 : f32 to vector<1x256xf32>
      %45 = arith.addf %43, %44 : vector<1x256xf32>
      %46 = math.rsqrt %45 : vector<1x256xf32>
      %47 = tpu.concatenate %36, %46 in 0 : vector<1x256xf32>, vector<1x256xf32> -> vector<2x256xf32>
      %c0_28 = arith.constant 0 : index
      %c0_29 = arith.constant 0 : index
      %48 = vector.load %arg5[%c0_28, %c0_29] : memref<2x256xf32, #tpu.memory_space<vmem>>, vector<2x256xf32>
      tpu.vector_store %arg5[%c0_28, %c0_29], %47 {strides = array<i32>} : memref<2x256xf32, #tpu.memory_space<vmem>>, vector<2x256xf32>,
    } else {
    }
    return
  }
  func.func @transform_0(%arg0: i32) -> (i32, i32) {
    %c0_i32 = arith.constant 0 : i32
    %c0_i32_0 = arith.constant 0 : i32
    return %arg0, %c0_i32 : i32, i32
  }
  func.func @transform_1(%arg0: i32) -> (i32, i32) {
    %c0_i32 = arith.constant 0 : i32
    %c0_i32_0 = arith.constant 0 : i32
    %c0_i32_1 = arith.constant 0 : i32
    return %c0_i32, %c0_i32_0 : i32, i32
  }
  func.func @transform_2(%arg0: i32) -> (i32, i32) {
    %c0_i32 = arith.constant 0 : i32
    %c0_i32_0 = arith.constant 0 : i32
    %c0_i32_1 = arith.constant 0 : i32
    return %c0_i32, %c0_i32_0 : i32, i32
  }
  func.func @transform_3(%arg0: i32) -> (i32, i32) {
    %c0_i32 = arith.constant 0 : i32
    %c0_i32_0 = arith.constant 0 : i32
    return %arg0, %c0_i32 : i32, i32
  }
  func.func @transform_4(%arg0: i32) -> (i32, i32) {
    %c0_i32 = arith.constant 0 : i32
    %c0_i32_0 = arith.constant 0 : i32
    %c0_i32_1 = arith.constant 0 : i32
    return %c0_i32, %c0_i32_0 : i32, i32
  }
}

module attributes {stable_mosaic.version = 11 : i64} {
  func.func @vae_fwd_kernel(%arg0: i32, %arg1: memref<512x256xbf16, #tpu.memory_space<vmem>>, %arg2: memref<512x32xf32, #tpu.memory_space<vmem>>, %arg3: memref<2x256xf32, #tpu.memory_space<vmem>>, %arg4: memref<256x128xbf16, #tpu.memory_space<vmem>>, %arg5: memref<1x128xf32, #tpu.memory_space<vmem>>, %arg6: memref<128x128xbf16, #tpu.memory_space<vmem>>, %arg7: memref<1x128xf32, #tpu.memory_space<vmem>>, %arg8: memref<32x128xbf16, #tpu.memory_space<vmem>>, %arg9: memref<1x128xf32, #tpu.memory_space<vmem>>, %arg10: memref<128x256xbf16, #tpu.memory_space<vmem>>, %arg11: memref<1x256xf32, #tpu.memory_space<vmem>>, %arg12: memref<256x512xbf16, #tpu.memory_space<vmem>>, %arg13: memref<1x512xf32, #tpu.memory_space<vmem>>, %arg14: memref<512x512xf32, #tpu.memory_space<vmem>>, %arg15: memref<512x128xf32, #tpu.memory_space<vmem>>) attributes {dimension_semantics = [#tpu.dimension_semantics<parallel>], iteration_bounds = array<i64: 2>, scalar_prefetch = 0 : i64, scratch_operands = 0 : i64, tpu.core_type = #tpu.core_type<tc>, window_params = [{transform_indices = @transform_0, window_bounds = array<i64: 512, 256>}, {transform_indices = @transform_1, window_bounds = array<i64: 512, 32>}, {pipeline_mode = #tpu.pipeline_mode<synchronous>, transform_indices = @transform_2, window_bounds = array<i64: 2, 256>}, {pipeline_mode = #tpu.pipeline_mode<synchronous>, transform_indices = @transform_3, window_bounds = array<i64: 256, 128>}, {pipeline_mode = #tpu.pipeline_mode<synchronous>, transform_indices = @transform_4, window_bounds = array<i64: 1, 128>}, {pipeline_mode = #tpu.pipeline_mode<synchronous>, transform_indices = @transform_5, window_bounds = array<i64: 128, 128>}, {pipeline_mode = #tpu.pipeline_mode<synchronous>, transform_indices = @transform_6, window_bounds = array<i64: 1, 128>}, {pipeline_mode = #tpu.pipeline_mode<synchronous>, transform_indices = @transform_7, window_bounds = array<i64: 32, 128>}, {pipeline_mode = #tpu.pipeline_mode<synchronous>, transform_indices = @transform_8, window_bounds = array<i64: 1, 128>}, {pipeline_mode = #tpu.pipeline_mode<synchronous>, transform_indices = @transform_9, window_bounds = array<i64: 128, 256>}, {pipeline_mode = #tpu.pipeline_mode<synchronous>, transform_indices = @transform_10, window_bounds = array<i64: 1, 256>}, {pipeline_mode = #tpu.pipeline_mode<synchronous>, transform_indices = @transform_11, window_bounds = array<i64: 256, 512>}, {pipeline_mode = #tpu.pipeline_mode<synchronous>, transform_indices = @transform_12, window_bounds = array<i64: 1, 512>}, {transform_indices = @transform_13, window_bounds = array<i64: 512, 512>}, {transform_indices = @transform_14, window_bounds = array<i64: 512, 128>}]} {
    %c0 = arith.constant 0 : index
    %c0_0 = arith.constant 0 : index
    %0 = vector.load %arg1[%c0, %c0_0] : memref<512x256xbf16, #tpu.memory_space<vmem>>, vector<512x256xbf16>
    %1 = arith.extf %0 : vector<512x256xbf16> to vector<512x256xf32>
    %c0_1 = arith.constant 0 : index
    %c0_2 = arith.constant 0 : index
    %2 = vector.load %arg3[%c0_1, %c0_2] : memref<2x256xf32, #tpu.memory_space<vmem>>, vector<1x256xf32>
    %c1 = arith.constant 1 : index
    %c0_3 = arith.constant 0 : index
    %3 = vector.load %arg3[%c1, %c0_3] : memref<2x256xf32, #tpu.memory_space<vmem>>, vector<1x256xf32>
    %4 = vector.broadcast %2 : vector<1x256xf32> to vector<512x256xf32>
    %5 = arith.subf %1, %4 : vector<512x256xf32>
    %6 = vector.broadcast %3 : vector<1x256xf32> to vector<512x256xf32>
    %7 = arith.mulf %5, %6 : vector<512x256xf32>
    %cst = arith.constant 0.000000e+00 : f32
    %8 = vector.broadcast %cst : f32 to vector<512x256xf32>
    %9 = arith.cmpf oge, %7, %8 : vector<512x256xf32>
    %cst_4 = arith.constant 0.00999999977 : f32
    %10 = vector.broadcast %cst_4 : f32 to vector<512x256xf32>
    %11 = arith.mulf %10, %7 : vector<512x256xf32>
    %12 = arith.select %9, %7, %11 : vector<512x256xi1>, vector<512x256xf32>
    %c0_5 = arith.constant 0 : index
    %c0_6 = arith.constant 0 : index
    %13 = vector.load %arg4[%c0_5, %c0_6] : memref<256x128xbf16, #tpu.memory_space<vmem>>, vector<256x128xbf16>
    %14 = arith.truncf %12 : vector<512x256xf32> to vector<512x256xbf16>
    %cst_7 = arith.constant dense<0.000000e+00> : vector<512x128xf32>
    %15 = tpu.matmul %14, %13, %cst_7 {dimension_numbers = #tpu.dot_dimension_numbers<[1], [0], [0], [1], [0, 0, 1, 1], [], []>} : vector<512x256xbf16>, vector<256x128xbf16>, vector<512x128xf32> -> vector<512x128xf32>
    %c0_8 = arith.constant 0 : index
    %c0_9 = arith.constant 0 : index
    %16 = vector.load %arg5[%c0_8, %c0_9] : memref<1x128xf32, #tpu.memory_space<vmem>>, vector<1x128xf32>
    %17 = vector.broadcast %16 : vector<1x128xf32> to vector<512x128xf32>
    %18 = arith.addf %15, %17 : vector<512x128xf32>
    %c0_10 = arith.constant 0 : index
    %c0_11 = arith.constant 0 : index
    %19 = vector.load %arg6[%c0_10, %c0_11] : memref<128x128xbf16, #tpu.memory_space<vmem>>, vector<128x128xbf16>
    %20 = arith.truncf %18 : vector<512x128xf32> to vector<512x128xbf16>
    %cst_12 = arith.constant dense<0.000000e+00> : vector<512x128xf32>
    %21 = tpu.matmul %20, %19, %cst_12 {dimension_numbers = #tpu.dot_dimension_numbers<[1], [0], [0], [1], [0, 0, 1, 1], [], []>} : vector<512x128xbf16>, vector<128x128xbf16>, vector<512x128xf32> -> vector<512x128xf32>
    %c0_13 = arith.constant 0 : index
    %c0_14 = arith.constant 0 : index
    %22 = vector.load %arg7[%c0_13, %c0_14] : memref<1x128xf32, #tpu.memory_space<vmem>>, vector<1x128xf32>
    %23 = vector.broadcast %22 : vector<1x128xf32> to vector<512x128xf32>
    %24 = arith.addf %21, %23 : vector<512x128xf32>
    %25 = vector.extract_strided_slice %24 {offsets = [0, 0], sizes = [512, 32], strides = [1, 1]} : vector<512x128xf32> to vector<512x32xf32>
    %26 = vector.extract_strided_slice %24 {offsets = [0, 32], sizes = [512, 32], strides = [1, 1]} : vector<512x128xf32> to vector<512x32xf32>
    %c0_15 = arith.constant 0 : index
    %c0_16 = arith.constant 0 : index
    %27 = vector.load %arg2[%c0_15, %c0_16] : memref<512x32xf32, #tpu.memory_space<vmem>>, vector<512x32xf32>
    %cst_17 = arith.constant 5.000000e-01 : f32
    %28 = vector.broadcast %cst_17 : f32 to vector<512x32xf32>
    %29 = arith.mulf %28, %26 : vector<512x32xf32>
    %30 = math.exp %29 : vector<512x32xf32>
    %31 = arith.mulf %27, %30 : vector<512x32xf32>
    %32 = arith.addf %31, %25 : vector<512x32xf32>
    %33 = arith.mulf %32, %32 : vector<512x32xf32>
    %cst_18 = arith.constant dense<0.000000e+00> : vector<512xf32>
    %34 = vector.multi_reduction <add>, %33, %cst_18 [1] : vector<512x32xf32> to vector<512xf32>
    %35 = vector.shape_cast %34 : vector<512xf32> to vector<512x1xf32>
    %36 = math.rsqrt %35 : vector<512x1xf32>
    %37 = vector.broadcast %36 : vector<512x1xf32> to vector<512x32xf32>
    %38 = arith.mulf %32, %37 : vector<512x32xf32>
    %c0_19 = arith.constant 0 : index
    %c0_20 = arith.constant 0 : index
    %39 = vector.load %arg8[%c0_19, %c0_20] : memref<32x128xbf16, #tpu.memory_space<vmem>>, vector<32x128xbf16>
    %40 = arith.truncf %38 : vector<512x32xf32> to vector<512x32xbf16>
    %cst_21 = arith.constant dense<0.000000e+00> : vector<512x128xf32>
    %41 = tpu.matmul %40, %39, %cst_21 {dimension_numbers = #tpu.dot_dimension_numbers<[1], [0], [0], [1], [0, 0, 1, 1], [], []>} : vector<512x32xbf16>, vector<32x128xbf16>, vector<512x128xf32> -> vector<512x128xf32>
    %c0_22 = arith.constant 0 : index
    %c0_23 = arith.constant 0 : index
    %42 = vector.load %arg9[%c0_22, %c0_23] : memref<1x128xf32, #tpu.memory_space<vmem>>, vector<1x128xf32>
    %43 = vector.broadcast %42 : vector<1x128xf32> to vector<512x128xf32>
    %44 = arith.addf %41, %43 : vector<512x128xf32>
    %cst_24 = arith.constant 0.000000e+00 : f32
    %45 = vector.broadcast %cst_24 : f32 to vector<512x128xf32>
    %46 = arith.cmpf oge, %44, %45 : vector<512x128xf32>
    %cst_25 = arith.constant 0.00999999977 : f32
    %47 = vector.broadcast %cst_25 : f32 to vector<512x128xf32>
    %48 = arith.mulf %47, %44 : vector<512x128xf32>
    %49 = arith.select %46, %44, %48 : vector<512x128xi1>, vector<512x128xf32>
    %c0_26 = arith.constant 0 : index
    %c0_27 = arith.constant 0 : index
    %50 = vector.load %arg10[%c0_26, %c0_27] : memref<128x256xbf16, #tpu.memory_space<vmem>>, vector<128x256xbf16>
    %51 = arith.truncf %49 : vector<512x128xf32> to vector<512x128xbf16>
    %cst_28 = arith.constant dense<0.000000e+00> : vector<512x256xf32>
    %52 = tpu.matmul %51, %50, %cst_28 {dimension_numbers = #tpu.dot_dimension_numbers<[1], [0], [0], [1], [0, 0, 1, 1], [], []>} : vector<512x128xbf16>, vector<128x256xbf16>, vector<512x256xf32> -> vector<512x256xf32>
    %c0_29 = arith.constant 0 : index
    %c0_30 = arith.constant 0 : index
    %53 = vector.load %arg11[%c0_29, %c0_30] : memref<1x256xf32, #tpu.memory_space<vmem>>, vector<1x256xf32>
    %54 = vector.broadcast %53 : vector<1x256xf32> to vector<512x256xf32>
    %55 = arith.addf %52, %54 : vector<512x256xf32>
    %cst_31 = arith.constant 0.000000e+00 : f32
    %56 = vector.broadcast %cst_31 : f32 to vector<512x256xf32>
    %57 = arith.cmpf oge, %55, %56 : vector<512x256xf32>
    %cst_32 = arith.constant 0.00999999977 : f32
    %58 = vector.broadcast %cst_32 : f32 to vector<512x256xf32>
    %59 = arith.mulf %58, %55 : vector<512x256xf32>
    %60 = arith.select %57, %55, %59 : vector<512x256xi1>, vector<512x256xf32>
    %c0_33 = arith.constant 0 : index
    %c0_34 = arith.constant 0 : index
    %61 = vector.load %arg12[%c0_33, %c0_34] : memref<256x512xbf16, #tpu.memory_space<vmem>>, vector<256x512xbf16>
    %62 = arith.truncf %60 : vector<512x256xf32> to vector<512x256xbf16>
    %cst_35 = arith.constant dense<0.000000e+00> : vector<512x512xf32>
    %63 = tpu.matmul %62, %61, %cst_35 {dimension_numbers = #tpu.dot_dimension_numbers<[1], [0], [0], [1], [0, 0, 1, 1], [], []>} : vector<512x256xbf16>, vector<256x512xbf16>, vector<512x512xf32> -> vector<512x512xf32>
    %c0_36 = arith.constant 0 : index
    %c0_37 = arith.constant 0 : index
    %64 = vector.load %arg13[%c0_36, %c0_37] : memref<1x512xf32, #tpu.memory_space<vmem>>, vector<1x512xf32>
    %65 = vector.broadcast %64 : vector<1x512xf32> to vector<512x512xf32>
    %66 = arith.addf %63, %65 : vector<512x512xf32>
    %67 = arith.mulf %66, %66 : vector<512x512xf32>
    %cst_38 = arith.constant dense<0.000000e+00> : vector<512xf32>
    %68 = vector.multi_reduction <add>, %67, %cst_38 [1] : vector<512x512xf32> to vector<512xf32>
    %69 = vector.shape_cast %68 : vector<512xf32> to vector<512x1xf32>
    %70 = math.rsqrt %69 : vector<512x1xf32>
    %71 = vector.broadcast %70 : vector<512x1xf32> to vector<512x512xf32>
    %72 = arith.mulf %66, %71 : vector<512x512xf32>
    %c0_39 = arith.constant 0 : index
    %c0_40 = arith.constant 0 : index
    %73 = vector.load %arg14[%c0_39, %c0_40] : memref<512x512xf32, #tpu.memory_space<vmem>>, vector<512x512xf32>
    tpu.vector_store %arg14[%c0_39, %c0_40], %72 {strides = array<i32>} : memref<512x512xf32, #tpu.memory_space<vmem>>, vector<512x512xf32>,
    %c0_41 = arith.constant 0 : index
    %c0_42 = arith.constant 0 : index
    %74 = vector.load %arg15[%c0_41, %c0_42] : memref<512x128xf32, #tpu.memory_space<vmem>>, vector<512x128xf32>
    tpu.vector_store %arg15[%c0_41, %c0_42], %24 {strides = array<i32>} : memref<512x128xf32, #tpu.memory_space<vmem>>, vector<512x128xf32>,
    return
  }
  func.func @transform_0(%arg0: i32) -> (i32, i32) {
    %c0_i32 = arith.constant 0 : i32
    %c0_i32_0 = arith.constant 0 : i32
    return %arg0, %c0_i32 : i32, i32
  }
  func.func @transform_1(%arg0: i32) -> (i32, i32) {
    %c0_i32 = arith.constant 0 : i32
    %c0_i32_0 = arith.constant 0 : i32
    return %arg0, %c0_i32 : i32, i32
  }
  func.func @transform_2(%arg0: i32) -> (i32, i32) {
    %c0_i32 = arith.constant 0 : i32
    %c0_i32_0 = arith.constant 0 : i32
    %c0_i32_1 = arith.constant 0 : i32
    return %c0_i32, %c0_i32_0 : i32, i32
  }
  func.func @transform_3(%arg0: i32) -> (i32, i32) {
    %c0_i32 = arith.constant 0 : i32
    %c0_i32_0 = arith.constant 0 : i32
    %c0_i32_1 = arith.constant 0 : i32
    return %c0_i32, %c0_i32_0 : i32, i32
  }
  func.func @transform_4(%arg0: i32) -> (i32, i32) {
    %c0_i32 = arith.constant 0 : i32
    %c0_i32_0 = arith.constant 0 : i32
    %c0_i32_1 = arith.constant 0 : i32
    return %c0_i32, %c0_i32_0 : i32, i32
  }
  func.func @transform_5(%arg0: i32) -> (i32, i32) {
    %c0_i32 = arith.constant 0 : i32
    %c0_i32_0 = arith.constant 0 : i32
    %c0_i32_1 = arith.constant 0 : i32
    return %c0_i32, %c0_i32_0 : i32, i32
  }
  func.func @transform_6(%arg0: i32) -> (i32, i32) {
    %c0_i32 = arith.constant 0 : i32
    %c0_i32_0 = arith.constant 0 : i32
    %c0_i32_1 = arith.constant 0 : i32
    return %c0_i32, %c0_i32_0 : i32, i32
  }
  func.func @transform_7(%arg0: i32) -> (i32, i32) {
    %c0_i32 = arith.constant 0 : i32
    %c0_i32_0 = arith.constant 0 : i32
    %c0_i32_1 = arith.constant 0 : i32
    return %c0_i32, %c0_i32_0 : i32, i32
  }
  func.func @transform_8(%arg0: i32) -> (i32, i32) {
    %c0_i32 = arith.constant 0 : i32
    %c0_i32_0 = arith.constant 0 : i32
    %c0_i32_1 = arith.constant 0 : i32
    return %c0_i32, %c0_i32_0 : i32, i32
  }
  func.func @transform_9(%arg0: i32) -> (i32, i32) {
    %c0_i32 = arith.constant 0 : i32
    %c0_i32_0 = arith.constant 0 : i32
    %c0_i32_1 = arith.constant 0 : i32
    return %c0_i32, %c0_i32_0 : i32, i32
  }
  func.func @transform_10(%arg0: i32) -> (i32, i32) {
    %c0_i32 = arith.constant 0 : i32
    %c0_i32_0 = arith.constant 0 : i32
    %c0_i32_1 = arith.constant 0 : i32
    return %c0_i32, %c0_i32_0 : i32, i32
  }
  func.func @transform_11(%arg0: i32) -> (i32, i32) {
    %c0_i32 = arith.constant 0 : i32
    %c0_i32_0 = arith.constant 0 : i32
    %c0_i32_1 = arith.constant 0 : i32
    return %c0_i32, %c0_i32_0 : i32, i32
  }
  func.func @transform_12(%arg0: i32) -> (i32, i32) {
    %c0_i32 = arith.constant 0 : i32
    %c0_i32_0 = arith.constant 0 : i32
    %c0_i32_1 = arith.constant 0 : i32
    return %c0_i32, %c0_i32_0 : i32, i32
  }
  func.func @transform_13(%arg0: i32) -> (i32, i32) {
    %c0_i32 = arith.constant 0 : i32
    %c0_i32_0 = arith.constant 0 : i32
    return %arg0, %c0_i32 : i32, i32
  }
  func.func @transform_14(%arg0: i32) -> (i32, i32) {
    %c0_i32 = arith.constant 0 : i32
    %c0_i32_0 = arith.constant 0 : i32
    return %arg0, %c0_i32 : i32, i32
  }
}

</mosaic_0001>

<llo_original>
// kernel: vae_forward.2
$region0: #{vae_forward.2}
  #allocation0 [shape = 'u32[]', space=smem, size = 0x4, offset = 0x4, fixed_abs, tag = 'smem constant byte address 0x4 - core index']
  #allocation1 [shape = 'u32[144,128]{1,0:T(1,128)}', space=vmem, size = 0x12000, scoped, tag = 'internal scratch']
  #allocation2 [shape = 'f32[1,256]{1,0:T(1,128)}', space=vmem, size = 0x400, scoped, tag = 'scratch operand']
  #allocation3 [shape = 'f32[1,256]{1,0:T(1,128)}', space=vmem, size = 0x400, scoped, tag = 'scratch operand']
  %s0 = inlined_call_operand.vmem [shape: bf16[1024,512], index: 0, kind: input, shape index: {}]
  %s1 = inlined_call_operand.vmem [shape: bf16[512,256], index: 1, kind: input, shape index: {}]
  %s2 = inlined_call_operand.vmem [shape: f32[1,256], index: 2, kind: input, shape index: {}]
  %s3 = inlined_call_operand.vmem [shape: bf16[1024,256], index: 3, kind: output, shape index: {0}]
  %s4 = inlined_call_operand.vmem [shape: f32[2,256], index: 4, kind: output, shape index: {1}]
  %5 = xla_tuple %s3, %s4
  %s6 = sld [smem:[#allocation0]]
  $region61: #{vae_forward.2} parent=0
    _
  %s8 = ssub.s32 1, %s6
  %s9 = scalar_select 0, %s8, %s6
  loop: start=0, step=1, limit=4
  $region2: #{vae_forward.2} parent=0 // loop_pre_header
    _
  $region3: #{vae_forward.2} parent=0 // loop_header
    %s11 = sphi 0, %s15
    %p12 = scmp.ge.s32.totalorder %s11, 4
    %s21 = sphi 0, %s23
    %s24 = sphi 0, %s21
    %s25 = sphi 0, %s24
    %s41 = sphi 0, %s25
    %s45 = sphi 0, %s45
    %s47 = sphi 0, %s45
    %s48 = sphi 0, %s47
    %s62 = sphi 0, %s48
    %s66 = sphi 0, %s66
    %s68 = sphi 0, %s66
    %s69 = sphi 0, %s68
    %s83 = sphi 0, %s69
    %s89 = sphi 0, %s91
    %s92 = sphi 0, %s89
    %s93 = sphi 0, %s92
    %s109 = sphi 0, %s93
    %s113 = sphi 0, %s113
    %s115 = sphi 0, %s113
    %s116 = sphi 0, %s115
    %s130 = sphi 0, %s116
  $region4: #{vae_forward.2} parent=0 // loop_header_branch
    %14 = sbr.rel (%p12) target = $region8
  $region5: #{vae_forward.2} parent=0 // loop_body
    %s16 = ssub.s32 %s11, 1
    %s17 = ssub.s32 %s11, 2
    %s18 = sadd.s32 %s11, 1
    %s19 = ssub.s32 %s11, %s18
    %p20 = scmp.eq.s32.totalorder %s19, 0
    %s22 = sadd.s32 %s21, 1
    %s23 = scalar_select %p20, %s21, %s22
    %p26 = pneg %p20
    %p27 = scmp.eq.s32.totalorder %s11, 1
    %p28 = por %p26, %p27
    %p29 = scmp.ne.s32.totalorder %s21, %s24
    %p30 = scmp.eq.s32.totalorder %s11, 0
    %p31 = por %p29, %p30
    %p32 = scmp.ne.s32.totalorder %s21, %s24
    %p33 = scmp.eq.s32.totalorder %s16, 1
    %p34 = por %p32, %p33
    %p35 = scmp.ne.s32.totalorder %s24, %s25
    %p36 = scmp.eq.s32.totalorder %s16, 0
    %p37 = por %p35, %p36
    %p38 = scmp.ne.s32.totalorder %s24, %s25
    %p39 = scmp.eq.s32.totalorder %s17, 1
    %p40 = por %p38, %p39
    %p42 = scmp.ne.s32.totalorder %s25, %s41
    %p43 = scmp.eq.s32.totalorder %s17, 0
    %p44 = por %p42, %p43
    %s46 = sadd.s32 %s45, 1
    %p49 = scmp.eq.s32.totalorder %s11, 1
    %p50 = scmp.ne.s32.totalorder %s45, %s47
    %p51 = scmp.eq.s32.totalorder %s11, 0
    %p52 = por %p50, %p51
    %p53 = scmp.ne.s32.totalorder %s45, %s47
    %p54 = scmp.eq.s32.totalorder %s16, 1
    %p55 = por %p53, %p54
    %p56 = scmp.ne.s32.totalorder %s47, %s48
    %p57 = scmp.eq.s32.totalorder %s16, 0
    %p58 = por %p56, %p57
    %p59 = scmp.ne.s32.totalorder %s47, %s48
    %p60 = scmp.eq.s32.totalorder %s17, 1
    %p61 = por %p59, %p60
    %p63 = scmp.ne.s32.totalorder %s48, %s62
    %p64 = scmp.eq.s32.totalorder %s17, 0
    %p65 = por %p63, %p64
    %s67 = sadd.s32 %s66, 1
    %p70 = scmp.eq.s32.totalorder %s11, 1
    %p71 = scmp.ne.s32.totalorder %s66, %s68
    %p72 = scmp.eq.s32.totalorder %s11, 0
    %p73 = por %p71, %p72
    %p74 = scmp.ne.s32.totalorder %s66, %s68
    %p75 = scmp.eq.s32.totalorder %s16, 1
    %p76 = por %p74, %p75
    %p77 = scmp.ne.s32.totalorder %s68, %s69
    %p78 = scmp.eq.s32.totalorder %s16, 0
    %p79 = por %p77, %p78
    %p80 = scmp.ne.s32.totalorder %s68, %s69
    %p81 = scmp.eq.s32.totalorder %s17, 1
    %p82 = por %p80, %p81
    %p84 = scmp.ne.s32.totalorder %s69, %s83
    %p85 = scmp.eq.s32.totalorder %s17, 0
    %p86 = por %p84, %p85
    %s87 = ssub.s32 %s11, %s18
    %p88 = scmp.eq.s32.totalorder %s87, 0
    %s90 = sadd.s32 %s89, 1
    %s91 = scalar_select %p88, %s89, %s90
    %p94 = pneg %p88
    %p95 = scmp.eq.s32.totalorder %s11, 1
    %p96 = por %p94, %p95
    %p97 = scmp.ne.s32.totalorder %s89, %s92
    %p98 = scmp.eq.s32.totalorder %s11, 0
    %p99 = por %p97, %p98
    %p100 = scmp.ne.s32.totalorder %s89, %s92
    %p101 = scmp.eq.s32.totalorder %s16, 1
    %p102 = por %p100, %p101
    %p103 = scmp.ne.s32.totalorder %s92, %s93
    %p104 = scmp.eq.s32.totalorder %s16, 0
    %p105 = por %p103, %p104
    %p106 = scmp.ne.s32.totalorder %s92, %s93
    %p107 = scmp.eq.s32.totalorder %s17, 1
    %p108 = por %p106, %p107
    %p110 = scmp.ne.s32.totalorder %s93, %s109
    %p111 = scmp.eq.s32.totalorder %s17, 0
    %p112 = por %p110, %p111
    %s114 = sadd.s32 %s113, 1
    %p117 = scmp.eq.s32.totalorder %s11, 1
    %p118 = scmp.ne.s32.totalorder %s113, %s115
    %p119 = scmp.eq.s32.totalorder %s11, 0
    %p120 = por %p118, %p119
    %p121 = scmp.ne.s32.totalorder %s113, %s115
    %p122 = scmp.eq.s32.totalorder %s16, 1
    %p123 = por %p121, %p122
    %p124 = scmp.ne.s32.totalorder %s115, %s116
    %p125 = scmp.eq.s32.totalorder %s16, 0
    %p126 = por %p124, %p125
    %p127 = scmp.ne.s32.totalorder %s115, %s116
    %p128 = scmp.eq.s32.totalorder %s17, 1
    %p129 = por %p127, %p128
    %p131 = scmp.ne.s32.totalorder %s116, %s130
    %p132 = scmp.eq.s32.totalorder %s17, 0
    %p133 = por %p131, %p132
    %p134 = scmp.le.s32.totalorder 1, %s11
    %p135 = scmp.lt.s32.totalorder %s11, 3
    %p136 = pnand %p134, %p135
    %p137 = pneg %p136
    // Predicated region
    $region9: #{vae_forward.2} parent=5 // pred_check
      _
    $region10: #{vae_forward.2} parent=5 // pred_check_branch
      %139 = sbr.rel (%p136) target = $region12
    $region11: #{vae_forward.2} parent=5 // pred_region
      %s140 = ssub.s32 %s11, 1
      // Predicated region
      $region13: #{vae_forward.2} parent=11 // pred_check
        %p141 = pneg %p58
      $region14: #{vae_forward.2} parent=11 // pred_check_branch
        %143 = sbr.rel (%p141) target = $region16
      $region15: #{vae_forward.2} parent=11 // pred_region
        _
      $region16: #{vae_forward.2} parent=11 // pred_fallthru
        _
      // Predicated region
      $region17: #{vae_forward.2} parent=11 // pred_check
        %p144 = pneg %p79
      $region18: #{vae_forward.2} parent=11 // pred_check_branch
        %146 = sbr.rel (%p144) target = $region20
      $region19: #{vae_forward.2} parent=11 // pred_region
        _
      $region20: #{vae_forward.2} parent=11 // pred_fallthru
        _
    $region12: #{vae_forward.2} parent=5 // pred_fallthru
      _
    %p147 = scmp.lt.s32.totalorder %s11, 2
    // Predicated region
    $region21: #{vae_forward.2} parent=5 // pred_check
      %p148 = pneg %p147
    $region22: #{vae_forward.2} parent=5 // pred_check_branch
      %150 = sbr.rel (%p148) target = $region24
    $region23: #{vae_forward.2} parent=5 // pred_region
      // Predicated region
      $region25: #{vae_forward.2} parent=23 // pred_check
        %p151 = pneg %p31
      $region26: #{vae_forward.2} parent=23 // pred_check_branch
        %153 = sbr.rel (%p151) target = $region28
      $region27: #{vae_forward.2} parent=23 // pred_region
        %s154 = smul.u32 64, %s11
        %p155 = scmp.lt.s32.totalorder %s154, 127
        %s156 = scalar_select %p155, %s154, 127
        %s157 = smul.addr %s156, 4
        %s158 = smul.addr %s157, 4
        %s159 = scalar_lea.vmem %s0, %s158
        %s160 = smul.u32 64, %s11
      $region28: #{vae_forward.2} parent=23 // pred_fallthru
        _
    $region24: #{vae_forward.2} parent=5 // pred_fallthru
      _
    %p161 = scmp.le.s32.totalorder 1, %s11
    %p162 = scmp.lt.s32.totalorder %s11, 3
    %p163 = pnand %p161, %p162
    %p164 = pneg %p163
    // Predicated region
    $region29: #{vae_forward.2} parent=5 // pred_check
      _
    $region30: #{vae_forward.2} parent=5 // pred_check_branch
      %166 = sbr.rel (%p163) target = $region32
    $region31: #{vae_forward.2} parent=5 // pred_region
      %s167 = ssub.s32 %s11, 1
      %s168 = smul.u32 64, %s16
      %p169 = scmp.lt.s32.totalorder %s168, 127
      %s170 = scalar_select %p169, %s168, 127
      %s171 = smul.addr %s170, 4
      %s172 = smul.addr %s171, 4
      %s173 = scalar_lea.vmem %s0, %s172
      %p174 = pneg %p37
      %p175 = pneg %p34
      %p176 = pneg %p58
      %p177 = pneg %p55
      %p178 = pneg %p79
      %p179 = pneg %p76
      %p180 = pneg %p105
      %p181 = pneg %p102
      %s182 = smul.u32 64, %s16
      %p183 = scmp.lt.s32.totalorder %s182, 127
      %s184 = scalar_select %p183, %s182, 127
      %s185 = smul.addr %s184, 2
      %s186 = smul.addr %s185, 4
      %s187 = scalar_lea.vmem %s3, %s186
      %p188 = pneg %p126
      %p189 = pneg %p123
      %s190 = smul.u32 64, %s16
      %p191 = scmp.lt.s32.totalorder %s190, 127
      %s192 = scalar_select %p191, %s190, 127
      %s193 = smul.addr %s192, 4
      %s194 = smul.addr %s193, 4
      %s195 = scalar_lea.vmem %s0, %s194
      %s196 = smul.u32 64, %s16
      %s197 = smul.u32 64, %s16
      %p198 = scmp.lt.s32.totalorder %s197, 127
      %s199 = scalar_select %p198, %s197, 127
      %s200 = smul.addr %s199, 2
      %s201 = smul.addr %s200, 4
      %s202 = scalar_lea.vmem %s3, %s201
      %s203 = smul.u32 64, %s16
      %p204 = scmp.eq.s32.totalorder %s16, 0
      // Predicated region
      $region33: #{vae_forward.2} parent=31 // pred_check
        %p205 = pneg %p204
      $region34: #{vae_forward.2} parent=31 // pred_check_branch
        %207 = sbr.rel (%p205) target = $region36
      $region35: #{vae_forward.2} parent=31 // pred_region
        %v208 = vlaneseq
        %vm209 = vcmp.ge.s32.totalorder %v208, 0
        %vm210 = vcmp.lt.s32.totalorder %v208, 256
        %vm211 = vmand %vm209, %vm210
        %212 = vst.msk [vmem:[#allocation2] sm:$0x3] %vm211, 0.0
        %213 = vst.msk [vmem:[#allocation3] sm:$0x3] %vm211, 0.0
      $region36: #{vae_forward.2} parent=31 // pred_fallthru
        _
      %v214 = vld [vmem:[%s195] sm:$0xff]
      %v215 = vld [vmem:[%s195 + $0x8] sm:$0xff]
      %v216 = vld [vmem:[%s195 + $0x10] sm:$0xff]
      %v217 = vld [vmem:[%s195 + $0x18] sm:$0xff]
      %v218 = vld [vmem:[%s195 + $0x20] sm:$0xff]
      %v219 = vld [vmem:[%s195 + $0x28] sm:$0xff]
      %v220 = vld [vmem:[%s195 + $0x30] sm:$0xff]
      %v221 = vld [vmem:[%s195 + $0x38] sm:$0xff]
      %v222 = vld [vmem:[%s195 + $0x40] sm:$0xff]
      %v223 = vld [vmem:[%s195 + $0x48] sm:$0xff]
      %v224 = vld [vmem:[%s195 + $0x50] sm:$0xff]
      %v225 = vld [vmem:[%s195 + $0x58] sm:$0xff]
      %v226 = vld [vmem:[%s195 + $0x60] sm:$0xff]
      %v227 = vld [vmem:[%s195 + $0x68] sm:$0xff]
      %v228 = vld [vmem:[%s195 + $0x70] sm:$0xff]
      %v229 = vld [vmem:[%s195 + $0x78] sm:$0xff]
      %v230 = vld [vmem:[%s195 + $0x80] sm:$0xff]
      %v231 = vld [vmem:[%s195 + $0x88] sm:$0xff]
      %v232 = vld [vmem:[%s195 + $0x90] sm:$0xff]
      %v233 = vld [vmem:[%s195 + $0x98] sm:$0xff]
      %v234 = vld [vmem:[%s195 + $0xa0] sm:$0xff]
      %v235 = vld [vmem:[%s195 + $0xa8] sm:$0xff]
      %v236 = vld [vmem:[%s195 + $0xb0] sm:$0xff]
      %v237 = vld [vmem:[%s195 + $0xb8] sm:$0xff]
      %v238 = vld [vmem:[%s195 + $0xc0] sm:$0xff]
      %v239 = vld [vmem:[%s195 + $0xc8] sm:$0xff]
      %v240 = vld [vmem:[%s195 + $0xd0] sm:$0xff]
      %v241 = vld [vmem:[%s195 + $0xd8] sm:$0xff]
      %v242 = vld [vmem:[%s195 + $0xe0] sm:$0xff]
      %v243 = vld [vmem:[%s195 + $0xe8] sm:$0xff]
      %v244 = vld [vmem:[%s195 + $0xf0] sm:$0xff]
      %v245 = vld [vmem:[%s195 + $0xf8] sm:$0xff]
      %v246 = vld [vmem:[%s195 + $0x100] sm:$0xff]
      %v247 = vld [vmem:[%s195 + $0x108] sm:$0xff]
      %v248 = vld [vmem:[%s195 + $0x110] sm:$0xff]
      %v249 = vld [vmem:[%s195 + $0x118] sm:$0xff]
      %v250 = vld [vmem:[%s195 + $0x120] sm:$0xff]
      %v251 = vld [vmem:[%s195 + $0x128] sm:$0xff]
      %v252 = vld [vmem:[%s195 + $0x130] sm:$0xff]
      %v253 = vld [vmem:[%s195 + $0x138] sm:$0xff]
      %v254 = vld [vmem:[%s195 + $0x140] sm:$0xff]
      %v255 = vld [vmem:[%s195 + $0x148] sm:$0xff]
      %v256 = vld [vmem:[%s195 + $0x150] sm:$0xff]
      %v257 = vld [vmem:[%s195 + $0x158] sm:$0xff]
      %v258 = vld [vmem:[%s195 + $0x160] sm:$0xff]
      %v259 = vld [vmem:[%s195 + $0x168] sm:$0xff]
      %v260 = vld [vmem:[%s195 + $0x170] sm:$0xff]
      %v261 = vld [vmem:[%s195 + $0x178] sm:$0xff]
      %v262 = vld [vmem:[%s195 + $0x180] sm:$0xff]
      %v263 = vld [vmem:[%s195 + $0x188] sm:$0xff]
      %v264 = vld [vmem:[%s195 + $0x190] sm:$0xff]
      %v265 = vld [vmem:[%s195 + $0x198] sm:$0xff]
      %v266 = vld [vmem:[%s195 + $0x1a0] sm:$0xff]
      %v267 = vld [vmem:[%s195 + $0x1a8] sm:$0xff]
      %v268 = vld [vmem:[%s195 + $0x1b0] sm:$0xff]
      %v269 = vld [vmem:[%s195 + $0x1b8] sm:$0xff]
      %v270 = vld [vmem:[%s195 + $0x1c0] sm:$0xff]
      %v271 = vld [vmem:[%s195 + $0x1c8] sm:$0xff]
      %v272 = vld [vmem:[%s195 + $0x1d0] sm:$0xff]
      %v273 = vld [vmem:[%s195 + $0x1d8] sm:$0xff]
      %v274 = vld [vmem:[%s195 + $0x1e0] sm:$0xff]
      %v275 = vld [vmem:[%s195 + $0x1e8] sm:$0xff]
      %v276 = vld [vmem:[%s195 + $0x1f0] sm:$0xff]
      %v277 = vld [vmem:[%s195 + $0x1f8] sm:$0xff]
      %v278 = vld [vmem:[%s195 + $0x200] sm:$0xff]
      %v279 = vld [vmem:[%s195 + $0x208] sm:$0xff]
      %v280 = vld [vmem:[%s195 + $0x210] sm:$0xff]
      %v281 = vld [vmem:[%s195 + $0x218] sm:$0xff]
      %v282 = vld [vmem:[%s195 + $0x220] sm:$0xff]
      %v283 = vld [vmem:[%s195 + $0x228] sm:$0xff]
      %v284 = vld [vmem:[%s195 + $0x230] sm:$0xff]
      %v285 = vld [vmem:[%s195 + $0x238] sm:$0xff]
      %v286 = vld [vmem:[%s195 + $0x240] sm:$0xff]
      %v287 = vld [vmem:[%s195 + $0x248] sm:$0xff]
      %v288 = vld [vmem:[%s195 + $0x250] sm:$0xff]
      %v289 = vld [vmem:[%s195 + $0x258] sm:$0xff]
      %v290 = vld [vmem:[%s195 + $0x260] sm:$0xff]
      %v291 = vld [vmem:[%s195 + $0x268] sm:$0xff]
      %v292 = vld [vmem:[%s195 + $0x270] sm:$0xff]
      %v293 = vld [vmem:[%s195 + $0x278] sm:$0xff]
      %v294 = vld [vmem:[%s195 + $0x280] sm:$0xff]
      %v295 = vld [vmem:[%s195 + $0x288] sm:$0xff]
      %v296 = vld [vmem:[%s195 + $0x290] sm:$0xff]
      %v297 = vld [vmem:[%s195 + $0x298] sm:$0xff]
      %v298 = vld [vmem:[%s195 + $0x2a0] sm:$0xff]
      %v299 = vld [vmem:[%s195 + $0x2a8] sm:$0xff]
      %v300 = vld [vmem:[%s195 + $0x2b0] sm:$0xff]
      %v301 = vld [vmem:[%s195 + $0x2b8] sm:$0xff]
      %v302 = vld [vmem:[%s195 + $0x2c0] sm:$0xff]
      %v303 = vld [vmem:[%s195 + $0x2c8] sm:$0xff]
      %v304 = vld [vmem:[%s195 + $0x2d0] sm:$0xff]
      %v305 = vld [vmem:[%s195 + $0x2d8] sm:$0xff]
      %v306 = vld [vmem:[%s195 + $0x2e0] sm:$0xff]
      %v307 = vld [vmem:[%s195 + $0x2e8] sm:$0xff]
      %v308 = vld [vmem:[%s195 + $0x2f0] sm:$0xff]
      %v309 = vld [vmem:[%s195 + $0x2f8] sm:$0xff]
      %v310 = vld [vmem:[%s195 + $0x300] sm:$0xff]
      %v311 = vld [vmem:[%s195 + $0x308] sm:$0xff]
      %v312 = vld [vmem:[%s195 + $0x310] sm:$0xff]
      %v313 = vld [vmem:[%s195 + $0x318] sm:$0xff]
      %v314 = vld [vmem:[%s195 + $0x320] sm:$0xff]
      %v315 = vld [vmem:[%s195 + $0x328] sm:$0xff]
      %v316 = vld [vmem:[%s195 + $0x330] sm:$0xff]
      %v317 = vld [vmem:[%s195 + $0x338] sm:$0xff]
      %v318 = vld [vmem:[%s195 + $0x340] sm:$0xff]
      %v319 = vld [vmem:[%s195 + $0x348] sm:$0xff]
      %v320 = vld [vmem:[%s195 + $0x350] sm:$0xff]
      %v321 = vld [vmem:[%s195 + $0x358] sm:$0xff]
      %v322 = vld [vmem:[%s195 + $0x360] sm:$0xff]
      %v323 = vld [vmem:[%s195 + $0x368] sm:$0xff]
      %v324 = vld [vmem:[%s195 + $0x370] sm:$0xff]
      %v325 = vld [vmem:[%s195 + $0x378] sm:$0xff]
      %v326 = vld [vmem:[%s195 + $0x380] sm:$0xff]
      %v327 = vld [vmem:[%s195 + $0x388] sm:$0xff]
      %v328 = vld [vmem:[%s195 + $0x390] sm:$0xff]
      %v329 = vld [vmem:[%s195 + $0x398] sm:$0xff]
      %v330 = vld [vmem:[%s195 + $0x3a0] sm:$0xff]
      %v331 = vld [vmem:[%s195 + $0x3a8] sm:$0xff]
      %v332 = vld [vmem:[%s195 + $0x3b0] sm:$0xff]
      %v333 = vld [vmem:[%s195 + $0x3b8] sm:$0xff]
      %v334 = vld [vmem:[%s195 + $0x3c0] sm:$0xff]
      %v335 = vld [vmem:[%s195 + $0x3c8] sm:$0xff]
      %v336 = vld [vmem:[%s195 + $0x3d0] sm:$0xff]
      %v337 = vld [vmem:[%s195 + $0x3d8] sm:$0xff]
      %v338 = vld [vmem:[%s195 + $0x3e0] sm:$0xff]
      %v339 = vld [vmem:[%s195 + $0x3e8] sm:$0xff]
      %v340 = vld [vmem:[%s195 + $0x3f0] sm:$0xff]
      %v341 = vld [vmem:[%s195 + $0x3f8] sm:$0xff]
      %v342 = vld [vmem:[%s1] sm:$0xff]
      %v343 = vld [vmem:[%s1 + $0x8] sm:$0xff]
      %v344 = vld [vmem:[%s1 + $0x10] sm:$0xff]
      %v345 = vld [vmem:[%s1 + $0x18] sm:$0xff]
      %v346 = vld [vmem:[%s1 + $0x20] sm:$0xff]
      %v347 = vld [vmem:[%s1 + $0x28] sm:$0xff]
      %v348 = vld [vmem:[%s1 + $0x30] sm:$0xff]
      %v349 = vld [vmem:[%s1 + $0x38] sm:$0xff]
      %v350 = vld [vmem:[%s1 + $0x40] sm:$0xff]
      %v351 = vld [vmem:[%s1 + $0x48] sm:$0xff]
      %v352 = vld [vmem:[%s1 + $0x50] sm:$0xff]
      %v353 = vld [vmem:[%s1 + $0x58] sm:$0xff]
      %v354 = vld [vmem:[%s1 + $0x60] sm:$0xff]
      %v355 = vld [vmem:[%s1 + $0x68] sm:$0xff]
      %v356 = vld [vmem:[%s1 + $0x70] sm:$0xff]
      %v357 = vld [vmem:[%s1 + $0x78] sm:$0xff]
      %v358 = vld [vmem:[%s1 + $0x80] sm:$0xff]
      %v359 = vld [vmem:[%s1 + $0x88] sm:$0xff]
      %v360 = vld [vmem:[%s1 + $0x90] sm:$0xff]
      %v361 = vld [vmem:[%s1 + $0x98] sm:$0xff]
      %v362 = vld [vmem:[%s1 + $0xa0] sm:$0xff]
      %v363 = vld [vmem:[%s1 + $0xa8] sm:$0xff]
      %v364 = vld [vmem:[%s1 + $0xb0] sm:$0xff]
      %v365 = vld [vmem:[%s1 + $0xb8] sm:$0xff]
      %v366 = vld [vmem:[%s1 + $0xc0] sm:$0xff]
      %v367 = vld [vmem:[%s1 + $0xc8] sm:$0xff]
      %v368 = vld [vmem:[%s1 + $0xd0] sm:$0xff]
      %v369 = vld [vmem:[%s1 + $0xd8] sm:$0xff]
      %v370 = vld [vmem:[%s1 + $0xe0] sm:$0xff]
      %v371 = vld [vmem:[%s1 + $0xe8] sm:$0xff]
      %v372 = vld [vmem:[%s1 + $0xf0] sm:$0xff]
      %v373 = vld [vmem:[%s1 + $0xf8] sm:$0xff]
      %v374 = vld [vmem:[%s1 + $0x100] sm:$0xff]
      %v375 = vld [vmem:[%s1 + $0x108] sm:$0xff]
      %v376 = vld [vmem:[%s1 + $0x110] sm:$0xff]
      %v377 = vld [vmem:[%s1 + $0x118] sm:$0xff]
      %v378 = vld [vmem:[%s1 + $0x120] sm:$0xff]
      %v379 = vld [vmem:[%s1 + $0x128] sm:$0xff]
      %v380 = vld [vmem:[%s1 + $0x130] sm:$0xff]
      %v381 = vld [vmem:[%s1 + $0x138] sm:$0xff]
      %v382 = vld [vmem:[%s1 + $0x140] sm:$0xff]
      %v383 = vld [vmem:[%s1 + $0x148] sm:$0xff]
      %v384 = vld [vmem:[%s1 + $0x150] sm:$0xff]
      %v385 = vld [vmem:[%s1 + $0x158] sm:$0xff]
      %v386 = vld [vmem:[%s1 + $0x160] sm:$0xff]
      %v387 = vld [vmem:[%s1 + $0x168] sm:$0xff]
      %v388 = vld [vmem:[%s1 + $0x170] sm:$0xff]
      %v389 = vld [vmem:[%s1 + $0x178] sm:$0xff]
      %v390 = vld [vmem:[%s1 + $0x180] sm:$0xff]
      %v391 = vld [vmem:[%s1 + $0x188] sm:$0xff]
      %v392 = vld [vmem:[%s1 + $0x190] sm:$0xff]
      %v393 = vld [vmem:[%s1 + $0x198] sm:$0xff]
      %v394 = vld [vmem:[%s1 + $0x1a0] sm:$0xff]
      %v395 = vld [vmem:[%s1 + $0x1a8] sm:$0xff]
      %v396 = vld [vmem:[%s1 + $0x1b0] sm:$0xff]
      %v397 = vld [vmem:[%s1 + $0x1b8] sm:$0xff]
      %v398 = vld [vmem:[%s1 + $0x1c0] sm:$0xff]
      %v399 = vld [vmem:[%s1 + $0x1c8] sm:$0xff]
      %v400 = vld [vmem:[%s1 + $0x1d0] sm:$0xff]
      %v401 = vld [vmem:[%s1 + $0x1d8] sm:$0xff]
      %v402 = vld [vmem:[%s1 + $0x1e0] sm:$0xff]
      %v403 = vld [vmem:[%s1 + $0x1e8] sm:$0xff]
      %v404 = vld [vmem:[%s1 + $0x1f0] sm:$0xff]
      %v405 = vld [vmem:[%s1 + $0x1f8] sm:$0xff]
      %v406 = vld [vmem:[%s2] sm:$0x3]
      %v408 = vlaneseq
      %v409 = vshrl.u32 %v408, 7
      %v410 = vsub.s32 0, %v409
      %v411 = vrot.slane %v406, %v410
      %v412 = vlaneseq
      %v413 = vshrl.u32 %v412, 7
      %v414 = vsub.s32 1, %v413
      %v415 = vrot.slane %v406, %v414
      %v546 = vunpack.c.l.b16 %v214
      %v547 = vunpack.c.h.b16 %v214
      %v548 = vunpack.c.l.b16 %v215
      %v549 = vunpack.c.h.b16 %v215
      %v550 = vunpack.c.l.b16 %v216
      %v551 = vunpack.c.h.b16 %v216
      %v552 = vunpack.c.l.b16 %v217
      %v553 = vunpack.c.h.b16 %v217
      %v554 = vunpack.c.l.b16 %v218
      %v555 = vunpack.c.h.b16 %v218
      %v556 = vunpack.c.l.b16 %v219
      %v557 = vunpack.c.h.b16 %v219
      %v558 = vunpack.c.l.b16 %v220
      %v559 = vunpack.c.h.b16 %v220
      %v560 = vunpack.c.l.b16 %v221
      %v561 = vunpack.c.h.b16 %v221
      %v562 = vunpack.c.l.b16 %v222
      %v563 = vunpack.c.h.b16 %v222
      %v564 = vunpack.c.l.b16 %v223
      %v565 = vunpack.c.h.b16 %v223
      %v566 = vunpack.c.l.b16 %v224
      %v567 = vunpack.c.h.b16 %v224
      %v568 = vunpack.c.l.b16 %v225
      %v569 = vunpack.c.h.b16 %v225
      %v570 = vunpack.c.l.b16 %v226
      %v571 = vunpack.c.h.b16 %v226
      %v572 = vunpack.c.l.b16 %v227
      %v573 = vunpack.c.h.b16 %v227
      %v574 = vunpack.c.l.b16 %v228
      %v575 = vunpack.c.h.b16 %v228
      %v576 = vunpack.c.l.b16 %v229
      %v577 = vunpack.c.h.b16 %v229
      %v578 = vunpack.c.l.b16 %v230
      %v579 = vunpack.c.h.b16 %v230
      %v580 = vunpack.c.l.b16 %v231
      %v581 = vunpack.c.h.b16 %v231
      %v582 = vunpack.c.l.b16 %v232
      %v583 = vunpack.c.h.b16 %v232
      %v584 = vunpack.c.l.b16 %v233
      %v585 = vunpack.c.h.b16 %v233
      %v586 = vunpack.c.l.b16 %v234
      %v587 = vunpack.c.h.b16 %v234
      %v588 = vunpack.c.l.b16 %v235
      %v589 = vunpack.c.h.b16 %v235
      %v590 = vunpack.c.l.b16 %v236
      %v591 = vunpack.c.h.b16 %v236
      %v592 = vunpack.c.l.b16 %v237
      %v593 = vunpack.c.h.b16 %v237
      %v594 = vunpack.c.l.b16 %v238
      %v595 = vunpack.c.h.b16 %v238
      %v596 = vunpack.c.l.b16 %v239
      %v597 = vunpack.c.h.b16 %v239
      %v598 = vunpack.c.l.b16 %v240
      %v599 = vunpack.c.h.b16 %v240
      %v600 = vunpack.c.l.b16 %v241
      %v601 = vunpack.c.h.b16 %v241
      %v602 = vunpack.c.l.b16 %v242
      %v603 = vunpack.c.h.b16 %v242
      %v604 = vunpack.c.l.b16 %v243
      %v605 = vunpack.c.h.b16 %v243
      %v606 = vunpack.c.l.b16 %v244
      %v607 = vunpack.c.h.b16 %v244
      %v608 = vunpack.c.l.b16 %v245
      %v609 = vunpack.c.h.b16 %v245
      %v610 = vunpack.c.l.b16 %v246
      %v611 = vunpack.c.h.b16 %v246
      %v612 = vunpack.c.l.b16 %v247
      %v613 = vunpack.c.h.b16 %v247
      %v614 = vunpack.c.l.b16 %v248
      %v615 = vunpack.c.h.b16 %v248
      %v616 = vunpack.c.l.b16 %v249
      %v617 = vunpack.c.h.b16 %v249
      %v618 = vunpack.c.l.b16 %v250
      %v619 = vunpack.c.h.b16 %v250
      %v620 = vunpack.c.l.b16 %v251
      %v621 = vunpack.c.h.b16 %v251
      %v622 = vunpack.c.l.b16 %v252
      %v623 = vunpack.c.h.b16 %v252
      %v624 = vunpack.c.l.b16 %v253
      %v625 = vunpack.c.h.b16 %v253
      %v626 = vunpack.c.l.b16 %v254
      %v627 = vunpack.c.h.b16 %v254
      %v628 = vunpack.c.l.b16 %v255
      %v629 = vunpack.c.h.b16 %v255
      %v630 = vunpack.c.l.b16 %v256
      %v631 = vunpack.c.h.b16 %v256
      %v632 = vunpack.c.l.b16 %v257
      %v633 = vunpack.c.h.b16 %v257
      %v634 = vunpack.c.l.b16 %v258
      %v635 = vunpack.c.h.b16 %v258
      %v636 = vunpack.c.l.b16 %v259
      %v637 = vunpack.c.h.b16 %v259
      %v638 = vunpack.c.l.b16 %v260
      %v639 = vunpack.c.h.b16 %v260
      %v640 = vunpack.c.l.b16 %v261
      %v641 = vunpack.c.h.b16 %v261
      %v642 = vunpack.c.l.b16 %v262
      %v643 = vunpack.c.h.b16 %v262
      %v644 = vunpack.c.l.b16 %v263
      %v645 = vunpack.c.h.b16 %v263
      %v646 = vunpack.c.l.b16 %v264
      %v647 = vunpack.c.h.b16 %v264
      %v648 = vunpack.c.l.b16 %v265
      %v649 = vunpack.c.h.b16 %v265
      %v650 = vunpack.c.l.b16 %v266
      %v651 = vunpack.c.h.b16 %v266
      %v652 = vunpack.c.l.b16 %v267
      %v653 = vunpack.c.h.b16 %v267
      %v654 = vunpack.c.l.b16 %v268
      %v655 = vunpack.c.h.b16 %v268
      %v656 = vunpack.c.l.b16 %v269
      %v657 = vunpack.c.h.b16 %v269
      %v658 = vunpack.c.l.b16 %v270
      %v659 = vunpack.c.h.b16 %v270
      %v660 = vunpack.c.l.b16 %v271
      %v661 = vunpack.c.h.b16 %v271
      %v662 = vunpack.c.l.b16 %v272
      %v663 = vunpack.c.h.b16 %v272
      %v664 = vunpack.c.l.b16 %v273
      %v665 = vunpack.c.h.b16 %v273
      %v666 = vunpack.c.l.b16 %v274
      %v667 = vunpack.c.h.b16 %v274
      %v668 = vunpack.c.l.b16 %v275
      %v669 = vunpack.c.h.b16 %v275
      %v670 = vunpack.c.l.b16 %v276
      %v671 = vunpack.c.h.b16 %v276
      %v672 = vunpack.c.l.b16 %v277
      %v673 = vunpack.c.h.b16 %v277
      %v674 = vunpack.c.l.b16 %v278
      %v675 = vunpack.c.h.b16 %v278
      %v676 = vunpack.c.l.b16 %v279
      %v677 = vunpack.c.h.b16 %v279
      %v678 = vunpack.c.l.b16 %v280
      %v679 = vunpack.c.h.b16 %v280
      %v680 = vunpack.c.l.b16 %v281
      %v681 = vunpack.c.h.b16 %v281
      %v682 = vunpack.c.l.b16 %v282
      %v683 = vunpack.c.h.b16 %v282
      %v684 = vunpack.c.l.b16 %v283
      %v685 = vunpack.c.h.b16 %v283
      %v686 = vunpack.c.l.b16 %v284
      %v687 = vunpack.c.h.b16 %v284
      %v688 = vunpack.c.l.b16 %v285
      %v689 = vunpack.c.h.b16 %v285
      %v690 = vunpack.c.l.b16 %v286
      %v691 = vunpack.c.h.b16 %v286
      %v692 = vunpack.c.l.b16 %v287
      %v693 = vunpack.c.h.b16 %v287
      %v694 = vunpack.c.l.b16 %v288
      %v695 = vunpack.c.h.b16 %v288
      %v696 = vunpack.c.l.b16 %v289
      %v697 = vunpack.c.h.b16 %v289
      %v698 = vunpack.c.l.b16 %v290
      %v699 = vunpack.c.h.b16 %v290
      %v700 = vunpack.c.l.b16 %v291
      %v701 = vunpack.c.h.b16 %v291
      %v702 = vunpack.c.l.b16 %v292
      %v703 = vunpack.c.h.b16 %v292
      %v704 = vunpack.c.l.b16 %v293
      %v705 = vunpack.c.h.b16 %v293
      %v706 = vunpack.c.l.b16 %v294
      %v707 = vunpack.c.h.b16 %v294
      %v708 = vunpack.c.l.b16 %v295
      %v709 = vunpack.c.h.b16 %v295
      %v710 = vunpack.c.l.b16 %v296
      %v711 = vunpack.c.h.b16 %v296
      %v712 = vunpack.c.l.b16 %v297
      %v713 = vunpack.c.h.b16 %v297
      %v714 = vunpack.c.l.b16 %v298
      %v715 = vunpack.c.h.b16 %v298
      %v716 = vunpack.c.l.b16 %v299
      %v717 = vunpack.c.h.b16 %v299
      %v718 = vunpack.c.l.b16 %v300
      %v719 = vunpack.c.h.b16 %v300
      %v720 = vunpack.c.l.b16 %v301
      %v721 = vunpack.c.h.b16 %v301
      %v722 = vunpack.c.l.b16 %v302
      %v723 = vunpack.c.h.b16 %v302
      %v724 = vunpack.c.l.b16 %v303
      %v725 = vunpack.c.h.b16 %v303
      %v726 = vunpack.c.l.b16 %v304
      %v727 = vunpack.c.h.b16 %v304
      %v728 = vunpack.c.l.b16 %v305
      %v729 = vunpack.c.h.b16 %v305
      %v730 = vunpack.c.l.b16 %v306
      %v731 = vunpack.c.h.b16 %v306
      %v732 = vunpack.c.l.b16 %v307
      %v733 = vunpack.c.h.b16 %v307
      %v734 = vunpack.c.l.b16 %v308
      %v735 = vunpack.c.h.b16 %v308
      %v736 = vunpack.c.l.b16 %v309
      %v737 = vunpack.c.h.b16 %v309
      %v738 = vunpack.c.l.b16 %v310
      %v739 = vunpack.c.h.b16 %v310
      %v740 = vunpack.c.l.b16 %v311
      %v741 = vunpack.c.h.b16 %v311
      %v742 = vunpack.c.l.b16 %v312
      %v743 = vunpack.c.h.b16 %v312
      %v744 = vunpack.c.l.b16 %v313
      %v745 = vunpack.c.h.b16 %v313
      %v746 = vunpack.c.l.b16 %v314
      %v747 = vunpack.c.h.b16 %v314
      %v748 = vunpack.c.l.b16 %v315
      %v749 = vunpack.c.h.b16 %v315
      %v750 = vunpack.c.l.b16 %v316
      %v751 = vunpack.c.h.b16 %v316
      %v752 = vunpack.c.l.b16 %v317
      %v753 = vunpack.c.h.b16 %v317
      %v754 = vunpack.c.l.b16 %v318
      %v755 = vunpack.c.h.b16 %v318
      %v756 = vunpack.c.l.b16 %v319
      %v757 = vunpack.c.h.b16 %v319
      %v758 = vunpack.c.l.b16 %v320
      %v759 = vunpack.c.h.b16 %v320
      %v760 = vunpack.c.l.b16 %v321
      %v761 = vunpack.c.h.b16 %v321
      %v762 = vunpack.c.l.b16 %v322
      %v763 = vunpack.c.h.b16 %v322
      %v764 = vunpack.c.l.b16 %v323
      %v765 = vunpack.c.h.b16 %v323
      %v766 = vunpack.c.l.b16 %v324
      %v767 = vunpack.c.h.b16 %v324
      %v768 = vunpack.c.l.b16 %v325
      %v769 = vunpack.c.h.b16 %v325
      %v770 = vunpack.c.l.b16 %v326
      %v771 = vunpack.c.h.b16 %v326
      %v772 = vunpack.c.l.b16 %v327
      %v773 = vunpack.c.h.b16 %v327
      %v774 = vunpack.c.l.b16 %v328
      %v775 = vunpack.c.h.b16 %v328
      %v776 = vunpack.c.l.b16 %v329
      %v777 = vunpack.c.h.b16 %v329
      %v778 = vunpack.c.l.b16 %v330
      %v779 = vunpack.c.h.b16 %v330
      %v780 = vunpack.c.l.b16 %v331
      %v781 = vunpack.c.h.b16 %v331
      %v782 = vunpack.c.l.b16 %v332
      %v783 = vunpack.c.h.b16 %v332
      %v784 = vunpack.c.l.b16 %v333
      %v785 = vunpack.c.h.b16 %v333
      %v786 = vunpack.c.l.b16 %v334
      %v787 = vunpack.c.h.b16 %v334
      %v788 = vunpack.c.l.b16 %v335
      %v789 = vunpack.c.h.b16 %v335
      %v790 = vunpack.c.l.b16 %v336
      %v791 = vunpack.c.h.b16 %v336
      %v792 = vunpack.c.l.b16 %v337
      %v793 = vunpack.c.h.b16 %v337
      %v794 = vunpack.c.l.b16 %v338
      %v795 = vunpack.c.h.b16 %v338
      %v796 = vunpack.c.l.b16 %v339
      %v797 = vunpack.c.h.b16 %v339
      %v798 = vunpack.c.l.b16 %v340
      %v799 = vunpack.c.h.b16 %v340
      %v800 = vunpack.c.l.b16 %v341
      %v801 = vunpack.c.h.b16 %v341
      %v802 = vpack.c.b16 %v550, %v546
      %v803 = vpack.c.b16 %v551, %v547
      %v804 = vpack.c.b16 %v552, %v548
      %v805 = vpack.c.b16 %v553, %v549
      %v806 = vpack.c.b16 %v558, %v554
      %v807 = vpack.c.b16 %v559, %v555
      %v808 = vpack.c.b16 %v560, %v556
      %v809 = vpack.c.b16 %v561, %v557
      %v810 = vpack.c.b16 %v566, %v562
      %v811 = vpack.c.b16 %v567, %v563
      %v812 = vpack.c.b16 %v568, %v564
      %v813 = vpack.c.b16 %v569, %v565
      %v814 = vpack.c.b16 %v574, %v570
      %v815 = vpack.c.b16 %v575, %v571
      %v816 = vpack.c.b16 %v576, %v572
      %v817 = vpack.c.b16 %v577, %v573
      %v818 = vpack.c.b16 %v582, %v578
      %v819 = vpack.c.b16 %v583, %v579
      %v820 = vpack.c.b16 %v584, %v580
      %v821 = vpack.c.b16 %v585, %v581
      %v822 = vpack.c.b16 %v590, %v586
      %v823 = vpack.c.b16 %v591, %v587
      %v824 = vpack.c.b16 %v592, %v588
      %v825 = vpack.c.b16 %v593, %v589
      %v826 = vpack.c.b16 %v598, %v594
      %v827 = vpack.c.b16 %v599, %v595
      %v828 = vpack.c.b16 %v600, %v596
      %v829 = vpack.c.b16 %v601, %v597
      %v830 = vpack.c.b16 %v606, %v602
      %v831 = vpack.c.b16 %v607, %v603
      %v832 = vpack.c.b16 %v608, %v604
      %v833 = vpack.c.b16 %v609, %v605
      %v834 = vpack.c.b16 %v614, %v610
      %v835 = vpack.c.b16 %v615, %v611
      %v836 = vpack.c.b16 %v616, %v612
      %v837 = vpack.c.b16 %v617, %v613
      %v838 = vpack.c.b16 %v622, %v618
      %v839 = vpack.c.b16 %v623, %v619
      %v840 = vpack.c.b16 %v624, %v620
      %v841 = vpack.c.b16 %v625, %v621
      %v842 = vpack.c.b16 %v630, %v626
      %v843 = vpack.c.b16 %v631, %v627
      %v844 = vpack.c.b16 %v632, %v628
      %v845 = vpack.c.b16 %v633, %v629
      %v846 = vpack.c.b16 %v638, %v634
      %v847 = vpack.c.b16 %v639, %v635
      %v848 = vpack.c.b16 %v640, %v636
      %v849 = vpack.c.b16 %v641, %v637
      %v850 = vpack.c.b16 %v646, %v642
      %v851 = vpack.c.b16 %v647, %v643
      %v852 = vpack.c.b16 %v648, %v644
      %v853 = vpack.c.b16 %v649, %v645
      %v854 = vpack.c.b16 %v654, %v650
      %v855 = vpack.c.b16 %v655, %v651
      %v856 = vpack.c.b16 %v656, %v652
      %v857 = vpack.c.b16 %v657, %v653
      %v858 = vpack.c.b16 %v662, %v658
      %v859 = vpack.c.b16 %v663, %v659
      %v860 = vpack.c.b16 %v664, %v660
      %v861 = vpack.c.b16 %v665, %v661
      %v862 = vpack.c.b16 %v670, %v666
      %v863 = vpack.c.b16 %v671, %v667
      %v864 = vpack.c.b16 %v672, %v668
      %v865 = vpack.c.b16 %v673, %v669
      %v866 = vpack.c.b16 %v678, %v674
      %v867 = vpack.c.b16 %v679, %v675
      %v868 = vpack.c.b16 %v680, %v676
      %v869 = vpack.c.b16 %v681, %v677
      %v870 = vpack.c.b16 %v686, %v682
      %v871 = vpack.c.b16 %v687, %v683
      %v872 = vpack.c.b16 %v688, %v684
      %v873 = vpack.c.b16 %v689, %v685
      %v874 = vpack.c.b16 %v694, %v690
      %v875 = vpack.c.b16 %v695, %v691
      %v876 = vpack.c.b16 %v696, %v692
      %v877 = vpack.c.b16 %v697, %v693
      %v878 = vpack.c.b16 %v702, %v698
      %v879 = vpack.c.b16 %v703, %v699
      %v880 = vpack.c.b16 %v704, %v700
      %v881 = vpack.c.b16 %v705, %v701
      %v882 = vpack.c.b16 %v710, %v706
      %v883 = vpack.c.b16 %v711, %v707
      %v884 = vpack.c.b16 %v712, %v708
      %v885 = vpack.c.b16 %v713, %v709
      %v886 = vpack.c.b16 %v718, %v714
      %v887 = vpack.c.b16 %v719, %v715
      %v888 = vpack.c.b16 %v720, %v716
      %v889 = vpack.c.b16 %v721, %v717
      %v890 = vpack.c.b16 %v726, %v722
      %v891 = vpack.c.b16 %v727, %v723
      %v892 = vpack.c.b16 %v728, %v724
      %v893 = vpack.c.b16 %v729, %v725
      %v894 = vpack.c.b16 %v734, %v730
      %v895 = vpack.c.b16 %v735, %v731
      %v896 = vpack.c.b16 %v736, %v732
      %v897 = vpack.c.b16 %v737, %v733
      %v898 = vpack.c.b16 %v742, %v738
      %v899 = vpack.c.b16 %v743, %v739
      %v900 = vpack.c.b16 %v744, %v740
      %v901 = vpack.c.b16 %v745, %v741
      %v902 = vpack.c.b16 %v750, %v746
      %v903 = vpack.c.b16 %v751, %v747
      %v904 = vpack.c.b16 %v752, %v748
      %v905 = vpack.c.b16 %v753, %v749
      %v906 = vpack.c.b16 %v758, %v754
      %v907 = vpack.c.b16 %v759, %v755
      %v908 = vpack.c.b16 %v760, %v756
      %v909 = vpack.c.b16 %v761, %v757
      %v910 = vpack.c.b16 %v766, %v762
      %v911 = vpack.c.b16 %v767, %v763
      %v912 = vpack.c.b16 %v768, %v764
      %v913 = vpack.c.b16 %v769, %v765
      %v914 = vpack.c.b16 %v774, %v770
      %v915 = vpack.c.b16 %v775, %v771
      %v916 = vpack.c.b16 %v776, %v772
      %v917 = vpack.c.b16 %v777, %v773
      %v918 = vpack.c.b16 %v782, %v778
      %v919 = vpack.c.b16 %v783, %v779
      %v920 = vpack.c.b16 %v784, %v780
      %v921 = vpack.c.b16 %v785, %v781
      %v922 = vpack.c.b16 %v790, %v786
      %v923 = vpack.c.b16 %v791, %v787
      %v924 = vpack.c.b16 %v792, %v788
      %v925 = vpack.c.b16 %v793, %v789
      %v926 = vpack.c.b16 %v798, %v794
      %v927 = vpack.c.b16 %v799, %v795
      %v928 = vpack.c.b16 %v800, %v796
      %v929 = vpack.c.b16 %v801, %v797
      %v1122 = vunpack.c.l.b16 %v342
      %v1123 = vunpack.c.h.b16 %v342
      %v1124 = vunpack.c.l.b16 %v343
      %v1125 = vunpack.c.h.b16 %v343
      %v1126 = vunpack.c.l.b16 %v344
      %v1127 = vunpack.c.h.b16 %v344
      %v1128 = vunpack.c.l.b16 %v345
      %v1129 = vunpack.c.h.b16 %v345
      %v1130 = vunpack.c.l.b16 %v346
      %v1131 = vunpack.c.h.b16 %v346
      %v1132 = vunpack.c.l.b16 %v347
      %v1133 = vunpack.c.h.b16 %v347
      %v1134 = vunpack.c.l.b16 %v348
      %v1135 = vunpack.c.h.b16 %v348
      %v1136 = vunpack.c.l.b16 %v349
      %v1137 = vunpack.c.h.b16 %v349
      %v1138 = vunpack.c.l.b16 %v350
      %v1139 = vunpack.c.h.b16 %v350
      %v1140 = vunpack.c.l.b16 %v351
      %v1141 = vunpack.c.h.b16 %v351
      %v1142 = vunpack.c.l.b16 %v352
      %v1143 = vunpack.c.h.b16 %v352
      %v1144 = vunpack.c.l.b16 %v353
      %v1145 = vunpack.c.h.b16 %v353
      %v1146 = vunpack.c.l.b16 %v354
      %v1147 = vunpack.c.h.b16 %v354
      %v1148 = vunpack.c.l.b16 %v355
      %v1149 = vunpack.c.h.b16 %v355
      %v1150 = vunpack.c.l.b16 %v356
      %v1151 = vunpack.c.h.b16 %v356
      %v1152 = vunpack.c.l.b16 %v357
      %v1153 = vunpack.c.h.b16 %v357
      %v1154 = vunpack.c.l.b16 %v358
      %v1155 = vunpack.c.h.b16 %v358
      %v1156 = vunpack.c.l.b16 %v359
      %v1157 = vunpack.c.h.b16 %v359
      %v1158 = vunpack.c.l.b16 %v360
      %v1159 = vunpack.c.h.b16 %v360
      %v1160 = vunpack.c.l.b16 %v361
      %v1161 = vunpack.c.h.b16 %v361
      %v1162 = vunpack.c.l.b16 %v362
      %v1163 = vunpack.c.h.b16 %v362
      %v1164 = vunpack.c.l.b16 %v363
      %v1165 = vunpack.c.h.b16 %v363
      %v1166 = vunpack.c.l.b16 %v364
      %v1167 = vunpack.c.h.b16 %v364
      %v1168 = vunpack.c.l.b16 %v365
      %v1169 = vunpack.c.h.b16 %v365
      %v1170 = vunpack.c.l.b16 %v366
      %v1171 = vunpack.c.h.b16 %v366
      %v1172 = vunpack.c.l.b16 %v367
      %v1173 = vunpack.c.h.b16 %v367
      %v1174 = vunpack.c.l.b16 %v368
      %v1175 = vunpack.c.h.b16 %v368
      %v1176 = vunpack.c.l.b16 %v369
      %v1177 = vunpack.c.h.b16 %v369
      %v1178 = vunpack.c.l.b16 %v370
      %v1179 = vunpack.c.h.b16 %v370
      %v1180 = vunpack.c.l.b16 %v371
      %v1181 = vunpack.c.h.b16 %v371
      %v1182 = vunpack.c.l.b16 %v372
      %v1183 = vunpack.c.h.b16 %v372
      %v1184 = vunpack.c.l.b16 %v373
      %v1185 = vunpack.c.h.b16 %v373
      %v1186 = vunpack.c.l.b16 %v374
      %v1187 = vunpack.c.h.b16 %v374
      %v1188 = vunpack.c.l.b16 %v375
      %v1189 = vunpack.c.h.b16 %v375
      %v1190 = vunpack.c.l.b16 %v376
      %v1191 = vunpack.c.h.b16 %v376
      %v1192 = vunpack.c.l.b16 %v377
      %v1193 = vunpack.c.h.b16 %v377
      %v1194 = vunpack.c.l.b16 %v378
      %v1195 = vunpack.c.h.b16 %v378
      %v1196 = vunpack.c.l.b16 %v379
      %v1197 = vunpack.c.h.b16 %v379
      %v1198 = vunpack.c.l.b16 %v380
      %v1199 = vunpack.c.h.b16 %v380
      %v1200 = vunpack.c.l.b16 %v381
      %v1201 = vunpack.c.h.b16 %v381
      %v1202 = vunpack.c.l.b16 %v382
      %v1203 = vunpack.c.h.b16 %v382
      %v1204 = vunpack.c.l.b16 %v383
      %v1205 = vunpack.c.h.b16 %v383
      %v1206 = vunpack.c.l.b16 %v384
      %v1207 = vunpack.c.h.b16 %v384
      %v1208 = vunpack.c.l.b16 %v385
      %v1209 = vunpack.c.h.b16 %v385
      %v1210 = vunpack.c.l.b16 %v386
      %v1211 = vunpack.c.h.b16 %v386
      %v1212 = vunpack.c.l.b16 %v387
      %v1213 = vunpack.c.h.b16 %v387
      %v1214 = vunpack.c.l.b16 %v388
      %v1215 = vunpack.c.h.b16 %v388
      %v1216 = vunpack.c.l.b16 %v389
      %v1217 = vunpack.c.h.b16 %v389
      %v1218 = vunpack.c.l.b16 %v390
      %v1219 = vunpack.c.h.b16 %v390
      %v1220 = vunpack.c.l.b16 %v391
      %v1221 = vunpack.c.h.b16 %v391
      %v1222 = vunpack.c.l.b16 %v392
      %v1223 = vunpack.c.h.b16 %v392
      %v1224 = vunpack.c.l.b16 %v393
      %v1225 = vunpack.c.h.b16 %v393
      %v1226 = vunpack.c.l.b16 %v394
      %v1227 = vunpack.c.h.b16 %v394
      %v1228 = vunpack.c.l.b16 %v395
      %v1229 = vunpack.c.h.b16 %v395
      %v1230 = vunpack.c.l.b16 %v396
      %v1231 = vunpack.c.h.b16 %v396
      %v1232 = vunpack.c.l.b16 %v397
      %v1233 = vunpack.c.h.b16 %v397
      %v1234 = vunpack.c.l.b16 %v398
      %v1235 = vunpack.c.h.b16 %v398
      %v1236 = vunpack.c.l.b16 %v399
      %v1237 = vunpack.c.h.b16 %v399
      %v1238 = vunpack.c.l.b16 %v400
      %v1239 = vunpack.c.h.b16 %v400
      %v1240 = vunpack.c.l.b16 %v401
      %v1241 = vunpack.c.h.b16 %v401
      %v1242 = vunpack.c.l.b16 %v402
      %v1243 = vunpack.c.h.b16 %v402
      %v1244 = vunpack.c.l.b16 %v403
      %v1245 = vunpack.c.h.b16 %v403
      %v1246 = vunpack.c.l.b16 %v404
      %v1247 = vunpack.c.h.b16 %v404
      %v1248 = vunpack.c.l.b16 %v405
      %v1249 = vunpack.c.h.b16 %v405
      %v1250 = vpack.c.b16 %v1124, %v1122
      %v1251 = vpack.c.b16 %v1125, %v1123
      %v1252 = vpack.c.b16 %v1128, %v1126
      %v1253 = vpack.c.b16 %v1129, %v1127
      %v1254 = vpack.c.b16 %v1132, %v1130
      %v1255 = vpack.c.b16 %v1133, %v1131
      %v1256 = vpack.c.b16 %v1136, %v1134
      %v1257 = vpack.c.b16 %v1137, %v1135
      %v1258 = vpack.c.b16 %v1140, %v1138
      %v1259 = vpack.c.b16 %v1141, %v1139
      %v1260 = vpack.c.b16 %v1144, %v1142
      %v1261 = vpack.c.b16 %v1145, %v1143
      %v1262 = vpack.c.b16 %v1148, %v1146
      %v1263 = vpack.c.b16 %v1149, %v1147
      %v1264 = vpack.c.b16 %v1152, %v1150
      %v1265 = vpack.c.b16 %v1153, %v1151
      %v1266 = vpack.c.b16 %v1156, %v1154
      %v1267 = vpack.c.b16 %v1157, %v1155
      %v1268 = vpack.c.b16 %v1160, %v1158
      %v1269 = vpack.c.b16 %v1161, %v1159
      %v1270 = vpack.c.b16 %v1164, %v1162
      %v1271 = vpack.c.b16 %v1165, %v1163
      %v1272 = vpack.c.b16 %v1168, %v1166
      %v1273 = vpack.c.b16 %v1169, %v1167
      %v1274 = vpack.c.b16 %v1172, %v1170
      %v1275 = vpack.c.b16 %v1173, %v1171
      %v1276 = vpack.c.b16 %v1176, %v1174
      %v1277 = vpack.c.b16 %v1177, %v1175
      %v1278 = vpack.c.b16 %v1180, %v1178
      %v1279 = vpack.c.b16 %v1181, %v1179
      %v1280 = vpack.c.b16 %v1184, %v1182
      %v1281 = vpack.c.b16 %v1185, %v1183
      %v1282 = vpack.c.b16 %v1188, %v1186
      %v1283 = vpack.c.b16 %v1189, %v1187
      %v1284 = vpack.c.b16 %v1192, %v1190
      %v1285 = vpack.c.b16 %v1193, %v1191
      %v1286 = vpack.c.b16 %v1196, %v1194
      %v1287 = vpack.c.b16 %v1197, %v1195
      %v1288 = vpack.c.b16 %v1200, %v1198
      %v1289 = vpack.c.b16 %v1201, %v1199
      %v1290 = vpack.c.b16 %v1204, %v1202
      %v1291 = vpack.c.b16 %v1205, %v1203
      %v1292 = vpack.c.b16 %v1208, %v1206
      %v1293 = vpack.c.b16 %v1209, %v1207
      %v1294 = vpack.c.b16 %v1212, %v1210
      %v1295 = vpack.c.b16 %v1213, %v1211
      %v1296 = vpack.c.b16 %v1216, %v1214
      %v1297 = vpack.c.b16 %v1217, %v1215
      %v1298 = vpack.c.b16 %v1220, %v1218
      %v1299 = vpack.c.b16 %v1221, %v1219
      %v1300 = vpack.c.b16 %v1224, %v1222
      %v1301 = vpack.c.b16 %v1225, %v1223
      %v1302 = vpack.c.b16 %v1228, %v1226
      %v1303 = vpack.c.b16 %v1229, %v1227
      %v1304 = vpack.c.b16 %v1232, %v1230
      %v1305 = vpack.c.b16 %v1233, %v1231
      %v1306 = vpack.c.b16 %v1236, %v1234
      %v1307 = vpack.c.b16 %v1237, %v1235
      %v1308 = vpack.c.b16 %v1240, %v1238
      %v1309 = vpack.c.b16 %v1241, %v1239
      %v1310 = vpack.c.b16 %v1244, %v1242
      %v1311 = vpack.c.b16 %v1245, %v1243
      %v1312 = vpack.c.b16 %v1248, %v1246
      %v1313 = vpack.c.b16 %v1249, %v1247
      %1378 = vmatprep.subr.bf16.mxu0 %v1251
      %1379 = vmatpush1.bf16.msra.mxu0 %v1250
      %1380 = vmatprep.subr.bf16.mxu0 %v1253
      %1381 = vmatpush1.bf16.msra.mxu0 %v1252
      %1382 = vmatprep.subr.bf16.mxu0 %v1255
      %1383 = vmatpush1.bf16.msra.mxu0 %v1254
      %1384 = vmatprep.subr.bf16.mxu0 %v1257
      %1385 = vmatpush1.bf16.msra.mxu0 %v1256
      %1386 = vmatprep.subr.bf16.mxu0 %v1259
      %1387 = vmatpush1.bf16.msra.mxu0 %v1258
      %1388 = vmatprep.subr.bf16.mxu0 %v1261
      %1389 = vmatpush1.bf16.msra.mxu0 %v1260
      %1390 = vmatprep.subr.bf16.mxu0 %v1263
      %1391 = vmatpush1.bf16.msra.mxu0 %v1262
      %1392 = vmatprep.subr.bf16.mxu0 %v1265
      %1393 = vmatpush1.bf16.msra.mxu0 %v1264
      %1394 = vmatprep.subr.bf16.mxu0 %v1267
      %1395 = vmatpush1.bf16.msra.mxu0 %v1266
      %1396 = vmatprep.subr.bf16.mxu0 %v1269
      %1397 = vmatpush1.bf16.msra.mxu0 %v1268
      %1398 = vmatprep.subr.bf16.mxu0 %v1271
      %1399 = vmatpush1.bf16.msra.mxu0 %v1270
      %1400 = vmatprep.subr.bf16.mxu0 %v1273
      %1401 = vmatpush1.bf16.msra.mxu0 %v1272
      %1402 = vmatprep.subr.bf16.mxu0 %v1275
      %1403 = vmatpush1.bf16.msra.mxu0 %v1274
      %1404 = vmatprep.subr.bf16.mxu0 %v1277
      %1405 = vmatpush1.bf16.msra.mxu0 %v1276
      %1406 = vmatprep.subr.bf16.mxu0 %v1279
      %1407 = vmatpush1.bf16.msra.mxu0 %v1278
      %1408 = vmatprep.subr.bf16.mxu0 %v1281
      %1409 = vmatpush1.bf16.msra.mxu0 %v1280
      %1410 = vmatprep.mubr.bf16.mxu0 %v803
      %1411 = vmatmul.mubr.bf16.gmra.mrb[0].mxu0 %v802
      %v1412 = vpop.f32.mrb[0].mxu0
      %v1413 = vadd.f32 %v411, %v1412
      %v1414 = vpop.f32.mrb[0].mxu0
      %v1415 = vadd.f32 %v415, %v1414
      %v1416 = vpop.f32.mrb[0].mxu0
      %v1417 = vadd.f32 %v411, %v1416
      %v1418 = vpop.f32.mrb[0].mxu0
      %v1419 = vadd.f32 %v415, %v1418
      %1420 = vmatprep.mubr.bf16.mxu0 %v807
      %1421 = vmatmul.mubr.bf16.gmra.mrb[0].mxu0 %v806
      %v1422 = vpop.f32.mrb[0].mxu0
      %v1423 = vadd.f32 %v411, %v1422
      %v1424 = vpop.f32.mrb[0].mxu0
      %v1425 = vadd.f32 %v415, %v1424
      %v1426 = vpop.f32.mrb[0].mxu0
      %v1427 = vadd.f32 %v411, %v1426
      %v1428 = vpop.f32.mrb[0].mxu0
      %v1429 = vadd.f32 %v415, %v1428
      %1430 = vmatprep.mubr.bf16.mxu0 %v811
      %1431 = vmatmul.mubr.bf16.gmra.mrb[0].mxu0 %v810
      %v1432 = vpop.f32.mrb[0].mxu0
      %v1433 = vadd.f32 %v411, %v1432
      %v1434 = vpop.f32.mrb[0].mxu0
      %v1435 = vadd.f32 %v415, %v1434
      %v1436 = vpop.f32.mrb[0].mxu0
      %v1437 = vadd.f32 %v411, %v1436
      %v1438 = vpop.f32.mrb[0].mxu0
      %v1439 = vadd.f32 %v415, %v1438
      %1440 = vmatprep.mubr.bf16.mxu0 %v815
      %1441 = vmatmul.mubr.bf16.gmra.mrb[0].mxu0 %v814
      %v1442 = vpop.f32.mrb[0].mxu0
      %v1443 = vadd.f32 %v411, %v1442
      %v1444 = vpop.f32.mrb[0].mxu0
      %v1445 = vadd.f32 %v415, %v1444
      %v1446 = vpop.f32.mrb[0].mxu0
      %v1447 = vadd.f32 %v411, %v1446
      %v1448 = vpop.f32.mrb[0].mxu0
      %v1449 = vadd.f32 %v415, %v1448
      %1450 = vmatprep.mubr.bf16.mxu0 %v819
      %1451 = vmatmul.mubr.bf16.gmra.mrb[0].mxu0 %v818
      %v1452 = vpop.f32.mrb[0].mxu0
      %v1453 = vadd.f32 %v411, %v1452
      %v1454 = vpop.f32.mrb[0].mxu0
      %v1455 = vadd.f32 %v415, %v1454
      %v1456 = vpop.f32.mrb[0].mxu0
      %v1457 = vadd.f32 %v411, %v1456
      %v1458 = vpop.f32.mrb[0].mxu0
      %v1459 = vadd.f32 %v415, %v1458
      %1460 = vmatprep.mubr.bf16.mxu0 %v823
      %1461 = vmatmul.mubr.bf16.gmra.mrb[0].mxu0 %v822
      %v1462 = vpop.f32.mrb[0].mxu0
      %v1463 = vadd.f32 %v411, %v1462
      %v1464 = vpop.f32.mrb[0].mxu0
      %v1465 = vadd.f32 %v415, %v1464
      %v1466 = vpop.f32.mrb[0].mxu0
      %v1467 = vadd.f32 %v411, %v1466
      %v1468 = vpop.f32.mrb[0].mxu0
      %v1469 = vadd.f32 %v415, %v1468
      %1470 = vmatprep.mubr.bf16.mxu0 %v827
      %1471 = vmatmul.mubr.bf16.gmra.mrb[0].mxu0 %v826
      %v1472 = vpop.f32.mrb[0].mxu0
      %v1473 = vadd.f32 %v411, %v1472
      %v1474 = vpop.f32.mrb[0].mxu0
      %v1475 = vadd.f32 %v415, %v1474
      %v1476 = vpop.f32.mrb[0].mxu0
      %v1477 = vadd.f32 %v411, %v1476
      %v1478 = vpop.f32.mrb[0].mxu0
      %v1479 = vadd.f32 %v415, %v1478
      %1480 = vmatprep.mubr.bf16.mxu0 %v831
      %1481 = vmatmul.mubr.bf16.gmra.mrb[0].mxu0 %v830
      %v1482 = vpop.f32.mrb[0].mxu0
      %v1483 = vadd.f32 %v411, %v1482
      %v1484 = vpop.f32.mrb[0].mxu0
      %v1485 = vadd.f32 %v415, %v1484
      %v1486 = vpop.f32.mrb[0].mxu0
      %v1487 = vadd.f32 %v411, %v1486
      %v1488 = vpop.f32.mrb[0].mxu0
      %v1489 = vadd.f32 %v415, %v1488
      %1490 = vmatprep.mubr.bf16.mxu0 %v835
      %1491 = vmatmul.mubr.bf16.gmra.mrb[0].mxu0 %v834
      %v1492 = vpop.f32.mrb[0].mxu0
      %v1493 = vadd.f32 %v411, %v1492
      %v1494 = vpop.f32.mrb[0].mxu0
      %v1495 = vadd.f32 %v415, %v1494
      %v1496 = vpop.f32.mrb[0].mxu0
      %v1497 = vadd.f32 %v411, %v1496
      %v1498 = vpop.f32.mrb[0].mxu0
      %v1499 = vadd.f32 %v415, %v1498
      %1500 = vmatprep.mubr.bf16.mxu0 %v839
      %1501 = vmatmul.mubr.bf16.gmra.mrb[0].mxu0 %v838
      %v1502 = vpop.f32.mrb[0].mxu0
      %v1503 = vadd.f32 %v411, %v1502
      %v1504 = vpop.f32.mrb[0].mxu0
      %v1505 = vadd.f32 %v415, %v1504
      %v1506 = vpop.f32.mrb[0].mxu0
      %v1507 = vadd.f32 %v411, %v1506
      %v1508 = vpop.f32.mrb[0].mxu0
      %v1509 = vadd.f32 %v415, %v1508
      %1510 = vmatprep.mubr.bf16.mxu0 %v843
      %1511 = vmatmul.mubr.bf16.gmra.mrb[0].mxu0 %v842
      %v1512 = vpop.f32.mrb[0].mxu0
      %v1513 = vadd.f32 %v411, %v1512
      %v1514 = vpop.f32.mrb[0].mxu0
      %v1515 = vadd.f32 %v415, %v1514
      %v1516 = vpop.f32.mrb[0].mxu0
      %v1517 = vadd.f32 %v411, %v1516
      %v1518 = vpop.f32.mrb[0].mxu0
      %v1519 = vadd.f32 %v415, %v1518
      %1520 = vmatprep.mubr.bf16.mxu0 %v847
      %1521 = vmatmul.mubr.bf16.gmra.mrb[0].mxu0 %v846
      %v1522 = vpop.f32.mrb[0].mxu0
      %v1523 = vadd.f32 %v411, %v1522
      %v1524 = vpop.f32.mrb[0].mxu0
      %v1525 = vadd.f32 %v415, %v1524
      %v1526 = vpop.f32.mrb[0].mxu0
      %v1527 = vadd.f32 %v411, %v1526
      %v1528 = vpop.f32.mrb[0].mxu0
      %v1529 = vadd.f32 %v415, %v1528
      %1530 = vmatprep.mubr.bf16.mxu0 %v851
      %1531 = vmatmul.mubr.bf16.gmra.mrb[0].mxu0 %v850
      %v1532 = vpop.f32.mrb[0].mxu0
      %v1533 = vadd.f32 %v411, %v1532
      %v1534 = vpop.f32.mrb[0].mxu0
      %v1535 = vadd.f32 %v415, %v1534
      %v1536 = vpop.f32.mrb[0].mxu0
      %v1537 = vadd.f32 %v411, %v1536
      %v1538 = vpop.f32.mrb[0].mxu0
      %v1539 = vadd.f32 %v415, %v1538
      %1540 = vmatprep.mubr.bf16.mxu0 %v855
      %1541 = vmatmul.mubr.bf16.gmra.mrb[0].mxu0 %v854
      %v1542 = vpop.f32.mrb[0].mxu0
      %v1543 = vadd.f32 %v411, %v1542
      %v1544 = vpop.f32.mrb[0].mxu0
      %v1545 = vadd.f32 %v415, %v1544
      %v1546 = vpop.f32.mrb[0].mxu0
      %v1547 = vadd.f32 %v411, %v1546
      %v1548 = vpop.f32.mrb[0].mxu0
      %v1549 = vadd.f32 %v415, %v1548
      %1550 = vmatprep.mubr.bf16.mxu0 %v859
      %1551 = vmatmul.mubr.bf16.gmra.mrb[0].mxu0 %v858
      %v1552 = vpop.f32.mrb[0].mxu0
      %v1553 = vadd.f32 %v411, %v1552
      %v1554 = vpop.f32.mrb[0].mxu0
      %v1555 = vadd.f32 %v415, %v1554
      %v1556 = vpop.f32.mrb[0].mxu0
      %v1557 = vadd.f32 %v411, %v1556
      %v1558 = vpop.f32.mrb[0].mxu0
      %v1559 = vadd.f32 %v415, %v1558
      %1560 = vmatprep.mubr.bf16.mxu0 %v863
      %1561 = vmatmul.mubr.bf16.gmra.mrb[0].mxu0 %v862
      %v1562 = vpop.f32.mrb[0].mxu0
      %v1563 = vadd.f32 %v411, %v1562
      %v1564 = vpop.f32.mrb[0].mxu0
      %v1565 = vadd.f32 %v415, %v1564
      %v1566 = vpop.f32.mrb[0].mxu0
      %v1567 = vadd.f32 %v411, %v1566
      %v1568 = vpop.f32.mrb[0].mxu0
      %v1569 = vadd.f32 %v415, %v1568
      %1570 = vmatprep.mubr.bf16.mxu0 %v867
      %1571 = vmatmul.mubr.bf16.gmra.mrb[0].mxu0 %v866
      %v1572 = vpop.f32.mrb[0].mxu0
      %v1573 = vadd.f32 %v411, %v1572
      %v1574 = vpop.f32.mrb[0].mxu0
      %v1575 = vadd.f32 %v415, %v1574
      %v1576 = vpop.f32.mrb[0].mxu0
      %v1577 = vadd.f32 %v411, %v1576
      %v1578 = vpop.f32.mrb[0].mxu0
      %v1579 = vadd.f32 %v415, %v1578
      %1580 = vmatprep.mubr.bf16.mxu0 %v871
      %1581 = vmatmul.mubr.bf16.gmra.mrb[0].mxu0 %v870
      %v1582 = vpop.f32.mrb[0].mxu0
      %v1583 = vadd.f32 %v411, %v1582
      %v1584 = vpop.f32.mrb[0].mxu0
      %v1585 = vadd.f32 %v415, %v1584
      %v1586 = vpop.f32.mrb[0].mxu0
      %v1587 = vadd.f32 %v411, %v1586
      %v1588 = vpop.f32.mrb[0].mxu0
      %v1589 = vadd.f32 %v415, %v1588
      %1590 = vmatprep.mubr.bf16.mxu0 %v875
      %1591 = vmatmul.mubr.bf16.gmra.mrb[0].mxu0 %v874
      %v1592 = vpop.f32.mrb[0].mxu0
      %v1593 = vadd.f32 %v411, %v1592
      %v1594 = vpop.f32.mrb[0].mxu0
      %v1595 = vadd.f32 %v415, %v1594
      %v1596 = vpop.f32.mrb[0].mxu0
      %v1597 = vadd.f32 %v411, %v1596
      %v1598 = vpop.f32.mrb[0].mxu0
      %v1599 = vadd.f32 %v415, %v1598
      %1600 = vmatprep.mubr.bf16.mxu0 %v879
      %1601 = vmatmul.mubr.bf16.gmra.mrb[0].mxu0 %v878
      %v1602 = vpop.f32.mrb[0].mxu0
      %v1603 = vadd.f32 %v411, %v1602
      %v1604 = vpop.f32.mrb[0].mxu0
      %v1605 = vadd.f32 %v415, %v1604
      %v1606 = vpop.f32.mrb[0].mxu0
      %v1607 = vadd.f32 %v411, %v1606
      %v1608 = vpop.f32.mrb[0].mxu0
      %v1609 = vadd.f32 %v415, %v1608
      %1610 = vmatprep.mubr.bf16.mxu0 %v883
      %1611 = vmatmul.mubr.bf16.gmra.mrb[0].mxu0 %v882
      %v1612 = vpop.f32.mrb[0].mxu0
      %v1613 = vadd.f32 %v411, %v1612
      %v1614 = vpop.f32.mrb[0].mxu0
      %v1615 = vadd.f32 %v415, %v1614
      %v1616 = vpop.f32.mrb[0].mxu0
      %v1617 = vadd.f32 %v411, %v1616
      %v1618 = vpop.f32.mrb[0].mxu0
      %v1619 = vadd.f32 %v415, %v1618
      %1620 = vmatprep.mubr.bf16.mxu0 %v887
      %1621 = vmatmul.mubr.bf16.gmra.mrb[0].mxu0 %v886
      %v1622 = vpop.f32.mrb[0].mxu0
      %v1623 = vadd.f32 %v411, %v1622
      %v1624 = vpop.f32.mrb[0].mxu0
      %v1625 = vadd.f32 %v415, %v1624
      %v1626 = vpop.f32.mrb[0].mxu0
      %v1627 = vadd.f32 %v411, %v1626
      %v1628 = vpop.f32.mrb[0].mxu0
      %v1629 = vadd.f32 %v415, %v1628
      %1630 = vmatprep.mubr.bf16.mxu0 %v891
      %1631 = vmatmul.mubr.bf16.gmra.mrb[0].mxu0 %v890
      %v1632 = vpop.f32.mrb[0].mxu0
      %v1633 = vadd.f32 %v411, %v1632
      %v1634 = vpop.f32.mrb[0].mxu0
      %v1635 = vadd.f32 %v415, %v1634
      %v1636 = vpop.f32.mrb[0].mxu0
      %v1637 = vadd.f32 %v411, %v1636
      %v1638 = vpop.f32.mrb[0].mxu0
      %v1639 = vadd.f32 %v415, %v1638
      %1640 = vmatprep.mubr.bf16.mxu0 %v895
      %1641 = vmatmul.mubr.bf16.gmra.mrb[0].mxu0 %v894
      %v1642 = vpop.f32.mrb[0].mxu0
      %v1643 = vadd.f32 %v411, %v1642
      %v1644 = vpop.f32.mrb[0].mxu0
      %v1645 = vadd.f32 %v415, %v1644
      %v1646 = vpop.f32.mrb[0].mxu0
      %v1647 = vadd.f32 %v411, %v1646
      %v1648 = vpop.f32.mrb[0].mxu0
      %v1649 = vadd.f32 %v415, %v1648
      %1650 = vmatprep.mubr.bf16.mxu0 %v899
      %1651 = vmatmul.mubr.bf16.gmra.mrb[0].mxu0 %v898
      %v1652 = vpop.f32.mrb[0].mxu0
      %v1653 = vadd.f32 %v411, %v1652
      %v1654 = vpop.f32.mrb[0].mxu0
      %v1655 = vadd.f32 %v415, %v1654
      %v1656 = vpop.f32.mrb[0].mxu0
      %v1657 = vadd.f32 %v411, %v1656
      %v1658 = vpop.f32.mrb[0].mxu0
      %v1659 = vadd.f32 %v415, %v1658
      %1660 = vmatprep.mubr.bf16.mxu0 %v903
      %1661 = vmatmul.mubr.bf16.gmra.mrb[0].mxu0 %v902
      %v1662 = vpop.f32.mrb[0].mxu0
      %v1663 = vadd.f32 %v411, %v1662
      %v1664 = vpop.f32.mrb[0].mxu0
      %v1665 = vadd.f32 %v415, %v1664
      %v1666 = vpop.f32.mrb[0].mxu0
      %v1667 = vadd.f32 %v411, %v1666
      %v1668 = vpop.f32.mrb[0].mxu0
      %v1669 = vadd.f32 %v415, %v1668
      %1670 = vmatprep.mubr.bf16.mxu0 %v907
      %1671 = vmatmul.mubr.bf16.gmra.mrb[0].mxu0 %v906
      %v1672 = vpop.f32.mrb[0].mxu0
      %v1673 = vadd.f32 %v411, %v1672
      %v1674 = vpop.f32.mrb[0].mxu0
      %v1675 = vadd.f32 %v415, %v1674
      %v1676 = vpop.f32.mrb[0].mxu0
      %v1677 = vadd.f32 %v411, %v1676
      %v1678 = vpop.f32.mrb[0].mxu0
      %v1679 = vadd.f32 %v415, %v1678
      %1680 = vmatprep.mubr.bf16.mxu0 %v911
      %1681 = vmatmul.mubr.bf16.gmra.mrb[0].mxu0 %v910
      %v1682 = vpop.f32.mrb[0].mxu0
      %v1683 = vadd.f32 %v411, %v1682
      %v1684 = vpop.f32.mrb[0].mxu0
      %v1685 = vadd.f32 %v415, %v1684
      %v1686 = vpop.f32.mrb[0].mxu0
      %v1687 = vadd.f32 %v411, %v1686
      %v1688 = vpop.f32.mrb[0].mxu0
      %v1689 = vadd.f32 %v415, %v1688
      %1690 = vmatprep.mubr.bf16.mxu0 %v915
      %1691 = vmatmul.mubr.bf16.gmra.mrb[0].mxu0 %v914
      %v1692 = vpop.f32.mrb[0].mxu0
      %v1693 = vadd.f32 %v411, %v1692
      %v1694 = vpop.f32.mrb[0].mxu0
      %v1695 = vadd.f32 %v415, %v1694
      %v1696 = vpop.f32.mrb[0].mxu0
      %v1697 = vadd.f32 %v411, %v1696
      %v1698 = vpop.f32.mrb[0].mxu0
      %v1699 = vadd.f32 %v415, %v1698
      %1700 = vmatprep.mubr.bf16.mxu0 %v919
      %1701 = vmatmul.mubr.bf16.gmra.mrb[0].mxu0 %v918
      %v1702 = vpop.f32.mrb[0].mxu0
      %v1703 = vadd.f32 %v411, %v1702
      %v1704 = vpop.f32.mrb[0].mxu0
      %v1705 = vadd.f32 %v415, %v1704
      %v1706 = vpop.f32.mrb[0].mxu0
      %v1707 = vadd.f32 %v411, %v1706
      %v1708 = vpop.f32.mrb[0].mxu0
      %v1709 = vadd.f32 %v415, %v1708
      %1710 = vmatprep.mubr.bf16.mxu0 %v923
      %1711 = vmatmul.mubr.bf16.gmra.mrb[0].mxu0 %v922
      %v1712 = vpop.f32.mrb[0].mxu0
      %v1713 = vadd.f32 %v411, %v1712
      %v1714 = vpop.f32.mrb[0].mxu0
      %v1715 = vadd.f32 %v415, %v1714
      %v1716 = vpop.f32.mrb[0].mxu0
      %v1717 = vadd.f32 %v411, %v1716
      %v1718 = vpop.f32.mrb[0].mxu0
      %v1719 = vadd.f32 %v415, %v1718
      %1720 = vmatprep.mubr.bf16.mxu0 %v927
      %1721 = vmatmul.mubr.bf16.gmra.mrb[0].mxu0 %v926
      %v1722 = vpop.f32.mrb[0].mxu0
      %v1723 = vadd.f32 %v411, %v1722
      %v1724 = vpop.f32.mrb[0].mxu0
      %v1725 = vadd.f32 %v415, %v1724
      %v1726 = vpop.f32.mrb[0].mxu0
      %v1727 = vadd.f32 %v411, %v1726
      %v1728 = vpop.f32.mrb[0].mxu0
      %v1729 = vadd.f32 %v415, %v1728
      %1730 = vdwg.mxu0
      %1731 = vmatprep.subr.bf16.mxu0 %v1283
      %1732 = vmatpush1.bf16.msra.mxu0 %v1282
      %1733 = vmatprep.subr.bf16.mxu0 %v1285
      %1734 = vmatpush1.bf16.msra.mxu0 %v1284
      %1735 = vmatprep.subr.bf16.mxu0 %v1287
      %1736 = vmatpush1.bf16.msra.mxu0 %v1286
      %1737 = vmatprep.subr.bf16.mxu0 %v1289
      %1738 = vmatpush1.bf16.msra.mxu0 %v1288
      %1739 = vmatprep.subr.bf16.mxu0 %v1291
      %1740 = vmatpush1.bf16.msra.mxu0 %v1290
      %1741 = vmatprep.subr.bf16.mxu0 %v1293
      %1742 = vmatpush1.bf16.msra.mxu0 %v1292
      %1743 = vmatprep.subr.bf16.mxu0 %v1295
      %1744 = vmatpush1.bf16.msra.mxu0 %v1294
      %1745 = vmatprep.subr.bf16.mxu0 %v1297
      %1746 = vmatpush1.bf16.msra.mxu0 %v1296
      %1747 = vmatprep.subr.bf16.mxu0 %v1299
      %1748 = vmatpush1.bf16.msra.mxu0 %v1298
      %1749 = vmatprep.subr.bf16.mxu0 %v1301
      %1750 = vmatpush1.bf16.msra.mxu0 %v1300
      %1751 = vmatprep.subr.bf16.mxu0 %v1303
      %1752 = vmatpush1.bf16.msra.mxu0 %v1302
      %1753 = vmatprep.subr.bf16.mxu0 %v1305
      %1754 = vmatpush1.bf16.msra.mxu0 %v1304
      %1755 = vmatprep.subr.bf16.mxu0 %v1307
      %1756 = vmatpush1.bf16.msra.mxu0 %v1306
      %1757 = vmatprep.subr.bf16.mxu0 %v1309
      %1758 = vmatpush1.bf16.msra.mxu0 %v1308
      %1759 = vmatprep.subr.bf16.mxu0 %v1311
      %1760 = vmatpush1.bf16.msra.mxu0 %v1310
      %1761 = vmatprep.subr.bf16.mxu0 %v1313
      %1762 = vmatpush1.bf16.msra.mxu0 %v1312
      %1763 = vmatprep.mubr.bf16.mxu0 %v805
      %1764 = vmatmul.mubr.bf16.gmra.mrb[0].mxu0 %v804
      %v1765 = vpop.f32.mrb[0].mxu0
      %v1766 = vadd.f32 %v1413, %v1765
      %v1767 = vpop.f32.mrb[0].mxu0
      %v1768 = vadd.f32 %v1415, %v1767
      %v1769 = vpop.f32.mrb[0].mxu0
      %v1770 = vadd.f32 %v1417, %v1769
      %v1771 = vpop.f32.mrb[0].mxu0
      %v1772 = vadd.f32 %v1419, %v1771
      %1773 = vmatprep.mubr.bf16.mxu0 %v809
      %1774 = vmatmul.mubr.bf16.gmra.mrb[0].mxu0 %v808
      %v1775 = vpop.f32.mrb[0].mxu0
      %v1776 = vadd.f32 %v1423, %v1775
      %v1777 = vpop.f32.mrb[0].mxu0
      %v1778 = vadd.f32 %v1425, %v1777
      %v1779 = vpop.f32.mrb[0].mxu0
      %v1780 = vadd.f32 %v1427, %v1779
      %v1781 = vpop.f32.mrb[0].mxu0
      %v1782 = vadd.f32 %v1429, %v1781
      %1783 = vmatprep.mubr.bf16.mxu0 %v813
      %1784 = vmatmul.mubr.bf16.gmra.mrb[0].mxu0 %v812
      %v1785 = vpop.f32.mrb[0].mxu0
      %v1786 = vadd.f32 %v1433, %v1785
      %v1787 = vpop.f32.mrb[0].mxu0
      %v1788 = vadd.f32 %v1435, %v1787
      %v1789 = vpop.f32.mrb[0].mxu0
      %v1790 = vadd.f32 %v1437, %v1789
      %v1791 = vpop.f32.mrb[0].mxu0
      %v1792 = vadd.f32 %v1439, %v1791
      %1793 = vmatprep.mubr.bf16.mxu0 %v817
      %1794 = vmatmul.mubr.bf16.gmra.mrb[0].mxu0 %v816
      %v1795 = vpop.f32.mrb[0].mxu0
      %v1796 = vadd.f32 %v1443, %v1795
      %v1797 = vpop.f32.mrb[0].mxu0
      %v1798 = vadd.f32 %v1445, %v1797
      %v1799 = vpop.f32.mrb[0].mxu0
      %v1800 = vadd.f32 %v1447, %v1799
      %v1801 = vpop.f32.mrb[0].mxu0
      %v1802 = vadd.f32 %v1449, %v1801
      %1803 = vmatprep.mubr.bf16.mxu0 %v821
      %1804 = vmatmul.mubr.bf16.gmra.mrb[0].mxu0 %v820
      %v1805 = vpop.f32.mrb[0].mxu0
      %v1806 = vadd.f32 %v1453, %v1805
      %v1807 = vpop.f32.mrb[0].mxu0
      %v1808 = vadd.f32 %v1455, %v1807
      %v1809 = vpop.f32.mrb[0].mxu0
      %v1810 = vadd.f32 %v1457, %v1809
      %v1811 = vpop.f32.mrb[0].mxu0
      %v1812 = vadd.f32 %v1459, %v1811
      %1813 = vmatprep.mubr.bf16.mxu0 %v825
      %1814 = vmatmul.mubr.bf16.gmra.mrb[0].mxu0 %v824
      %v1815 = vpop.f32.mrb[0].mxu0
      %v1816 = vadd.f32 %v1463, %v1815
      %v1817 = vpop.f32.mrb[0].mxu0
      %v1818 = vadd.f32 %v1465, %v1817
      %v1819 = vpop.f32.mrb[0].mxu0
      %v1820 = vadd.f32 %v1467, %v1819
      %v1821 = vpop.f32.mrb[0].mxu0
      %v1822 = vadd.f32 %v1469, %v1821
      %1823 = vmatprep.mubr.bf16.mxu0 %v829
      %1824 = vmatmul.mubr.bf16.gmra.mrb[0].mxu0 %v828
      %v1825 = vpop.f32.mrb[0].mxu0
      %v1826 = vadd.f32 %v1473, %v1825
      %v1827 = vpop.f32.mrb[0].mxu0
      %v1828 = vadd.f32 %v1475, %v1827
      %v1829 = vpop.f32.mrb[0].mxu0
      %v1830 = vadd.f32 %v1477, %v1829
      %v1831 = vpop.f32.mrb[0].mxu0
      %v1832 = vadd.f32 %v1479, %v1831
      %1833 = vmatprep.mubr.bf16.mxu0 %v833
      %1834 = vmatmul.mubr.bf16.gmra.mrb[0].mxu0 %v832
      %v1835 = vpop.f32.mrb[0].mxu0
      %v1836 = vadd.f32 %v1483, %v1835
      %v1837 = vpop.f32.mrb[0].mxu0
      %v1838 = vadd.f32 %v1485, %v1837
      %v1839 = vpop.f32.mrb[0].mxu0
      %v1840 = vadd.f32 %v1487, %v1839
      %v1841 = vpop.f32.mrb[0].mxu0
      %v1842 = vadd.f32 %v1489, %v1841
      %1843 = vmatprep.mubr.bf16.mxu0 %v837
      %1844 = vmatmul.mubr.bf16.gmra.mrb[0].mxu0 %v836
      %v1845 = vpop.f32.mrb[0].mxu0
      %v1846 = vadd.f32 %v1493, %v1845
      %v1847 = vpop.f32.mrb[0].mxu0
      %v1848 = vadd.f32 %v1495, %v1847
      %v1849 = vpop.f32.mrb[0].mxu0
      %v1850 = vadd.f32 %v1497, %v1849
      %v1851 = vpop.f32.mrb[0].mxu0
      %v1852 = vadd.f32 %v1499, %v1851
      %1853 = vmatprep.mubr.bf16.mxu0 %v841
      %1854 = vmatmul.mubr.bf16.gmra.mrb[0].mxu0 %v840
      %v1855 = vpop.f32.mrb[0].mxu0
      %v1856 = vadd.f32 %v1503, %v1855
      %v1857 = vpop.f32.mrb[0].mxu0
      %v1858 = vadd.f32 %v1505, %v1857
      %v1859 = vpop.f32.mrb[0].mxu0
      %v1860 = vadd.f32 %v1507, %v1859
      %v1861 = vpop.f32.mrb[0].mxu0
      %v1862 = vadd.f32 %v1509, %v1861
      %1863 = vmatprep.mubr.bf16.mxu0 %v845
      %1864 = vmatmul.mubr.bf16.gmra.mrb[0].mxu0 %v844
      %v1865 = vpop.f32.mrb[0].mxu0
      %v1866 = vadd.f32 %v1513, %v1865
      %v1867 = vpop.f32.mrb[0].mxu0
      %v1868 = vadd.f32 %v1515, %v1867
      %v1869 = vpop.f32.mrb[0].mxu0
      %v1870 = vadd.f32 %v1517, %v1869
      %v1871 = vpop.f32.mrb[0].mxu0
      %v1872 = vadd.f32 %v1519, %v1871
      %1873 = vmatprep.mubr.bf16.mxu0 %v849
      %1874 = vmatmul.mubr.bf16.gmra.mrb[0].mxu0 %v848
      %v1875 = vpop.f32.mrb[0].mxu0
      %v1876 = vadd.f32 %v1523, %v1875
      %v1877 = vpop.f32.mrb[0].mxu0
      %v1878 = vadd.f32 %v1525, %v1877
      %v1879 = vpop.f32.mrb[0].mxu0
      %v1880 = vadd.f32 %v1527, %v1879
      %v1881 = vpop.f32.mrb[0].mxu0
      %v1882 = vadd.f32 %v1529, %v1881
      %1883 = vmatprep.mubr.bf16.mxu0 %v853
      %1884 = vmatmul.mubr.bf16.gmra.mrb[0].mxu0 %v852
      %v1885 = vpop.f32.mrb[0].mxu0
      %v1886 = vadd.f32 %v1533, %v1885
      %v1887 = vpop.f32.mrb[0].mxu0
      %v1888 = vadd.f32 %v1535, %v1887
      %v1889 = vpop.f32.mrb[0].mxu0
      %v1890 = vadd.f32 %v1537, %v1889
      %v1891 = vpop.f32.mrb[0].mxu0
      %v1892 = vadd.f32 %v1539, %v1891
      %1893 = vmatprep.mubr.bf16.mxu0 %v857
      %1894 = vmatmul.mubr.bf16.gmra.mrb[0].mxu0 %v856
      %v1895 = vpop.f32.mrb[0].mxu0
      %v1896 = vadd.f32 %v1543, %v1895
      %v1897 = vpop.f32.mrb[0].mxu0
      %v1898 = vadd.f32 %v1545, %v1897
      %v1899 = vpop.f32.mrb[0].mxu0
      %v1900 = vadd.f32 %v1547, %v1899
      %v1901 = vpop.f32.mrb[0].mxu0
      %v1902 = vadd.f32 %v1549, %v1901
      %1903 = vmatprep.mubr.bf16.mxu0 %v861
      %1904 = vmatmul.mubr.bf16.gmra.mrb[0].mxu0 %v860
      %v1905 = vpop.f32.mrb[0].mxu0
      %v1906 = vadd.f32 %v1553, %v1905
      %v1907 = vpop.f32.mrb[0].mxu0
      %v1908 = vadd.f32 %v1555, %v1907
      %v1909 = vpop.f32.mrb[0].mxu0
      %v1910 = vadd.f32 %v1557, %v1909
      %v1911 = vpop.f32.mrb[0].mxu0
      %v1912 = vadd.f32 %v1559, %v1911
      %1913 = vmatprep.mubr.bf16.mxu0 %v865
      %1914 = vmatmul.mubr.bf16.gmra.mrb[0].mxu0 %v864
      %v1915 = vpop.f32.mrb[0].mxu0
      %v1916 = vadd.f32 %v1563, %v1915
      %v1917 = vpop.f32.mrb[0].mxu0
      %v1918 = vadd.f32 %v1565, %v1917
      %v1919 = vpop.f32.mrb[0].mxu0
      %v1920 = vadd.f32 %v1567, %v1919
      %v1921 = vpop.f32.mrb[0].mxu0
      %v1922 = vadd.f32 %v1569, %v1921
      %1923 = vmatprep.mubr.bf16.mxu0 %v869
      %1924 = vmatmul.mubr.bf16.gmra.mrb[0].mxu0 %v868
      %v1925 = vpop.f32.mrb[0].mxu0
      %v1926 = vadd.f32 %v1573, %v1925
      %v1927 = vpop.f32.mrb[0].mxu0
      %v1928 = vadd.f32 %v1575, %v1927
      %v1929 = vpop.f32.mrb[0].mxu0
      %v1930 = vadd.f32 %v1577, %v1929
      %v1931 = vpop.f32.mrb[0].mxu0
      %v1932 = vadd.f32 %v1579, %v1931
      %1933 = vmatprep.mubr.bf16.mxu0 %v873
      %1934 = vmatmul.mubr.bf16.gmra.mrb[0].mxu0 %v872
      %v1935 = vpop.f32.mrb[0].mxu0
      %v1936 = vadd.f32 %v1583, %v1935
      %v1937 = vpop.f32.mrb[0].mxu0
      %v1938 = vadd.f32 %v1585, %v1937
      %v1939 = vpop.f32.mrb[0].mxu0
      %v1940 = vadd.f32 %v1587, %v1939
      %v1941 = vpop.f32.mrb[0].mxu0
      %v1942 = vadd.f32 %v1589, %v1941
      %1943 = vmatprep.mubr.bf16.mxu0 %v877
      %1944 = vmatmul.mubr.bf16.gmra.mrb[0].mxu0 %v876
      %v1945 = vpop.f32.mrb[0].mxu0
      %v1946 = vadd.f32 %v1593, %v1945
      %v1947 = vpop.f32.mrb[0].mxu0
      %v1948 = vadd.f32 %v1595, %v1947
      %v1949 = vpop.f32.mrb[0].mxu0
      %v1950 = vadd.f32 %v1597, %v1949
      %v1951 = vpop.f32.mrb[0].mxu0
      %v1952 = vadd.f32 %v1599, %v1951
      %1953 = vmatprep.mubr.bf16.mxu0 %v881
      %1954 = vmatmul.mubr.bf16.gmra.mrb[0].mxu0 %v880
      %v1955 = vpop.f32.mrb[0].mxu0
      %v1956 = vadd.f32 %v1603, %v1955
      %v1957 = vpop.f32.mrb[0].mxu0
      %v1958 = vadd.f32 %v1605, %v1957
      %v1959 = vpop.f32.mrb[0].mxu0
      %v1960 = vadd.f32 %v1607, %v1959
      %v1961 = vpop.f32.mrb[0].mxu0
      %v1962 = vadd.f32 %v1609, %v1961
      %1963 = vmatprep.mubr.bf16.mxu0 %v885
      %1964 = vmatmul.mubr.bf16.gmra.mrb[0].mxu0 %v884
      %v1965 = vpop.f32.mrb[0].mxu0
      %v1966 = vadd.f32 %v1613, %v1965
      %v1967 = vpop.f32.mrb[0].mxu0
      %v1968 = vadd.f32 %v1615, %v1967
      %v1969 = vpop.f32.mrb[0].mxu0
      %v1970 = vadd.f32 %v1617, %v1969
      %v1971 = vpop.f32.mrb[0].mxu0
      %v1972 = vadd.f32 %v1619, %v1971
      %1973 = vmatprep.mubr.bf16.mxu0 %v889
      %1974 = vmatmul.mubr.bf16.gmra.mrb[0].mxu0 %v888
      %v1975 = vpop.f32.mrb[0].mxu0
      %v1976 = vadd.f32 %v1623, %v1975
      %v1977 = vpop.f32.mrb[0].mxu0
      %v1978 = vadd.f32 %v1625, %v1977
      %v1979 = vpop.f32.mrb[0].mxu0
      %v1980 = vadd.f32 %v1627, %v1979
      %v1981 = vpop.f32.mrb[0].mxu0
      %v1982 = vadd.f32 %v1629, %v1981
      %1983 = vmatprep.mubr.bf16.mxu0 %v893
      %1984 = vmatmul.mubr.bf16.gmra.mrb[0].mxu0 %v892
      %v1985 = vpop.f32.mrb[0].mxu0
      %v1986 = vadd.f32 %v1633, %v1985
      %v1987 = vpop.f32.mrb[0].mxu0
      %v1988 = vadd.f32 %v1635, %v1987
      %v1989 = vpop.f32.mrb[0].mxu0
      %v1990 = vadd.f32 %v1637, %v1989
      %v1991 = vpop.f32.mrb[0].mxu0
      %v1992 = vadd.f32 %v1639, %v1991
      %1993 = vmatprep.mubr.bf16.mxu0 %v897
      %1994 = vmatmul.mubr.bf16.gmra.mrb[0].mxu0 %v896
      %v1995 = vpop.f32.mrb[0].mxu0
      %v1996 = vadd.f32 %v1643, %v1995
      %v1997 = vpop.f32.mrb[0].mxu0
      %v1998 = vadd.f32 %v1645, %v1997
      %v1999 = vpop.f32.mrb[0].mxu0
      %v2000 = vadd.f32 %v1647, %v1999
      %v2001 = vpop.f32.mrb[0].mxu0
      %v2002 = vadd.f32 %v1649, %v2001
      %2003 = vmatprep.mubr.bf16.mxu0 %v901
      %2004 = vmatmul.mubr.bf16.gmra.mrb[0].mxu0 %v900
      %v2005 = vpop.f32.mrb[0].mxu0
      %v2006 = vadd.f32 %v1653, %v2005
      %v2007 = vpop.f32.mrb[0].mxu0
      %v2008 = vadd.f32 %v1655, %v2007
      %v2009 = vpop.f32.mrb[0].mxu0
      %v2010 = vadd.f32 %v1657, %v2009
      %v2011 = vpop.f32.mrb[0].mxu0
      %v2012 = vadd.f32 %v1659, %v2011
      %2013 = vmatprep.mubr.bf16.mxu0 %v905
      %2014 = vmatmul.mubr.bf16.gmra.mrb[0].mxu0 %v904
      %v2015 = vpop.f32.mrb[0].mxu0
      %v2016 = vadd.f32 %v1663, %v2015
      %v2017 = vpop.f32.mrb[0].mxu0
      %v2018 = vadd.f32 %v1665, %v2017
      %v2019 = vpop.f32.mrb[0].mxu0
      %v2020 = vadd.f32 %v1667, %v2019
      %v2021 = vpop.f32.mrb[0].mxu0
      %v2022 = vadd.f32 %v1669, %v2021
      %2023 = vmatprep.mubr.bf16.mxu0 %v909
      %2024 = vmatmul.mubr.bf16.gmra.mrb[0].mxu0 %v908
      %v2025 = vpop.f32.mrb[0].mxu0
      %v2026 = vadd.f32 %v1673, %v2025
      %v2027 = vpop.f32.mrb[0].mxu0
      %v2028 = vadd.f32 %v1675, %v2027
      %v2029 = vpop.f32.mrb[0].mxu0
      %v2030 = vadd.f32 %v1677, %v2029
      %v2031 = vpop.f32.mrb[0].mxu0
      %v2032 = vadd.f32 %v1679, %v2031
      %2033 = vmatprep.mubr.bf16.mxu0 %v913
      %2034 = vmatmul.mubr.bf16.gmra.mrb[0].mxu0 %v912
      %v2035 = vpop.f32.mrb[0].mxu0
      %v2036 = vadd.f32 %v1683, %v2035
      %v2037 = vpop.f32.mrb[0].mxu0
      %v2038 = vadd.f32 %v1685, %v2037
      %v2039 = vpop.f32.mrb[0].mxu0
      %v2040 = vadd.f32 %v1687, %v2039
      %v2041 = vpop.f32.mrb[0].mxu0
      %v2042 = vadd.f32 %v1689, %v2041
      %2043 = vmatprep.mubr.bf16.mxu0 %v917
      %2044 = vmatmul.mubr.bf16.gmra.mrb[0].mxu0 %v916
      %v2045 = vpop.f32.mrb[0].mxu0
      %v2046 = vadd.f32 %v1693, %v2045
      %v2047 = vpop.f32.mrb[0].mxu0
      %v2048 = vadd.f32 %v1695, %v2047
      %v2049 = vpop.f32.mrb[0].mxu0
      %v2050 = vadd.f32 %v1697, %v2049
      %v2051 = vpop.f32.mrb[0].mxu0
      %v2052 = vadd.f32 %v1699, %v2051
      %2053 = vmatprep.mubr.bf16.mxu0 %v921
      %2054 = vmatmul.mubr.bf16.gmra.mrb[0].mxu0 %v920
      %v2055 = vpop.f32.mrb[0].mxu0
      %v2056 = vadd.f32 %v1703, %v2055
      %v2057 = vpop.f32.mrb[0].mxu0
      %v2058 = vadd.f32 %v1705, %v2057
      %v2059 = vpop.f32.mrb[0].mxu0
      %v2060 = vadd.f32 %v1707, %v2059
      %v2061 = vpop.f32.mrb[0].mxu0
      %v2062 = vadd.f32 %v1709, %v2061
      %2063 = vmatprep.mubr.bf16.mxu0 %v925
      %2064 = vmatmul.mubr.bf16.gmra.mrb[0].mxu0 %v924
      %v2065 = vpop.f32.mrb[0].mxu0
      %v2066 = vadd.f32 %v1713, %v2065
      %v2067 = vpop.f32.mrb[0].mxu0
      %v2068 = vadd.f32 %v1715, %v2067
      %v2069 = vpop.f32.mrb[0].mxu0
      %v2070 = vadd.f32 %v1717, %v2069
      %v2071 = vpop.f32.mrb[0].mxu0
      %v2072 = vadd.f32 %v1719, %v2071
      %2073 = vmatprep.mubr.bf16.mxu0 %v929
      %2074 = vmatmul.mubr.bf16.gmra.mrb[0].mxu0 %v928
      %v2075 = vpop.f32.mrb[0].mxu0
      %v2076 = vadd.f32 %v1723, %v2075
      %v2077 = vpop.f32.mrb[0].mxu0
      %v2078 = vadd.f32 %v1725, %v2077
      %v2079 = vpop.f32.mrb[0].mxu0
      %v2080 = vadd.f32 %v1727, %v2079
      %v2081 = vpop.f32.mrb[0].mxu0
      %v2082 = vadd.f32 %v1729, %v2081
      %2083 = vdwg.mxu0
      %v2084 = vpack.c.bf16 %v1770, %v1766
      %v2085 = vpack.c.bf16 %v1772, %v1768
      %v2086 = vpack.c.bf16 %v1780, %v1776
      %v2087 = vpack.c.bf16 %v1782, %v1778
      %v2088 = vpack.c.bf16 %v1790, %v1786
      %v2089 = vpack.c.bf16 %v1792, %v1788
      %v2090 = vpack.c.bf16 %v1800, %v1796
      %v2091 = vpack.c.bf16 %v1802, %v1798
      %v2092 = vpack.c.bf16 %v1810, %v1806
      %v2093 = vpack.c.bf16 %v1812, %v1808
      %v2094 = vpack.c.bf16 %v1820, %v1816
      %v2095 = vpack.c.bf16 %v1822, %v1818
      %v2096 = vpack.c.bf16 %v1830, %v1826
      %v2097 = vpack.c.bf16 %v1832, %v1828
      %v2098 = vpack.c.bf16 %v1840, %v1836
      %v2099 = vpack.c.bf16 %v1842, %v1838
      %v2100 = vpack.c.bf16 %v1850, %v1846
      %v2101 = vpack.c.bf16 %v1852, %v1848
      %v2102 = vpack.c.bf16 %v1860, %v1856
      %v2103 = vpack.c.bf16 %v1862, %v1858
      %v2104 = vpack.c.bf16 %v1870, %v1866
      %v2105 = vpack.c.bf16 %v1872, %v1868
      %v2106 = vpack.c.bf16 %v1880, %v1876
      %v2107 = vpack.c.bf16 %v1882, %v1878
      %v2108 = vpack.c.bf16 %v1890, %v1886
      %v2109 = vpack.c.bf16 %v1892, %v1888
      %v2110 = vpack.c.bf16 %v1900, %v1896
      %v2111 = vpack.c.bf16 %v1902, %v1898
      %v2112 = vpack.c.bf16 %v1910, %v1906
      %v2113 = vpack.c.bf16 %v1912, %v1908
      %v2114 = vpack.c.bf16 %v1920, %v1916
      %v2115 = vpack.c.bf16 %v1922, %v1918
      %v2116 = vpack.c.bf16 %v1930, %v1926
      %v2117 = vpack.c.bf16 %v1932, %v1928
      %v2118 = vpack.c.bf16 %v1940, %v1936
      %v2119 = vpack.c.bf16 %v1942, %v1938
      %v2120 = vpack.c.bf16 %v1950, %v1946
      %v2121 = vpack.c.bf16 %v1952, %v1948
      %v2122 = vpack.c.bf16 %v1960, %v1956
      %v2123 = vpack.c.bf16 %v1962, %v1958
      %v2124 = vpack.c.bf16 %v1970, %v1966
      %v2125 = vpack.c.bf16 %v1972, %v1968
      %v2126 = vpack.c.bf16 %v1980, %v1976
      %v2127 = vpack.c.bf16 %v1982, %v1978
      %v2128 = vpack.c.bf16 %v1990, %v1986
      %v2129 = vpack.c.bf16 %v1992, %v1988
      %v2130 = vpack.c.bf16 %v2000, %v1996
      %v2131 = vpack.c.bf16 %v2002, %v1998
      %v2132 = vpack.c.bf16 %v2010, %v2006
      %v2133 = vpack.c.bf16 %v2012, %v2008
      %v2134 = vpack.c.bf16 %v2020, %v2016
      %v2135 = vpack.c.bf16 %v2022, %v2018
      %v2136 = vpack.c.bf16 %v2030, %v2026
      %v2137 = vpack.c.bf16 %v2032, %v2028
      %v2138 = vpack.c.bf16 %v2040, %v2036
      %v2139 = vpack.c.bf16 %v2042, %v2038
      %v2140 = vpack.c.bf16 %v2050, %v2046
      %v2141 = vpack.c.bf16 %v2052, %v2048
      %v2142 = vpack.c.bf16 %v2060, %v2056
      %v2143 = vpack.c.bf16 %v2062, %v2058
      %v2144 = vpack.c.bf16 %v2070, %v2066
      %v2145 = vpack.c.bf16 %v2072, %v2068
      %v2146 = vpack.c.bf16 %v2080, %v2076
      %v2147 = vpack.c.bf16 %v2082, %v2078
      %v2212 = vunpack.c.l.b16 %v2084
      %v2213 = vunpack.c.l.b16 %v2085
      %v2214 = vunpack.c.h.b16 %v2084
      %v2215 = vunpack.c.h.b16 %v2085
      %v2216 = vunpack.c.l.b16 %v2086
      %v2217 = vunpack.c.l.b16 %v2087
      %v2218 = vunpack.c.h.b16 %v2086
      %v2219 = vunpack.c.h.b16 %v2087
      %v2220 = vunpack.c.l.b16 %v2088
      %v2221 = vunpack.c.l.b16 %v2089
      %v2222 = vunpack.c.h.b16 %v2088
      %v2223 = vunpack.c.h.b16 %v2089
      %v2224 = vunpack.c.l.b16 %v2090
      %v2225 = vunpack.c.l.b16 %v2091
      %v2226 = vunpack.c.h.b16 %v2090
      %v2227 = vunpack.c.h.b16 %v2091
      %v2228 = vunpack.c.l.b16 %v2092
      %v2229 = vunpack.c.l.b16 %v2093
      %v2230 = vunpack.c.h.b16 %v2092
      %v2231 = vunpack.c.h.b16 %v2093
      %v2232 = vunpack.c.l.b16 %v2094
      %v2233 = vunpack.c.l.b16 %v2095
      %v2234 = vunpack.c.h.b16 %v2094
      %v2235 = vunpack.c.h.b16 %v2095
      %v2236 = vunpack.c.l.b16 %v2096
      %v2237 = vunpack.c.l.b16 %v2097
      %v2238 = vunpack.c.h.b16 %v2096
      %v2239 = vunpack.c.h.b16 %v2097
      %v2240 = vunpack.c.l.b16 %v2098
      %v2241 = vunpack.c.l.b16 %v2099
      %v2242 = vunpack.c.h.b16 %v2098
      %v2243 = vunpack.c.h.b16 %v2099
      %v2244 = vunpack.c.l.b16 %v2100
      %v2245 = vunpack.c.l.b16 %v2101
      %v2246 = vunpack.c.h.b16 %v2100
      %v2247 = vunpack.c.h.b16 %v2101
      %v2248 = vunpack.c.l.b16 %v2102
      %v2249 = vunpack.c.l.b16 %v2103
      %v2250 = vunpack.c.h.b16 %v2102
      %v2251 = vunpack.c.h.b16 %v2103
      %v2252 = vunpack.c.l.b16 %v2104
      %v2253 = vunpack.c.l.b16 %v2105
      %v2254 = vunpack.c.h.b16 %v2104
      %v2255 = vunpack.c.h.b16 %v2105
      %v2256 = vunpack.c.l.b16 %v2106
      %v2257 = vunpack.c.l.b16 %v2107
      %v2258 = vunpack.c.h.b16 %v2106
      %v2259 = vunpack.c.h.b16 %v2107
      %v2260 = vunpack.c.l.b16 %v2108
      %v2261 = vunpack.c.l.b16 %v2109
      %v2262 = vunpack.c.h.b16 %v2108
      %v2263 = vunpack.c.h.b16 %v2109
      %v2264 = vunpack.c.l.b16 %v2110
      %v2265 = vunpack.c.l.b16 %v2111
      %v2266 = vunpack.c.h.b16 %v2110
      %v2267 = vunpack.c.h.b16 %v2111
      %v2268 = vunpack.c.l.b16 %v2112
      %v2269 = vunpack.c.l.b16 %v2113
      %v2270 = vunpack.c.h.b16 %v2112
      %v2271 = vunpack.c.h.b16 %v2113
      %v2272 = vunpack.c.l.b16 %v2114
      %v2273 = vunpack.c.l.b16 %v2115
      %v2274 = vunpack.c.h.b16 %v2114
      %v2275 = vunpack.c.h.b16 %v2115
      %v2276 = vunpack.c.l.b16 %v2116
      %v2277 = vunpack.c.l.b16 %v2117
      %v2278 = vunpack.c.h.b16 %v2116
      %v2279 = vunpack.c.h.b16 %v2117
      %v2280 = vunpack.c.l.b16 %v2118
      %v2281 = vunpack.c.l.b16 %v2119
      %v2282 = vunpack.c.h.b16 %v2118
      %v2283 = vunpack.c.h.b16 %v2119
      %v2284 = vunpack.c.l.b16 %v2120
      %v2285 = vunpack.c.l.b16 %v2121
      %v2286 = vunpack.c.h.b16 %v2120
      %v2287 = vunpack.c.h.b16 %v2121
      %v2288 = vunpack.c.l.b16 %v2122
      %v2289 = vunpack.c.l.b16 %v2123
      %v2290 = vunpack.c.h.b16 %v2122
      %v2291 = vunpack.c.h.b16 %v2123
      %v2292 = vunpack.c.l.b16 %v2124
      %v2293 = vunpack.c.l.b16 %v2125
      %v2294 = vunpack.c.h.b16 %v2124
      %v2295 = vunpack.c.h.b16 %v2125
      %v2296 = vunpack.c.l.b16 %v2126
      %v2297 = vunpack.c.l.b16 %v2127
      %v2298 = vunpack.c.h.b16 %v2126
      %v2299 = vunpack.c.h.b16 %v2127
      %v2300 = vunpack.c.l.b16 %v2128
      %v2301 = vunpack.c.l.b16 %v2129
      %v2302 = vunpack.c.h.b16 %v2128
      %v2303 = vunpack.c.h.b16 %v2129
      %v2304 = vunpack.c.l.b16 %v2130
      %v2305 = vunpack.c.l.b16 %v2131
      %v2306 = vunpack.c.h.b16 %v2130
      %v2307 = vunpack.c.h.b16 %v2131
      %v2308 = vunpack.c.l.b16 %v2132
      %v2309 = vunpack.c.l.b16 %v2133
      %v2310 = vunpack.c.h.b16 %v2132
      %v2311 = vunpack.c.h.b16 %v2133
      %v2312 = vunpack.c.l.b16 %v2134
      %v2313 = vunpack.c.l.b16 %v2135
      %v2314 = vunpack.c.h.b16 %v2134
      %v2315 = vunpack.c.h.b16 %v2135
      %v2316 = vunpack.c.l.b16 %v2136
      %v2317 = vunpack.c.l.b16 %v2137
      %v2318 = vunpack.c.h.b16 %v2136
      %v2319 = vunpack.c.h.b16 %v2137
      %v2320 = vunpack.c.l.b16 %v2138
      %v2321 = vunpack.c.l.b16 %v2139
      %v2322 = vunpack.c.h.b16 %v2138
      %v2323 = vunpack.c.h.b16 %v2139
      %v2324 = vunpack.c.l.b16 %v2140
      %v2325 = vunpack.c.l.b16 %v2141
      %v2326 = vunpack.c.h.b16 %v2140
      %v2327 = vunpack.c.h.b16 %v2141
      %v2328 = vunpack.c.l.b16 %v2142
      %v2329 = vunpack.c.l.b16 %v2143
      %v2330 = vunpack.c.h.b16 %v2142
      %v2331 = vunpack.c.h.b16 %v2143
      %v2332 = vunpack.c.l.b16 %v2144
      %v2333 = vunpack.c.l.b16 %v2145
      %v2334 = vunpack.c.h.b16 %v2144
      %v2335 = vunpack.c.h.b16 %v2145
      %v2336 = vunpack.c.l.b16 %v2146
      %v2337 = vunpack.c.l.b16 %v2147
      %v2338 = vunpack.c.h.b16 %v2146
      %v2339 = vunpack.c.h.b16 %v2147
      %v2340 = vpack.c.b16 %v2213, %v2212
      %v2341 = vpack.c.b16 %v2215, %v2214
      %v2342 = vpack.c.b16 %v2217, %v2216
      %v2343 = vpack.c.b16 %v2219, %v2218
      %v2344 = vpack.c.b16 %v2221, %v2220
      %v2345 = vpack.c.b16 %v2223, %v2222
      %v2346 = vpack.c.b16 %v2225, %v2224
      %v2347 = vpack.c.b16 %v2227, %v2226
      %v2348 = vpack.c.b16 %v2229, %v2228
      %v2349 = vpack.c.b16 %v2231, %v2230
      %v2350 = vpack.c.b16 %v2233, %v2232
      %v2351 = vpack.c.b16 %v2235, %v2234
      %v2352 = vpack.c.b16 %v2237, %v2236
      %v2353 = vpack.c.b16 %v2239, %v2238
      %v2354 = vpack.c.b16 %v2241, %v2240
      %v2355 = vpack.c.b16 %v2243, %v2242
      %v2356 = vpack.c.b16 %v2245, %v2244
      %v2357 = vpack.c.b16 %v2247, %v2246
      %v2358 = vpack.c.b16 %v2249, %v2248
      %v2359 = vpack.c.b16 %v2251, %v2250
      %v2360 = vpack.c.b16 %v2253, %v2252
      %v2361 = vpack.c.b16 %v2255, %v2254
      %v2362 = vpack.c.b16 %v2257, %v2256
      %v2363 = vpack.c.b16 %v2259, %v2258
      %v2364 = vpack.c.b16 %v2261, %v2260
      %v2365 = vpack.c.b16 %v2263, %v2262
      %v2366 = vpack.c.b16 %v2265, %v2264
      %v2367 = vpack.c.b16 %v2267, %v2266
      %v2368 = vpack.c.b16 %v2269, %v2268
      %v2369 = vpack.c.b16 %v2271, %v2270
      %v2370 = vpack.c.b16 %v2273, %v2272
      %v2371 = vpack.c.b16 %v2275, %v2274
      %v2372 = vpack.c.b16 %v2277, %v2276
      %v2373 = vpack.c.b16 %v2279, %v2278
      %v2374 = vpack.c.b16 %v2281, %v2280
      %v2375 = vpack.c.b16 %v2283, %v2282
      %v2376 = vpack.c.b16 %v2285, %v2284
      %v2377 = vpack.c.b16 %v2287, %v2286
      %v2378 = vpack.c.b16 %v2289, %v2288
      %v2379 = vpack.c.b16 %v2291, %v2290
      %v2380 = vpack.c.b16 %v2293, %v2292
      %v2381 = vpack.c.b16 %v2295, %v2294
      %v2382 = vpack.c.b16 %v2297, %v2296
      %v2383 = vpack.c.b16 %v2299, %v2298
      %v2384 = vpack.c.b16 %v2301, %v2300
      %v2385 = vpack.c.b16 %v2303, %v2302
      %v2386 = vpack.c.b16 %v2305, %v2304
      %v2387 = vpack.c.b16 %v2307, %v2306
      %v2388 = vpack.c.b16 %v2309, %v2308
      %v2389 = vpack.c.b16 %v2311, %v2310
      %v2390 = vpack.c.b16 %v2313, %v2312
      %v2391 = vpack.c.b16 %v2315, %v2314
      %v2392 = vpack.c.b16 %v2317, %v2316
      %v2393 = vpack.c.b16 %v2319, %v2318
      %v2394 = vpack.c.b16 %v2321, %v2320
      %v2395 = vpack.c.b16 %v2323, %v2322
      %v2396 = vpack.c.b16 %v2325, %v2324
      %v2397 = vpack.c.b16 %v2327, %v2326
      %v2398 = vpack.c.b16 %v2329, %v2328
      %v2399 = vpack.c.b16 %v2331, %v2330
      %v2400 = vpack.c.b16 %v2333, %v2332
      %v2401 = vpack.c.b16 %v2335, %v2334
      %v2402 = vpack.c.b16 %v2337, %v2336
      %v2403 = vpack.c.b16 %v2339, %v2338
      %2468 = vst [vmem:[%s202] sm:$0xff] %v2340
      %2469 = vst [vmem:[%s202 + $0x8] sm:$0xff] %v2341
      %2470 = vst [vmem:[%s202 + $0x10] sm:$0xff] %v2342
      %2471 = vst [vmem:[%s202 + $0x18] sm:$0xff] %v2343
      %2472 = vst [vmem:[%s202 + $0x20] sm:$0xff] %v2344
      %2473 = vst [vmem:[%s202 + $0x28] sm:$0xff] %v2345
      %2474 = vst [vmem:[%s202 + $0x30] sm:$0xff] %v2346
      %2475 = vst [vmem:[%s202 + $0x38] sm:$0xff] %v2347
      %2476 = vst [vmem:[%s202 + $0x40] sm:$0xff] %v2348
      %2477 = vst [vmem:[%s202 + $0x48] sm:$0xff] %v2349
      %2478 = vst [vmem:[%s202 + $0x50] sm:$0xff] %v2350
      %2479 = vst [vmem:[%s202 + $0x58] sm:$0xff] %v2351
      %2480 = vst [vmem:[%s202 + $0x60] sm:$0xff] %v2352
      %2481 = vst [vmem:[%s202 + $0x68] sm:$0xff] %v2353
      %2482 = vst [vmem:[%s202 + $0x70] sm:$0xff] %v2354
      %2483 = vst [vmem:[%s202 + $0x78] sm:$0xff] %v2355
      %2484 = vst [vmem:[%s202 + $0x80] sm:$0xff] %v2356
      %2485 = vst [vmem:[%s202 + $0x88] sm:$0xff] %v2357
      %2486 = vst [vmem:[%s202 + $0x90] sm:$0xff] %v2358
      %2487 = vst [vmem:[%s202 + $0x98] sm:$0xff] %v2359
      %2488 = vst [vmem:[%s202 + $0xa0] sm:$0xff] %v2360
      %2489 = vst [vmem:[%s202 + $0xa8] sm:$0xff] %v2361
      %2490 = vst [vmem:[%s202 + $0xb0] sm:$0xff] %v2362
      %2491 = vst [vmem:[%s202 + $0xb8] sm:$0xff] %v2363
      %2492 = vst [vmem:[%s202 + $0xc0] sm:$0xff] %v2364
      %2493 = vst [vmem:[%s202 + $0xc8] sm:$0xff] %v2365
      %2494 = vst [vmem:[%s202 + $0xd0] sm:$0xff] %v2366
      %2495 = vst [vmem:[%s202 + $0xd8] sm:$0xff] %v2367
      %2496 = vst [vmem:[%s202 + $0xe0] sm:$0xff] %v2368
      %2497 = vst [vmem:[%s202 + $0xe8] sm:$0xff] %v2369
      %2498 = vst [vmem:[%s202 + $0xf0] sm:$0xff] %v2370
      %2499 = vst [vmem:[%s202 + $0xf8] sm:$0xff] %v2371
      %2500 = vst [vmem:[%s202 + $0x100] sm:$0xff] %v2372
      %2501 = vst [vmem:[%s202 + $0x108] sm:$0xff] %v2373
      %2502 = vst [vmem:[%s202 + $0x110] sm:$0xff] %v2374
      %2503 = vst [vmem:[%s202 + $0x118] sm:$0xff] %v2375
      %2504 = vst [vmem:[%s202 + $0x120] sm:$0xff] %v2376
      %2505 = vst [vmem:[%s202 + $0x128] sm:$0xff] %v2377
      %2506 = vst [vmem:[%s202 + $0x130] sm:$0xff] %v2378
      %2507 = vst [vmem:[%s202 + $0x138] sm:$0xff] %v2379
      %2508 = vst [vmem:[%s202 + $0x140] sm:$0xff] %v2380
      %2509 = vst [vmem:[%s202 + $0x148] sm:$0xff] %v2381
      %2510 = vst [vmem:[%s202 + $0x150] sm:$0xff] %v2382
      %2511 = vst [vmem:[%s202 + $0x158] sm:$0xff] %v2383
      %2512 = vst [vmem:[%s202 + $0x160] sm:$0xff] %v2384
      %2513 = vst [vmem:[%s202 + $0x168] sm:$0xff] %v2385
      %2514 = vst [vmem:[%s202 + $0x170] sm:$0xff] %v2386
      %2515 = vst [vmem:[%s202 + $0x178] sm:$0xff] %v2387
      %2516 = vst [vmem:[%s202 + $0x180] sm:$0xff] %v2388
      %2517 = vst [vmem:[%s202 + $0x188] sm:$0xff] %v2389
      %2518 = vst [vmem:[%s202 + $0x190] sm:$0xff] %v2390
      %2519 = vst [vmem:[%s202 + $0x198] sm:$0xff] %v2391
      %2520 = vst [vmem:[%s202 + $0x1a0] sm:$0xff] %v2392
      %2521 = vst [vmem:[%s202 + $0x1a8] sm:$0xff] %v2393
      %2522 = vst [vmem:[%s202 + $0x1b0] sm:$0xff] %v2394
      %2523 = vst [vmem:[%s202 + $0x1b8] sm:$0xff] %v2395
      %2524 = vst [vmem:[%s202 + $0x1c0] sm:$0xff] %v2396
      %2525 = vst [vmem:[%s202 + $0x1c8] sm:$0xff] %v2397
      %2526 = vst [vmem:[%s202 + $0x1d0] sm:$0xff] %v2398
      %2527 = vst [vmem:[%s202 + $0x1d8] sm:$0xff] %v2399
      %2528 = vst [vmem:[%s202 + $0x1e0] sm:$0xff] %v2400
      %2529 = vst [vmem:[%s202 + $0x1e8] sm:$0xff] %v2401
      %2530 = vst [vmem:[%s202 + $0x1f0] sm:$0xff] %v2402
      %2531 = vst [vmem:[%s202 + $0x1f8] sm:$0xff] %v2403
      %v2532 = vunpack.c.l.bf16 %v2084
      %v2533 = vunpack.c.l.bf16 %v2085
      %v2534 = vunpack.c.h.bf16 %v2084
      %v2535 = vunpack.c.h.bf16 %v2085
      %v2536 = vunpack.c.l.bf16 %v2086
      %v2537 = vunpack.c.l.bf16 %v2087
      %v2538 = vunpack.c.h.bf16 %v2086
      %v2539 = vunpack.c.h.bf16 %v2087
      %v2540 = vunpack.c.l.bf16 %v2088
      %v2541 = vunpack.c.l.bf16 %v2089
      %v2542 = vunpack.c.h.bf16 %v2088
      %v2543 = vunpack.c.h.bf16 %v2089
      %v2544 = vunpack.c.l.bf16 %v2090
      %v2545 = vunpack.c.l.bf16 %v2091
      %v2546 = vunpack.c.h.bf16 %v2090
      %v2547 = vunpack.c.h.bf16 %v2091
      %v2548 = vunpack.c.l.bf16 %v2092
      %v2549 = vunpack.c.l.bf16 %v2093
      %v2550 = vunpack.c.h.bf16 %v2092
      %v2551 = vunpack.c.h.bf16 %v2093
      %v2552 = vunpack.c.l.bf16 %v2094
      %v2553 = vunpack.c.l.bf16 %v2095
      %v2554 = vunpack.c.h.bf16 %v2094
      %v2555 = vunpack.c.h.bf16 %v2095
      %v2556 = vunpack.c.l.bf16 %v2096
      %v2557 = vunpack.c.l.bf16 %v2097
      %v2558 = vunpack.c.h.bf16 %v2096
      %v2559 = vunpack.c.h.bf16 %v2097
      %v2560 = vunpack.c.l.bf16 %v2098
      %v2561 = vunpack.c.l.bf16 %v2099
      %v2562 = vunpack.c.h.bf16 %v2098
      %v2563 = vunpack.c.h.bf16 %v2099
      %v2564 = vunpack.c.l.bf16 %v2100
      %v2565 = vunpack.c.l.bf16 %v2101
      %v2566 = vunpack.c.h.bf16 %v2100
      %v2567 = vunpack.c.h.bf16 %v2101
      %v2568 = vunpack.c.l.bf16 %v2102
      %v2569 = vunpack.c.l.bf16 %v2103
      %v2570 = vunpack.c.h.bf16 %v2102
      %v2571 = vunpack.c.h.bf16 %v2103
      %v2572 = vunpack.c.l.bf16 %v2104
      %v2573 = vunpack.c.l.bf16 %v2105
      %v2574 = vunpack.c.h.bf16 %v2104
      %v2575 = vunpack.c.h.bf16 %v2105
      %v2576 = vunpack.c.l.bf16 %v2106
      %v2577 = vunpack.c.l.bf16 %v2107
      %v2578 = vunpack.c.h.bf16 %v2106
      %v2579 = vunpack.c.h.bf16 %v2107
      %v2580 = vunpack.c.l.bf16 %v2108
      %v2581 = vunpack.c.l.bf16 %v2109
      %v2582 = vunpack.c.h.bf16 %v2108
      %v2583 = vunpack.c.h.bf16 %v2109
      %v2584 = vunpack.c.l.bf16 %v2110
      %v2585 = vunpack.c.l.bf16 %v2111
      %v2586 = vunpack.c.h.bf16 %v2110
      %v2587 = vunpack.c.h.bf16 %v2111
      %v2588 = vunpack.c.l.bf16 %v2112
      %v2589 = vunpack.c.l.bf16 %v2113
      %v2590 = vunpack.c.h.bf16 %v2112
      %v2591 = vunpack.c.h.bf16 %v2113
      %v2592 = vunpack.c.l.bf16 %v2114
      %v2593 = vunpack.c.l.bf16 %v2115
      %v2594 = vunpack.c.h.bf16 %v2114
      %v2595 = vunpack.c.h.bf16 %v2115
      %v2596 = vunpack.c.l.bf16 %v2116
      %v2597 = vunpack.c.l.bf16 %v2117
      %v2598 = vunpack.c.h.bf16 %v2116
      %v2599 = vunpack.c.h.bf16 %v2117
      %v2600 = vunpack.c.l.bf16 %v2118
      %v2601 = vunpack.c.l.bf16 %v2119
      %v2602 = vunpack.c.h.bf16 %v2118
      %v2603 = vunpack.c.h.bf16 %v2119
      %v2604 = vunpack.c.l.bf16 %v2120
      %v2605 = vunpack.c.l.bf16 %v2121
      %v2606 = vunpack.c.h.bf16 %v2120
      %v2607 = vunpack.c.h.bf16 %v2121
      %v2608 = vunpack.c.l.bf16 %v2122
      %v2609 = vunpack.c.l.bf16 %v2123
      %v2610 = vunpack.c.h.bf16 %v2122
      %v2611 = vunpack.c.h.bf16 %v2123
      %v2612 = vunpack.c.l.bf16 %v2124
      %v2613 = vunpack.c.l.bf16 %v2125
      %v2614 = vunpack.c.h.bf16 %v2124
      %v2615 = vunpack.c.h.bf16 %v2125
      %v2616 = vunpack.c.l.bf16 %v2126
      %v2617 = vunpack.c.l.bf16 %v2127
      %v2618 = vunpack.c.h.bf16 %v2126
      %v2619 = vunpack.c.h.bf16 %v2127
      %v2620 = vunpack.c.l.bf16 %v2128
      %v2621 = vunpack.c.l.bf16 %v2129
      %v2622 = vunpack.c.h.bf16 %v2128
      %v2623 = vunpack.c.h.bf16 %v2129
      %v2624 = vunpack.c.l.bf16 %v2130
      %v2625 = vunpack.c.l.bf16 %v2131
      %v2626 = vunpack.c.h.bf16 %v2130
      %v2627 = vunpack.c.h.bf16 %v2131
      %v2628 = vunpack.c.l.bf16 %v2132
      %v2629 = vunpack.c.l.bf16 %v2133
      %v2630 = vunpack.c.h.bf16 %v2132
      %v2631 = vunpack.c.h.bf16 %v2133
      %v2632 = vunpack.c.l.bf16 %v2134
      %v2633 = vunpack.c.l.bf16 %v2135
      %v2634 = vunpack.c.h.bf16 %v2134
      %v2635 = vunpack.c.h.bf16 %v2135
      %v2636 = vunpack.c.l.bf16 %v2136
      %v2637 = vunpack.c.l.bf16 %v2137
      %v2638 = vunpack.c.h.bf16 %v2136
      %v2639 = vunpack.c.h.bf16 %v2137
      %v2640 = vunpack.c.l.bf16 %v2138
      %v2641 = vunpack.c.l.bf16 %v2139
      %v2642 = vunpack.c.h.bf16 %v2138
      %v2643 = vunpack.c.h.bf16 %v2139
      %v2644 = vunpack.c.l.bf16 %v2140
      %v2645 = vunpack.c.l.bf16 %v2141
      %v2646 = vunpack.c.h.bf16 %v2140
      %v2647 = vunpack.c.h.bf16 %v2141
      %v2648 = vunpack.c.l.bf16 %v2142
      %v2649 = vunpack.c.l.bf16 %v2143
      %v2650 = vunpack.c.h.bf16 %v2142
      %v2651 = vunpack.c.h.bf16 %v2143
      %v2652 = vunpack.c.l.bf16 %v2144
      %v2653 = vunpack.c.l.bf16 %v2145
      %v2654 = vunpack.c.h.bf16 %v2144
      %v2655 = vunpack.c.h.bf16 %v2145
      %v2656 = vunpack.c.l.bf16 %v2146
      %v2657 = vunpack.c.l.bf16 %v2147
      %v2658 = vunpack.c.h.bf16 %v2146
      %v2659 = vunpack.c.h.bf16 %v2147
      %s2660 = smul.u32 %s16, 512
      %v2661 = vlaneseq
      %v2662 = vshrl.u32 %v2661, 7
      %v2663 = vadd.s32 %v2662, 8
      %v2664 = vadd.s32 %v2662, 16
      %v2665 = vadd.s32 %v2662, 24
      %v2666 = vadd.s32 %v2662, 32
      %v2667 = vadd.s32 %v2662, 40
      %v2668 = vadd.s32 %v2662, 48
      %v2669 = vadd.s32 %v2662, 56
      %v2670 = vadd.s32 %v2662, 64
      %v2671 = vadd.s32 %v2662, 72
      %v2672 = vadd.s32 %v2662, 80
      %v2673 = vadd.s32 %v2662, 88
      %v2674 = vadd.s32 %v2662, 96
      %v2675 = vadd.s32 %v2662, 104
      %v2676 = vadd.s32 %v2662, 112
      %v2677 = vadd.s32 %v2662, 120
      %v2678 = vadd.s32 %v2662, 128
      %v2679 = vadd.s32 %v2662, 136
      %v2680 = vadd.s32 %v2662, 144
      %v2681 = vadd.s32 %v2662, 152
      %v2682 = vadd.s32 %v2662, 160
      %v2683 = vadd.s32 %v2662, 168
      %v2684 = vadd.s32 %v2662, 176
      %v2685 = vadd.s32 %v2662, 184
      %v2686 = vadd.s32 %v2662, 192
      %v2687 = vadd.s32 %v2662, 200
      %v2688 = vadd.s32 %v2662, 208
      %v2689 = vadd.s32 %v2662, 216
      %v2690 = vadd.s32 %v2662, 224
      %v2691 = vadd.s32 %v2662, 232
      %v2692 = vadd.s32 %v2662, 240
      %v2693 = vadd.s32 %v2662, 248
      %v2694 = vadd.s32 %v2662, 256
      %v2695 = vadd.s32 %v2662, 264
      %v2696 = vadd.s32 %v2662, 272
      %v2697 = vadd.s32 %v2662, 280
      %v2698 = vadd.s32 %v2662, 288
      %v2699 = vadd.s32 %v2662, 296
      %v2700 = vadd.s32 %v2662, 304
      %v2701 = vadd.s32 %v2662, 312
      %v2702 = vadd.s32 %v2662, 320
      %v2703 = vadd.s32 %v2662, 328
      %v2704 = vadd.s32 %v2662, 336
      %v2705 = vadd.s32 %v2662, 344
      %v2706 = vadd.s32 %v2662, 352
      %v2707 = vadd.s32 %v2662, 360
      %v2708 = vadd.s32 %v2662, 368
      %v2709 = vadd.s32 %v2662, 376
      %v2710 = vadd.s32 %v2662, 384
      %v2711 = vadd.s32 %v2662, 392
      %v2712 = vadd.s32 %v2662, 400
      %v2713 = vadd.s32 %v2662, 408
      %v2714 = vadd.s32 %v2662, 416
      %v2715 = vadd.s32 %v2662, 424
      %v2716 = vadd.s32 %v2662, 432
      %v2717 = vadd.s32 %v2662, 440
      %v2718 = vadd.s32 %v2662, 448
      %v2719 = vadd.s32 %v2662, 456
      %v2720 = vadd.s32 %v2662, 464
      %v2721 = vadd.s32 %v2662, 472
      %v2722 = vadd.s32 %v2662, 480
      %v2723 = vadd.s32 %v2662, 488
      %v2724 = vadd.s32 %v2662, 496
      %v2725 = vadd.s32 %v2662, 504
      %v2726 = vstv %s2660
      %v2727 = vadd.s32 %v2726, %v2662
      %v2728 = vadd.s32 %v2726, %v2663
      %v2729 = vadd.s32 %v2726, %v2664
      %v2730 = vadd.s32 %v2726, %v2665
      %v2731 = vadd.s32 %v2726, %v2666
      %v2732 = vadd.s32 %v2726, %v2667
      %v2733 = vadd.s32 %v2726, %v2668
      %v2734 = vadd.s32 %v2726, %v2669
      %v2735 = vadd.s32 %v2726, %v2670
      %v2736 = vadd.s32 %v2726, %v2671
      %v2737 = vadd.s32 %v2726, %v2672
      %v2738 = vadd.s32 %v2726, %v2673
      %v2739 = vadd.s32 %v2726, %v2674
      %v2740 = vadd.s32 %v2726, %v2675
      %v2741 = vadd.s32 %v2726, %v2676
      %v2742 = vadd.s32 %v2726, %v2677
      %v2743 = vadd.s32 %v2726, %v2678
      %v2744 = vadd.s32 %v2726, %v2679
      %v2745 = vadd.s32 %v2726, %v2680
      %v2746 = vadd.s32 %v2726, %v2681
      %v2747 = vadd.s32 %v2726, %v2682
      %v2748 = vadd.s32 %v2726, %v2683
      %v2749 = vadd.s32 %v2726, %v2684
      %v2750 = vadd.s32 %v2726, %v2685
      %v2751 = vadd.s32 %v2726, %v2686
      %v2752 = vadd.s32 %v2726, %v2687
      %v2753 = vadd.s32 %v2726, %v2688
      %v2754 = vadd.s32 %v2726, %v2689
      %v2755 = vadd.s32 %v2726, %v2690
      %v2756 = vadd.s32 %v2726, %v2691
      %v2757 = vadd.s32 %v2726, %v2692
      %v2758 = vadd.s32 %v2726, %v2693
      %v2759 = vadd.s32 %v2726, %v2694
      %v2760 = vadd.s32 %v2726, %v2695
      %v2761 = vadd.s32 %v2726, %v2696
      %v2762 = vadd.s32 %v2726, %v2697
      %v2763 = vadd.s32 %v2726, %v2698
      %v2764 = vadd.s32 %v2726, %v2699
      %v2765 = vadd.s32 %v2726, %v2700
      %v2766 = vadd.s32 %v2726, %v2701
      %v2767 = vadd.s32 %v2726, %v2702
      %v2768 = vadd.s32 %v2726, %v2703
      %v2769 = vadd.s32 %v2726, %v2704
      %v2770 = vadd.s32 %v2726, %v2705
      %v2771 = vadd.s32 %v2726, %v2706
      %v2772 = vadd.s32 %v2726, %v2707
      %v2773 = vadd.s32 %v2726, %v2708
      %v2774 = vadd.s32 %v2726, %v2709
      %v2775 = vadd.s32 %v2726, %v2710
      %v2776 = vadd.s32 %v2726, %v2711
      %v2777 = vadd.s32 %v2726, %v2712
      %v2778 = vadd.s32 %v2726, %v2713
      %v2779 = vadd.s32 %v2726, %v2714
      %v2780 = vadd.s32 %v2726, %v2715
      %v2781 = vadd.s32 %v2726, %v2716
      %v2782 = vadd.s32 %v2726, %v2717
      %v2783 = vadd.s32 %v2726, %v2718
      %v2784 = vadd.s32 %v2726, %v2719
      %v2785 = vadd.s32 %v2726, %v2720
      %v2786 = vadd.s32 %v2726, %v2721
      %v2787 = vadd.s32 %v2726, %v2722
      %v2788 = vadd.s32 %v2726, %v2723
      %v2789 = vadd.s32 %v2726, %v2724
      %v2790 = vadd.s32 %v2726, %v2725
      %vm2791 = vcmp.lt.s32.totalorder %v2727, 768
      %vm2792 = vcmp.lt.s32.totalorder %v2728, 768
      %vm2793 = vcmp.lt.s32.totalorder %v2729, 768
      %vm2794 = vcmp.lt.s32.totalorder %v2730, 768
      %vm2795 = vcmp.lt.s32.totalorder %v2731, 768
      %vm2796 = vcmp.lt.s32.totalorder %v2732, 768
      %vm2797 = vcmp.lt.s32.totalorder %v2733, 768
      %vm2798 = vcmp.lt.s32.totalorder %v2734, 768
      %vm2799 = vcmp.lt.s32.totalorder %v2735, 768
      %vm2800 = vcmp.lt.s32.totalorder %v2736, 768
      %vm2801 = vcmp.lt.s32.totalorder %v2737, 768
      %vm2802 = vcmp.lt.s32.totalorder %v2738, 768
      %vm2803 = vcmp.lt.s32.totalorder %v2739, 768
      %vm2804 = vcmp.lt.s32.totalorder %v2740, 768
      %vm2805 = vcmp.lt.s32.totalorder %v2741, 768
      %vm2806 = vcmp.lt.s32.totalorder %v2742, 768
      %vm2807 = vcmp.lt.s32.totalorder %v2743, 768
      %vm2808 = vcmp.lt.s32.totalorder %v2744, 768
      %vm2809 = vcmp.lt.s32.totalorder %v2745, 768
      %vm2810 = vcmp.lt.s32.totalorder %v2746, 768
      %vm2811 = vcmp.lt.s32.totalorder %v2747, 768
      %vm2812 = vcmp.lt.s32.totalorder %v2748, 768
      %vm2813 = vcmp.lt.s32.totalorder %v2749, 768
      %vm2814 = vcmp.lt.s32.totalorder %v2750, 768
      %vm2815 = vcmp.lt.s32.totalorder %v2751, 768
      %vm2816 = vcmp.lt.s32.totalorder %v2752, 768
      %vm2817 = vcmp.lt.s32.totalorder %v2753, 768
      %vm2818 = vcmp.lt.s32.totalorder %v2754, 768
      %vm2819 = vcmp.lt.s32.totalorder %v2755, 768
      %vm2820 = vcmp.lt.s32.totalorder %v2756, 768
      %vm2821 = vcmp.lt.s32.totalorder %v2757, 768
      %vm2822 = vcmp.lt.s32.totalorder %v2758, 768
      %vm2823 = vcmp.lt.s32.totalorder %v2759, 768
      %vm2824 = vcmp.lt.s32.totalorder %v2760, 768
      %vm2825 = vcmp.lt.s32.totalorder %v2761, 768
      %vm2826 = vcmp.lt.s32.totalorder %v2762, 768
      %vm2827 = vcmp.lt.s32.totalorder %v2763, 768
      %vm2828 = vcmp.lt.s32.totalorder %v2764, 768
      %vm2829 = vcmp.lt.s32.totalorder %v2765, 768
      %vm2830 = vcmp.lt.s32.totalorder %v2766, 768
      %vm2831 = vcmp.lt.s32.totalorder %v2767, 768
      %vm2832 = vcmp.lt.s32.totalorder %v2768, 768
      %vm2833 = vcmp.lt.s32.totalorder %v2769, 768
      %vm2834 = vcmp.lt.s32.totalorder %v2770, 768
      %vm2835 = vcmp.lt.s32.totalorder %v2771, 768
      %vm2836 = vcmp.lt.s32.totalorder %v2772, 768
      %vm2837 = vcmp.lt.s32.totalorder %v2773, 768
      %vm2838 = vcmp.lt.s32.totalorder %v2774, 768
      %vm2839 = vcmp.lt.s32.totalorder %v2775, 768
      %vm2840 = vcmp.lt.s32.totalorder %v2776, 768
      %vm2841 = vcmp.lt.s32.totalorder %v2777, 768
      %vm2842 = vcmp.lt.s32.totalorder %v2778, 768
      %vm2843 = vcmp.lt.s32.totalorder %v2779, 768
      %vm2844 = vcmp.lt.s32.totalorder %v2780, 768
      %vm2845 = vcmp.lt.s32.totalorder %v2781, 768
      %vm2846 = vcmp.lt.s32.totalorder %v2782, 768
      %vm2847 = vcmp.lt.s32.totalorder %v2783, 768
      %vm2848 = vcmp.lt.s32.totalorder %v2784, 768
      %vm2849 = vcmp.lt.s32.totalorder %v2785, 768
      %vm2850 = vcmp.lt.s32.totalorder %v2786, 768
      %vm2851 = vcmp.lt.s32.totalorder %v2787, 768
      %vm2852 = vcmp.lt.s32.totalorder %v2788, 768
      %vm2853 = vcmp.lt.s32.totalorder %v2789, 768
      %vm2854 = vcmp.lt.s32.totalorder %v2790, 768
      %v2855 = vsel %vm2791, %v2532, 0.0
      %v2856 = vsel %vm2791, %v2533, 0.0
      %v2857 = vsel %vm2792, %v2534, 0.0
      %v2858 = vsel %vm2792, %v2535, 0.0
      %v2859 = vsel %vm2793, %v2536, 0.0
      %v2860 = vsel %vm2793, %v2537, 0.0
      %v2861 = vsel %vm2794, %v2538, 0.0
      %v2862 = vsel %vm2794, %v2539, 0.0
      %v2863 = vsel %vm2795, %v2540, 0.0
      %v2864 = vsel %vm2795, %v2541, 0.0
      %v2865 = vsel %vm2796, %v2542, 0.0
      %v2866 = vsel %vm2796, %v2543, 0.0
      %v2867 = vsel %vm2797, %v2544, 0.0
      %v2868 = vsel %vm2797, %v2545, 0.0
      %v2869 = vsel %vm2798, %v2546, 0.0
      %v2870 = vsel %vm2798, %v2547, 0.0
      %v2871 = vsel %vm2799, %v2548, 0.0
      %v2872 = vsel %vm2799, %v2549, 0.0
      %v2873 = vsel %vm2800, %v2550, 0.0
      %v2874 = vsel %vm2800, %v2551, 0.0
      %v2875 = vsel %vm2801, %v2552, 0.0
      %v2876 = vsel %vm2801, %v2553, 0.0
      %v2877 = vsel %vm2802, %v2554, 0.0
      %v2878 = vsel %vm2802, %v2555, 0.0
      %v2879 = vsel %vm2803, %v2556, 0.0
      %v2880 = vsel %vm2803, %v2557, 0.0
      %v2881 = vsel %vm2804, %v2558, 0.0
      %v2882 = vsel %vm2804, %v2559, 0.0
      %v2883 = vsel %vm2805, %v2560, 0.0
      %v2884 = vsel %vm2805, %v2561, 0.0
      %v2885 = vsel %vm2806, %v2562, 0.0
      %v2886 = vsel %vm2806, %v2563, 0.0
      %v2887 = vsel %vm2807, %v2564, 0.0
      %v2888 = vsel %vm2807, %v2565, 0.0
      %v2889 = vsel %vm2808, %v2566, 0.0
      %v2890 = vsel %vm2808, %v2567, 0.0
      %v2891 = vsel %vm2809, %v2568, 0.0
      %v2892 = vsel %vm2809, %v2569, 0.0
      %v2893 = vsel %vm2810, %v2570, 0.0
      %v2894 = vsel %vm2810, %v2571, 0.0
      %v2895 = vsel %vm2811, %v2572, 0.0
      %v2896 = vsel %vm2811, %v2573, 0.0
      %v2897 = vsel %vm2812, %v2574, 0.0
      %v2898 = vsel %vm2812, %v2575, 0.0
      %v2899 = vsel %vm2813, %v2576, 0.0
      %v2900 = vsel %vm2813, %v2577, 0.0
      %v2901 = vsel %vm2814, %v2578, 0.0
      %v2902 = vsel %vm2814, %v2579, 0.0
      %v2903 = vsel %vm2815, %v2580, 0.0
      %v2904 = vsel %vm2815, %v2581, 0.0
      %v2905 = vsel %vm2816, %v2582, 0.0
      %v2906 = vsel %vm2816, %v2583, 0.0
      %v2907 = vsel %vm2817, %v2584, 0.0
      %v2908 = vsel %vm2817, %v2585, 0.0
      %v2909 = vsel %vm2818, %v2586, 0.0
      %v2910 = vsel %vm2818, %v2587, 0.0
      %v2911 = vsel %vm2819, %v2588, 0.0
      %v2912 = vsel %vm2819, %v2589, 0.0
      %v2913 = vsel %vm2820, %v2590, 0.0
      %v2914 = vsel %vm2820, %v2591, 0.0
      %v2915 = vsel %vm2821, %v2592, 0.0
      %v2916 = vsel %vm2821, %v2593, 0.0
      %v2917 = vsel %vm2822, %v2594, 0.0
      %v2918 = vsel %vm2822, %v2595, 0.0
      %v2919 = vsel %vm2823, %v2596, 0.0
      %v2920 = vsel %vm2823, %v2597, 0.0
      %v2921 = vsel %vm2824, %v2598, 0.0
      %v2922 = vsel %vm2824, %v2599, 0.0
      %v2923 = vsel %vm2825, %v2600, 0.0
      %v2924 = vsel %vm2825, %v2601, 0.0
      %v2925 = vsel %vm2826, %v2602, 0.0
      %v2926 = vsel %vm2826, %v2603, 0.0
      %v2927 = vsel %vm2827, %v2604, 0.0
      %v2928 = vsel %vm2827, %v2605, 0.0
      %v2929 = vsel %vm2828, %v2606, 0.0
      %v2930 = vsel %vm2828, %v2607, 0.0
      %v2931 = vsel %vm2829, %v2608, 0.0
      %v2932 = vsel %vm2829, %v2609, 0.0
      %v2933 = vsel %vm2830, %v2610, 0.0
      %v2934 = vsel %vm2830, %v2611, 0.0
      %v2935 = vsel %vm2831, %v2612, 0.0
      %v2936 = vsel %vm2831, %v2613, 0.0
      %v2937 = vsel %vm2832, %v2614, 0.0
      %v2938 = vsel %vm2832, %v2615, 0.0
      %v2939 = vsel %vm2833, %v2616, 0.0
      %v2940 = vsel %vm2833, %v2617, 0.0
      %v2941 = vsel %vm2834, %v2618, 0.0
      %v2942 = vsel %vm2834, %v2619, 0.0
      %v2943 = vsel %vm2835, %v2620, 0.0
      %v2944 = vsel %vm2835, %v2621, 0.0
      %v2945 = vsel %vm2836, %v2622, 0.0
      %v2946 = vsel %vm2836, %v2623, 0.0
      %v2947 = vsel %vm2837, %v2624, 0.0
      %v2948 = vsel %vm2837, %v2625, 0.0
      %v2949 = vsel %vm2838, %v2626, 0.0
      %v2950 = vsel %vm2838, %v2627, 0.0
      %v2951 = vsel %vm2839, %v2628, 0.0
      %v2952 = vsel %vm2839, %v2629, 0.0
      %v2953 = vsel %vm2840, %v2630, 0.0
      %v2954 = vsel %vm2840, %v2631, 0.0
      %v2955 = vsel %vm2841, %v2632, 0.0
      %v2956 = vsel %vm2841, %v2633, 0.0
      %v2957 = vsel %vm2842, %v2634, 0.0
      %v2958 = vsel %vm2842, %v2635, 0.0
      %v2959 = vsel %vm2843, %v2636, 0.0
      %v2960 = vsel %vm2843, %v2637, 0.0
      %v2961 = vsel %vm2844, %v2638, 0.0
      %v2962 = vsel %vm2844, %v2639, 0.0
      %v2963 = vsel %vm2845, %v2640, 0.0
      %v2964 = vsel %vm2845, %v2641, 0.0
      %v2965 = vsel %vm2846, %v2642, 0.0
      %v2966 = vsel %vm2846, %v2643, 0.0
      %v2967 = vsel %vm2847, %v2644, 0.0
      %v2968 = vsel %vm2847, %v2645, 0.0
      %v2969 = vsel %vm2848, %v2646, 0.0
      %v2970 = vsel %vm2848, %v2647, 0.0
      %v2971 = vsel %vm2849, %v2648, 0.0
      %v2972 = vsel %vm2849, %v2649, 0.0
      %v2973 = vsel %vm2850, %v2650, 0.0
      %v2974 = vsel %vm2850, %v2651, 0.0
      %v2975 = vsel %vm2851, %v2652, 0.0
      %v2976 = vsel %vm2851, %v2653, 0.0
      %v2977 = vsel %vm2852, %v2654, 0.0
      %v2978 = vsel %vm2852, %v2655, 0.0
      %v2979 = vsel %vm2853, %v2656, 0.0
      %v2980 = vsel %vm2853, %v2657, 0.0
      %v2981 = vsel %vm2854, %v2658, 0.0
      %v2982 = vsel %vm2854, %v2659, 0.0
      %v2983 = vld [vmem:[#allocation2] sm:$0x3]
      %v2984 = vadd.f32 %v2855, %v2857
      %v2985 = vadd.f32 %v2984, %v2859
      %v2986 = vadd.f32 %v2985, %v2861
      %v2987 = vadd.f32 %v2986, %v2863
      %v2988 = vadd.f32 %v2987, %v2865
      %v2989 = vadd.f32 %v2988, %v2867
      %v2990 = vadd.f32 %v2989, %v2869
      %v2991 = vadd.f32 %v2990, %v2871
      %v2992 = vadd.f32 %v2991, %v2873
      %v2993 = vadd.f32 %v2992, %v2875
      %v2994 = vadd.f32 %v2993, %v2877
      %v2995 = vadd.f32 %v2994, %v2879
      %v2996 = vadd.f32 %v2995, %v2881
      %v2997 = vadd.f32 %v2996, %v2883
      %v2998 = vadd.f32 %v2997, %v2885
      %v2999 = vadd.f32 %v2998, %v2887
      %v3000 = vadd.f32 %v2999, %v2889
      %v3001 = vadd.f32 %v3000, %v2891
      %v3002 = vadd.f32 %v3001, %v2893
      %v3003 = vadd.f32 %v3002, %v2895
      %v3004 = vadd.f32 %v3003, %v2897
      %v3005 = vadd.f32 %v3004, %v2899
      %v3006 = vadd.f32 %v3005, %v2901
      %v3007 = vadd.f32 %v3006, %v2903
      %v3008 = vadd.f32 %v3007, %v2905
      %v3009 = vadd.f32 %v3008, %v2907
      %v3010 = vadd.f32 %v3009, %v2909
      %v3011 = vadd.f32 %v3010, %v2911
      %v3012 = vadd.f32 %v3011, %v2913
      %v3013 = vadd.f32 %v3012, %v2915
      %v3014 = vadd.f32 %v3013, %v2917
      %v3015 = vadd.f32 %v3014, %v2919
      %v3016 = vadd.f32 %v3015, %v2921
      %v3017 = vadd.f32 %v3016, %v2923
      %v3018 = vadd.f32 %v3017, %v2925
      %v3019 = vadd.f32 %v3018, %v2927
      %v3020 = vadd.f32 %v3019, %v2929
      %v3021 = vadd.f32 %v3020, %v2931
      %v3022 = vadd.f32 %v3021, %v2933
      %v3023 = vadd.f32 %v3022, %v2935
      %v3024 = vadd.f32 %v3023, %v2937
      %v3025 = vadd.f32 %v3024, %v2939
      %v3026 = vadd.f32 %v3025, %v2941
      %v3027 = vadd.f32 %v3026, %v2943
      %v3028 = vadd.f32 %v3027, %v2945
      %v3029 = vadd.f32 %v3028, %v2947
      %v3030 = vadd.f32 %v3029, %v2949
      %v3031 = vadd.f32 %v3030, %v2951
      %v3032 = vadd.f32 %v3031, %v2953
      %v3033 = vadd.f32 %v3032, %v2955
      %v3034 = vadd.f32 %v3033, %v2957
      %v3035 = vadd.f32 %v3034, %v2959
      %v3036 = vadd.f32 %v3035, %v2961
      %v3037 = vadd.f32 %v3036, %v2963
      %v3038 = vadd.f32 %v3037, %v2965
      %v3039 = vadd.f32 %v3038, %v2967
      %v3040 = vadd.f32 %v3039, %v2969
      %v3041 = vadd.f32 %v3040, %v2971
      %v3042 = vadd.f32 %v3041, %v2973
      %v3043 = vadd.f32 %v3042, %v2975
      %v3044 = vadd.f32 %v3043, %v2977
      %v3045 = vadd.f32 %v3044, %v2979
      %v3046 = vadd.f32 %v3045, %v2981
      %v3047 = vrot.slane %v3046, 4
      %v3048 = vadd.f32 %v3046, %v3047
      %v3049 = vrot.slane %v3048, 2
      %v3050 = vadd.f32 %v3048, %v3049
      %v3051 = vrot.slane %v3050, 1
      %v3052 = vadd.f32 %v3050, %v3051
      %v3053 = vadd.f32 %v2856, %v2858
      %v3054 = vadd.f32 %v3053, %v2860
      %v3055 = vadd.f32 %v3054, %v2862
      %v3056 = vadd.f32 %v3055, %v2864
      %v3057 = vadd.f32 %v3056, %v2866
      %v3058 = vadd.f32 %v3057, %v2868
      %v3059 = vadd.f32 %v3058, %v2870
      %v3060 = vadd.f32 %v3059, %v2872
      %v3061 = vadd.f32 %v3060, %v2874
      %v3062 = vadd.f32 %v3061, %v2876
      %v3063 = vadd.f32 %v3062, %v2878
      %v3064 = vadd.f32 %v3063, %v2880
      %v3065 = vadd.f32 %v3064, %v2882
      %v3066 = vadd.f32 %v3065, %v2884
      %v3067 = vadd.f32 %v3066, %v2886
      %v3068 = vadd.f32 %v3067, %v2888
      %v3069 = vadd.f32 %v3068, %v2890
      %v3070 = vadd.f32 %v3069, %v2892
      %v3071 = vadd.f32 %v3070, %v2894
      %v3072 = vadd.f32 %v3071, %v2896
      %v3073 = vadd.f32 %v3072, %v2898
      %v3074 = vadd.f32 %v3073, %v2900
      %v3075 = vadd.f32 %v3074, %v2902
      %v3076 = vadd.f32 %v3075, %v2904
      %v3077 = vadd.f32 %v3076, %v2906
      %v3078 = vadd.f32 %v3077, %v2908
      %v3079 = vadd.f32 %v3078, %v2910
      %v3080 = vadd.f32 %v3079, %v2912
      %v3081 = vadd.f32 %v3080, %v2914
      %v3082 = vadd.f32 %v3081, %v2916
      %v3083 = vadd.f32 %v3082, %v2918
      %v3084 = vadd.f32 %v3083, %v2920
      %v3085 = vadd.f32 %v3084, %v2922
      %v3086 = vadd.f32 %v3085, %v2924
      %v3087 = vadd.f32 %v3086, %v2926
      %v3088 = vadd.f32 %v3087, %v2928
      %v3089 = vadd.f32 %v3088, %v2930
      %v3090 = vadd.f32 %v3089, %v2932
      %v3091 = vadd.f32 %v3090, %v2934
      %v3092 = vadd.f32 %v3091, %v2936
      %v3093 = vadd.f32 %v3092, %v2938
      %v3094 = vadd.f32 %v3093, %v2940
      %v3095 = vadd.f32 %v3094, %v2942
      %v3096 = vadd.f32 %v3095, %v2944
      %v3097 = vadd.f32 %v3096, %v2946
      %v3098 = vadd.f32 %v3097, %v2948
      %v3099 = vadd.f32 %v3098, %v2950
      %v3100 = vadd.f32 %v3099, %v2952
      %v3101 = vadd.f32 %v3100, %v2954
      %v3102 = vadd.f32 %v3101, %v2956
      %v3103 = vadd.f32 %v3102, %v2958
      %v3104 = vadd.f32 %v3103, %v2960
      %v3105 = vadd.f32 %v3104, %v2962
      %v3106 = vadd.f32 %v3105, %v2964
      %v3107 = vadd.f32 %v3106, %v2966
      %v3108 = vadd.f32 %v3107, %v2968
      %v3109 = vadd.f32 %v3108, %v2970
      %v3110 = vadd.f32 %v3109, %v2972
      %v3111 = vadd.f32 %v3110, %v2974
      %v3112 = vadd.f32 %v3111, %v2976
      %v3113 = vadd.f32 %v3112, %v2978
      %v3114 = vadd.f32 %v3113, %v2980
      %v3115 = vadd.f32 %v3114, %v2982
      %v3116 = vrot.slane %v3115, 4
      %v3117 = vadd.f32 %v3115, %v3116
      %v3118 = vrot.slane %v3117, 2
      %v3119 = vadd.f32 %v3117, %v3118
      %v3120 = vrot.slane %v3119, 1
      %v3121 = vadd.f32 %v3119, %v3120
      %v3124 = vcombine.low %v3052, %v3121
      %v3126 = vunpack.c.l.s4 1966171168
      %v3127 = vunpack.c.0.s8 %v3126
      %v3128 = vlaneseq
      %v3129 = vshrl.u32 %v3128, 7
      %v3130 = vsub.s32 %v3127, %v3129
      %v3131 = vrot.slane %v3124, %v3130
      %v3133 = vunpack.c.l.s4 1966171168
      %v3134 = vunpack.c.0.s8 %v3133
      %v3135 = vlaneseq
      %v3136 = vshrl.u32 %v3135, 7
      %v3137 = vsub.s32 %v3134, %v3136
      %v3138 = vrot.slane %v3131, %v3137
      %v3140 = vadd.f32 %v2983, %v3138
      %v3141 = vlaneseq
      %vm3142 = vcmp.ge.s32.totalorder %v3141, 0
      %vm3143 = vcmp.lt.s32.totalorder %v3141, 256
      %vm3144 = vmand %vm3142, %vm3143
      %3145 = vst.msk [vmem:[#allocation2] sm:$0x3] %vm3144, %v3140
      %v3146 = vld [vmem:[#allocation3] sm:$0x3]
      %v3147 = vmul.f32 %v2855, %v2855
      %v3148 = vmul.f32 %v2856, %v2856
      %v3149 = vmul.f32 %v2857, %v2857
      %v3150 = vmul.f32 %v2858, %v2858
      %v3151 = vmul.f32 %v2859, %v2859
      %v3152 = vmul.f32 %v2860, %v2860
      %v3153 = vmul.f32 %v2861, %v2861
      %v3154 = vmul.f32 %v2862, %v2862
      %v3155 = vmul.f32 %v2863, %v2863
      %v3156 = vmul.f32 %v2864, %v2864
      %v3157 = vmul.f32 %v2865, %v2865
      %v3158 = vmul.f32 %v2866, %v2866
      %v3159 = vmul.f32 %v2867, %v2867
      %v3160 = vmul.f32 %v2868, %v2868
      %v3161 = vmul.f32 %v2869, %v2869
      %v3162 = vmul.f32 %v2870, %v2870
      %v3163 = vmul.f32 %v2871, %v2871
      %v3164 = vmul.f32 %v2872, %v2872
      %v3165 = vmul.f32 %v2873, %v2873
      %v3166 = vmul.f32 %v2874, %v2874
      %v3167 = vmul.f32 %v2875, %v2875
      %v3168 = vmul.f32 %v2876, %v2876
      %v3169 = vmul.f32 %v2877, %v2877
      %v3170 = vmul.f32 %v2878, %v2878
      %v3171 = vmul.f32 %v2879, %v2879
      %v3172 = vmul.f32 %v2880, %v2880
      %v3173 = vmul.f32 %v2881, %v2881
      %v3174 = vmul.f32 %v2882, %v2882
      %v3175 = vmul.f32 %v2883, %v2883
      %v3176 = vmul.f32 %v2884, %v2884
      %v3177 = vmul.f32 %v2885, %v2885
      %v3178 = vmul.f32 %v2886, %v2886
      %v3179 = vmul.f32 %v2887, %v2887
      %v3180 = vmul.f32 %v2888, %v2888
      %v3181 = vmul.f32 %v2889, %v2889
      %v3182 = vmul.f32 %v2890, %v2890
      %v3183 = vmul.f32 %v2891, %v2891
      %v3184 = vmul.f32 %v2892, %v2892
      %v3185 = vmul.f32 %v2893, %v2893
      %v3186 = vmul.f32 %v2894, %v2894
      %v3187 = vmul.f32 %v2895, %v2895
      %v3188 = vmul.f32 %v2896, %v2896
      %v3189 = vmul.f32 %v2897, %v2897
      %v3190 = vmul.f32 %v2898, %v2898
      %v3191 = vmul.f32 %v2899, %v2899
      %v3192 = vmul.f32 %v2900, %v2900
      %v3193 = vmul.f32 %v2901, %v2901
      %v3194 = vmul.f32 %v2902, %v2902
      %v3195 = vmul.f32 %v2903, %v2903
      %v3196 = vmul.f32 %v2904, %v2904
      %v3197 = vmul.f32 %v2905, %v2905
      %v3198 = vmul.f32 %v2906, %v2906
      %v3199 = vmul.f32 %v2907, %v2907
      %v3200 = vmul.f32 %v2908, %v2908
      %v3201 = vmul.f32 %v2909, %v2909
      %v3202 = vmul.f32 %v2910, %v2910
      %v3203 = vmul.f32 %v2911, %v2911
      %v3204 = vmul.f32 %v2912, %v2912
      %v3205 = vmul.f32 %v2913, %v2913
      %v3206 = vmul.f32 %v2914, %v2914
      %v3207 = vmul.f32 %v2915, %v2915
      %v3208 = vmul.f32 %v2916, %v2916
      %v3209 = vmul.f32 %v2917, %v2917
      %v3210 = vmul.f32 %v2918, %v2918
      %v3211 = vmul.f32 %v2919, %v2919
      %v3212 = vmul.f32 %v2920, %v2920
      %v3213 = vmul.f32 %v2921, %v2921
      %v3214 = vmul.f32 %v2922, %v2922
      %v3215 = vmul.f32 %v2923, %v2923
      %v3216 = vmul.f32 %v2924, %v2924
      %v3217 = vmul.f32 %v2925, %v2925
      %v3218 = vmul.f32 %v2926, %v2926
      %v3219 = vmul.f32 %v2927, %v2927
      %v3220 = vmul.f32 %v2928, %v2928
      %v3221 = vmul.f32 %v2929, %v2929
      %v3222 = vmul.f32 %v2930, %v2930
      %v3223 = vmul.f32 %v2931, %v2931
      %v3224 = vmul.f32 %v2932, %v2932
      %v3225 = vmul.f32 %v2933, %v2933
      %v3226 = vmul.f32 %v2934, %v2934
      %v3227 = vmul.f32 %v2935, %v2935
      %v3228 = vmul.f32 %v2936, %v2936
      %v3229 = vmul.f32 %v2937, %v2937
      %v3230 = vmul.f32 %v2938, %v2938
      %v3231 = vmul.f32 %v2939, %v2939
      %v3232 = vmul.f32 %v2940, %v2940
      %v3233 = vmul.f32 %v2941, %v2941
      %v3234 = vmul.f32 %v2942, %v2942
      %v3235 = vmul.f32 %v2943, %v2943
      %v3236 = vmul.f32 %v2944, %v2944
      %v3237 = vmul.f32 %v2945, %v2945
      %v3238 = vmul.f32 %v2946, %v2946
      %v3239 = vmul.f32 %v2947, %v2947
      %v3240 = vmul.f32 %v2948, %v2948
      %v3241 = vmul.f32 %v2949, %v2949
      %v3242 = vmul.f32 %v2950, %v2950
      %v3243 = vmul.f32 %v2951, %v2951
      %v3244 = vmul.f32 %v2952, %v2952
      %v3245 = vmul.f32 %v2953, %v2953
      %v3246 = vmul.f32 %v2954, %v2954
      %v3247 = vmul.f32 %v2955, %v2955
      %v3248 = vmul.f32 %v2956, %v2956
      %v3249 = vmul.f32 %v2957, %v2957
      %v3250 = vmul.f32 %v2958, %v2958
      %v3251 = vmul.f32 %v2959, %v2959
      %v3252 = vmul.f32 %v2960, %v2960
      %v3253 = vmul.f32 %v2961, %v2961
      %v3254 = vmul.f32 %v2962, %v2962
      %v3255 = vmul.f32 %v2963, %v2963
      %v3256 = vmul.f32 %v2964, %v2964
      %v3257 = vmul.f32 %v2965, %v2965
      %v3258 = vmul.f32 %v2966, %v2966
      %v3259 = vmul.f32 %v2967, %v2967
      %v3260 = vmul.f32 %v2968, %v2968
      %v3261 = vmul.f32 %v2969, %v2969
      %v3262 = vmul.f32 %v2970, %v2970
      %v3263 = vmul.f32 %v2971, %v2971
      %v3264 = vmul.f32 %v2972, %v2972
      %v3265 = vmul.f32 %v2973, %v2973
      %v3266 = vmul.f32 %v2974, %v2974
      %v3267 = vmul.f32 %v2975, %v2975
      %v3268 = vmul.f32 %v2976, %v2976
      %v3269 = vmul.f32 %v2977, %v2977
      %v3270 = vmul.f32 %v2978, %v2978
      %v3271 = vmul.f32 %v2979, %v2979
      %v3272 = vmul.f32 %v2980, %v2980
      %v3273 = vmul.f32 %v2981, %v2981
      %v3274 = vmul.f32 %v2982, %v2982
      %v3275 = vadd.f32 %v3147, %v3149
      %v3276 = vadd.f32 %v3275, %v3151
      %v3277 = vadd.f32 %v3276, %v3153
      %v3278 = vadd.f32 %v3277, %v3155
      %v3279 = vadd.f32 %v3278, %v3157
      %v3280 = vadd.f32 %v3279, %v3159
      %v3281 = vadd.f32 %v3280, %v3161
      %v3282 = vadd.f32 %v3281, %v3163
      %v3283 = vadd.f32 %v3282, %v3165
      %v3284 = vadd.f32 %v3283, %v3167
      %v3285 = vadd.f32 %v3284, %v3169
      %v3286 = vadd.f32 %v3285, %v3171
      %v3287 = vadd.f32 %v3286, %v3173
      %v3288 = vadd.f32 %v3287, %v3175
      %v3289 = vadd.f32 %v3288, %v3177
      %v3290 = vadd.f32 %v3289, %v3179
      %v3291 = vadd.f32 %v3290, %v3181
      %v3292 = vadd.f32 %v3291, %v3183
      %v3293 = vadd.f32 %v3292, %v3185
      %v3294 = vadd.f32 %v3293, %v3187
      %v3295 = vadd.f32 %v3294, %v3189
      %v3296 = vadd.f32 %v3295, %v3191
      %v3297 = vadd.f32 %v3296, %v3193
      %v3298 = vadd.f32 %v3297, %v3195
      %v3299 = vadd.f32 %v3298, %v3197
      %v3300 = vadd.f32 %v3299, %v3199
      %v3301 = vadd.f32 %v3300, %v3201
      %v3302 = vadd.f32 %v3301, %v3203
      %v3303 = vadd.f32 %v3302, %v3205
      %v3304 = vadd.f32 %v3303, %v3207
      %v3305 = vadd.f32 %v3304, %v3209
      %v3306 = vadd.f32 %v3305, %v3211
      %v3307 = vadd.f32 %v3306, %v3213
      %v3308 = vadd.f32 %v3307, %v3215
      %v3309 = vadd.f32 %v3308, %v3217
      %v3310 = vadd.f32 %v3309, %v3219
      %v3311 = vadd.f32 %v3310, %v3221
      %v3312 = vadd.f32 %v3311, %v3223
      %v3313 = vadd.f32 %v3312, %v3225
      %v3314 = vadd.f32 %v3313, %v3227
      %v3315 = vadd.f32 %v3314, %v3229
      %v3316 = vadd.f32 %v3315, %v3231
      %v3317 = vadd.f32 %v3316, %v3233
      %v3318 = vadd.f32 %v3317, %v3235
      %v3319 = vadd.f32 %v3318, %v3237
      %v3320 = vadd.f32 %v3319, %v3239
      %v3321 = vadd.f32 %v3320, %v3241
      %v3322 = vadd.f32 %v3321, %v3243
      %v3323 = vadd.f32 %v3322, %v3245
      %v3324 = vadd.f32 %v3323, %v3247
      %v3325 = vadd.f32 %v3324, %v3249
      %v3326 = vadd.f32 %v3325, %v3251
      %v3327 = vadd.f32 %v3326, %v3253
      %v3328 = vadd.f32 %v3327, %v3255
      %v3329 = vadd.f32 %v3328, %v3257
      %v3330 = vadd.f32 %v3329, %v3259
      %v3331 = vadd.f32 %v3330, %v3261
      %v3332 = vadd.f32 %v3331, %v3263
      %v3333 = vadd.f32 %v3332, %v3265
      %v3334 = vadd.f32 %v3333, %v3267
      %v3335 = vadd.f32 %v3334, %v3269
      %v3336 = vadd.f32 %v3335, %v3271
      %v3337 = vadd.f32 %v3336, %v3273
      %v3338 = vrot.slane %v3337, 4
      %v3339 = vadd.f32 %v3337, %v3338
      %v3340 = vrot.slane %v3339, 2
      %v3341 = vadd.f32 %v3339, %v3340
      %v3342 = vrot.slane %v3341, 1
      %v3343 = vadd.f32 %v3341, %v3342
      %v3344 = vadd.f32 %v3148, %v3150
      %v3345 = vadd.f32 %v3344, %v3152
      %v3346 = vadd.f32 %v3345, %v3154
      %v3347 = vadd.f32 %v3346, %v3156
      %v3348 = vadd.f32 %v3347, %v3158
      %v3349 = vadd.f32 %v3348, %v3160
      %v3350 = vadd.f32 %v3349, %v3162
      %v3351 = vadd.f32 %v3350, %v3164
      %v3352 = vadd.f32 %v3351, %v3166
      %v3353 = vadd.f32 %v3352, %v3168
      %v3354 = vadd.f32 %v3353, %v3170
      %v3355 = vadd.f32 %v3354, %v3172
      %v3356 = vadd.f32 %v3355, %v3174
      %v3357 = vadd.f32 %v3356, %v3176
      %v3358 = vadd.f32 %v3357, %v3178
      %v3359 = vadd.f32 %v3358, %v3180
      %v3360 = vadd.f32 %v3359, %v3182
      %v3361 = vadd.f32 %v3360, %v3184
      %v3362 = vadd.f32 %v3361, %v3186
      %v3363 = vadd.f32 %v3362, %v3188
      %v3364 = vadd.f32 %v3363, %v3190
      %v3365 = vadd.f32 %v3364, %v3192
      %v3366 = vadd.f32 %v3365, %v3194
      %v3367 = vadd.f32 %v3366, %v3196
      %v3368 = vadd.f32 %v3367, %v3198
      %v3369 = vadd.f32 %v3368, %v3200
      %v3370 = vadd.f32 %v3369, %v3202
      %v3371 = vadd.f32 %v3370, %v3204
      %v3372 = vadd.f32 %v3371, %v3206
      %v3373 = vadd.f32 %v3372, %v3208
      %v3374 = vadd.f32 %v3373, %v3210
      %v3375 = vadd.f32 %v3374, %v3212
      %v3376 = vadd.f32 %v3375, %v3214
      %v3377 = vadd.f32 %v3376, %v3216
      %v3378 = vadd.f32 %v3377, %v3218
      %v3379 = vadd.f32 %v3378, %v3220
      %v3380 = vadd.f32 %v3379, %v3222
      %v3381 = vadd.f32 %v3380, %v3224
      %v3382 = vadd.f32 %v3381, %v3226
      %v3383 = vadd.f32 %v3382, %v3228
      %v3384 = vadd.f32 %v3383, %v3230
      %v3385 = vadd.f32 %v3384, %v3232
      %v3386 = vadd.f32 %v3385, %v3234
      %v3387 = vadd.f32 %v3386, %v3236
      %v3388 = vadd.f32 %v3387, %v3238
      %v3389 = vadd.f32 %v3388, %v3240
      %v3390 = vadd.f32 %v3389, %v3242
      %v3391 = vadd.f32 %v3390, %v3244
      %v3392 = vadd.f32 %v3391, %v3246
      %v3393 = vadd.f32 %v3392, %v3248
      %v3394 = vadd.f32 %v3393, %v3250
      %v3395 = vadd.f32 %v3394, %v3252
      %v3396 = vadd.f32 %v3395, %v3254
      %v3397 = vadd.f32 %v3396, %v3256
      %v3398 = vadd.f32 %v3397, %v3258
      %v3399 = vadd.f32 %v3398, %v3260
      %v3400 = vadd.f32 %v3399, %v3262
      %v3401 = vadd.f32 %v3400, %v3264
      %v3402 = vadd.f32 %v3401, %v3266
      %v3403 = vadd.f32 %v3402, %v3268
      %v3404 = vadd.f32 %v3403, %v3270
      %v3405 = vadd.f32 %v3404, %v3272
      %v3406 = vadd.f32 %v3405, %v3274
      %v3407 = vrot.slane %v3406, 4
      %v3408 = vadd.f32 %v3406, %v3407
      %v3409 = vrot.slane %v3408, 2
      %v3410 = vadd.f32 %v3408, %v3409
      %v3411 = vrot.slane %v3410, 1
      %v3412 = vadd.f32 %v3410, %v3411
      %v3415 = vcombine.low %v3343, %v3412
      %v3417 = vunpack.c.l.s4 1966171168
      %v3418 = vunpack.c.0.s8 %v3417
      %v3419 = vlaneseq
      %v3420 = vshrl.u32 %v3419, 7
      %v3421 = vsub.s32 %v3418, %v3420
      %v3422 = vrot.slane %v3415, %v3421
      %v3424 = vunpack.c.l.s4 1966171168
      %v3425 = vunpack.c.0.s8 %v3424
      %v3426 = vlaneseq
      %v3427 = vshrl.u32 %v3426, 7
      %v3428 = vsub.s32 %v3425, %v3427
      %v3429 = vrot.slane %v3422, %v3428
      %v3431 = vadd.f32 %v3146, %v3429
      %3432 = vst.msk [vmem:[#allocation3] sm:$0x3] %vm3144, %v3431
      %p3433 = scmp.eq.s32.totalorder %s16, 1
      // Predicated region
      $region37: #{vae_forward.2} parent=31 // pred_check
        %p3434 = pneg %p3433
      $region38: #{vae_forward.2} parent=31 // pred_check_branch
        %3436 = sbr.rel (%p3434) target = $region40
      $region39: #{vae_forward.2} parent=31 // pred_region
        %v3437 = vld [vmem:[#allocation2] sm:$0x3]
        %v3438 = vmul.f32 %v3437, 0.0013020834
        %v3439 = vld [vmem:[#allocation3] sm:$0x3]
        %v3440 = vmul.f32 %v3439, 0.0013020834
        %v3441 = vmul.f32 %v3438, %v3438
        %v3442 = vsub.f32 %v3440, %v3441
        %v3443 = vmax.f32 %v3442, 0.0
        %v3444 = vadd.f32 %v3443, 1e-05
        %v3445 = vrsqrt.pop %v3444
        %v3447 = vlaneseq
        %v3448 = vshrl.u32 %v3447, 7
        %v3449 = vsub.s32 0, %v3448
        %v3450 = vrot.slane %v3438, %v3449
        %v3451 = vlaneseq
        %v3452 = vshrl.u32 %v3451, 7
        %v3453 = vsub.s32 1, %v3452
        %v3454 = vrot.slane %v3438, %v3453
        %v3458 = vlaneseq
        %v3459 = vshrl.u32 %v3458, 7
        %v3460 = vsub.s32 0, %v3459
        %v3461 = vrot.slane %v3445, %v3460
        %v3462 = vlaneseq
        %v3463 = vshrl.u32 %v3462, 7
        %v3464 = vsub.s32 1, %v3463
        %v3465 = vrot.slane %v3445, %v3464
        %vm3468 = vcmask 1040384
        %v3469 = vsel %vm3468, %v3450, %v3461
        %v3470 = vsel %vm3468, %v3454, %v3465
        %v3473 = vcombine.low %v3469, %v3470
        %v3475 = vunpack.c.l.s4 1983009808
        %v3476 = vunpack.c.0.s8 %v3475
        %v3477 = vlaneseq
        %v3478 = vshrl.u32 %v3477, 7
        %v3479 = vsub.s32 %v3476, %v3478
        %v3480 = vrot.slane %v3473, %v3479
        %3482 = vst [vmem:[%s4] sm:$0xf] %v3480
      $region40: #{vae_forward.2} parent=31 // pred_fallthru
        _
      %s3483 = smul.u32 64, %s16
      %p3484 = scmp.lt.s32.totalorder %s3483, 127
      %s3485 = scalar_select %p3484, %s3483, 127
      %s3486 = smul.addr %s3485, 2
      %s3487 = smul.addr %s3486, 4
      %s3488 = scalar_lea.vmem %s3, %s3487
      // Predicated region
      $region41: #{vae_forward.2} parent=31 // pred_check
        %p3489 = pneg %p102
      $region42: #{vae_forward.2} parent=31 // pred_check_branch
        %3491 = sbr.rel (%p3489) target = $region44
      $region43: #{vae_forward.2} parent=31 // pred_region
        %s3492 = smul.u32 64, %s16
      $region44: #{vae_forward.2} parent=31 // pred_fallthru
        _
      // Predicated region
      $region45: #{vae_forward.2} parent=31 // pred_check
        %p3493 = pneg %p123
      $region46: #{vae_forward.2} parent=31 // pred_check_branch
        %3495 = sbr.rel (%p3493) target = $region48
      $region47: #{vae_forward.2} parent=31 // pred_region
        _
      $region48: #{vae_forward.2} parent=31 // pred_fallthru
        _
      // Predicated region
      $region49: #{vae_forward.2} parent=31 // pred_check
        %p3496 = pneg %p123
      $region50: #{vae_forward.2} parent=31 // pred_check_branch
        %3498 = sbr.rel (%p3496) target = $region52
      $region51: #{vae_forward.2} parent=31 // pred_region
        _
      $region52: #{vae_forward.2} parent=31 // pred_fallthru
        _
    $region32: #{vae_forward.2} parent=5 // pred_fallthru
      _
    %p3499 = scmp.le.s32.totalorder 2, %s11
    // Predicated region
    $region53: #{vae_forward.2} parent=5 // pred_check
      %p3500 = pneg %p3499
    $region54: #{vae_forward.2} parent=5 // pred_check_branch
      %3502 = sbr.rel (%p3500) target = $region56
    $region55: #{vae_forward.2} parent=5 // pred_region
      %s3503 = ssub.s32 %s11, 2
      // Predicated region
      $region57: #{vae_forward.2} parent=55 // pred_check
        %p3504 = pneg %p108
      $region58: #{vae_forward.2} parent=55 // pred_check_branch
        %3506 = sbr.rel (%p3504) target = $region60
      $region59: #{vae_forward.2} parent=55 // pred_region
        %s3507 = smul.u32 64, %s17
        %p3508 = scmp.lt.s32.totalorder %s3507, 127
        %s3509 = scalar_select %p3508, %s3507, 127
        %s3510 = smul.addr %s3509, 2
        %s3511 = smul.addr %s3510, 4
        %s3512 = scalar_lea.vmem %s3, %s3511
      $region60: #{vae_forward.2} parent=55 // pred_fallthru
        _
    $region56: #{vae_forward.2} parent=5 // pred_fallthru
      _
  $region6: #{vae_forward.2} parent=0 // loop_footer
    %s15 = sadd.s32 1, %s11
  $region7: #{vae_forward.2} parent=0 // loop_footer_branch
    %10 = sbr.rel target = $region3
  $region8: #{vae_forward.2} parent=0 // loop_exit
    _

// kernel: vae_forward.3
$region0: #{vae_forward.3}
  #allocation0 [shape = 'u32[]', space=smem, size = 0x4, offset = 0x4, fixed_abs, tag = 'smem constant byte address 0x4 - core index']
  #allocation1 [shape = 'u32[144,128]{1,0:T(1,128)}', space=vmem, size = 0x12000, scoped, tag = 'internal scratch']
  %s0 = inlined_call_operand.vmem [shape: bf16[1024,256], index: 0, kind: input, shape index: {}]
  %s1 = inlined_call_operand.vmem [shape: f32[1024,32], index: 1, kind: input, shape index: {}]
  %s2 = inlined_call_operand.vmem [shape: f32[2,256], index: 2, kind: input, shape index: {}]
  %s3 = inlined_call_operand.vmem [shape: bf16[256,128], index: 3, kind: input, shape index: {}]
  %s4 = inlined_call_operand.vmem [shape: f32[1,128], index: 4, kind: input, shape index: {}]
  %s5 = inlined_call_operand.vmem [shape: bf16[128,128], index: 5, kind: input, shape index: {}]
  %s6 = inlined_call_operand.vmem [shape: f32[1,128], index: 6, kind: input, shape index: {}]
  %s7 = inlined_call_operand.vmem [shape: bf16[32,128], index: 7, kind: input, shape index: {}]
  %s8 = inlined_call_operand.vmem [shape: f32[1,128], index: 8, kind: input, shape index: {}]
  %s9 = inlined_call_operand.vmem [shape: bf16[128,256], index: 9, kind: input, shape index: {}]
  %s10 = inlined_call_operand.vmem [shape: f32[1,256], index: 10, kind: input, shape index: {}]
  %s11 = inlined_call_operand.vmem [shape: bf16[256,512], index: 11, kind: input, shape index: {}]
  %s12 = inlined_call_operand.vmem [shape: f32[1,512], index: 12, kind: input, shape index: {}]
  %s13 = inlined_call_operand.vmem [shape: f32[1024,512], index: 13, kind: output, shape index: {0}]
  %s14 = inlined_call_operand.vmem [shape: f32[1024,128], index: 14, kind: output, shape index: {1}]
  %15 = xla_tuple %s13, %s14
  %s16 = sld [smem:[#allocation0]]
  $region93: #{vae_forward.3} parent=0
    _
  %s18 = ssub.s32 1, %s16
  %s19 = scalar_select 0, %s18, %s16
  loop: start=0, step=1, limit=4
  $region2: #{vae_forward.3} parent=0 // loop_pre_header
    _
  $region3: #{vae_forward.3} parent=0 // loop_header
    %s21 = sphi 0, %s25
    %p22 = scmp.ge.s32.totalorder %s21, 4
    %s31 = sphi 0, %s33
    %s34 = sphi 0, %s31
    %s35 = sphi 0, %s34
    %s51 = sphi 0, %s35
    %s57 = sphi 0, %s59
    %s60 = sphi 0, %s57
    %s61 = sphi 0, %s60
    %s77 = sphi 0, %s61
    %s81 = sphi 0, %s81
    %s83 = sphi 0, %s81
    %s84 = sphi 0, %s83
    %s98 = sphi 0, %s84
    %s102 = sphi 0, %s102
    %s104 = sphi 0, %s102
    %s105 = sphi 0, %s104
    %s119 = sphi 0, %s105
    %s123 = sphi 0, %s123
    %s125 = sphi 0, %s123
    %s126 = sphi 0, %s125
    %s140 = sphi 0, %s126
    %s144 = sphi 0, %s144
    %s146 = sphi 0, %s144
    %s147 = sphi 0, %s146
    %s161 = sphi 0, %s147
    %s165 = sphi 0, %s165
    %s167 = sphi 0, %s165
    %s168 = sphi 0, %s167
    %s182 = sphi 0, %s168
    %s186 = sphi 0, %s186
    %s188 = sphi 0, %s186
    %s189 = sphi 0, %s188
    %s203 = sphi 0, %s189
    %s207 = sphi 0, %s207
    %s209 = sphi 0, %s207
    %s210 = sphi 0, %s209
    %s224 = sphi 0, %s210
    %s228 = sphi 0, %s228
    %s230 = sphi 0, %s228
    %s231 = sphi 0, %s230
    %s245 = sphi 0, %s231
    %s249 = sphi 0, %s249
    %s251 = sphi 0, %s249
    %s252 = sphi 0, %s251
    %s266 = sphi 0, %s252
    %s270 = sphi 0, %s270
    %s272 = sphi 0, %s270
    %s273 = sphi 0, %s272
    %s287 = sphi 0, %s273
    %s291 = sphi 0, %s291
    %s293 = sphi 0, %s291
    %s294 = sphi 0, %s293
    %s308 = sphi 0, %s294
    %s314 = sphi 0, %s316
    %s317 = sphi 0, %s314
    %s318 = sphi 0, %s317
    %s334 = sphi 0, %s318
    %s340 = sphi 0, %s342
    %s343 = sphi 0, %s340
    %s344 = sphi 0, %s343
    %s360 = sphi 0, %s344
  $region4: #{vae_forward.3} parent=0 // loop_header_branch
    %24 = sbr.rel (%p22) target = $region8
  $region5: #{vae_forward.3} parent=0 // loop_body
    %s26 = ssub.s32 %s21, 1
    %s27 = ssub.s32 %s21, 2
    %s28 = sadd.s32 %s21, 1
    %s29 = ssub.s32 %s21, %s28
    %p30 = scmp.eq.s32.totalorder %s29, 0
    %s32 = sadd.s32 %s31, 1
    %s33 = scalar_select %p30, %s31, %s32
    %p36 = pneg %p30
    %p37 = scmp.eq.s32.totalorder %s21, 1
    %p38 = por %p36, %p37
    %p39 = scmp.ne.s32.totalorder %s31, %s34
    %p40 = scmp.eq.s32.totalorder %s21, 0
    %p41 = por %p39, %p40
    %p42 = scmp.ne.s32.totalorder %s31, %s34
    %p43 = scmp.eq.s32.totalorder %s26, 1
    %p44 = por %p42, %p43
    %p45 = scmp.ne.s32.totalorder %s34, %s35
    %p46 = scmp.eq.s32.totalorder %s26, 0
    %p47 = por %p45, %p46
    %p48 = scmp.ne.s32.totalorder %s34, %s35
    %p49 = scmp.eq.s32.totalorder %s27, 1
    %p50 = por %p48, %p49
    %p52 = scmp.ne.s32.totalorder %s35, %s51
    %p53 = scmp.eq.s32.totalorder %s27, 0
    %p54 = por %p52, %p53
    %s55 = ssub.s32 %s21, %s28
    %p56 = scmp.eq.s32.totalorder %s55, 0
    %s58 = sadd.s32 %s57, 1
    %s59 = scalar_select %p56, %s57, %s58
    %p62 = pneg %p56
    %p63 = scmp.eq.s32.totalorder %s21, 1
    %p64 = por %p62, %p63
    %p65 = scmp.ne.s32.totalorder %s57, %s60
    %p66 = scmp.eq.s32.totalorder %s21, 0
    %p67 = por %p65, %p66
    %p68 = scmp.ne.s32.totalorder %s57, %s60
    %p69 = scmp.eq.s32.totalorder %s26, 1
    %p70 = por %p68, %p69
    %p71 = scmp.ne.s32.totalorder %s60, %s61
    %p72 = scmp.eq.s32.totalorder %s26, 0
    %p73 = por %p71, %p72
    %p74 = scmp.ne.s32.totalorder %s60, %s61
    %p75 = scmp.eq.s32.totalorder %s27, 1
    %p76 = por %p74, %p75
    %p78 = scmp.ne.s32.totalorder %s61, %s77
    %p79 = scmp.eq.s32.totalorder %s27, 0
    %p80 = por %p78, %p79
    %s82 = sadd.s32 %s81, 1
    %p85 = scmp.eq.s32.totalorder %s21, 1
    %p86 = scmp.ne.s32.totalorder %s81, %s83
    %p87 = scmp.eq.s32.totalorder %s21, 0
    %p88 = por %p86, %p87
    %p89 = scmp.ne.s32.totalorder %s81, %s83
    %p90 = scmp.eq.s32.totalorder %s26, 1
    %p91 = por %p89, %p90
    %p92 = scmp.ne.s32.totalorder %s83, %s84
    %p93 = scmp.eq.s32.totalorder %s26, 0
    %p94 = por %p92, %p93
    %p95 = scmp.ne.s32.totalorder %s83, %s84
    %p96 = scmp.eq.s32.totalorder %s27, 1
    %p97 = por %p95, %p96
    %p99 = scmp.ne.s32.totalorder %s84, %s98
    %p100 = scmp.eq.s32.totalorder %s27, 0
    %p101 = por %p99, %p100
    %s103 = sadd.s32 %s102, 1
    %p106 = scmp.eq.s32.totalorder %s21, 1
    %p107 = scmp.ne.s32.totalorder %s102, %s104
    %p108 = scmp.eq.s32.totalorder %s21, 0
    %p109 = por %p107, %p108
    %p110 = scmp.ne.s32.totalorder %s102, %s104
    %p111 = scmp.eq.s32.totalorder %s26, 1
    %p112 = por %p110, %p111
    %p113 = scmp.ne.s32.totalorder %s104, %s105
    %p114 = scmp.eq.s32.totalorder %s26, 0
    %p115 = por %p113, %p114
    %p116 = scmp.ne.s32.totalorder %s104, %s105
    %p117 = scmp.eq.s32.totalorder %s27, 1
    %p118 = por %p116, %p117
    %p120 = scmp.ne.s32.totalorder %s105, %s119
    %p121 = scmp.eq.s32.totalorder %s27, 0
    %p122 = por %p120, %p121
    %s124 = sadd.s32 %s123, 1
    %p127 = scmp.eq.s32.totalorder %s21, 1
    %p128 = scmp.ne.s32.totalorder %s123, %s125
    %p129 = scmp.eq.s32.totalorder %s21, 0
    %p130 = por %p128, %p129
    %p131 = scmp.ne.s32.totalorder %s123, %s125
    %p132 = scmp.eq.s32.totalorder %s26, 1
    %p133 = por %p131, %p132
    %p134 = scmp.ne.s32.totalorder %s125, %s126
    %p135 = scmp.eq.s32.totalorder %s26, 0
    %p136 = por %p134, %p135
    %p137 = scmp.ne.s32.totalorder %s125, %s126
    %p138 = scmp.eq.s32.totalorder %s27, 1
    %p139 = por %p137, %p138
    %p141 = scmp.ne.s32.totalorder %s126, %s140
    %p142 = scmp.eq.s32.totalorder %s27, 0
    %p143 = por %p141, %p142
    %s145 = sadd.s32 %s144, 1
    %p148 = scmp.eq.s32.totalorder %s21, 1
    %p149 = scmp.ne.s32.totalorder %s144, %s146
    %p150 = scmp.eq.s32.totalorder %s21, 0
    %p151 = por %p149, %p150
    %p152 = scmp.ne.s32.totalorder %s144, %s146
    %p153 = scmp.eq.s32.totalorder %s26, 1
    %p154 = por %p152, %p153
    %p155 = scmp.ne.s32.totalorder %s146, %s147
    %p156 = scmp.eq.s32.totalorder %s26, 0
    %p157 = por %p155, %p156
    %p158 = scmp.ne.s32.totalorder %s146, %s147
    %p159 = scmp.eq.s32.totalorder %s27, 1
    %p160 = por %p158, %p159
    %p162 = scmp.ne.s32.totalorder %s147, %s161
    %p163 = scmp.eq.s32.totalorder %s27, 0
    %p164 = por %p162, %p163
    %s166 = sadd.s32 %s165, 1
    %p169 = scmp.eq.s32.totalorder %s21, 1
    %p170 = scmp.ne.s32.totalorder %s165, %s167
    %p171 = scmp.eq.s32.totalorder %s21, 0
    %p172 = por %p170, %p171
    %p173 = scmp.ne.s32.totalorder %s165, %s167
    %p174 = scmp.eq.s32.totalorder %s26, 1
    %p175 = por %p173, %p174
    %p176 = scmp.ne.s32.totalorder %s167, %s168
    %p177 = scmp.eq.s32.totalorder %s26, 0
    %p178 = por %p176, %p177
    %p179 = scmp.ne.s32.totalorder %s167, %s168
    %p180 = scmp.eq.s32.totalorder %s27, 1
    %p181 = por %p179, %p180
    %p183 = scmp.ne.s32.totalorder %s168, %s182
    %p184 = scmp.eq.s32.totalorder %s27, 0
    %p185 = por %p183, %p184
    %s187 = sadd.s32 %s186, 1
    %p190 = scmp.eq.s32.totalorder %s21, 1
    %p191 = scmp.ne.s32.totalorder %s186, %s188
    %p192 = scmp.eq.s32.totalorder %s21, 0
    %p193 = por %p191, %p192
    %p194 = scmp.ne.s32.totalorder %s186, %s188
    %p195 = scmp.eq.s32.totalorder %s26, 1
    %p196 = por %p194, %p195
    %p197 = scmp.ne.s32.totalorder %s188, %s189
    %p198 = scmp.eq.s32.totalorder %s26, 0
    %p199 = por %p197, %p198
    %p200 = scmp.ne.s32.totalorder %s188, %s189
    %p201 = scmp.eq.s32.totalorder %s27, 1
    %p202 = por %p200, %p201
    %p204 = scmp.ne.s32.totalorder %s189, %s203
    %p205 = scmp.eq.s32.totalorder %s27, 0
    %p206 = por %p204, %p205
    %s208 = sadd.s32 %s207, 1
    %p211 = scmp.eq.s32.totalorder %s21, 1
    %p212 = scmp.ne.s32.totalorder %s207, %s209
    %p213 = scmp.eq.s32.totalorder %s21, 0
    %p214 = por %p212, %p213
    %p215 = scmp.ne.s32.totalorder %s207, %s209
    %p216 = scmp.eq.s32.totalorder %s26, 1
    %p217 = por %p215, %p216
    %p218 = scmp.ne.s32.totalorder %s209, %s210
    %p219 = scmp.eq.s32.totalorder %s26, 0
    %p220 = por %p218, %p219
    %p221 = scmp.ne.s32.totalorder %s209, %s210
    %p222 = scmp.eq.s32.totalorder %s27, 1
    %p223 = por %p221, %p222
    %p225 = scmp.ne.s32.totalorder %s210, %s224
    %p226 = scmp.eq.s32.totalorder %s27, 0
    %p227 = por %p225, %p226
    %s229 = sadd.s32 %s228, 1
    %p232 = scmp.eq.s32.totalorder %s21, 1
    %p233 = scmp.ne.s32.totalorder %s228, %s230
    %p234 = scmp.eq.s32.totalorder %s21, 0
    %p235 = por %p233, %p234
    %p236 = scmp.ne.s32.totalorder %s228, %s230
    %p237 = scmp.eq.s32.totalorder %s26, 1
    %p238 = por %p236, %p237
    %p239 = scmp.ne.s32.totalorder %s230, %s231
    %p240 = scmp.eq.s32.totalorder %s26, 0
    %p241 = por %p239, %p240
    %p242 = scmp.ne.s32.totalorder %s230, %s231
    %p243 = scmp.eq.s32.totalorder %s27, 1
    %p244 = por %p242, %p243
    %p246 = scmp.ne.s32.totalorder %s231, %s245
    %p247 = scmp.eq.s32.totalorder %s27, 0
    %p248 = por %p246, %p247
    %s250 = sadd.s32 %s249, 1
    %p253 = scmp.eq.s32.totalorder %s21, 1
    %p254 = scmp.ne.s32.totalorder %s249, %s251
    %p255 = scmp.eq.s32.totalorder %s21, 0
    %p256 = por %p254, %p255
    %p257 = scmp.ne.s32.totalorder %s249, %s251
    %p258 = scmp.eq.s32.totalorder %s26, 1
    %p259 = por %p257, %p258
    %p260 = scmp.ne.s32.totalorder %s251, %s252
    %p261 = scmp.eq.s32.totalorder %s26, 0
    %p262 = por %p260, %p261
    %p263 = scmp.ne.s32.totalorder %s251, %s252
    %p264 = scmp.eq.s32.totalorder %s27, 1
    %p265 = por %p263, %p264
    %p267 = scmp.ne.s32.totalorder %s252, %s266
    %p268 = scmp.eq.s32.totalorder %s27, 0
    %p269 = por %p267, %p268
    %s271 = sadd.s32 %s270, 1
    %p274 = scmp.eq.s32.totalorder %s21, 1
    %p275 = scmp.ne.s32.totalorder %s270, %s272
    %p276 = scmp.eq.s32.totalorder %s21, 0
    %p277 = por %p275, %p276
    %p278 = scmp.ne.s32.totalorder %s270, %s272
    %p279 = scmp.eq.s32.totalorder %s26, 1
    %p280 = por %p278, %p279
    %p281 = scmp.ne.s32.totalorder %s272, %s273
    %p282 = scmp.eq.s32.totalorder %s26, 0
    %p283 = por %p281, %p282
    %p284 = scmp.ne.s32.totalorder %s272, %s273
    %p285 = scmp.eq.s32.totalorder %s27, 1
    %p286 = por %p284, %p285
    %p288 = scmp.ne.s32.totalorder %s273, %s287
    %p289 = scmp.eq.s32.totalorder %s27, 0
    %p290 = por %p288, %p289
    %s292 = sadd.s32 %s291, 1
    %p295 = scmp.eq.s32.totalorder %s21, 1
    %p296 = scmp.ne.s32.totalorder %s291, %s293
    %p297 = scmp.eq.s32.totalorder %s21, 0
    %p298 = por %p296, %p297
    %p299 = scmp.ne.s32.totalorder %s291, %s293
    %p300 = scmp.eq.s32.totalorder %s26, 1
    %p301 = por %p299, %p300
    %p302 = scmp.ne.s32.totalorder %s293, %s294
    %p303 = scmp.eq.s32.totalorder %s26, 0
    %p304 = por %p302, %p303
    %p305 = scmp.ne.s32.totalorder %s293, %s294
    %p306 = scmp.eq.s32.totalorder %s27, 1
    %p307 = por %p305, %p306
    %p309 = scmp.ne.s32.totalorder %s294, %s308
    %p310 = scmp.eq.s32.totalorder %s27, 0
    %p311 = por %p309, %p310
    %s312 = ssub.s32 %s21, %s28
    %p313 = scmp.eq.s32.totalorder %s312, 0
    %s315 = sadd.s32 %s314, 1
    %s316 = scalar_select %p313, %s314, %s315
    %p319 = pneg %p313
    %p320 = scmp.eq.s32.totalorder %s21, 1
    %p321 = por %p319, %p320
    %p322 = scmp.ne.s32.totalorder %s314, %s317
    %p323 = scmp.eq.s32.totalorder %s21, 0
    %p324 = por %p322, %p323
    %p325 = scmp.ne.s32.totalorder %s314, %s317
    %p326 = scmp.eq.s32.totalorder %s26, 1
    %p327 = por %p325, %p326
    %p328 = scmp.ne.s32.totalorder %s317, %s318
    %p329 = scmp.eq.s32.totalorder %s26, 0
    %p330 = por %p328, %p329
    %p331 = scmp.ne.s32.totalorder %s317, %s318
    %p332 = scmp.eq.s32.totalorder %s27, 1
    %p333 = por %p331, %p332
    %p335 = scmp.ne.s32.totalorder %s318, %s334
    %p336 = scmp.eq.s32.totalorder %s27, 0
    %p337 = por %p335, %p336
    %s338 = ssub.s32 %s21, %s28
    %p339 = scmp.eq.s32.totalorder %s338, 0
    %s341 = sadd.s32 %s340, 1
    %s342 = scalar_select %p339, %s340, %s341
    %p345 = pneg %p339
    %p346 = scmp.eq.s32.totalorder %s21, 1
    %p347 = por %p345, %p346
    %p348 = scmp.ne.s32.totalorder %s340, %s343
    %p349 = scmp.eq.s32.totalorder %s21, 0
    %p350 = por %p348, %p349
    %p351 = scmp.ne.s32.totalorder %s340, %s343
    %p352 = scmp.eq.s32.totalorder %s26, 1
    %p353 = por %p351, %p352
    %p354 = scmp.ne.s32.totalorder %s343, %s344
    %p355 = scmp.eq.s32.totalorder %s26, 0
    %p356 = por %p354, %p355
    %p357 = scmp.ne.s32.totalorder %s343, %s344
    %p358 = scmp.eq.s32.totalorder %s27, 1
    %p359 = por %p357, %p358
    %p361 = scmp.ne.s32.totalorder %s344, %s360
    %p362 = scmp.eq.s32.totalorder %s27, 0
    %p363 = por %p361, %p362
    %p364 = scmp.le.s32.totalorder 1, %s21
    %p365 = scmp.lt.s32.totalorder %s21, 3
    %p366 = pnand %p364, %p365
    %p367 = pneg %p366
    // Predicated region
    $region9: #{vae_forward.3} parent=5 // pred_check
      _
    $region10: #{vae_forward.3} parent=5 // pred_check_branch
      %369 = sbr.rel (%p366) target = $region12
    $region11: #{vae_forward.3} parent=5 // pred_region
      %s370 = ssub.s32 %s21, 1
      // Predicated region
      $region13: #{vae_forward.3} parent=11 // pred_check
        %p371 = pneg %p94
      $region14: #{vae_forward.3} parent=11 // pred_check_branch
        %373 = sbr.rel (%p371) target = $region16
      $region15: #{vae_forward.3} parent=11 // pred_region
        _
      $region16: #{vae_forward.3} parent=11 // pred_fallthru
        _
      // Predicated region
      $region17: #{vae_forward.3} parent=11 // pred_check
        %p374 = pneg %p115
      $region18: #{vae_forward.3} parent=11 // pred_check_branch
        %376 = sbr.rel (%p374) target = $region20
      $region19: #{vae_forward.3} parent=11 // pred_region
        _
      $region20: #{vae_forward.3} parent=11 // pred_fallthru
        _
      // Predicated region
      $region21: #{vae_forward.3} parent=11 // pred_check
        %p377 = pneg %p136
      $region22: #{vae_forward.3} parent=11 // pred_check_branch
        %379 = sbr.rel (%p377) target = $region24
      $region23: #{vae_forward.3} parent=11 // pred_region
        _
      $region24: #{vae_forward.3} parent=11 // pred_fallthru
        _
      // Predicated region
      $region25: #{vae_forward.3} parent=11 // pred_check
        %p380 = pneg %p157
      $region26: #{vae_forward.3} parent=11 // pred_check_branch
        %382 = sbr.rel (%p380) target = $region28
      $region27: #{vae_forward.3} parent=11 // pred_region
        _
      $region28: #{vae_forward.3} parent=11 // pred_fallthru
        _
      // Predicated region
      $region29: #{vae_forward.3} parent=11 // pred_check
        %p383 = pneg %p178
      $region30: #{vae_forward.3} parent=11 // pred_check_branch
        %385 = sbr.rel (%p383) target = $region32
      $region31: #{vae_forward.3} parent=11 // pred_region
        _
      $region32: #{vae_forward.3} parent=11 // pred_fallthru
        _
      // Predicated region
      $region33: #{vae_forward.3} parent=11 // pred_check
        %p386 = pneg %p199
      $region34: #{vae_forward.3} parent=11 // pred_check_branch
        %388 = sbr.rel (%p386) target = $region36
      $region35: #{vae_forward.3} parent=11 // pred_region
        _
      $region36: #{vae_forward.3} parent=11 // pred_fallthru
        _
      // Predicated region
      $region37: #{vae_forward.3} parent=11 // pred_check
        %p389 = pneg %p220
      $region38: #{vae_forward.3} parent=11 // pred_check_branch
        %391 = sbr.rel (%p389) target = $region40
      $region39: #{vae_forward.3} parent=11 // pred_region
        _
      $region40: #{vae_forward.3} parent=11 // pred_fallthru
        _
      // Predicated region
      $region41: #{vae_forward.3} parent=11 // pred_check
        %p392 = pneg %p241
      $region42: #{vae_forward.3} parent=11 // pred_check_branch
        %394 = sbr.rel (%p392) target = $region44
      $region43: #{vae_forward.3} parent=11 // pred_region
        _
      $region44: #{vae_forward.3} parent=11 // pred_fallthru
        _
      // Predicated region
      $region45: #{vae_forward.3} parent=11 // pred_check
        %p395 = pneg %p262
      $region46: #{vae_forward.3} parent=11 // pred_check_branch
        %397 = sbr.rel (%p395) target = $region48
      $region47: #{vae_forward.3} parent=11 // pred_region
        _
      $region48: #{vae_forward.3} parent=11 // pred_fallthru
        _
      // Predicated region
      $region49: #{vae_forward.3} parent=11 // pred_check
        %p398 = pneg %p283
      $region50: #{vae_forward.3} parent=11 // pred_check_branch
        %400 = sbr.rel (%p398) target = $region52
      $region51: #{vae_forward.3} parent=11 // pred_region
        _
      $region52: #{vae_forward.3} parent=11 // pred_fallthru
        _
      // Predicated region
      $region53: #{vae_forward.3} parent=11 // pred_check
        %p401 = pneg %p304
      $region54: #{vae_forward.3} parent=11 // pred_check_branch
        %403 = sbr.rel (%p401) target = $region56
      $region55: #{vae_forward.3} parent=11 // pred_region
        _
      $region56: #{vae_forward.3} parent=11 // pred_fallthru
        _
    $region12: #{vae_forward.3} parent=5 // pred_fallthru
      _
    %p404 = scmp.lt.s32.totalorder %s21, 2
    // Predicated region
    $region57: #{vae_forward.3} parent=5 // pred_check
      %p405 = pneg %p404
    $region58: #{vae_forward.3} parent=5 // pred_check_branch
      %407 = sbr.rel (%p405) target = $region60
    $region59: #{vae_forward.3} parent=5 // pred_region
      // Predicated region
      $region61: #{vae_forward.3} parent=59 // pred_check
        %p408 = pneg %p41
      $region62: #{vae_forward.3} parent=59 // pred_check_branch
        %410 = sbr.rel (%p408) target = $region64
      $region63: #{vae_forward.3} parent=59 // pred_region
        %s411 = smul.u32 64, %s21
        %p412 = scmp.lt.s32.totalorder %s411, 127
        %s413 = scalar_select %p412, %s411, 127
        %s414 = smul.addr %s413, 2
        %s415 = smul.addr %s414, 4
        %s416 = scalar_lea.vmem %s0, %s415
        %s417 = smul.u32 64, %s21
      $region64: #{vae_forward.3} parent=59 // pred_fallthru
        _
      // Predicated region
      $region65: #{vae_forward.3} parent=59 // pred_check
        %p418 = pneg %p67
      $region66: #{vae_forward.3} parent=59 // pred_check_branch
        %420 = sbr.rel (%p418) target = $region68
      $region67: #{vae_forward.3} parent=59 // pred_region
        %s421 = smul.u32 64, %s21
        %p422 = scmp.lt.s32.totalorder %s421, 127
        %s423 = scalar_select %p422, %s421, 127
        %s424 = smul.addr %s423, 8
        %s425 = scalar_lea.vmem %s1, %s424
        %s426 = smul.u32 64, %s21
      $region68: #{vae_forward.3} parent=59 // pred_fallthru
        _
    $region60: #{vae_forward.3} parent=5 // pred_fallthru
      _
    %p427 = scmp.le.s32.totalorder 1, %s21
    %p428 = scmp.lt.s32.totalorder %s21, 3
    %p429 = pnand %p427, %p428
    %p430 = pneg %p429
    // Predicated region
    $region69: #{vae_forward.3} parent=5 // pred_check
      _
    $region70: #{vae_forward.3} parent=5 // pred_check_branch
      %432 = sbr.rel (%p429) target = $region72
    $region71: #{vae_forward.3} parent=5 // pred_region
      %s433 = ssub.s32 %s21, 1
      %s434 = smul.u32 64, %s26
      %p435 = scmp.lt.s32.totalorder %s434, 127
      %s436 = scalar_select %p435, %s434, 127
      %s437 = smul.addr %s436, 2
      %s438 = smul.addr %s437, 4
      %s439 = scalar_lea.vmem %s0, %s438
      %p440 = pneg %p47
      %p441 = pneg %p44
      %s442 = smul.u32 64, %s26
      %p443 = scmp.lt.s32.totalorder %s442, 127
      %s444 = scalar_select %p443, %s442, 127
      %s445 = smul.addr %s444, 8
      %s446 = scalar_lea.vmem %s1, %s445
      %p447 = pneg %p73
      %p448 = pneg %p70
      %p449 = pneg %p94
      %p450 = pneg %p91
      %p451 = pneg %p115
      %p452 = pneg %p112
      %p453 = pneg %p136
      %p454 = pneg %p133
      %p455 = pneg %p157
      %p456 = pneg %p154
      %p457 = pneg %p178
      %p458 = pneg %p175
      %p459 = pneg %p199
      %p460 = pneg %p196
      %p461 = pneg %p220
      %p462 = pneg %p217
      %p463 = pneg %p241
      %p464 = pneg %p238
      %p465 = pneg %p262
      %p466 = pneg %p259
      %p467 = pneg %p283
      %p468 = pneg %p280
      %p469 = pneg %p304
      %p470 = pneg %p301
      %p471 = pneg %p330
      %p472 = pneg %p327
      %s473 = smul.u32 64, %s26
      %p474 = scmp.lt.s32.totalorder %s473, 127
      %s475 = scalar_select %p474, %s473, 127
      %s476 = smul.addr %s475, 4
      %s477 = smul.addr %s476, 8
      %s478 = scalar_lea.vmem %s13, %s477
      %p479 = pneg %p356
      %p480 = pneg %p353
      %s481 = smul.u32 64, %s26
      %p482 = scmp.lt.s32.totalorder %s481, 127
      %s483 = scalar_select %p482, %s481, 127
      %s484 = smul.addr %s483, 8
      %s485 = scalar_lea.vmem %s14, %s484
      %s486 = smul.u32 64, %s26
      %p487 = scmp.lt.s32.totalorder %s486, 127
      %s488 = scalar_select %p487, %s486, 127
      %s489 = smul.addr %s488, 2
      %s490 = smul.addr %s489, 4
      %s491 = scalar_lea.vmem %s0, %s490
      %s492 = smul.u32 64, %s26
      %s493 = smul.u32 64, %s26
      %p494 = scmp.lt.s32.totalorder %s493, 127
      %s495 = scalar_select %p494, %s493, 127
      %s496 = smul.addr %s495, 8
      %s497 = scalar_lea.vmem %s1, %s496
      %s498 = smul.u32 64, %s26
      %s499 = smul.u32 64, %s26
      %p500 = scmp.lt.s32.totalorder %s499, 127
      %s501 = scalar_select %p500, %s499, 127
      %s502 = smul.addr %s501, 4
      %s503 = smul.addr %s502, 8
      %s504 = scalar_lea.vmem %s13, %s503
      %s505 = smul.u32 64, %s26
      %s506 = smul.u32 64, %s26
      %p507 = scmp.lt.s32.totalorder %s506, 127
      %s508 = scalar_select %p507, %s506, 127
      %s509 = smul.addr %s508, 8
      %s510 = scalar_lea.vmem %s14, %s509
      %s511 = smul.u32 64, %s26
      %v513 = vld [vmem:[%s491] sm:$0xff]
      %v514 = vld [vmem:[%s491 + $0x8] sm:$0xff]
      %v515 = vld [vmem:[%s491 + $0x10] sm:$0xff]
      %v516 = vld [vmem:[%s491 + $0x18] sm:$0xff]
      %v517 = vld [vmem:[%s491 + $0x20] sm:$0xff]
      %v518 = vld [vmem:[%s491 + $0x28] sm:$0xff]
      %v519 = vld [vmem:[%s491 + $0x30] sm:$0xff]
      %v520 = vld [vmem:[%s491 + $0x38] sm:$0xff]
      %v521 = vld [vmem:[%s491 + $0x40] sm:$0xff]
      %v522 = vld [vmem:[%s491 + $0x48] sm:$0xff]
      %v523 = vld [vmem:[%s491 + $0x50] sm:$0xff]
      %v524 = vld [vmem:[%s491 + $0x58] sm:$0xff]
      %v525 = vld [vmem:[%s491 + $0x60] sm:$0xff]
      %v526 = vld [vmem:[%s491 + $0x68] sm:$0xff]
      %v527 = vld [vmem:[%s491 + $0x70] sm:$0xff]
      %v528 = vld [vmem:[%s491 + $0x78] sm:$0xff]
      %v529 = vld [vmem:[%s491 + $0x80] sm:$0xff]
      %v530 = vld [vmem:[%s491 + $0x88] sm:$0xff]
      %v531 = vld [vmem:[%s491 + $0x90] sm:$0xff]
      %v532 = vld [vmem:[%s491 + $0x98] sm:$0xff]
      %v533 = vld [vmem:[%s491 + $0xa0] sm:$0xff]
      %v534 = vld [vmem:[%s491 + $0xa8] sm:$0xff]
      %v535 = vld [vmem:[%s491 + $0xb0] sm:$0xff]
      %v536 = vld [vmem:[%s491 + $0xb8] sm:$0xff]
      %v537 = vld [vmem:[%s491 + $0xc0] sm:$0xff]
      %v538 = vld [vmem:[%s491 + $0xc8] sm:$0xff]
      %v539 = vld [vmem:[%s491 + $0xd0] sm:$0xff]
      %v540 = vld [vmem:[%s491 + $0xd8] sm:$0xff]
      %v541 = vld [vmem:[%s491 + $0xe0] sm:$0xff]
      %v542 = vld [vmem:[%s491 + $0xe8] sm:$0xff]
      %v543 = vld [vmem:[%s491 + $0xf0] sm:$0xff]
      %v544 = vld [vmem:[%s491 + $0xf8] sm:$0xff]
      %v545 = vld [vmem:[%s491 + $0x100] sm:$0xff]
      %v546 = vld [vmem:[%s491 + $0x108] sm:$0xff]
      %v547 = vld [vmem:[%s491 + $0x110] sm:$0xff]
      %v548 = vld [vmem:[%s491 + $0x118] sm:$0xff]
      %v549 = vld [vmem:[%s491 + $0x120] sm:$0xff]
      %v550 = vld [vmem:[%s491 + $0x128] sm:$0xff]
      %v551 = vld [vmem:[%s491 + $0x130] sm:$0xff]
      %v552 = vld [vmem:[%s491 + $0x138] sm:$0xff]
      %v553 = vld [vmem:[%s491 + $0x140] sm:$0xff]
      %v554 = vld [vmem:[%s491 + $0x148] sm:$0xff]
      %v555 = vld [vmem:[%s491 + $0x150] sm:$0xff]
      %v556 = vld [vmem:[%s491 + $0x158] sm:$0xff]
      %v557 = vld [vmem:[%s491 + $0x160] sm:$0xff]
      %v558 = vld [vmem:[%s491 + $0x168] sm:$0xff]
      %v559 = vld [vmem:[%s491 + $0x170] sm:$0xff]
      %v560 = vld [vmem:[%s491 + $0x178] sm:$0xff]
      %v561 = vld [vmem:[%s491 + $0x180] sm:$0xff]
      %v562 = vld [vmem:[%s491 + $0x188] sm:$0xff]
      %v563 = vld [vmem:[%s491 + $0x190] sm:$0xff]
      %v564 = vld [vmem:[%s491 + $0x198] sm:$0xff]
      %v565 = vld [vmem:[%s491 + $0x1a0] sm:$0xff]
      %v566 = vld [vmem:[%s491 + $0x1a8] sm:$0xff]
      %v567 = vld [vmem:[%s491 + $0x1b0] sm:$0xff]
      %v568 = vld [vmem:[%s491 + $0x1b8] sm:$0xff]
      %v569 = vld [vmem:[%s491 + $0x1c0] sm:$0xff]
      %v570 = vld [vmem:[%s491 + $0x1c8] sm:$0xff]
      %v571 = vld [vmem:[%s491 + $0x1d0] sm:$0xff]
      %v572 = vld [vmem:[%s491 + $0x1d8] sm:$0xff]
      %v573 = vld [vmem:[%s491 + $0x1e0] sm:$0xff]
      %v574 = vld [vmem:[%s491 + $0x1e8] sm:$0xff]
      %v575 = vld [vmem:[%s491 + $0x1f0] sm:$0xff]
      %v576 = vld [vmem:[%s491 + $0x1f8] sm:$0xff]
      %v577 = vunpack.c.l.bf16 %v513
      %v578 = vunpack.c.h.bf16 %v513
      %v579 = vunpack.c.l.bf16 %v514
      %v580 = vunpack.c.h.bf16 %v514
      %v581 = vunpack.c.l.bf16 %v515
      %v582 = vunpack.c.h.bf16 %v515
      %v583 = vunpack.c.l.bf16 %v516
      %v584 = vunpack.c.h.bf16 %v516
      %v585 = vunpack.c.l.bf16 %v517
      %v586 = vunpack.c.h.bf16 %v517
      %v587 = vunpack.c.l.bf16 %v518
      %v588 = vunpack.c.h.bf16 %v518
      %v589 = vunpack.c.l.bf16 %v519
      %v590 = vunpack.c.h.bf16 %v519
      %v591 = vunpack.c.l.bf16 %v520
      %v592 = vunpack.c.h.bf16 %v520
      %v593 = vunpack.c.l.bf16 %v521
      %v594 = vunpack.c.h.bf16 %v521
      %v595 = vunpack.c.l.bf16 %v522
      %v596 = vunpack.c.h.bf16 %v522
      %v597 = vunpack.c.l.bf16 %v523
      %v598 = vunpack.c.h.bf16 %v523
      %v599 = vunpack.c.l.bf16 %v524
      %v600 = vunpack.c.h.bf16 %v524
      %v601 = vunpack.c.l.bf16 %v525
      %v602 = vunpack.c.h.bf16 %v525
      %v603 = vunpack.c.l.bf16 %v526
      %v604 = vunpack.c.h.bf16 %v526
      %v605 = vunpack.c.l.bf16 %v527
      %v606 = vunpack.c.h.bf16 %v527
      %v607 = vunpack.c.l.bf16 %v528
      %v608 = vunpack.c.h.bf16 %v528
      %v609 = vunpack.c.l.bf16 %v529
      %v610 = vunpack.c.h.bf16 %v529
      %v611 = vunpack.c.l.bf16 %v530
      %v612 = vunpack.c.h.bf16 %v530
      %v613 = vunpack.c.l.bf16 %v531
      %v614 = vunpack.c.h.bf16 %v531
      %v615 = vunpack.c.l.bf16 %v532
      %v616 = vunpack.c.h.bf16 %v532
      %v617 = vunpack.c.l.bf16 %v533
      %v618 = vunpack.c.h.bf16 %v533
      %v619 = vunpack.c.l.bf16 %v534
      %v620 = vunpack.c.h.bf16 %v534
      %v621 = vunpack.c.l.bf16 %v535
      %v622 = vunpack.c.h.bf16 %v535
      %v623 = vunpack.c.l.bf16 %v536
      %v624 = vunpack.c.h.bf16 %v536
      %v625 = vunpack.c.l.bf16 %v537
      %v626 = vunpack.c.h.bf16 %v537
      %v627 = vunpack.c.l.bf16 %v538
      %v628 = vunpack.c.h.bf16 %v538
      %v629 = vunpack.c.l.bf16 %v539
      %v630 = vunpack.c.h.bf16 %v539
      %v631 = vunpack.c.l.bf16 %v540
      %v632 = vunpack.c.h.bf16 %v540
      %v633 = vunpack.c.l.bf16 %v541
      %v634 = vunpack.c.h.bf16 %v541
      %v635 = vunpack.c.l.bf16 %v542
      %v636 = vunpack.c.h.bf16 %v542
      %v637 = vunpack.c.l.bf16 %v543
      %v638 = vunpack.c.h.bf16 %v543
      %v639 = vunpack.c.l.bf16 %v544
      %v640 = vunpack.c.h.bf16 %v544
      %v641 = vunpack.c.l.bf16 %v545
      %v642 = vunpack.c.h.bf16 %v545
      %v643 = vunpack.c.l.bf16 %v546
      %v644 = vunpack.c.h.bf16 %v546
      %v645 = vunpack.c.l.bf16 %v547
      %v646 = vunpack.c.h.bf16 %v547
      %v647 = vunpack.c.l.bf16 %v548
      %v648 = vunpack.c.h.bf16 %v548
      %v649 = vunpack.c.l.bf16 %v549
      %v650 = vunpack.c.h.bf16 %v549
      %v651 = vunpack.c.l.bf16 %v550
      %v652 = vunpack.c.h.bf16 %v550
      %v653 = vunpack.c.l.bf16 %v551
      %v654 = vunpack.c.h.bf16 %v551
      %v655 = vunpack.c.l.bf16 %v552
      %v656 = vunpack.c.h.bf16 %v552
      %v657 = vunpack.c.l.bf16 %v553
      %v658 = vunpack.c.h.bf16 %v553
      %v659 = vunpack.c.l.bf16 %v554
      %v660 = vunpack.c.h.bf16 %v554
      %v661 = vunpack.c.l.bf16 %v555
      %v662 = vunpack.c.h.bf16 %v555
      %v663 = vunpack.c.l.bf16 %v556
      %v664 = vunpack.c.h.bf16 %v556
      %v665 = vunpack.c.l.bf16 %v557
      %v666 = vunpack.c.h.bf16 %v557
      %v667 = vunpack.c.l.bf16 %v558
      %v668 = vunpack.c.h.bf16 %v558
      %v669 = vunpack.c.l.bf16 %v559
      %v670 = vunpack.c.h.bf16 %v559
      %v671 = vunpack.c.l.bf16 %v560
      %v672 = vunpack.c.h.bf16 %v560
      %v673 = vunpack.c.l.bf16 %v561
      %v674 = vunpack.c.h.bf16 %v561
      %v675 = vunpack.c.l.bf16 %v562
      %v676 = vunpack.c.h.bf16 %v562
      %v677 = vunpack.c.l.bf16 %v563
      %v678 = vunpack.c.h.bf16 %v563
      %v679 = vunpack.c.l.bf16 %v564
      %v680 = vunpack.c.h.bf16 %v564
      %v681 = vunpack.c.l.bf16 %v565
      %v682 = vunpack.c.h.bf16 %v565
      %v683 = vunpack.c.l.bf16 %v566
      %v684 = vunpack.c.h.bf16 %v566
      %v685 = vunpack.c.l.bf16 %v567
      %v686 = vunpack.c.h.bf16 %v567
      %v687 = vunpack.c.l.bf16 %v568
      %v688 = vunpack.c.h.bf16 %v568
      %v689 = vunpack.c.l.bf16 %v569
      %v690 = vunpack.c.h.bf16 %v569
      %v691 = vunpack.c.l.bf16 %v570
      %v692 = vunpack.c.h.bf16 %v570
      %v693 = vunpack.c.l.bf16 %v571
      %v694 = vunpack.c.h.bf16 %v571
      %v695 = vunpack.c.l.bf16 %v572
      %v696 = vunpack.c.h.bf16 %v572
      %v697 = vunpack.c.l.bf16 %v573
      %v698 = vunpack.c.h.bf16 %v573
      %v699 = vunpack.c.l.bf16 %v574
      %v700 = vunpack.c.h.bf16 %v574
      %v701 = vunpack.c.l.bf16 %v575
      %v702 = vunpack.c.h.bf16 %v575
      %v703 = vunpack.c.l.bf16 %v576
      %v704 = vunpack.c.h.bf16 %v576
      %v705 = vld [vmem:[%s2] ss:$2 sm:$0x3]
      %s706 = scalar_lea.vmem %s2, 1
      %v707 = vld [vmem:[%s706] ss:$2 sm:$0x3]
      %v709 = vlaneseq
      %v710 = vshrl.u32 %v709, 7
      %v711 = vsub.s32 0, %v710
      %v712 = vrot.slane %v705, %v711
      %v713 = vlaneseq
      %v714 = vshrl.u32 %v713, 7
      %v715 = vsub.s32 1, %v714
      %v716 = vrot.slane %v705, %v715
      %v719 = vsub.f32 %v577, %v712
      %v720 = vsub.f32 %v578, %v716
      %v721 = vsub.f32 %v579, %v712
      %v722 = vsub.f32 %v580, %v716
      %v723 = vsub.f32 %v581, %v712
      %v724 = vsub.f32 %v582, %v716
      %v725 = vsub.f32 %v583, %v712
      %v726 = vsub.f32 %v584, %v716
      %v727 = vsub.f32 %v585, %v712
      %v728 = vsub.f32 %v586, %v716
      %v729 = vsub.f32 %v587, %v712
      %v730 = vsub.f32 %v588, %v716
      %v731 = vsub.f32 %v589, %v712
      %v732 = vsub.f32 %v590, %v716
      %v733 = vsub.f32 %v591, %v712
      %v734 = vsub.f32 %v592, %v716
      %v735 = vsub.f32 %v593, %v712
      %v736 = vsub.f32 %v594, %v716
      %v737 = vsub.f32 %v595, %v712
      %v738 = vsub.f32 %v596, %v716
      %v739 = vsub.f32 %v597, %v712
      %v740 = vsub.f32 %v598, %v716
      %v741 = vsub.f32 %v599, %v712
      %v742 = vsub.f32 %v600, %v716
      %v743 = vsub.f32 %v601, %v712
      %v744 = vsub.f32 %v602, %v716
      %v745 = vsub.f32 %v603, %v712
      %v746 = vsub.f32 %v604, %v716
      %v747 = vsub.f32 %v605, %v712
      %v748 = vsub.f32 %v606, %v716
      %v749 = vsub.f32 %v607, %v712
      %v750 = vsub.f32 %v608, %v716
      %v751 = vsub.f32 %v609, %v712
      %v752 = vsub.f32 %v610, %v716
      %v753 = vsub.f32 %v611, %v712
      %v754 = vsub.f32 %v612, %v716
      %v755 = vsub.f32 %v613, %v712
      %v756 = vsub.f32 %v614, %v716
      %v757 = vsub.f32 %v615, %v712
      %v758 = vsub.f32 %v616, %v716
      %v759 = vsub.f32 %v617, %v712
      %v760 = vsub.f32 %v618, %v716
      %v761 = vsub.f32 %v619, %v712
      %v762 = vsub.f32 %v620, %v716
      %v763 = vsub.f32 %v621, %v712
      %v764 = vsub.f32 %v622, %v716
      %v765 = vsub.f32 %v623, %v712
      %v766 = vsub.f32 %v624, %v716
      %v767 = vsub.f32 %v625, %v712
      %v768 = vsub.f32 %v626, %v716
      %v769 = vsub.f32 %v627, %v712
      %v770 = vsub.f32 %v628, %v716
      %v771 = vsub.f32 %v629, %v712
      %v772 = vsub.f32 %v630, %v716
      %v773 = vsub.f32 %v631, %v712
      %v774 = vsub.f32 %v632, %v716
      %v775 = vsub.f32 %v633, %v712
      %v776 = vsub.f32 %v634, %v716
      %v777 = vsub.f32 %v635, %v712
      %v778 = vsub.f32 %v636, %v716
      %v779 = vsub.f32 %v637, %v712
      %v780 = vsub.f32 %v638, %v716
      %v781 = vsub.f32 %v639, %v712
      %v782 = vsub.f32 %v640, %v716
      %v783 = vsub.f32 %v641, %v712
      %v784 = vsub.f32 %v642, %v716
      %v785 = vsub.f32 %v643, %v712
      %v786 = vsub.f32 %v644, %v716
      %v787 = vsub.f32 %v645, %v712
      %v788 = vsub.f32 %v646, %v716
      %v789 = vsub.f32 %v647, %v712
      %v790 = vsub.f32 %v648, %v716
      %v791 = vsub.f32 %v649, %v712
      %v792 = vsub.f32 %v650, %v716
      %v793 = vsub.f32 %v651, %v712
      %v794 = vsub.f32 %v652, %v716
      %v795 = vsub.f32 %v653, %v712
      %v796 = vsub.f32 %v654, %v716
      %v797 = vsub.f32 %v655, %v712
      %v798 = vsub.f32 %v656, %v716
      %v799 = vsub.f32 %v657, %v712
      %v800 = vsub.f32 %v658, %v716
      %v801 = vsub.f32 %v659, %v712
      %v802 = vsub.f32 %v660, %v716
      %v803 = vsub.f32 %v661, %v712
      %v804 = vsub.f32 %v662, %v716
      %v805 = vsub.f32 %v663, %v712
      %v806 = vsub.f32 %v664, %v716
      %v807 = vsub.f32 %v665, %v712
      %v808 = vsub.f32 %v666, %v716
      %v809 = vsub.f32 %v667, %v712
      %v810 = vsub.f32 %v668, %v716
      %v811 = vsub.f32 %v669, %v712
      %v812 = vsub.f32 %v670, %v716
      %v813 = vsub.f32 %v671, %v712
      %v814 = vsub.f32 %v672, %v716
      %v815 = vsub.f32 %v673, %v712
      %v816 = vsub.f32 %v674, %v716
      %v817 = vsub.f32 %v675, %v712
      %v818 = vsub.f32 %v676, %v716
      %v819 = vsub.f32 %v677, %v712
      %v820 = vsub.f32 %v678, %v716
      %v821 = vsub.f32 %v679, %v712
      %v822 = vsub.f32 %v680, %v716
      %v823 = vsub.f32 %v681, %v712
      %v824 = vsub.f32 %v682, %v716
      %v825 = vsub.f32 %v683, %v712
      %v826 = vsub.f32 %v684, %v716
      %v827 = vsub.f32 %v685, %v712
      %v828 = vsub.f32 %v686, %v716
      %v829 = vsub.f32 %v687, %v712
      %v830 = vsub.f32 %v688, %v716
      %v831 = vsub.f32 %v689, %v712
      %v832 = vsub.f32 %v690, %v716
      %v833 = vsub.f32 %v691, %v712
      %v834 = vsub.f32 %v692, %v716
      %v835 = vsub.f32 %v693, %v712
      %v836 = vsub.f32 %v694, %v716
      %v837 = vsub.f32 %v695, %v712
      %v838 = vsub.f32 %v696, %v716
      %v839 = vsub.f32 %v697, %v712
      %v840 = vsub.f32 %v698, %v716
      %v841 = vsub.f32 %v699, %v712
      %v842 = vsub.f32 %v700, %v716
      %v843 = vsub.f32 %v701, %v712
      %v844 = vsub.f32 %v702, %v716
      %v845 = vsub.f32 %v703, %v712
      %v846 = vsub.f32 %v704, %v716
      %v848 = vlaneseq
      %v849 = vshrl.u32 %v848, 7
      %v850 = vsub.s32 0, %v849
      %v851 = vrot.slane %v707, %v850
      %v852 = vlaneseq
      %v853 = vshrl.u32 %v852, 7
      %v854 = vsub.s32 1, %v853
      %v855 = vrot.slane %v707, %v854
      %v858 = vmul.f32 %v719, %v851
      %v859 = vmul.f32 %v720, %v855
      %v860 = vmul.f32 %v721, %v851
      %v861 = vmul.f32 %v722, %v855
      %v862 = vmul.f32 %v723, %v851
      %v863 = vmul.f32 %v724, %v855
      %v864 = vmul.f32 %v725, %v851
      %v865 = vmul.f32 %v726, %v855
      %v866 = vmul.f32 %v727, %v851
      %v867 = vmul.f32 %v728, %v855
      %v868 = vmul.f32 %v729, %v851
      %v869 = vmul.f32 %v730, %v855
      %v870 = vmul.f32 %v731, %v851
      %v871 = vmul.f32 %v732, %v855
      %v872 = vmul.f32 %v733, %v851
      %v873 = vmul.f32 %v734, %v855
      %v874 = vmul.f32 %v735, %v851
      %v875 = vmul.f32 %v736, %v855
      %v876 = vmul.f32 %v737, %v851
      %v877 = vmul.f32 %v738, %v855
      %v878 = vmul.f32 %v739, %v851
      %v879 = vmul.f32 %v740, %v855
      %v880 = vmul.f32 %v741, %v851
      %v881 = vmul.f32 %v742, %v855
      %v882 = vmul.f32 %v743, %v851
      %v883 = vmul.f32 %v744, %v855
      %v884 = vmul.f32 %v745, %v851
      %v885 = vmul.f32 %v746, %v855
      %v886 = vmul.f32 %v747, %v851
      %v887 = vmul.f32 %v748, %v855
      %v888 = vmul.f32 %v749, %v851
      %v889 = vmul.f32 %v750, %v855
      %v890 = vmul.f32 %v751, %v851
      %v891 = vmul.f32 %v752, %v855
      %v892 = vmul.f32 %v753, %v851
      %v893 = vmul.f32 %v754, %v855
      %v894 = vmul.f32 %v755, %v851
      %v895 = vmul.f32 %v756, %v855
      %v896 = vmul.f32 %v757, %v851
      %v897 = vmul.f32 %v758, %v855
      %v898 = vmul.f32 %v759, %v851
      %v899 = vmul.f32 %v760, %v855
      %v900 = vmul.f32 %v761, %v851
      %v901 = vmul.f32 %v762, %v855
      %v902 = vmul.f32 %v763, %v851
      %v903 = vmul.f32 %v764, %v855
      %v904 = vmul.f32 %v765, %v851
      %v905 = vmul.f32 %v766, %v855
      %v906 = vmul.f32 %v767, %v851
      %v907 = vmul.f32 %v768, %v855
      %v908 = vmul.f32 %v769, %v851
      %v909 = vmul.f32 %v770, %v855
      %v910 = vmul.f32 %v771, %v851
      %v911 = vmul.f32 %v772, %v855
      %v912 = vmul.f32 %v773, %v851
      %v913 = vmul.f32 %v774, %v855
      %v914 = vmul.f32 %v775, %v851
      %v915 = vmul.f32 %v776, %v855
      %v916 = vmul.f32 %v777, %v851
      %v917 = vmul.f32 %v778, %v855
      %v918 = vmul.f32 %v779, %v851
      %v919 = vmul.f32 %v780, %v855
      %v920 = vmul.f32 %v781, %v851
      %v921 = vmul.f32 %v782, %v855
      %v922 = vmul.f32 %v783, %v851
      %v923 = vmul.f32 %v784, %v855
      %v924 = vmul.f32 %v785, %v851
      %v925 = vmul.f32 %v786, %v855
      %v926 = vmul.f32 %v787, %v851
      %v927 = vmul.f32 %v788, %v855
      %v928 = vmul.f32 %v789, %v851
      %v929 = vmul.f32 %v790, %v855
      %v930 = vmul.f32 %v791, %v851
      %v931 = vmul.f32 %v792, %v855
      %v932 = vmul.f32 %v793, %v851
      %v933 = vmul.f32 %v794, %v855
      %v934 = vmul.f32 %v795, %v851
      %v935 = vmul.f32 %v796, %v855
      %v936 = vmul.f32 %v797, %v851
      %v937 = vmul.f32 %v798, %v855
      %v938 = vmul.f32 %v799, %v851
      %v939 = vmul.f32 %v800, %v855
      %v940 = vmul.f32 %v801, %v851
      %v941 = vmul.f32 %v802, %v855
      %v942 = vmul.f32 %v803, %v851
      %v943 = vmul.f32 %v804, %v855
      %v944 = vmul.f32 %v805, %v851
      %v945 = vmul.f32 %v806, %v855
      %v946 = vmul.f32 %v807, %v851
      %v947 = vmul.f32 %v808, %v855
      %v948 = vmul.f32 %v809, %v851
      %v949 = vmul.f32 %v810, %v855
      %v950 = vmul.f32 %v811, %v851
      %v951 = vmul.f32 %v812, %v855
      %v952 = vmul.f32 %v813, %v851
      %v953 = vmul.f32 %v814, %v855
      %v954 = vmul.f32 %v815, %v851
      %v955 = vmul.f32 %v816, %v855
      %v956 = vmul.f32 %v817, %v851
      %v957 = vmul.f32 %v818, %v855
      %v958 = vmul.f32 %v819, %v851
      %v959 = vmul.f32 %v820, %v855
      %v960 = vmul.f32 %v821, %v851
      %v961 = vmul.f32 %v822, %v855
      %v962 = vmul.f32 %v823, %v851
      %v963 = vmul.f32 %v824, %v855
      %v964 = vmul.f32 %v825, %v851
      %v965 = vmul.f32 %v826, %v855
      %v966 = vmul.f32 %v827, %v851
      %v967 = vmul.f32 %v828, %v855
      %v968 = vmul.f32 %v829, %v851
      %v969 = vmul.f32 %v830, %v855
      %v970 = vmul.f32 %v831, %v851
      %v971 = vmul.f32 %v832, %v855
      %v972 = vmul.f32 %v833, %v851
      %v973 = vmul.f32 %v834, %v855
      %v974 = vmul.f32 %v835, %v851
      %v975 = vmul.f32 %v836, %v855
      %v976 = vmul.f32 %v837, %v851
      %v977 = vmul.f32 %v838, %v855
      %v978 = vmul.f32 %v839, %v851
      %v979 = vmul.f32 %v840, %v855
      %v980 = vmul.f32 %v841, %v851
      %v981 = vmul.f32 %v842, %v855
      %v982 = vmul.f32 %v843, %v851
      %v983 = vmul.f32 %v844, %v855
      %v984 = vmul.f32 %v845, %v851
      %v985 = vmul.f32 %v846, %v855
      %vm986 = vcmp.ge.f32.partialorder %v858, 0.0
      %vm987 = vcmp.ge.f32.partialorder %v859, 0.0
      %vm988 = vcmp.ge.f32.partialorder %v860, 0.0
      %vm989 = vcmp.ge.f32.partialorder %v861, 0.0
      %vm990 = vcmp.ge.f32.partialorder %v862, 0.0
      %vm991 = vcmp.ge.f32.partialorder %v863, 0.0
      %vm992 = vcmp.ge.f32.partialorder %v864, 0.0
      %vm993 = vcmp.ge.f32.partialorder %v865, 0.0
      %vm994 = vcmp.ge.f32.partialorder %v866, 0.0
      %vm995 = vcmp.ge.f32.partialorder %v867, 0.0
      %vm996 = vcmp.ge.f32.partialorder %v868, 0.0
      %vm997 = vcmp.ge.f32.partialorder %v869, 0.0
      %vm998 = vcmp.ge.f32.partialorder %v870, 0.0
      %vm999 = vcmp.ge.f32.partialorder %v871, 0.0
      %vm1000 = vcmp.ge.f32.partialorder %v872, 0.0
      %vm1001 = vcmp.ge.f32.partialorder %v873, 0.0
      %vm1002 = vcmp.ge.f32.partialorder %v874, 0.0
      %vm1003 = vcmp.ge.f32.partialorder %v875, 0.0
      %vm1004 = vcmp.ge.f32.partialorder %v876, 0.0
      %vm1005 = vcmp.ge.f32.partialorder %v877, 0.0
      %vm1006 = vcmp.ge.f32.partialorder %v878, 0.0
      %vm1007 = vcmp.ge.f32.partialorder %v879, 0.0
      %vm1008 = vcmp.ge.f32.partialorder %v880, 0.0
      %vm1009 = vcmp.ge.f32.partialorder %v881, 0.0
      %vm1010 = vcmp.ge.f32.partialorder %v882, 0.0
      %vm1011 = vcmp.ge.f32.partialorder %v883, 0.0
      %vm1012 = vcmp.ge.f32.partialorder %v884, 0.0
      %vm1013 = vcmp.ge.f32.partialorder %v885, 0.0
      %vm1014 = vcmp.ge.f32.partialorder %v886, 0.0
      %vm1015 = vcmp.ge.f32.partialorder %v887, 0.0
      %vm1016 = vcmp.ge.f32.partialorder %v888, 0.0
      %vm1017 = vcmp.ge.f32.partialorder %v889, 0.0
      %vm1018 = vcmp.ge.f32.partialorder %v890, 0.0
      %vm1019 = vcmp.ge.f32.partialorder %v891, 0.0
      %vm1020 = vcmp.ge.f32.partialorder %v892, 0.0
      %vm1021 = vcmp.ge.f32.partialorder %v893, 0.0
      %vm1022 = vcmp.ge.f32.partialorder %v894, 0.0
      %vm1023 = vcmp.ge.f32.partialorder %v895, 0.0
      %vm1024 = vcmp.ge.f32.partialorder %v896, 0.0
      %vm1025 = vcmp.ge.f32.partialorder %v897, 0.0
      %vm1026 = vcmp.ge.f32.partialorder %v898, 0.0
      %vm1027 = vcmp.ge.f32.partialorder %v899, 0.0
      %vm1028 = vcmp.ge.f32.partialorder %v900, 0.0
      %vm1029 = vcmp.ge.f32.partialorder %v901, 0.0
      %vm1030 = vcmp.ge.f32.partialorder %v902, 0.0
      %vm1031 = vcmp.ge.f32.partialorder %v903, 0.0
      %vm1032 = vcmp.ge.f32.partialorder %v904, 0.0
      %vm1033 = vcmp.ge.f32.partialorder %v905, 0.0
      %vm1034 = vcmp.ge.f32.partialorder %v906, 0.0
      %vm1035 = vcmp.ge.f32.partialorder %v907, 0.0
      %vm1036 = vcmp.ge.f32.partialorder %v908, 0.0
      %vm1037 = vcmp.ge.f32.partialorder %v909, 0.0
      %vm1038 = vcmp.ge.f32.partialorder %v910, 0.0
      %vm1039 = vcmp.ge.f32.partialorder %v911, 0.0
      %vm1040 = vcmp.ge.f32.partialorder %v912, 0.0
      %vm1041 = vcmp.ge.f32.partialorder %v913, 0.0
      %vm1042 = vcmp.ge.f32.partialorder %v914, 0.0
      %vm1043 = vcmp.ge.f32.partialorder %v915, 0.0
      %vm1044 = vcmp.ge.f32.partialorder %v916, 0.0
      %vm1045 = vcmp.ge.f32.partialorder %v917, 0.0
      %vm1046 = vcmp.ge.f32.partialorder %v918, 0.0
      %vm1047 = vcmp.ge.f32.partialorder %v919, 0.0
      %vm1048 = vcmp.ge.f32.partialorder %v920, 0.0
      %vm1049 = vcmp.ge.f32.partialorder %v921, 0.0
      %vm1050 = vcmp.ge.f32.partialorder %v922, 0.0
      %vm1051 = vcmp.ge.f32.partialorder %v923, 0.0
      %vm1052 = vcmp.ge.f32.partialorder %v924, 0.0
      %vm1053 = vcmp.ge.f32.partialorder %v925, 0.0
      %vm1054 = vcmp.ge.f32.partialorder %v926, 0.0
      %vm1055 = vcmp.ge.f32.partialorder %v927, 0.0
      %vm1056 = vcmp.ge.f32.partialorder %v928, 0.0
      %vm1057 = vcmp.ge.f32.partialorder %v929, 0.0
      %vm1058 = vcmp.ge.f32.partialorder %v930, 0.0
      %vm1059 = vcmp.ge.f32.partialorder %v931, 0.0
      %vm1060 = vcmp.ge.f32.partialorder %v932, 0.0
      %vm1061 = vcmp.ge.f32.partialorder %v933, 0.0
      %vm1062 = vcmp.ge.f32.partialorder %v934, 0.0
      %vm1063 = vcmp.ge.f32.partialorder %v935, 0.0
      %vm1064 = vcmp.ge.f32.partialorder %v936, 0.0
      %vm1065 = vcmp.ge.f32.partialorder %v937, 0.0
      %vm1066 = vcmp.ge.f32.partialorder %v938, 0.0
      %vm1067 = vcmp.ge.f32.partialorder %v939, 0.0
      %vm1068 = vcmp.ge.f32.partialorder %v940, 0.0
      %vm1069 = vcmp.ge.f32.partialorder %v941, 0.0
      %vm1070 = vcmp.ge.f32.partialorder %v942, 0.0
      %vm1071 = vcmp.ge.f32.partialorder %v943, 0.0
      %vm1072 = vcmp.ge.f32.partialorder %v944, 0.0
      %vm1073 = vcmp.ge.f32.partialorder %v945, 0.0
      %vm1074 = vcmp.ge.f32.partialorder %v946, 0.0
      %vm1075 = vcmp.ge.f32.partialorder %v947, 0.0
      %vm1076 = vcmp.ge.f32.partialorder %v948, 0.0
      %vm1077 = vcmp.ge.f32.partialorder %v949, 0.0
      %vm1078 = vcmp.ge.f32.partialorder %v950, 0.0
      %vm1079 = vcmp.ge.f32.partialorder %v951, 0.0
      %vm1080 = vcmp.ge.f32.partialorder %v952, 0.0
      %vm1081 = vcmp.ge.f32.partialorder %v953, 0.0
      %vm1082 = vcmp.ge.f32.partialorder %v954, 0.0
      %vm1083 = vcmp.ge.f32.partialorder %v955, 0.0
      %vm1084 = vcmp.ge.f32.partialorder %v956, 0.0
      %vm1085 = vcmp.ge.f32.partialorder %v957, 0.0
      %vm1086 = vcmp.ge.f32.partialorder %v958, 0.0
      %vm1087 = vcmp.ge.f32.partialorder %v959, 0.0
      %vm1088 = vcmp.ge.f32.partialorder %v960, 0.0
      %vm1089 = vcmp.ge.f32.partialorder %v961, 0.0
      %vm1090 = vcmp.ge.f32.partialorder %v962, 0.0
      %vm1091 = vcmp.ge.f32.partialorder %v963, 0.0
      %vm1092 = vcmp.ge.f32.partialorder %v964, 0.0
      %vm1093 = vcmp.ge.f32.partialorder %v965, 0.0
      %vm1094 = vcmp.ge.f32.partialorder %v966, 0.0
      %vm1095 = vcmp.ge.f32.partialorder %v967, 0.0
      %vm1096 = vcmp.ge.f32.partialorder %v968, 0.0
      %vm1097 = vcmp.ge.f32.partialorder %v969, 0.0
      %vm1098 = vcmp.ge.f32.partialorder %v970, 0.0
      %vm1099 = vcmp.ge.f32.partialorder %v971, 0.0
      %vm1100 = vcmp.ge.f32.partialorder %v972, 0.0
      %vm1101 = vcmp.ge.f32.partialorder %v973, 0.0
      %vm1102 = vcmp.ge.f32.partialorder %v974, 0.0
      %vm1103 = vcmp.ge.f32.partialorder %v975, 0.0
      %vm1104 = vcmp.ge.f32.partialorder %v976, 0.0
      %vm1105 = vcmp.ge.f32.partialorder %v977, 0.0
      %vm1106 = vcmp.ge.f32.partialorder %v978, 0.0
      %vm1107 = vcmp.ge.f32.partialorder %v979, 0.0
      %vm1108 = vcmp.ge.f32.partialorder %v980, 0.0
      %vm1109 = vcmp.ge.f32.partialorder %v981, 0.0
      %vm1110 = vcmp.ge.f32.partialorder %v982, 0.0
      %vm1111 = vcmp.ge.f32.partialorder %v983, 0.0
      %vm1112 = vcmp.ge.f32.partialorder %v984, 0.0
      %vm1113 = vcmp.ge.f32.partialorder %v985, 0.0
      %v1114 = vmul.f32 %v858, 0.01
      %v1115 = vmul.f32 %v859, 0.01
      %v1116 = vmul.f32 %v860, 0.01
      %v1117 = vmul.f32 %v861, 0.01
      %v1118 = vmul.f32 %v862, 0.01
      %v1119 = vmul.f32 %v863, 0.01
      %v1120 = vmul.f32 %v864, 0.01
      %v1121 = vmul.f32 %v865, 0.01
      %v1122 = vmul.f32 %v866, 0.01
      %v1123 = vmul.f32 %v867, 0.01
      %v1124 = vmul.f32 %v868, 0.01
      %v1125 = vmul.f32 %v869, 0.01
      %v1126 = vmul.f32 %v870, 0.01
      %v1127 = vmul.f32 %v871, 0.01
      %v1128 = vmul.f32 %v872, 0.01
      %v1129 = vmul.f32 %v873, 0.01
      %v1130 = vmul.f32 %v874, 0.01
      %v1131 = vmul.f32 %v875, 0.01
      %v1132 = vmul.f32 %v876, 0.01
      %v1133 = vmul.f32 %v877, 0.01
      %v1134 = vmul.f32 %v878, 0.01
      %v1135 = vmul.f32 %v879, 0.01
      %v1136 = vmul.f32 %v880, 0.01
      %v1137 = vmul.f32 %v881, 0.01
      %v1138 = vmul.f32 %v882, 0.01
      %v1139 = vmul.f32 %v883, 0.01
      %v1140 = vmul.f32 %v884, 0.01
      %v1141 = vmul.f32 %v885, 0.01
      %v1142 = vmul.f32 %v886, 0.01
      %v1143 = vmul.f32 %v887, 0.01
      %v1144 = vmul.f32 %v888, 0.01
      %v1145 = vmul.f32 %v889, 0.01
      %v1146 = vmul.f32 %v890, 0.01
      %v1147 = vmul.f32 %v891, 0.01
      %v1148 = vmul.f32 %v892, 0.01
      %v1149 = vmul.f32 %v893, 0.01
      %v1150 = vmul.f32 %v894, 0.01
      %v1151 = vmul.f32 %v895, 0.01
      %v1152 = vmul.f32 %v896, 0.01
      %v1153 = vmul.f32 %v897, 0.01
      %v1154 = vmul.f32 %v898, 0.01
      %v1155 = vmul.f32 %v899, 0.01
      %v1156 = vmul.f32 %v900, 0.01
      %v1157 = vmul.f32 %v901, 0.01
      %v1158 = vmul.f32 %v902, 0.01
      %v1159 = vmul.f32 %v903, 0.01
      %v1160 = vmul.f32 %v904, 0.01
      %v1161 = vmul.f32 %v905, 0.01
      %v1162 = vmul.f32 %v906, 0.01
      %v1163 = vmul.f32 %v907, 0.01
      %v1164 = vmul.f32 %v908, 0.01
      %v1165 = vmul.f32 %v909, 0.01
      %v1166 = vmul.f32 %v910, 0.01
      %v1167 = vmul.f32 %v911, 0.01
      %v1168 = vmul.f32 %v912, 0.01
      %v1169 = vmul.f32 %v913, 0.01
      %v1170 = vmul.f32 %v914, 0.01
      %v1171 = vmul.f32 %v915, 0.01
      %v1172 = vmul.f32 %v916, 0.01
      %v1173 = vmul.f32 %v917, 0.01
      %v1174 = vmul.f32 %v918, 0.01
      %v1175 = vmul.f32 %v919, 0.01
      %v1176 = vmul.f32 %v920, 0.01
      %v1177 = vmul.f32 %v921, 0.01
      %v1178 = vmul.f32 %v922, 0.01
      %v1179 = vmul.f32 %v923, 0.01
      %v1180 = vmul.f32 %v924, 0.01
      %v1181 = vmul.f32 %v925, 0.01
      %v1182 = vmul.f32 %v926, 0.01
      %v1183 = vmul.f32 %v927, 0.01
      %v1184 = vmul.f32 %v928, 0.01
      %v1185 = vmul.f32 %v929, 0.01
      %v1186 = vmul.f32 %v930, 0.01
      %v1187 = vmul.f32 %v931, 0.01
      %v1188 = vmul.f32 %v932, 0.01
      %v1189 = vmul.f32 %v933, 0.01
      %v1190 = vmul.f32 %v934, 0.01
      %v1191 = vmul.f32 %v935, 0.01
      %v1192 = vmul.f32 %v936, 0.01
      %v1193 = vmul.f32 %v937, 0.01
      %v1194 = vmul.f32 %v938, 0.01
      %v1195 = vmul.f32 %v939, 0.01
      %v1196 = vmul.f32 %v940, 0.01
      %v1197 = vmul.f32 %v941, 0.01
      %v1198 = vmul.f32 %v942, 0.01
      %v1199 = vmul.f32 %v943, 0.01
      %v1200 = vmul.f32 %v944, 0.01
      %v1201 = vmul.f32 %v945, 0.01
      %v1202 = vmul.f32 %v946, 0.01
      %v1203 = vmul.f32 %v947, 0.01
      %v1204 = vmul.f32 %v948, 0.01
      %v1205 = vmul.f32 %v949, 0.01
      %v1206 = vmul.f32 %v950, 0.01
      %v1207 = vmul.f32 %v951, 0.01
      %v1208 = vmul.f32 %v952, 0.01
      %v1209 = vmul.f32 %v953, 0.01
      %v1210 = vmul.f32 %v954, 0.01
      %v1211 = vmul.f32 %v955, 0.01
      %v1212 = vmul.f32 %v956, 0.01
      %v1213 = vmul.f32 %v957, 0.01
      %v1214 = vmul.f32 %v958, 0.01
      %v1215 = vmul.f32 %v959, 0.01
      %v1216 = vmul.f32 %v960, 0.01
      %v1217 = vmul.f32 %v961, 0.01
      %v1218 = vmul.f32 %v962, 0.01
      %v1219 = vmul.f32 %v963, 0.01
      %v1220 = vmul.f32 %v964, 0.01
      %v1221 = vmul.f32 %v965, 0.01
      %v1222 = vmul.f32 %v966, 0.01
      %v1223 = vmul.f32 %v967, 0.01
      %v1224 = vmul.f32 %v968, 0.01
      %v1225 = vmul.f32 %v969, 0.01
      %v1226 = vmul.f32 %v970, 0.01
      %v1227 = vmul.f32 %v971, 0.01
      %v1228 = vmul.f32 %v972, 0.01
      %v1229 = vmul.f32 %v973, 0.01
      %v1230 = vmul.f32 %v974, 0.01
      %v1231 = vmul.f32 %v975, 0.01
      %v1232 = vmul.f32 %v976, 0.01
      %v1233 = vmul.f32 %v977, 0.01
      %v1234 = vmul.f32 %v978, 0.01
      %v1235 = vmul.f32 %v979, 0.01
      %v1236 = vmul.f32 %v980, 0.01
      %v1237 = vmul.f32 %v981, 0.01
      %v1238 = vmul.f32 %v982, 0.01
      %v1239 = vmul.f32 %v983, 0.01
      %v1240 = vmul.f32 %v984, 0.01
      %v1241 = vmul.f32 %v985, 0.01
      %v1242 = vsel %vm986, %v858, %v1114
      %v1243 = vsel %vm987, %v859, %v1115
      %v1244 = vsel %vm988, %v860, %v1116
      %v1245 = vsel %vm989, %v861, %v1117
      %v1246 = vsel %vm990, %v862, %v1118
      %v1247 = vsel %vm991, %v863, %v1119
      %v1248 = vsel %vm992, %v864, %v1120
      %v1249 = vsel %vm993, %v865, %v1121
      %v1250 = vsel %vm994, %v866, %v1122
      %v1251 = vsel %vm995, %v867, %v1123
      %v1252 = vsel %vm996, %v868, %v1124
      %v1253 = vsel %vm997, %v869, %v1125
      %v1254 = vsel %vm998, %v870, %v1126
      %v1255 = vsel %vm999, %v871, %v1127
      %v1256 = vsel %vm1000, %v872, %v1128
      %v1257 = vsel %vm1001, %v873, %v1129
      %v1258 = vsel %vm1002, %v874, %v1130
      %v1259 = vsel %vm1003, %v875, %v1131
      %v1260 = vsel %vm1004, %v876, %v1132
      %v1261 = vsel %vm1005, %v877, %v1133
      %v1262 = vsel %vm1006, %v878, %v1134
      %v1263 = vsel %vm1007, %v879, %v1135
      %v1264 = vsel %vm1008, %v880, %v1136
      %v1265 = vsel %vm1009, %v881, %v1137
      %v1266 = vsel %vm1010, %v882, %v1138
      %v1267 = vsel %vm1011, %v883, %v1139
      %v1268 = vsel %vm1012, %v884, %v1140
      %v1269 = vsel %vm1013, %v885, %v1141
      %v1270 = vsel %vm1014, %v886, %v1142
      %v1271 = vsel %vm1015, %v887, %v1143
      %v1272 = vsel %vm1016, %v888, %v1144
      %v1273 = vsel %vm1017, %v889, %v1145
      %v1274 = vsel %vm1018, %v890, %v1146
      %v1275 = vsel %vm1019, %v891, %v1147
      %v1276 = vsel %vm1020, %v892, %v1148
      %v1277 = vsel %vm1021, %v893, %v1149
      %v1278 = vsel %vm1022, %v894, %v1150
      %v1279 = vsel %vm1023, %v895, %v1151
      %v1280 = vsel %vm1024, %v896, %v1152
      %v1281 = vsel %vm1025, %v897, %v1153
      %v1282 = vsel %vm1026, %v898, %v1154
      %v1283 = vsel %vm1027, %v899, %v1155
      %v1284 = vsel %vm1028, %v900, %v1156
      %v1285 = vsel %vm1029, %v901, %v1157
      %v1286 = vsel %vm1030, %v902, %v1158
      %v1287 = vsel %vm1031, %v903, %v1159
      %v1288 = vsel %vm1032, %v904, %v1160
      %v1289 = vsel %vm1033, %v905, %v1161
      %v1290 = vsel %vm1034, %v906, %v1162
      %v1291 = vsel %vm1035, %v907, %v1163
      %v1292 = vsel %vm1036, %v908, %v1164
      %v1293 = vsel %vm1037, %v909, %v1165
      %v1294 = vsel %vm1038, %v910, %v1166
      %v1295 = vsel %vm1039, %v911, %v1167
      %v1296 = vsel %vm1040, %v912, %v1168
      %v1297 = vsel %vm1041, %v913, %v1169
      %v1298 = vsel %vm1042, %v914, %v1170
      %v1299 = vsel %vm1043, %v915, %v1171
      %v1300 = vsel %vm1044, %v916, %v1172
      %v1301 = vsel %vm1045, %v917, %v1173
      %v1302 = vsel %vm1046, %v918, %v1174
      %v1303 = vsel %vm1047, %v919, %v1175
      %v1304 = vsel %vm1048, %v920, %v1176
      %v1305 = vsel %vm1049, %v921, %v1177
      %v1306 = vsel %vm1050, %v922, %v1178
      %v1307 = vsel %vm1051, %v923, %v1179
      %v1308 = vsel %vm1052, %v924, %v1180
      %v1309 = vsel %vm1053, %v925, %v1181
      %v1310 = vsel %vm1054, %v926, %v1182
      %v1311 = vsel %vm1055, %v927, %v1183
      %v1312 = vsel %vm1056, %v928, %v1184
      %v1313 = vsel %vm1057, %v929, %v1185
      %v1314 = vsel %vm1058, %v930, %v1186
      %v1315 = vsel %vm1059, %v931, %v1187
      %v1316 = vsel %vm1060, %v932, %v1188
      %v1317 = vsel %vm1061, %v933, %v1189
      %v1318 = vsel %vm1062, %v934, %v1190
      %v1319 = vsel %vm1063, %v935, %v1191
      %v1320 = vsel %vm1064, %v936, %v1192
      %v1321 = vsel %vm1065, %v937, %v1193
      %v1322 = vsel %vm1066, %v938, %v1194
      %v1323 = vsel %vm1067, %v939, %v1195
      %v1324 = vsel %vm1068, %v940, %v1196
      %v1325 = vsel %vm1069, %v941, %v1197
      %v1326 = vsel %vm1070, %v942, %v1198
      %v1327 = vsel %vm1071, %v943, %v1199
      %v1328 = vsel %vm1072, %v944, %v1200
      %v1329 = vsel %vm1073, %v945, %v1201
      %v1330 = vsel %vm1074, %v946, %v1202
      %v1331 = vsel %vm1075, %v947, %v1203
      %v1332 = vsel %vm1076, %v948, %v1204
      %v1333 = vsel %vm1077, %v949, %v1205
      %v1334 = vsel %vm1078, %v950, %v1206
      %v1335 = vsel %vm1079, %v951, %v1207
      %v1336 = vsel %vm1080, %v952, %v1208
      %v1337 = vsel %vm1081, %v953, %v1209
      %v1338 = vsel %vm1082, %v954, %v1210
      %v1339 = vsel %vm1083, %v955, %v1211
      %v1340 = vsel %vm1084, %v956, %v1212
      %v1341 = vsel %vm1085, %v957, %v1213
      %v1342 = vsel %vm1086, %v958, %v1214
      %v1343 = vsel %vm1087, %v959, %v1215
      %v1344 = vsel %vm1088, %v960, %v1216
      %v1345 = vsel %vm1089, %v961, %v1217
      %v1346 = vsel %vm1090, %v962, %v1218
      %v1347 = vsel %vm1091, %v963, %v1219
      %v1348 = vsel %vm1092, %v964, %v1220
      %v1349 = vsel %vm1093, %v965, %v1221
      %v1350 = vsel %vm1094, %v966, %v1222
      %v1351 = vsel %vm1095, %v967, %v1223
      %v1352 = vsel %vm1096, %v968, %v1224
      %v1353 = vsel %vm1097, %v969, %v1225
      %v1354 = vsel %vm1098, %v970, %v1226
      %v1355 = vsel %vm1099, %v971, %v1227
      %v1356 = vsel %vm1100, %v972, %v1228
      %v1357 = vsel %vm1101, %v973, %v1229
      %v1358 = vsel %vm1102, %v974, %v1230
      %v1359 = vsel %vm1103, %v975, %v1231
      %v1360 = vsel %vm1104, %v976, %v1232
      %v1361 = vsel %vm1105, %v977, %v1233
      %v1362 = vsel %vm1106, %v978, %v1234
      %v1363 = vsel %vm1107, %v979, %v1235
      %v1364 = vsel %vm1108, %v980, %v1236
      %v1365 = vsel %vm1109, %v981, %v1237
      %v1366 = vsel %vm1110, %v982, %v1238
      %v1367 = vsel %vm1111, %v983, %v1239
      %v1368 = vsel %vm1112, %v984, %v1240
      %v1369 = vsel %vm1113, %v985, %v1241
      %v1370 = vld [vmem:[%s3] sm:$0xf]
      %v1371 = vld [vmem:[%s3 + $0x4] sm:$0xf]
      %v1372 = vld [vmem:[%s3 + $0x8] sm:$0xf]
      %v1373 = vld [vmem:[%s3 + $0xc] sm:$0xf]
      %v1374 = vld [vmem:[%s3 + $0x10] sm:$0xf]
      %v1375 = vld [vmem:[%s3 + $0x14] sm:$0xf]
      %v1376 = vld [vmem:[%s3 + $0x18] sm:$0xf]
      %v1377 = vld [vmem:[%s3 + $0x1c] sm:$0xf]
      %v1378 = vld [vmem:[%s3 + $0x20] sm:$0xf]
      %v1379 = vld [vmem:[%s3 + $0x24] sm:$0xf]
      %v1380 = vld [vmem:[%s3 + $0x28] sm:$0xf]
      %v1381 = vld [vmem:[%s3 + $0x2c] sm:$0xf]
      %v1382 = vld [vmem:[%s3 + $0x30] sm:$0xf]
      %v1383 = vld [vmem:[%s3 + $0x34] sm:$0xf]
      %v1384 = vld [vmem:[%s3 + $0x38] sm:$0xf]
      %v1385 = vld [vmem:[%s3 + $0x3c] sm:$0xf]
      %v1386 = vld [vmem:[%s3 + $0x40] sm:$0xf]
      %v1387 = vld [vmem:[%s3 + $0x44] sm:$0xf]
      %v1388 = vld [vmem:[%s3 + $0x48] sm:$0xf]
      %v1389 = vld [vmem:[%s3 + $0x4c] sm:$0xf]
      %v1390 = vld [vmem:[%s3 + $0x50] sm:$0xf]
      %v1391 = vld [vmem:[%s3 + $0x54] sm:$0xf]
      %v1392 = vld [vmem:[%s3 + $0x58] sm:$0xf]
      %v1393 = vld [vmem:[%s3 + $0x5c] sm:$0xf]
      %v1394 = vld [vmem:[%s3 + $0x60] sm:$0xf]
      %v1395 = vld [vmem:[%s3 + $0x64] sm:$0xf]
      %v1396 = vld [vmem:[%s3 + $0x68] sm:$0xf]
      %v1397 = vld [vmem:[%s3 + $0x6c] sm:$0xf]
      %v1398 = vld [vmem:[%s3 + $0x70] sm:$0xf]
      %v1399 = vld [vmem:[%s3 + $0x74] sm:$0xf]
      %v1400 = vld [vmem:[%s3 + $0x78] sm:$0xf]
      %v1401 = vld [vmem:[%s3 + $0x7c] sm:$0xf]
      %v1402 = vpack.c.bf16 %v1244, %v1242
      %v1403 = vpack.c.bf16 %v1245, %v1243
      %v1404 = vpack.c.bf16 %v1248, %v1246
      %v1405 = vpack.c.bf16 %v1249, %v1247
      %v1406 = vpack.c.bf16 %v1252, %v1250
      %v1407 = vpack.c.bf16 %v1253, %v1251
      %v1408 = vpack.c.bf16 %v1256, %v1254
      %v1409 = vpack.c.bf16 %v1257, %v1255
      %v1410 = vpack.c.bf16 %v1260, %v1258
      %v1411 = vpack.c.bf16 %v1261, %v1259
      %v1412 = vpack.c.bf16 %v1264, %v1262
      %v1413 = vpack.c.bf16 %v1265, %v1263
      %v1414 = vpack.c.bf16 %v1268, %v1266
      %v1415 = vpack.c.bf16 %v1269, %v1267
      %v1416 = vpack.c.bf16 %v1272, %v1270
      %v1417 = vpack.c.bf16 %v1273, %v1271
      %v1418 = vpack.c.bf16 %v1276, %v1274
      %v1419 = vpack.c.bf16 %v1277, %v1275
      %v1420 = vpack.c.bf16 %v1280, %v1278
      %v1421 = vpack.c.bf16 %v1281, %v1279
      %v1422 = vpack.c.bf16 %v1284, %v1282
      %v1423 = vpack.c.bf16 %v1285, %v1283
      %v1424 = vpack.c.bf16 %v1288, %v1286
      %v1425 = vpack.c.bf16 %v1289, %v1287
      %v1426 = vpack.c.bf16 %v1292, %v1290
      %v1427 = vpack.c.bf16 %v1293, %v1291
      %v1428 = vpack.c.bf16 %v1296, %v1294
      %v1429 = vpack.c.bf16 %v1297, %v1295
      %v1430 = vpack.c.bf16 %v1300, %v1298
      %v1431 = vpack.c.bf16 %v1301, %v1299
      %v1432 = vpack.c.bf16 %v1304, %v1302
      %v1433 = vpack.c.bf16 %v1305, %v1303
      %v1434 = vpack.c.bf16 %v1308, %v1306
      %v1435 = vpack.c.bf16 %v1309, %v1307
      %v1436 = vpack.c.bf16 %v1312, %v1310
      %v1437 = vpack.c.bf16 %v1313, %v1311
      %v1438 = vpack.c.bf16 %v1316, %v1314
      %v1439 = vpack.c.bf16 %v1317, %v1315
      %v1440 = vpack.c.bf16 %v1320, %v1318
      %v1441 = vpack.c.bf16 %v1321, %v1319
      %v1442 = vpack.c.bf16 %v1324, %v1322
      %v1443 = vpack.c.bf16 %v1325, %v1323
      %v1444 = vpack.c.bf16 %v1328, %v1326
      %v1445 = vpack.c.bf16 %v1329, %v1327
      %v1446 = vpack.c.bf16 %v1332, %v1330
      %v1447 = vpack.c.bf16 %v1333, %v1331
      %v1448 = vpack.c.bf16 %v1336, %v1334
      %v1449 = vpack.c.bf16 %v1337, %v1335
      %v1450 = vpack.c.bf16 %v1340, %v1338
      %v1451 = vpack.c.bf16 %v1341, %v1339
      %v1452 = vpack.c.bf16 %v1344, %v1342
      %v1453 = vpack.c.bf16 %v1345, %v1343
      %v1454 = vpack.c.bf16 %v1348, %v1346
      %v1455 = vpack.c.bf16 %v1349, %v1347
      %v1456 = vpack.c.bf16 %v1352, %v1350
      %v1457 = vpack.c.bf16 %v1353, %v1351
      %v1458 = vpack.c.bf16 %v1356, %v1354
      %v1459 = vpack.c.bf16 %v1357, %v1355
      %v1460 = vpack.c.bf16 %v1360, %v1358
      %v1461 = vpack.c.bf16 %v1361, %v1359
      %v1462 = vpack.c.bf16 %v1364, %v1362
      %v1463 = vpack.c.bf16 %v1365, %v1363
      %v1464 = vpack.c.bf16 %v1368, %v1366
      %v1465 = vpack.c.bf16 %v1369, %v1367
      %v1466 = vld [vmem:[%s4] sm:$0x1]
      %v1468 = vlaneseq
      %v1469 = vshrl.u32 %v1468, 7
      %v1470 = vsub.s32 0, %v1469
      %v1471 = vrot.slane %v1466, %v1470
      %v1505 = vunpack.c.l.b16 %v1370
      %v1506 = vunpack.c.l.b16 %v1371
      %v1507 = vunpack.c.l.b16 %v1372
      %v1508 = vunpack.c.l.b16 %v1373
      %v1509 = vunpack.c.l.b16 %v1374
      %v1510 = vunpack.c.l.b16 %v1375
      %v1511 = vunpack.c.l.b16 %v1376
      %v1512 = vunpack.c.l.b16 %v1377
      %v1513 = vunpack.c.l.b16 %v1378
      %v1514 = vunpack.c.l.b16 %v1379
      %v1515 = vunpack.c.l.b16 %v1380
      %v1516 = vunpack.c.l.b16 %v1381
      %v1517 = vunpack.c.l.b16 %v1382
      %v1518 = vunpack.c.l.b16 %v1383
      %v1519 = vunpack.c.l.b16 %v1384
      %v1520 = vunpack.c.l.b16 %v1385
      %v1521 = vunpack.c.l.b16 %v1386
      %v1522 = vunpack.c.l.b16 %v1387
      %v1523 = vunpack.c.l.b16 %v1388
      %v1524 = vunpack.c.l.b16 %v1389
      %v1525 = vunpack.c.l.b16 %v1390
      %v1526 = vunpack.c.l.b16 %v1391
      %v1527 = vunpack.c.l.b16 %v1392
      %v1528 = vunpack.c.l.b16 %v1393
      %v1529 = vunpack.c.l.b16 %v1394
      %v1530 = vunpack.c.l.b16 %v1395
      %v1531 = vunpack.c.l.b16 %v1396
      %v1532 = vunpack.c.l.b16 %v1397
      %v1533 = vunpack.c.l.b16 %v1398
      %v1534 = vunpack.c.l.b16 %v1399
      %v1535 = vunpack.c.l.b16 %v1400
      %v1536 = vunpack.c.l.b16 %v1401
      %v1537 = vpack.c.b16 %v1506, %v1505
      %v1538 = vpack.c.b16 %v1508, %v1507
      %v1539 = vpack.c.b16 %v1510, %v1509
      %v1540 = vpack.c.b16 %v1512, %v1511
      %v1541 = vpack.c.b16 %v1514, %v1513
      %v1542 = vpack.c.b16 %v1516, %v1515
      %v1543 = vpack.c.b16 %v1518, %v1517
      %v1544 = vpack.c.b16 %v1520, %v1519
      %v1545 = vpack.c.b16 %v1522, %v1521
      %v1546 = vpack.c.b16 %v1524, %v1523
      %v1547 = vpack.c.b16 %v1526, %v1525
      %v1548 = vpack.c.b16 %v1528, %v1527
      %v1549 = vpack.c.b16 %v1530, %v1529
      %v1550 = vpack.c.b16 %v1532, %v1531
      %v1551 = vpack.c.b16 %v1534, %v1533
      %v1552 = vpack.c.b16 %v1536, %v1535
      %1569 = vmatprep.subr.bf16.mxu0 0
      %1570 = vmatpush1.bf16.msra.mxu0 %v1537
      %1571 = vmatprep.subr.bf16.mxu0 0
      %1572 = vmatpush1.bf16.msra.mxu0 %v1538
      %1573 = vmatprep.subr.bf16.mxu0 0
      %1574 = vmatpush1.bf16.msra.mxu0 %v1539
      %1575 = vmatprep.subr.bf16.mxu0 0
      %1576 = vmatpush1.bf16.msra.mxu0 %v1540
      %1577 = vmatprep.subr.bf16.mxu0 0
      %1578 = vmatpush1.bf16.msra.mxu0 %v1541
      %1579 = vmatprep.subr.bf16.mxu0 0
      %1580 = vmatpush1.bf16.msra.mxu0 %v1542
      %1581 = vmatprep.subr.bf16.mxu0 0
      %1582 = vmatpush1.bf16.msra.mxu0 %v1543
      %1583 = vmatprep.subr.bf16.mxu0 0
      %1584 = vmatpush1.bf16.msra.mxu0 %v1544
      %1585 = vmatprep.subr.bf16.mxu0 0
      %1586 = vmatpush1.bf16.msra.mxu0 %v1545
      %1587 = vmatprep.subr.bf16.mxu0 0
      %1588 = vmatpush1.bf16.msra.mxu0 %v1546
      %1589 = vmatprep.subr.bf16.mxu0 0
      %1590 = vmatpush1.bf16.msra.mxu0 %v1547
      %1591 = vmatprep.subr.bf16.mxu0 0
      %1592 = vmatpush1.bf16.msra.mxu0 %v1548
      %1593 = vmatprep.subr.bf16.mxu0 0
      %1594 = vmatpush1.bf16.msra.mxu0 %v1549
      %1595 = vmatprep.subr.bf16.mxu0 0
      %1596 = vmatpush1.bf16.msra.mxu0 %v1550
      %1597 = vmatprep.subr.bf16.mxu0 0
      %1598 = vmatpush1.bf16.msra.mxu0 %v1551
      %1599 = vmatprep.subr.bf16.mxu0 0
      %1600 = vmatpush1.bf16.msra.mxu0 %v1552
      %1601 = vmatprep.mubr.bf16.mxu0 %v1403
      %1602 = vmatmul.mubr.bf16.gmra.mrb[0].mxu0 %v1402
      %v1603 = vpop.f32.mrb[0].mxu0
      %v1604 = vadd.f32 %v1471, %v1603
      %v1605 = vpop.f32.mrb[0].mxu0
      %v1606 = vpop.f32.mrb[0].mxu0
      %v1607 = vadd.f32 %v1471, %v1606
      %v1608 = vpop.f32.mrb[0].mxu0
      %1609 = vmatprep.mubr.bf16.mxu0 %v1405
      %1610 = vmatmul.mubr.bf16.gmra.mrb[0].mxu0 %v1404
      %v1611 = vpop.f32.mrb[0].mxu0
      %v1612 = vadd.f32 %v1471, %v1611
      %v1613 = vpop.f32.mrb[0].mxu0
      %v1614 = vpop.f32.mrb[0].mxu0
      %v1615 = vadd.f32 %v1471, %v1614
      %v1616 = vpop.f32.mrb[0].mxu0
      %1617 = vmatprep.mubr.bf16.mxu0 %v1407
      %1618 = vmatmul.mubr.bf16.gmra.mrb[0].mxu0 %v1406
      %v1619 = vpop.f32.mrb[0].mxu0
      %v1620 = vadd.f32 %v1471, %v1619
      %v1621 = vpop.f32.mrb[0].mxu0
      %v1622 = vpop.f32.mrb[0].mxu0
      %v1623 = vadd.f32 %v1471, %v1622
      %v1624 = vpop.f32.mrb[0].mxu0
      %1625 = vmatprep.mubr.bf16.mxu0 %v1409
      %1626 = vmatmul.mubr.bf16.gmra.mrb[0].mxu0 %v1408
      %v1627 = vpop.f32.mrb[0].mxu0
      %v1628 = vadd.f32 %v1471, %v1627
      %v1629 = vpop.f32.mrb[0].mxu0
      %v1630 = vpop.f32.mrb[0].mxu0
      %v1631 = vadd.f32 %v1471, %v1630
      %v1632 = vpop.f32.mrb[0].mxu0
      %1633 = vmatprep.mubr.bf16.mxu0 %v1411
      %1634 = vmatmul.mubr.bf16.gmra.mrb[0].mxu0 %v1410
      %v1635 = vpop.f32.mrb[0].mxu0
      %v1636 = vadd.f32 %v1471, %v1635
      %v1637 = vpop.f32.mrb[0].mxu0
      %v1638 = vpop.f32.mrb[0].mxu0
      %v1639 = vadd.f32 %v1471, %v1638
      %v1640 = vpop.f32.mrb[0].mxu0
      %1641 = vmatprep.mubr.bf16.mxu0 %v1413
      %1642 = vmatmul.mubr.bf16.gmra.mrb[0].mxu0 %v1412
      %v1643 = vpop.f32.mrb[0].mxu0
      %v1644 = vadd.f32 %v1471, %v1643
      %v1645 = vpop.f32.mrb[0].mxu0
      %v1646 = vpop.f32.mrb[0].mxu0
      %v1647 = vadd.f32 %v1471, %v1646
      %v1648 = vpop.f32.mrb[0].mxu0
      %1649 = vmatprep.mubr.bf16.mxu0 %v1415
      %1650 = vmatmul.mubr.bf16.gmra.mrb[0].mxu0 %v1414
      %v1651 = vpop.f32.mrb[0].mxu0
      %v1652 = vadd.f32 %v1471, %v1651
      %v1653 = vpop.f32.mrb[0].mxu0
      %v1654 = vpop.f32.mrb[0].mxu0
      %v1655 = vadd.f32 %v1471, %v1654
      %v1656 = vpop.f32.mrb[0].mxu0
      %1657 = vmatprep.mubr.bf16.mxu0 %v1417
      %1658 = vmatmul.mubr.bf16.gmra.mrb[0].mxu0 %v1416
      %v1659 = vpop.f32.mrb[0].mxu0
      %v1660 = vadd.f32 %v1471, %v1659
      %v1661 = vpop.f32.mrb[0].mxu0
      %v1662 = vpop.f32.mrb[0].mxu0
      %v1663 = vadd.f32 %v1471, %v1662
      %v1664 = vpop.f32.mrb[0].mxu0
      %1665 = vmatprep.mubr.bf16.mxu0 %v1419
      %1666 = vmatmul.mubr.bf16.gmra.mrb[0].mxu0 %v1418
      %v1667 = vpop.f32.mrb[0].mxu0
      %v1668 = vadd.f32 %v1471, %v1667
      %v1669 = vpop.f32.mrb[0].mxu0
      %v1670 = vpop.f32.mrb[0].mxu0
      %v1671 = vadd.f32 %v1471, %v1670
      %v1672 = vpop.f32.mrb[0].mxu0
      %1673 = vmatprep.mubr.bf16.mxu0 %v1421
      %1674 = vmatmul.mubr.bf16.gmra.mrb[0].mxu0 %v1420
      %v1675 = vpop.f32.mrb[0].mxu0
      %v1676 = vadd.f32 %v1471, %v1675
      %v1677 = vpop.f32.mrb[0].mxu0
      %v1678 = vpop.f32.mrb[0].mxu0
      %v1679 = vadd.f32 %v1471, %v1678
      %v1680 = vpop.f32.mrb[0].mxu0
      %1681 = vmatprep.mubr.bf16.mxu0 %v1423
      %1682 = vmatmul.mubr.bf16.gmra.mrb[0].mxu0 %v1422
      %v1683 = vpop.f32.mrb[0].mxu0
      %v1684 = vadd.f32 %v1471, %v1683
      %v1685 = vpop.f32.mrb[0].mxu0
      %v1686 = vpop.f32.mrb[0].mxu0
      %v1687 = vadd.f32 %v1471, %v1686
      %v1688 = vpop.f32.mrb[0].mxu0
      %1689 = vmatprep.mubr.bf16.mxu0 %v1425
      %1690 = vmatmul.mubr.bf16.gmra.mrb[0].mxu0 %v1424
      %v1691 = vpop.f32.mrb[0].mxu0
      %v1692 = vadd.f32 %v1471, %v1691
      %v1693 = vpop.f32.mrb[0].mxu0
      %v1694 = vpop.f32.mrb[0].mxu0
      %v1695 = vadd.f32 %v1471, %v1694
      %v1696 = vpop.f32.mrb[0].mxu0
      %1697 = vmatprep.mubr.bf16.mxu0 %v1427
      %1698 = vmatmul.mubr.bf16.gmra.mrb[0].mxu0 %v1426
      %v1699 = vpop.f32.mrb[0].mxu0
      %v1700 = vadd.f32 %v1471, %v1699
      %v1701 = vpop.f32.mrb[0].mxu0
      %v1702 = vpop.f32.mrb[0].mxu0
      %v1703 = vadd.f32 %v1471, %v1702
      %v1704 = vpop.f32.mrb[0].mxu0
      %1705 = vmatprep.mubr.bf16.mxu0 %v1429
      %1706 = vmatmul.mubr.bf16.gmra.mrb[0].mxu0 %v1428
      %v1707 = vpop.f32.mrb[0].mxu0
      %v1708 = vadd.f32 %v1471, %v1707
      %v1709 = vpop.f32.mrb[0].mxu0
      %v1710 = vpop.f32.mrb[0].mxu0
      %v1711 = vadd.f32 %v1471, %v1710
      %v1712 = vpop.f32.mrb[0].mxu0
      %1713 = vmatprep.mubr.bf16.mxu0 %v1431
      %1714 = vmatmul.mubr.bf16.gmra.mrb[0].mxu0 %v1430
      %v1715 = vpop.f32.mrb[0].mxu0
      %v1716 = vadd.f32 %v1471, %v1715
      %v1717 = vpop.f32.mrb[0].mxu0
      %v1718 = vpop.f32.mrb[0].mxu0
      %v1719 = vadd.f32 %v1471, %v1718
      %v1720 = vpop.f32.mrb[0].mxu0
      %1721 = vmatprep.mubr.bf16.mxu0 %v1433
      %1722 = vmatmul.mubr.bf16.gmra.mrb[0].mxu0 %v1432
      %v1723 = vpop.f32.mrb[0].mxu0
      %v1724 = vadd.f32 %v1471, %v1723
      %v1725 = vpop.f32.mrb[0].mxu0
      %v1726 = vpop.f32.mrb[0].mxu0
      %v1727 = vadd.f32 %v1471, %v1726
      %v1728 = vpop.f32.mrb[0].mxu0
      %1729 = vmatprep.mubr.bf16.mxu0 %v1435
      %1730 = vmatmul.mubr.bf16.gmra.mrb[0].mxu0 %v1434
      %v1731 = vpop.f32.mrb[0].mxu0
      %v1732 = vadd.f32 %v1471, %v1731
      %v1733 = vpop.f32.mrb[0].mxu0
      %v1734 = vpop.f32.mrb[0].mxu0
      %v1735 = vadd.f32 %v1471, %v1734
      %v1736 = vpop.f32.mrb[0].mxu0
      %1737 = vmatprep.mubr.bf16.mxu0 %v1437
      %1738 = vmatmul.mubr.bf16.gmra.mrb[0].mxu0 %v1436
      %v1739 = vpop.f32.mrb[0].mxu0
      %v1740 = vadd.f32 %v1471, %v1739
      %v1741 = vpop.f32.mrb[0].mxu0
      %v1742 = vpop.f32.mrb[0].mxu0
      %v1743 = vadd.f32 %v1471, %v1742
      %v1744 = vpop.f32.mrb[0].mxu0
      %1745 = vmatprep.mubr.bf16.mxu0 %v1439
      %1746 = vmatmul.mubr.bf16.gmra.mrb[0].mxu0 %v1438
      %v1747 = vpop.f32.mrb[0].mxu0
      %v1748 = vadd.f32 %v1471, %v1747
      %v1749 = vpop.f32.mrb[0].mxu0
      %v1750 = vpop.f32.mrb[0].mxu0
      %v1751 = vadd.f32 %v1471, %v1750
      %v1752 = vpop.f32.mrb[0].mxu0
      %1753 = vmatprep.mubr.bf16.mxu0 %v1441
      %1754 = vmatmul.mubr.bf16.gmra.mrb[0].mxu0 %v1440
      %v1755 = vpop.f32.mrb[0].mxu0
      %v1756 = vadd.f32 %v1471, %v1755
      %v1757 = vpop.f32.mrb[0].mxu0
      %v1758 = vpop.f32.mrb[0].mxu0
      %v1759 = vadd.f32 %v1471, %v1758
      %v1760 = vpop.f32.mrb[0].mxu0
      %1761 = vmatprep.mubr.bf16.mxu0 %v1443
      %1762 = vmatmul.mubr.bf16.gmra.mrb[0].mxu0 %v1442
      %v1763 = vpop.f32.mrb[0].mxu0
      %v1764 = vadd.f32 %v1471, %v1763
      %v1765 = vpop.f32.mrb[0].mxu0
      %v1766 = vpop.f32.mrb[0].mxu0
      %v1767 = vadd.f32 %v1471, %v1766
      %v1768 = vpop.f32.mrb[0].mxu0
      %1769 = vmatprep.mubr.bf16.mxu0 %v1445
      %1770 = vmatmul.mubr.bf16.gmra.mrb[0].mxu0 %v1444
      %v1771 = vpop.f32.mrb[0].mxu0
      %v1772 = vadd.f32 %v1471, %v1771
      %v1773 = vpop.f32.mrb[0].mxu0
      %v1774 = vpop.f32.mrb[0].mxu0
      %v1775 = vadd.f32 %v1471, %v1774
      %v1776 = vpop.f32.mrb[0].mxu0
      %1777 = vmatprep.mubr.bf16.mxu0 %v1447
      %1778 = vmatmul.mubr.bf16.gmra.mrb[0].mxu0 %v1446
      %v1779 = vpop.f32.mrb[0].mxu0
      %v1780 = vadd.f32 %v1471, %v1779
      %v1781 = vpop.f32.mrb[0].mxu0
      %v1782 = vpop.f32.mrb[0].mxu0
      %v1783 = vadd.f32 %v1471, %v1782
      %v1784 = vpop.f32.mrb[0].mxu0
      %1785 = vmatprep.mubr.bf16.mxu0 %v1449
      %1786 = vmatmul.mubr.bf16.gmra.mrb[0].mxu0 %v1448
      %v1787 = vpop.f32.mrb[0].mxu0
      %v1788 = vadd.f32 %v1471, %v1787
      %v1789 = vpop.f32.mrb[0].mxu0
      %v1790 = vpop.f32.mrb[0].mxu0
      %v1791 = vadd.f32 %v1471, %v1790
      %v1792 = vpop.f32.mrb[0].mxu0
      %1793 = vmatprep.mubr.bf16.mxu0 %v1451
      %1794 = vmatmul.mubr.bf16.gmra.mrb[0].mxu0 %v1450
      %v1795 = vpop.f32.mrb[0].mxu0
      %v1796 = vadd.f32 %v1471, %v1795
      %v1797 = vpop.f32.mrb[0].mxu0
      %v1798 = vpop.f32.mrb[0].mxu0
      %v1799 = vadd.f32 %v1471, %v1798
      %v1800 = vpop.f32.mrb[0].mxu0
      %1801 = vmatprep.mubr.bf16.mxu0 %v1453
      %1802 = vmatmul.mubr.bf16.gmra.mrb[0].mxu0 %v1452
      %v1803 = vpop.f32.mrb[0].mxu0
      %v1804 = vadd.f32 %v1471, %v1803
      %v1805 = vpop.f32.mrb[0].mxu0
      %v1806 = vpop.f32.mrb[0].mxu0
      %v1807 = vadd.f32 %v1471, %v1806
      %v1808 = vpop.f32.mrb[0].mxu0
      %1809 = vmatprep.mubr.bf16.mxu0 %v1455
      %1810 = vmatmul.mubr.bf16.gmra.mrb[0].mxu0 %v1454
      %v1811 = vpop.f32.mrb[0].mxu0
      %v1812 = vadd.f32 %v1471, %v1811
      %v1813 = vpop.f32.mrb[0].mxu0
      %v1814 = vpop.f32.mrb[0].mxu0
      %v1815 = vadd.f32 %v1471, %v1814
      %v1816 = vpop.f32.mrb[0].mxu0
      %1817 = vmatprep.mubr.bf16.mxu0 %v1457
      %1818 = vmatmul.mubr.bf16.gmra.mrb[0].mxu0 %v1456
      %v1819 = vpop.f32.mrb[0].mxu0
      %v1820 = vadd.f32 %v1471, %v1819
      %v1821 = vpop.f32.mrb[0].mxu0
      %v1822 = vpop.f32.mrb[0].mxu0
      %v1823 = vadd.f32 %v1471, %v1822
      %v1824 = vpop.f32.mrb[0].mxu0
      %1825 = vmatprep.mubr.bf16.mxu0 %v1459
      %1826 = vmatmul.mubr.bf16.gmra.mrb[0].mxu0 %v1458
      %v1827 = vpop.f32.mrb[0].mxu0
      %v1828 = vadd.f32 %v1471, %v1827
      %v1829 = vpop.f32.mrb[0].mxu0
      %v1830 = vpop.f32.mrb[0].mxu0
      %v1831 = vadd.f32 %v1471, %v1830
      %v1832 = vpop.f32.mrb[0].mxu0
      %1833 = vmatprep.mubr.bf16.mxu0 %v1461
      %1834 = vmatmul.mubr.bf16.gmra.mrb[0].mxu0 %v1460
      %v1835 = vpop.f32.mrb[0].mxu0
      %v1836 = vadd.f32 %v1471, %v1835
      %v1837 = vpop.f32.mrb[0].mxu0
      %v1838 = vpop.f32.mrb[0].mxu0
      %v1839 = vadd.f32 %v1471, %v1838
      %v1840 = vpop.f32.mrb[0].mxu0
      %1841 = vmatprep.mubr.bf16.mxu0 %v1463
      %1842 = vmatmul.mubr.bf16.gmra.mrb[0].mxu0 %v1462
      %v1843 = vpop.f32.mrb[0].mxu0
      %v1844 = vadd.f32 %v1471, %v1843
      %v1845 = vpop.f32.mrb[0].mxu0
      %v1846 = vpop.f32.mrb[0].mxu0
      %v1847 = vadd.f32 %v1471, %v1846
      %v1848 = vpop.f32.mrb[0].mxu0
      %1849 = vmatprep.mubr.bf16.mxu0 %v1465
      %1850 = vmatmul.mubr.bf16.gmra.mrb[0].mxu0 %v1464
      %v1851 = vpop.f32.mrb[0].mxu0
      %v1852 = vadd.f32 %v1471, %v1851
      %v1853 = vpop.f32.mrb[0].mxu0
      %v1854 = vpop.f32.mrb[0].mxu0
      %v1855 = vadd.f32 %v1471, %v1854
      %v1856 = vpop.f32.mrb[0].mxu0
      %1857 = vdwg.mxu0
      %v1858 = vld [vmem:[%s5] sm:$0xf]
      %v1859 = vld [vmem:[%s5 + $0x4] sm:$0xf]
      %v1860 = vld [vmem:[%s5 + $0x8] sm:$0xf]
      %v1861 = vld [vmem:[%s5 + $0xc] sm:$0xf]
      %v1862 = vld [vmem:[%s5 + $0x10] sm:$0xf]
      %v1863 = vld [vmem:[%s5 + $0x14] sm:$0xf]
      %v1864 = vld [vmem:[%s5 + $0x18] sm:$0xf]
      %v1865 = vld [vmem:[%s5 + $0x1c] sm:$0xf]
      %v1866 = vld [vmem:[%s5 + $0x20] sm:$0xf]
      %v1867 = vld [vmem:[%s5 + $0x24] sm:$0xf]
      %v1868 = vld [vmem:[%s5 + $0x28] sm:$0xf]
      %v1869 = vld [vmem:[%s5 + $0x2c] sm:$0xf]
      %v1870 = vld [vmem:[%s5 + $0x30] sm:$0xf]
      %v1871 = vld [vmem:[%s5 + $0x34] sm:$0xf]
      %v1872 = vld [vmem:[%s5 + $0x38] sm:$0xf]
      %v1873 = vld [vmem:[%s5 + $0x3c] sm:$0xf]
      %v1874 = vpack.c.bf16 %v1607, %v1604
      %v1875 = vpack.c.bf16 %v1615, %v1612
      %v1876 = vpack.c.bf16 %v1623, %v1620
      %v1877 = vpack.c.bf16 %v1631, %v1628
      %v1878 = vpack.c.bf16 %v1639, %v1636
      %v1879 = vpack.c.bf16 %v1647, %v1644
      %v1880 = vpack.c.bf16 %v1655, %v1652
      %v1881 = vpack.c.bf16 %v1663, %v1660
      %v1882 = vpack.c.bf16 %v1671, %v1668
      %v1883 = vpack.c.bf16 %v1679, %v1676
      %v1884 = vpack.c.bf16 %v1687, %v1684
      %v1885 = vpack.c.bf16 %v1695, %v1692
      %v1886 = vpack.c.bf16 %v1703, %v1700
      %v1887 = vpack.c.bf16 %v1711, %v1708
      %v1888 = vpack.c.bf16 %v1719, %v1716
      %v1889 = vpack.c.bf16 %v1727, %v1724
      %v1890 = vpack.c.bf16 %v1735, %v1732
      %v1891 = vpack.c.bf16 %v1743, %v1740
      %v1892 = vpack.c.bf16 %v1751, %v1748
      %v1893 = vpack.c.bf16 %v1759, %v1756
      %v1894 = vpack.c.bf16 %v1767, %v1764
      %v1895 = vpack.c.bf16 %v1775, %v1772
      %v1896 = vpack.c.bf16 %v1783, %v1780
      %v1897 = vpack.c.bf16 %v1791, %v1788
      %v1898 = vpack.c.bf16 %v1799, %v1796
      %v1899 = vpack.c.bf16 %v1807, %v1804
      %v1900 = vpack.c.bf16 %v1815, %v1812
      %v1901 = vpack.c.bf16 %v1823, %v1820
      %v1902 = vpack.c.bf16 %v1831, %v1828
      %v1903 = vpack.c.bf16 %v1839, %v1836
      %v1904 = vpack.c.bf16 %v1847, %v1844
      %v1905 = vpack.c.bf16 %v1855, %v1852
      %v1906 = vld [vmem:[%s6] sm:$0x1]
      %v1908 = vlaneseq
      %v1909 = vshrl.u32 %v1908, 7
      %v1910 = vsub.s32 0, %v1909
      %v1911 = vrot.slane %v1906, %v1910
      %v1929 = vunpack.c.l.b16 %v1858
      %v1930 = vunpack.c.l.b16 %v1859
      %v1931 = vunpack.c.l.b16 %v1860
      %v1932 = vunpack.c.l.b16 %v1861
      %v1933 = vunpack.c.l.b16 %v1862
      %v1934 = vunpack.c.l.b16 %v1863
      %v1935 = vunpack.c.l.b16 %v1864
      %v1936 = vunpack.c.l.b16 %v1865
      %v1937 = vunpack.c.l.b16 %v1866
      %v1938 = vunpack.c.l.b16 %v1867
      %v1939 = vunpack.c.l.b16 %v1868
      %v1940 = vunpack.c.l.b16 %v1869
      %v1941 = vunpack.c.l.b16 %v1870
      %v1942 = vunpack.c.l.b16 %v1871
      %v1943 = vunpack.c.l.b16 %v1872
      %v1944 = vunpack.c.l.b16 %v1873
      %v1945 = vpack.c.b16 %v1930, %v1929
      %v1946 = vpack.c.b16 %v1932, %v1931
      %v1947 = vpack.c.b16 %v1934, %v1933
      %v1948 = vpack.c.b16 %v1936, %v1935
      %v1949 = vpack.c.b16 %v1938, %v1937
      %v1950 = vpack.c.b16 %v1940, %v1939
      %v1951 = vpack.c.b16 %v1942, %v1941
      %v1952 = vpack.c.b16 %v1944, %v1943
      %1961 = vmatprep.subr.bf16.mxu0 0
      %1962 = vmatpush1.bf16.msra.mxu0 %v1945
      %1963 = vmatprep.subr.bf16.mxu0 0
      %1964 = vmatpush1.bf16.msra.mxu0 %v1946
      %1965 = vmatprep.subr.bf16.mxu0 0
      %1966 = vmatpush1.bf16.msra.mxu0 %v1947
      %1967 = vmatprep.subr.bf16.mxu0 0
      %1968 = vmatpush1.bf16.msra.mxu0 %v1948
      %1969 = vmatprep.subr.bf16.mxu0 0
      %1970 = vmatpush1.bf16.msra.mxu0 %v1949
      %1971 = vmatprep.subr.bf16.mxu0 0
      %1972 = vmatpush1.bf16.msra.mxu0 %v1950
      %1973 = vmatprep.subr.bf16.mxu0 0
      %1974 = vmatpush1.bf16.msra.mxu0 %v1951
      %1975 = vmatprep.subr.bf16.mxu0 0
      %1976 = vmatpush1.bf16.msra.mxu0 %v1952
      %1977 = vmatprep.subr.bf16.mxu0 0
      %1978 = vmatpush1.bf16.msra.mxu0 0
      %1979 = vmatprep.subr.bf16.mxu0 0
      %1980 = vmatpush1.bf16.msra.mxu0 0
      %1981 = vmatprep.subr.bf16.mxu0 0
      %1982 = vmatpush1.bf16.msra.mxu0 0
      %1983 = vmatprep.subr.bf16.mxu0 0
      %1984 = vmatpush1.bf16.msra.mxu0 0
      %1985 = vmatprep.subr.bf16.mxu0 0
      %1986 = vmatpush1.bf16.msra.mxu0 0
      %1987 = vmatprep.subr.bf16.mxu0 0
      %1988 = vmatpush1.bf16.msra.mxu0 0
      %1989 = vmatprep.subr.bf16.mxu0 0
      %1990 = vmatpush1.bf16.msra.mxu0 0
      %1991 = vmatprep.subr.bf16.mxu0 0
      %1992 = vmatpush1.bf16.msra.mxu0 0
      %1993 = vmatprep.mubr.bf16.mxu0 0
      %1994 = vmatmul.mubr.bf16.gmra.mrb[0].mxu0 %v1874
      %v1995 = vpop.f32.mrb[0].mxu0
      %v1996 = vadd.f32 %v1911, %v1995
      %v1997 = vpop.f32.mrb[0].mxu0
      %v1998 = vpop.f32.mrb[0].mxu0
      %v1999 = vadd.f32 %v1911, %v1998
      %v2000 = vpop.f32.mrb[0].mxu0
      %2001 = vmatprep.mubr.bf16.mxu0 0
      %2002 = vmatmul.mubr.bf16.gmra.mrb[0].mxu0 %v1875
      %v2003 = vpop.f32.mrb[0].mxu0
      %v2004 = vadd.f32 %v1911, %v2003
      %v2005 = vpop.f32.mrb[0].mxu0
      %v2006 = vpop.f32.mrb[0].mxu0
      %v2007 = vadd.f32 %v1911, %v2006
      %v2008 = vpop.f32.mrb[0].mxu0
      %2009 = vmatprep.mubr.bf16.mxu0 0
      %2010 = vmatmul.mubr.bf16.gmra.mrb[0].mxu0 %v1876
      %v2011 = vpop.f32.mrb[0].mxu0
      %v2012 = vadd.f32 %v1911, %v2011
      %v2013 = vpop.f32.mrb[0].mxu0
      %v2014 = vpop.f32.mrb[0].mxu0
      %v2015 = vadd.f32 %v1911, %v2014
      %v2016 = vpop.f32.mrb[0].mxu0
      %2017 = vmatprep.mubr.bf16.mxu0 0
      %2018 = vmatmul.mubr.bf16.gmra.mrb[0].mxu0 %v1877
      %v2019 = vpop.f32.mrb[0].mxu0
      %v2020 = vadd.f32 %v1911, %v2019
      %v2021 = vpop.f32.mrb[0].mxu0
      %v2022 = vpop.f32.mrb[0].mxu0
      %v2023 = vadd.f32 %v1911, %v2022
      %v2024 = vpop.f32.mrb[0].mxu0
      %2025 = vmatprep.mubr.bf16.mxu0 0
      %2026 = vmatmul.mubr.bf16.gmra.mrb[0].mxu0 %v1878
      %v2027 = vpop.f32.mrb[0].mxu0
      %v2028 = vadd.f32 %v1911, %v2027
      %v2029 = vpop.f32.mrb[0].mxu0
      %v2030 = vpop.f32.mrb[0].mxu0
      %v2031 = vadd.f32 %v1911, %v2030
      %v2032 = vpop.f32.mrb[0].mxu0
      %2033 = vmatprep.mubr.bf16.mxu0 0
      %2034 = vmatmul.mubr.bf16.gmra.mrb[0].mxu0 %v1879
      %v2035 = vpop.f32.mrb[0].mxu0
      %v2036 = vadd.f32 %v1911, %v2035
      %v2037 = vpop.f32.mrb[0].mxu0
      %v2038 = vpop.f32.mrb[0].mxu0
      %v2039 = vadd.f32 %v1911, %v2038
      %v2040 = vpop.f32.mrb[0].mxu0
      %2041 = vmatprep.mubr.bf16.mxu0 0
      %2042 = vmatmul.mubr.bf16.gmra.mrb[0].mxu0 %v1880
      %v2043 = vpop.f32.mrb[0].mxu0
      %v2044 = vadd.f32 %v1911, %v2043
      %v2045 = vpop.f32.mrb[0].mxu0
      %v2046 = vpop.f32.mrb[0].mxu0
      %v2047 = vadd.f32 %v1911, %v2046
      %v2048 = vpop.f32.mrb[0].mxu0
      %2049 = vmatprep.mubr.bf16.mxu0 0
      %2050 = vmatmul.mubr.bf16.gmra.mrb[0].mxu0 %v1881
      %v2051 = vpop.f32.mrb[0].mxu0
      %v2052 = vadd.f32 %v1911, %v2051
      %v2053 = vpop.f32.mrb[0].mxu0
      %v2054 = vpop.f32.mrb[0].mxu0
      %v2055 = vadd.f32 %v1911, %v2054
      %v2056 = vpop.f32.mrb[0].mxu0
      %2057 = vmatprep.mubr.bf16.mxu0 0
      %2058 = vmatmul.mubr.bf16.gmra.mrb[0].mxu0 %v1882
      %v2059 = vpop.f32.mrb[0].mxu0
      %v2060 = vadd.f32 %v1911, %v2059
      %v2061 = vpop.f32.mrb[0].mxu0
      %v2062 = vpop.f32.mrb[0].mxu0
      %v2063 = vadd.f32 %v1911, %v2062
      %v2064 = vpop.f32.mrb[0].mxu0
      %2065 = vmatprep.mubr.bf16.mxu0 0
      %2066 = vmatmul.mubr.bf16.gmra.mrb[0].mxu0 %v1883
      %v2067 = vpop.f32.mrb[0].mxu0
      %v2068 = vadd.f32 %v1911, %v2067
      %v2069 = vpop.f32.mrb[0].mxu0
      %v2070 = vpop.f32.mrb[0].mxu0
      %v2071 = vadd.f32 %v1911, %v2070
      %v2072 = vpop.f32.mrb[0].mxu0
      %2073 = vmatprep.mubr.bf16.mxu0 0
      %2074 = vmatmul.mubr.bf16.gmra.mrb[0].mxu0 %v1884
      %v2075 = vpop.f32.mrb[0].mxu0
      %v2076 = vadd.f32 %v1911, %v2075
      %v2077 = vpop.f32.mrb[0].mxu0
      %v2078 = vpop.f32.mrb[0].mxu0
      %v2079 = vadd.f32 %v1911, %v2078
      %v2080 = vpop.f32.mrb[0].mxu0
      %2081 = vmatprep.mubr.bf16.mxu0 0
      %2082 = vmatmul.mubr.bf16.gmra.mrb[0].mxu0 %v1885
      %v2083 = vpop.f32.mrb[0].mxu0
      %v2084 = vadd.f32 %v1911, %v2083
      %v2085 = vpop.f32.mrb[0].mxu0
      %v2086 = vpop.f32.mrb[0].mxu0
      %v2087 = vadd.f32 %v1911, %v2086
      %v2088 = vpop.f32.mrb[0].mxu0
      %2089 = vmatprep.mubr.bf16.mxu0 0
      %2090 = vmatmul.mubr.bf16.gmra.mrb[0].mxu0 %v1886
      %v2091 = vpop.f32.mrb[0].mxu0
      %v2092 = vadd.f32 %v1911, %v2091
      %v2093 = vpop.f32.mrb[0].mxu0
      %v2094 = vpop.f32.mrb[0].mxu0
      %v2095 = vadd.f32 %v1911, %v2094
      %v2096 = vpop.f32.mrb[0].mxu0
      %2097 = vmatprep.mubr.bf16.mxu0 0
      %2098 = vmatmul.mubr.bf16.gmra.mrb[0].mxu0 %v1887
      %v2099 = vpop.f32.mrb[0].mxu0
      %v2100 = vadd.f32 %v1911, %v2099
      %v2101 = vpop.f32.mrb[0].mxu0
      %v2102 = vpop.f32.mrb[0].mxu0
      %v2103 = vadd.f32 %v1911, %v2102
      %v2104 = vpop.f32.mrb[0].mxu0
      %2105 = vmatprep.mubr.bf16.mxu0 0
      %2106 = vmatmul.mubr.bf16.gmra.mrb[0].mxu0 %v1888
      %v2107 = vpop.f32.mrb[0].mxu0
      %v2108 = vadd.f32 %v1911, %v2107
      %v2109 = vpop.f32.mrb[0].mxu0
      %v2110 = vpop.f32.mrb[0].mxu0
      %v2111 = vadd.f32 %v1911, %v2110
      %v2112 = vpop.f32.mrb[0].mxu0
      %2113 = vmatprep.mubr.bf16.mxu0 0
      %2114 = vmatmul.mubr.bf16.gmra.mrb[0].mxu0 %v1889
      %v2115 = vpop.f32.mrb[0].mxu0
      %v2116 = vadd.f32 %v1911, %v2115
      %v2117 = vpop.f32.mrb[0].mxu0
      %v2118 = vpop.f32.mrb[0].mxu0
      %v2119 = vadd.f32 %v1911, %v2118
      %v2120 = vpop.f32.mrb[0].mxu0
      %2121 = vmatprep.mubr.bf16.mxu0 0
      %2122 = vmatmul.mubr.bf16.gmra.mrb[0].mxu0 %v1890
      %v2123 = vpop.f32.mrb[0].mxu0
      %v2124 = vadd.f32 %v1911, %v2123
      %v2125 = vpop.f32.mrb[0].mxu0
      %v2126 = vpop.f32.mrb[0].mxu0
      %v2127 = vadd.f32 %v1911, %v2126
      %v2128 = vpop.f32.mrb[0].mxu0
      %2129 = vmatprep.mubr.bf16.mxu0 0
      %2130 = vmatmul.mubr.bf16.gmra.mrb[0].mxu0 %v1891
      %v2131 = vpop.f32.mrb[0].mxu0
      %v2132 = vadd.f32 %v1911, %v2131
      %v2133 = vpop.f32.mrb[0].mxu0
      %v2134 = vpop.f32.mrb[0].mxu0
      %v2135 = vadd.f32 %v1911, %v2134
      %v2136 = vpop.f32.mrb[0].mxu0
      %2137 = vmatprep.mubr.bf16.mxu0 0
      %2138 = vmatmul.mubr.bf16.gmra.mrb[0].mxu0 %v1892
      %v2139 = vpop.f32.mrb[0].mxu0
      %v2140 = vadd.f32 %v1911, %v2139
      %v2141 = vpop.f32.mrb[0].mxu0
      %v2142 = vpop.f32.mrb[0].mxu0
      %v2143 = vadd.f32 %v1911, %v2142
      %v2144 = vpop.f32.mrb[0].mxu0
      %2145 = vmatprep.mubr.bf16.mxu0 0
      %2146 = vmatmul.mubr.bf16.gmra.mrb[0].mxu0 %v1893
      %v2147 = vpop.f32.mrb[0].mxu0
      %v2148 = vadd.f32 %v1911, %v2147
      %v2149 = vpop.f32.mrb[0].mxu0
      %v2150 = vpop.f32.mrb[0].mxu0
      %v2151 = vadd.f32 %v1911, %v2150
      %v2152 = vpop.f32.mrb[0].mxu0
      %2153 = vmatprep.mubr.bf16.mxu0 0
      %2154 = vmatmul.mubr.bf16.gmra.mrb[0].mxu0 %v1894
      %v2155 = vpop.f32.mrb[0].mxu0
      %v2156 = vadd.f32 %v1911, %v2155
      %v2157 = vpop.f32.mrb[0].mxu0
      %v2158 = vpop.f32.mrb[0].mxu0
      %v2159 = vadd.f32 %v1911, %v2158
      %v2160 = vpop.f32.mrb[0].mxu0
      %2161 = vmatprep.mubr.bf16.mxu0 0
      %2162 = vmatmul.mubr.bf16.gmra.mrb[0].mxu0 %v1895
      %v2163 = vpop.f32.mrb[0].mxu0
      %v2164 = vadd.f32 %v1911, %v2163
      %v2165 = vpop.f32.mrb[0].mxu0
      %v2166 = vpop.f32.mrb[0].mxu0
      %v2167 = vadd.f32 %v1911, %v2166
      %v2168 = vpop.f32.mrb[0].mxu0
      %2169 = vmatprep.mubr.bf16.mxu0 0
      %2170 = vmatmul.mubr.bf16.gmra.mrb[0].mxu0 %v1896
      %v2171 = vpop.f32.mrb[0].mxu0
      %v2172 = vadd.f32 %v1911, %v2171
      %v2173 = vpop.f32.mrb[0].mxu0
      %v2174 = vpop.f32.mrb[0].mxu0
      %v2175 = vadd.f32 %v1911, %v2174
      %v2176 = vpop.f32.mrb[0].mxu0
      %2177 = vmatprep.mubr.bf16.mxu0 0
      %2178 = vmatmul.mubr.bf16.gmra.mrb[0].mxu0 %v1897
      %v2179 = vpop.f32.mrb[0].mxu0
      %v2180 = vadd.f32 %v1911, %v2179
      %v2181 = vpop.f32.mrb[0].mxu0
      %v2182 = vpop.f32.mrb[0].mxu0
      %v2183 = vadd.f32 %v1911, %v2182
      %v2184 = vpop.f32.mrb[0].mxu0
      %2185 = vmatprep.mubr.bf16.mxu0 0
      %2186 = vmatmul.mubr.bf16.gmra.mrb[0].mxu0 %v1898
      %v2187 = vpop.f32.mrb[0].mxu0
      %v2188 = vadd.f32 %v1911, %v2187
      %v2189 = vpop.f32.mrb[0].mxu0
      %v2190 = vpop.f32.mrb[0].mxu0
      %v2191 = vadd.f32 %v1911, %v2190
      %v2192 = vpop.f32.mrb[0].mxu0
      %2193 = vmatprep.mubr.bf16.mxu0 0
      %2194 = vmatmul.mubr.bf16.gmra.mrb[0].mxu0 %v1899
      %v2195 = vpop.f32.mrb[0].mxu0
      %v2196 = vadd.f32 %v1911, %v2195
      %v2197 = vpop.f32.mrb[0].mxu0
      %v2198 = vpop.f32.mrb[0].mxu0
      %v2199 = vadd.f32 %v1911, %v2198
      %v2200 = vpop.f32.mrb[0].mxu0
      %2201 = vmatprep.mubr.bf16.mxu0 0
      %2202 = vmatmul.mubr.bf16.gmra.mrb[0].mxu0 %v1900
      %v2203 = vpop.f32.mrb[0].mxu0
      %v2204 = vadd.f32 %v1911, %v2203
      %v2205 = vpop.f32.mrb[0].mxu0
      %v2206 = vpop.f32.mrb[0].mxu0
      %v2207 = vadd.f32 %v1911, %v2206
      %v2208 = vpop.f32.mrb[0].mxu0
      %2209 = vmatprep.mubr.bf16.mxu0 0
      %2210 = vmatmul.mubr.bf16.gmra.mrb[0].mxu0 %v1901
      %v2211 = vpop.f32.mrb[0].mxu0
      %v2212 = vadd.f32 %v1911, %v2211
      %v2213 = vpop.f32.mrb[0].mxu0
      %v2214 = vpop.f32.mrb[0].mxu0
      %v2215 = vadd.f32 %v1911, %v2214
      %v2216 = vpop.f32.mrb[0].mxu0
      %2217 = vmatprep.mubr.bf16.mxu0 0
      %2218 = vmatmul.mubr.bf16.gmra.mrb[0].mxu0 %v1902
      %v2219 = vpop.f32.mrb[0].mxu0
      %v2220 = vadd.f32 %v1911, %v2219
      %v2221 = vpop.f32.mrb[0].mxu0
      %v2222 = vpop.f32.mrb[0].mxu0
      %v2223 = vadd.f32 %v1911, %v2222
      %v2224 = vpop.f32.mrb[0].mxu0
      %2225 = vmatprep.mubr.bf16.mxu0 0
      %2226 = vmatmul.mubr.bf16.gmra.mrb[0].mxu0 %v1903
      %v2227 = vpop.f32.mrb[0].mxu0
      %v2228 = vadd.f32 %v1911, %v2227
      %v2229 = vpop.f32.mrb[0].mxu0
      %v2230 = vpop.f32.mrb[0].mxu0
      %v2231 = vadd.f32 %v1911, %v2230
      %v2232 = vpop.f32.mrb[0].mxu0
      %2233 = vmatprep.mubr.bf16.mxu0 0
      %2234 = vmatmul.mubr.bf16.gmra.mrb[0].mxu0 %v1904
      %v2235 = vpop.f32.mrb[0].mxu0
      %v2236 = vadd.f32 %v1911, %v2235
      %v2237 = vpop.f32.mrb[0].mxu0
      %v2238 = vpop.f32.mrb[0].mxu0
      %v2239 = vadd.f32 %v1911, %v2238
      %v2240 = vpop.f32.mrb[0].mxu0
      %2241 = vmatprep.mubr.bf16.mxu0 0
      %2242 = vmatmul.mubr.bf16.gmra.mrb[0].mxu0 %v1905
      %v2243 = vpop.f32.mrb[0].mxu0
      %v2244 = vadd.f32 %v1911, %v2243
      %v2245 = vpop.f32.mrb[0].mxu0
      %v2246 = vpop.f32.mrb[0].mxu0
      %v2247 = vadd.f32 %v1911, %v2246
      %v2248 = vpop.f32.mrb[0].mxu0
      %2249 = vdwg.mxu0
      %v2250 = vld [vmem:[%s497] sm:$0xff]
      %v2251 = vld [vmem:[%s497 + $0x8] sm:$0xff]
      %v2252 = vld [vmem:[%s497 + $0x10] sm:$0xff]
      %v2253 = vld [vmem:[%s497 + $0x18] sm:$0xff]
      %v2254 = vld [vmem:[%s497 + $0x20] sm:$0xff]
      %v2255 = vld [vmem:[%s497 + $0x28] sm:$0xff]
      %v2256 = vld [vmem:[%s497 + $0x30] sm:$0xff]
      %v2257 = vld [vmem:[%s497 + $0x38] sm:$0xff]
      %v2258 = vld [vmem:[%s497 + $0x40] sm:$0xff]
      %v2259 = vld [vmem:[%s497 + $0x48] sm:$0xff]
      %v2260 = vld [vmem:[%s497 + $0x50] sm:$0xff]
      %v2261 = vld [vmem:[%s497 + $0x58] sm:$0xff]
      %v2262 = vld [vmem:[%s497 + $0x60] sm:$0xff]
      %v2263 = vld [vmem:[%s497 + $0x68] sm:$0xff]
      %v2264 = vld [vmem:[%s497 + $0x70] sm:$0xff]
      %v2265 = vld [vmem:[%s497 + $0x78] sm:$0xff]
      %v2266 = vld [vmem:[%s497 + $0x80] sm:$0xff]
      %v2267 = vld [vmem:[%s497 + $0x88] sm:$0xff]
      %v2268 = vld [vmem:[%s497 + $0x90] sm:$0xff]
      %v2269 = vld [vmem:[%s497 + $0x98] sm:$0xff]
      %v2270 = vld [vmem:[%s497 + $0xa0] sm:$0xff]
      %v2271 = vld [vmem:[%s497 + $0xa8] sm:$0xff]
      %v2272 = vld [vmem:[%s497 + $0xb0] sm:$0xff]
      %v2273 = vld [vmem:[%s497 + $0xb8] sm:$0xff]
      %v2274 = vld [vmem:[%s497 + $0xc0] sm:$0xff]
      %v2275 = vld [vmem:[%s497 + $0xc8] sm:$0xff]
      %v2276 = vld [vmem:[%s497 + $0xd0] sm:$0xff]
      %v2277 = vld [vmem:[%s497 + $0xd8] sm:$0xff]
      %v2278 = vld [vmem:[%s497 + $0xe0] sm:$0xff]
      %v2279 = vld [vmem:[%s497 + $0xe8] sm:$0xff]
      %v2280 = vld [vmem:[%s497 + $0xf0] sm:$0xff]
      %v2281 = vld [vmem:[%s497 + $0xf8] sm:$0xff]
      %v2282 = vld [vmem:[%s497 + $0x100] sm:$0xff]
      %v2283 = vld [vmem:[%s497 + $0x108] sm:$0xff]
      %v2284 = vld [vmem:[%s497 + $0x110] sm:$0xff]
      %v2285 = vld [vmem:[%s497 + $0x118] sm:$0xff]
      %v2286 = vld [vmem:[%s497 + $0x120] sm:$0xff]
      %v2287 = vld [vmem:[%s497 + $0x128] sm:$0xff]
      %v2288 = vld [vmem:[%s497 + $0x130] sm:$0xff]
      %v2289 = vld [vmem:[%s497 + $0x138] sm:$0xff]
      %v2290 = vld [vmem:[%s497 + $0x140] sm:$0xff]
      %v2291 = vld [vmem:[%s497 + $0x148] sm:$0xff]
      %v2292 = vld [vmem:[%s497 + $0x150] sm:$0xff]
      %v2293 = vld [vmem:[%s497 + $0x158] sm:$0xff]
      %v2294 = vld [vmem:[%s497 + $0x160] sm:$0xff]
      %v2295 = vld [vmem:[%s497 + $0x168] sm:$0xff]
      %v2296 = vld [vmem:[%s497 + $0x170] sm:$0xff]
      %v2297 = vld [vmem:[%s497 + $0x178] sm:$0xff]
      %v2298 = vld [vmem:[%s497 + $0x180] sm:$0xff]
      %v2299 = vld [vmem:[%s497 + $0x188] sm:$0xff]
      %v2300 = vld [vmem:[%s497 + $0x190] sm:$0xff]
      %v2301 = vld [vmem:[%s497 + $0x198] sm:$0xff]
      %v2302 = vld [vmem:[%s497 + $0x1a0] sm:$0xff]
      %v2303 = vld [vmem:[%s497 + $0x1a8] sm:$0xff]
      %v2304 = vld [vmem:[%s497 + $0x1b0] sm:$0xff]
      %v2305 = vld [vmem:[%s497 + $0x1b8] sm:$0xff]
      %v2306 = vld [vmem:[%s497 + $0x1c0] sm:$0xff]
      %v2307 = vld [vmem:[%s497 + $0x1c8] sm:$0xff]
      %v2308 = vld [vmem:[%s497 + $0x1d0] sm:$0xff]
      %v2309 = vld [vmem:[%s497 + $0x1d8] sm:$0xff]
      %v2310 = vld [vmem:[%s497 + $0x1e0] sm:$0xff]
      %v2311 = vld [vmem:[%s497 + $0x1e8] sm:$0xff]
      %v2312 = vld [vmem:[%s497 + $0x1f0] sm:$0xff]
      %v2313 = vld [vmem:[%s497 + $0x1f8] sm:$0xff]
      %v2314 = vmul.f32 %v1996, 0.5
      %v2315 = vmul.f32 %v1999, 0.5
      %v2316 = vmul.f32 %v2004, 0.5
      %v2317 = vmul.f32 %v2007, 0.5
      %v2318 = vmul.f32 %v2012, 0.5
      %v2319 = vmul.f32 %v2015, 0.5
      %v2320 = vmul.f32 %v2020, 0.5
      %v2321 = vmul.f32 %v2023, 0.5
      %v2322 = vmul.f32 %v2028, 0.5
      %v2323 = vmul.f32 %v2031, 0.5
      %v2324 = vmul.f32 %v2036, 0.5
      %v2325 = vmul.f32 %v2039, 0.5
      %v2326 = vmul.f32 %v2044, 0.5
      %v2327 = vmul.f32 %v2047, 0.5
      %v2328 = vmul.f32 %v2052, 0.5
      %v2329 = vmul.f32 %v2055, 0.5
      %v2330 = vmul.f32 %v2060, 0.5
      %v2331 = vmul.f32 %v2063, 0.5
      %v2332 = vmul.f32 %v2068, 0.5
      %v2333 = vmul.f32 %v2071, 0.5
      %v2334 = vmul.f32 %v2076, 0.5
      %v2335 = vmul.f32 %v2079, 0.5
      %v2336 = vmul.f32 %v2084, 0.5
      %v2337 = vmul.f32 %v2087, 0.5
      %v2338 = vmul.f32 %v2092, 0.5
      %v2339 = vmul.f32 %v2095, 0.5
      %v2340 = vmul.f32 %v2100, 0.5
      %v2341 = vmul.f32 %v2103, 0.5
      %v2342 = vmul.f32 %v2108, 0.5
      %v2343 = vmul.f32 %v2111, 0.5
      %v2344 = vmul.f32 %v2116, 0.5
      %v2345 = vmul.f32 %v2119, 0.5
      %v2346 = vmul.f32 %v2124, 0.5
      %v2347 = vmul.f32 %v2127, 0.5
      %v2348 = vmul.f32 %v2132, 0.5
      %v2349 = vmul.f32 %v2135, 0.5
      %v2350 = vmul.f32 %v2140, 0.5
      %v2351 = vmul.f32 %v2143, 0.5
      %v2352 = vmul.f32 %v2148, 0.5
      %v2353 = vmul.f32 %v2151, 0.5
      %v2354 = vmul.f32 %v2156, 0.5
      %v2355 = vmul.f32 %v2159, 0.5
      %v2356 = vmul.f32 %v2164, 0.5
      %v2357 = vmul.f32 %v2167, 0.5
      %v2358 = vmul.f32 %v2172, 0.5
      %v2359 = vmul.f32 %v2175, 0.5
      %v2360 = vmul.f32 %v2180, 0.5
      %v2361 = vmul.f32 %v2183, 0.5
      %v2362 = vmul.f32 %v2188, 0.5
      %v2363 = vmul.f32 %v2191, 0.5
      %v2364 = vmul.f32 %v2196, 0.5
      %v2365 = vmul.f32 %v2199, 0.5
      %v2366 = vmul.f32 %v2204, 0.5
      %v2367 = vmul.f32 %v2207, 0.5
      %v2368 = vmul.f32 %v2212, 0.5
      %v2369 = vmul.f32 %v2215, 0.5
      %v2370 = vmul.f32 %v2220, 0.5
      %v2371 = vmul.f32 %v2223, 0.5
      %v2372 = vmul.f32 %v2228, 0.5
      %v2373 = vmul.f32 %v2231, 0.5
      %v2374 = vmul.f32 %v2236, 0.5
      %v2375 = vmul.f32 %v2239, 0.5
      %v2376 = vmul.f32 %v2244, 0.5
      %v2377 = vmul.f32 %v2247, 0.5
      %v2378 = vmul.f32 %v2314, 1.442695
      %v2379 = vpow.pop %v2378
      %v2380 = vmul.f32 %v2315, 1.442695
      %v2381 = vpow.pop %v2380
      %v2382 = vmul.f32 %v2316, 1.442695
      %v2383 = vpow.pop %v2382
      %v2384 = vmul.f32 %v2317, 1.442695
      %v2385 = vpow.pop %v2384
      %v2386 = vmul.f32 %v2318, 1.442695
      %v2387 = vpow.pop %v2386
      %v2388 = vmul.f32 %v2319, 1.442695
      %v2389 = vpow.pop %v2388
      %v2390 = vmul.f32 %v2320, 1.442695
      %v2391 = vpow.pop %v2390
      %v2392 = vmul.f32 %v2321, 1.442695
      %v2393 = vpow.pop %v2392
      %v2394 = vmul.f32 %v2322, 1.442695
      %v2395 = vpow.pop %v2394
      %v2396 = vmul.f32 %v2323, 1.442695
      %v2397 = vpow.pop %v2396
      %v2398 = vmul.f32 %v2324, 1.442695
      %v2399 = vpow.pop %v2398
      %v2400 = vmul.f32 %v2325, 1.442695
      %v2401 = vpow.pop %v2400
      %v2402 = vmul.f32 %v2326, 1.442695
      %v2403 = vpow.pop %v2402
      %v2404 = vmul.f32 %v2327, 1.442695
      %v2405 = vpow.pop %v2404
      %v2406 = vmul.f32 %v2328, 1.442695
      %v2407 = vpow.pop %v2406
      %v2408 = vmul.f32 %v2329, 1.442695
      %v2409 = vpow.pop %v2408
      %v2410 = vmul.f32 %v2330, 1.442695
      %v2411 = vpow.pop %v2410
      %v2412 = vmul.f32 %v2331, 1.442695
      %v2413 = vpow.pop %v2412
      %v2414 = vmul.f32 %v2332, 1.442695
      %v2415 = vpow.pop %v2414
      %v2416 = vmul.f32 %v2333, 1.442695
      %v2417 = vpow.pop %v2416
      %v2418 = vmul.f32 %v2334, 1.442695
      %v2419 = vpow.pop %v2418
      %v2420 = vmul.f32 %v2335, 1.442695
      %v2421 = vpow.pop %v2420
      %v2422 = vmul.f32 %v2336, 1.442695
      %v2423 = vpow.pop %v2422
      %v2424 = vmul.f32 %v2337, 1.442695
      %v2425 = vpow.pop %v2424
      %v2426 = vmul.f32 %v2338, 1.442695
      %v2427 = vpow.pop %v2426
      %v2428 = vmul.f32 %v2339, 1.442695
      %v2429 = vpow.pop %v2428
      %v2430 = vmul.f32 %v2340, 1.442695
      %v2431 = vpow.pop %v2430
      %v2432 = vmul.f32 %v2341, 1.442695
      %v2433 = vpow.pop %v2432
      %v2434 = vmul.f32 %v2342, 1.442695
      %v2435 = vpow.pop %v2434
      %v2436 = vmul.f32 %v2343, 1.442695
      %v2437 = vpow.pop %v2436
      %v2438 = vmul.f32 %v2344, 1.442695
      %v2439 = vpow.pop %v2438
      %v2440 = vmul.f32 %v2345, 1.442695
      %v2441 = vpow.pop %v2440
      %v2442 = vmul.f32 %v2346, 1.442695
      %v2443 = vpow.pop %v2442
      %v2444 = vmul.f32 %v2347, 1.442695
      %v2445 = vpow.pop %v2444
      %v2446 = vmul.f32 %v2348, 1.442695
      %v2447 = vpow.pop %v2446
      %v2448 = vmul.f32 %v2349, 1.442695
      %v2449 = vpow.pop %v2448
      %v2450 = vmul.f32 %v2350, 1.442695
      %v2451 = vpow.pop %v2450
      %v2452 = vmul.f32 %v2351, 1.442695
      %v2453 = vpow.pop %v2452
      %v2454 = vmul.f32 %v2352, 1.442695
      %v2455 = vpow.pop %v2454
      %v2456 = vmul.f32 %v2353, 1.442695
      %v2457 = vpow.pop %v2456
      %v2458 = vmul.f32 %v2354, 1.442695
      %v2459 = vpow.pop %v2458
      %v2460 = vmul.f32 %v2355, 1.442695
      %v2461 = vpow.pop %v2460
      %v2462 = vmul.f32 %v2356, 1.442695
      %v2463 = vpow.pop %v2462
      %v2464 = vmul.f32 %v2357, 1.442695
      %v2465 = vpow.pop %v2464
      %v2466 = vmul.f32 %v2358, 1.442695
      %v2467 = vpow.pop %v2466
      %v2468 = vmul.f32 %v2359, 1.442695
      %v2469 = vpow.pop %v2468
      %v2470 = vmul.f32 %v2360, 1.442695
      %v2471 = vpow.pop %v2470
      %v2472 = vmul.f32 %v2361, 1.442695
      %v2473 = vpow.pop %v2472
      %v2474 = vmul.f32 %v2362, 1.442695
      %v2475 = vpow.pop %v2474
      %v2476 = vmul.f32 %v2363, 1.442695
      %v2477 = vpow.pop %v2476
      %v2478 = vmul.f32 %v2364, 1.442695
      %v2479 = vpow.pop %v2478
      %v2480 = vmul.f32 %v2365, 1.442695
      %v2481 = vpow.pop %v2480
      %v2482 = vmul.f32 %v2366, 1.442695
      %v2483 = vpow.pop %v2482
      %v2484 = vmul.f32 %v2367, 1.442695
      %v2485 = vpow.pop %v2484
      %v2486 = vmul.f32 %v2368, 1.442695
      %v2487 = vpow.pop %v2486
      %v2488 = vmul.f32 %v2369, 1.442695
      %v2489 = vpow.pop %v2488
      %v2490 = vmul.f32 %v2370, 1.442695
      %v2491 = vpow.pop %v2490
      %v2492 = vmul.f32 %v2371, 1.442695
      %v2493 = vpow.pop %v2492
      %v2494 = vmul.f32 %v2372, 1.442695
      %v2495 = vpow.pop %v2494
      %v2496 = vmul.f32 %v2373, 1.442695
      %v2497 = vpow.pop %v2496
      %v2498 = vmul.f32 %v2374, 1.442695
      %v2499 = vpow.pop %v2498
      %v2500 = vmul.f32 %v2375, 1.442695
      %v2501 = vpow.pop %v2500
      %v2502 = vmul.f32 %v2376, 1.442695
      %v2503 = vpow.pop %v2502
      %v2504 = vmul.f32 %v2377, 1.442695
      %v2505 = vpow.pop %v2504
      %2570 = vrot.lane.b32.xlu0 %v2379, 96
      %v2571 = vpop.permute.xlu0 %2570
      %2572 = vrot.lane.b32.xlu0 %v2381, 96
      %v2573 = vpop.permute.xlu0 %2572
      %2574 = vrot.lane.b32.xlu0 %v2383, 96
      %v2575 = vpop.permute.xlu0 %2574
      %2576 = vrot.lane.b32.xlu0 %v2385, 96
      %v2577 = vpop.permute.xlu0 %2576
      %2578 = vrot.lane.b32.xlu0 %v2387, 96
      %v2579 = vpop.permute.xlu0 %2578
      %2580 = vrot.lane.b32.xlu0 %v2389, 96
      %v2581 = vpop.permute.xlu0 %2580
      %2582 = vrot.lane.b32.xlu0 %v2391, 96
      %v2583 = vpop.permute.xlu0 %2582
      %2584 = vrot.lane.b32.xlu0 %v2393, 96
      %v2585 = vpop.permute.xlu0 %2584
      %2586 = vrot.lane.b32.xlu0 %v2395, 96
      %v2587 = vpop.permute.xlu0 %2586
      %2588 = vrot.lane.b32.xlu0 %v2397, 96
      %v2589 = vpop.permute.xlu0 %2588
      %2590 = vrot.lane.b32.xlu0 %v2399, 96
      %v2591 = vpop.permute.xlu0 %2590
      %2592 = vrot.lane.b32.xlu0 %v2401, 96
      %v2593 = vpop.permute.xlu0 %2592
      %2594 = vrot.lane.b32.xlu0 %v2403, 96
      %v2595 = vpop.permute.xlu0 %2594
      %2596 = vrot.lane.b32.xlu0 %v2405, 96
      %v2597 = vpop.permute.xlu0 %2596
      %2598 = vrot.lane.b32.xlu0 %v2407, 96
      %v2599 = vpop.permute.xlu0 %2598
      %2600 = vrot.lane.b32.xlu0 %v2409, 96
      %v2601 = vpop.permute.xlu0 %2600
      %2602 = vrot.lane.b32.xlu0 %v2411, 96
      %v2603 = vpop.permute.xlu0 %2602
      %2604 = vrot.lane.b32.xlu0 %v2413, 96
      %v2605 = vpop.permute.xlu0 %2604
      %2606 = vrot.lane.b32.xlu0 %v2415, 96
      %v2607 = vpop.permute.xlu0 %2606
      %2608 = vrot.lane.b32.xlu0 %v2417, 96
      %v2609 = vpop.permute.xlu0 %2608
      %2610 = vrot.lane.b32.xlu0 %v2419, 96
      %v2611 = vpop.permute.xlu0 %2610
      %2612 = vrot.lane.b32.xlu0 %v2421, 96
      %v2613 = vpop.permute.xlu0 %2612
      %2614 = vrot.lane.b32.xlu0 %v2423, 96
      %v2615 = vpop.permute.xlu0 %2614
      %2616 = vrot.lane.b32.xlu0 %v2425, 96
      %v2617 = vpop.permute.xlu0 %2616
      %2618 = vrot.lane.b32.xlu0 %v2427, 96
      %v2619 = vpop.permute.xlu0 %2618
      %2620 = vrot.lane.b32.xlu0 %v2429, 96
      %v2621 = vpop.permute.xlu0 %2620
      %2622 = vrot.lane.b32.xlu0 %v2431, 96
      %v2623 = vpop.permute.xlu0 %2622
      %2624 = vrot.lane.b32.xlu0 %v2433, 96
      %v2625 = vpop.permute.xlu0 %2624
      %2626 = vrot.lane.b32.xlu0 %v2435, 96
      %v2627 = vpop.permute.xlu0 %2626
      %2628 = vrot.lane.b32.xlu0 %v2437, 96
      %v2629 = vpop.permute.xlu0 %2628
      %2630 = vrot.lane.b32.xlu0 %v2439, 96
      %v2631 = vpop.permute.xlu0 %2630
      %2632 = vrot.lane.b32.xlu0 %v2441, 96
      %v2633 = vpop.permute.xlu0 %2632
      %2634 = vrot.lane.b32.xlu0 %v2443, 96
      %v2635 = vpop.permute.xlu0 %2634
      %2636 = vrot.lane.b32.xlu0 %v2445, 96
      %v2637 = vpop.permute.xlu0 %2636
      %2638 = vrot.lane.b32.xlu0 %v2447, 96
      %v2639 = vpop.permute.xlu0 %2638
      %2640 = vrot.lane.b32.xlu0 %v2449, 96
      %v2641 = vpop.permute.xlu0 %2640
      %2642 = vrot.lane.b32.xlu0 %v2451, 96
      %v2643 = vpop.permute.xlu0 %2642
      %2644 = vrot.lane.b32.xlu0 %v2453, 96
      %v2645 = vpop.permute.xlu0 %2644
      %2646 = vrot.lane.b32.xlu0 %v2455, 96
      %v2647 = vpop.permute.xlu0 %2646
      %2648 = vrot.lane.b32.xlu0 %v2457, 96
      %v2649 = vpop.permute.xlu0 %2648
      %2650 = vrot.lane.b32.xlu0 %v2459, 96
      %v2651 = vpop.permute.xlu0 %2650
      %2652 = vrot.lane.b32.xlu0 %v2461, 96
      %v2653 = vpop.permute.xlu0 %2652
      %2654 = vrot.lane.b32.xlu0 %v2463, 96
      %v2655 = vpop.permute.xlu0 %2654
      %2656 = vrot.lane.b32.xlu0 %v2465, 96
      %v2657 = vpop.permute.xlu0 %2656
      %2658 = vrot.lane.b32.xlu0 %v2467, 96
      %v2659 = vpop.permute.xlu0 %2658
      %2660 = vrot.lane.b32.xlu0 %v2469, 96
      %v2661 = vpop.permute.xlu0 %2660
      %2662 = vrot.lane.b32.xlu0 %v2471, 96
      %v2663 = vpop.permute.xlu0 %2662
      %2664 = vrot.lane.b32.xlu0 %v2473, 96
      %v2665 = vpop.permute.xlu0 %2664
      %2666 = vrot.lane.b32.xlu0 %v2475, 96
      %v2667 = vpop.permute.xlu0 %2666
      %2668 = vrot.lane.b32.xlu0 %v2477, 96
      %v2669 = vpop.permute.xlu0 %2668
      %2670 = vrot.lane.b32.xlu0 %v2479, 96
      %v2671 = vpop.permute.xlu0 %2670
      %2672 = vrot.lane.b32.xlu0 %v2481, 96
      %v2673 = vpop.permute.xlu0 %2672
      %2674 = vrot.lane.b32.xlu0 %v2483, 96
      %v2675 = vpop.permute.xlu0 %2674
      %2676 = vrot.lane.b32.xlu0 %v2485, 96
      %v2677 = vpop.permute.xlu0 %2676
      %2678 = vrot.lane.b32.xlu0 %v2487, 96
      %v2679 = vpop.permute.xlu0 %2678
      %2680 = vrot.lane.b32.xlu0 %v2489, 96
      %v2681 = vpop.permute.xlu0 %2680
      %2682 = vrot.lane.b32.xlu0 %v2491, 96
      %v2683 = vpop.permute.xlu0 %2682
      %2684 = vrot.lane.b32.xlu0 %v2493, 96
      %v2685 = vpop.permute.xlu0 %2684
      %2686 = vrot.lane.b32.xlu0 %v2495, 96
      %v2687 = vpop.permute.xlu0 %2686
      %2688 = vrot.lane.b32.xlu0 %v2497, 96
      %v2689 = vpop.permute.xlu0 %2688
      %2690 = vrot.lane.b32.xlu0 %v2499, 96
      %v2691 = vpop.permute.xlu0 %2690
      %2692 = vrot.lane.b32.xlu0 %v2501, 96
      %v2693 = vpop.permute.xlu0 %2692
      %2694 = vrot.lane.b32.xlu0 %v2503, 96
      %v2695 = vpop.permute.xlu0 %2694
      %2696 = vrot.lane.b32.xlu0 %v2505, 96
      %v2697 = vpop.permute.xlu0 %2696
      %v2762 = vmul.f32 %v2250, %v2571
      %v2763 = vmul.f32 %v2251, %v2573
      %v2764 = vmul.f32 %v2252, %v2575
      %v2765 = vmul.f32 %v2253, %v2577
      %v2766 = vmul.f32 %v2254, %v2579
      %v2767 = vmul.f32 %v2255, %v2581
      %v2768 = vmul.f32 %v2256, %v2583
      %v2769 = vmul.f32 %v2257, %v2585
      %v2770 = vmul.f32 %v2258, %v2587
      %v2771 = vmul.f32 %v2259, %v2589
      %v2772 = vmul.f32 %v2260, %v2591
      %v2773 = vmul.f32 %v2261, %v2593
      %v2774 = vmul.f32 %v2262, %v2595
      %v2775 = vmul.f32 %v2263, %v2597
      %v2776 = vmul.f32 %v2264, %v2599
      %v2777 = vmul.f32 %v2265, %v2601
      %v2778 = vmul.f32 %v2266, %v2603
      %v2779 = vmul.f32 %v2267, %v2605
      %v2780 = vmul.f32 %v2268, %v2607
      %v2781 = vmul.f32 %v2269, %v2609
      %v2782 = vmul.f32 %v2270, %v2611
      %v2783 = vmul.f32 %v2271, %v2613
      %v2784 = vmul.f32 %v2272, %v2615
      %v2785 = vmul.f32 %v2273, %v2617
      %v2786 = vmul.f32 %v2274, %v2619
      %v2787 = vmul.f32 %v2275, %v2621
      %v2788 = vmul.f32 %v2276, %v2623
      %v2789 = vmul.f32 %v2277, %v2625
      %v2790 = vmul.f32 %v2278, %v2627
      %v2791 = vmul.f32 %v2279, %v2629
      %v2792 = vmul.f32 %v2280, %v2631
      %v2793 = vmul.f32 %v2281, %v2633
      %v2794 = vmul.f32 %v2282, %v2635
      %v2795 = vmul.f32 %v2283, %v2637
      %v2796 = vmul.f32 %v2284, %v2639
      %v2797 = vmul.f32 %v2285, %v2641
      %v2798 = vmul.f32 %v2286, %v2643
      %v2799 = vmul.f32 %v2287, %v2645
      %v2800 = vmul.f32 %v2288, %v2647
      %v2801 = vmul.f32 %v2289, %v2649
      %v2802 = vmul.f32 %v2290, %v2651
      %v2803 = vmul.f32 %v2291, %v2653
      %v2804 = vmul.f32 %v2292, %v2655
      %v2805 = vmul.f32 %v2293, %v2657
      %v2806 = vmul.f32 %v2294, %v2659
      %v2807 = vmul.f32 %v2295, %v2661
      %v2808 = vmul.f32 %v2296, %v2663
      %v2809 = vmul.f32 %v2297, %v2665
      %v2810 = vmul.f32 %v2298, %v2667
      %v2811 = vmul.f32 %v2299, %v2669
      %v2812 = vmul.f32 %v2300, %v2671
      %v2813 = vmul.f32 %v2301, %v2673
      %v2814 = vmul.f32 %v2302, %v2675
      %v2815 = vmul.f32 %v2303, %v2677
      %v2816 = vmul.f32 %v2304, %v2679
      %v2817 = vmul.f32 %v2305, %v2681
      %v2818 = vmul.f32 %v2306, %v2683
      %v2819 = vmul.f32 %v2307, %v2685
      %v2820 = vmul.f32 %v2308, %v2687
      %v2821 = vmul.f32 %v2309, %v2689
      %v2822 = vmul.f32 %v2310, %v2691
      %v2823 = vmul.f32 %v2311, %v2693
      %v2824 = vmul.f32 %v2312, %v2695
      %v2825 = vmul.f32 %v2313, %v2697
      %v2826 = vadd.f32 %v2762, %v1996
      %v2827 = vadd.f32 %v2763, %v1999
      %v2828 = vadd.f32 %v2764, %v2004
      %v2829 = vadd.f32 %v2765, %v2007
      %v2830 = vadd.f32 %v2766, %v2012
      %v2831 = vadd.f32 %v2767, %v2015
      %v2832 = vadd.f32 %v2768, %v2020
      %v2833 = vadd.f32 %v2769, %v2023
      %v2834 = vadd.f32 %v2770, %v2028
      %v2835 = vadd.f32 %v2771, %v2031
      %v2836 = vadd.f32 %v2772, %v2036
      %v2837 = vadd.f32 %v2773, %v2039
      %v2838 = vadd.f32 %v2774, %v2044
      %v2839 = vadd.f32 %v2775, %v2047
      %v2840 = vadd.f32 %v2776, %v2052
      %v2841 = vadd.f32 %v2777, %v2055
      %v2842 = vadd.f32 %v2778, %v2060
      %v2843 = vadd.f32 %v2779, %v2063
      %v2844 = vadd.f32 %v2780, %v2068
      %v2845 = vadd.f32 %v2781, %v2071
      %v2846 = vadd.f32 %v2782, %v2076
      %v2847 = vadd.f32 %v2783, %v2079
      %v2848 = vadd.f32 %v2784, %v2084
      %v2849 = vadd.f32 %v2785, %v2087
      %v2850 = vadd.f32 %v2786, %v2092
      %v2851 = vadd.f32 %v2787, %v2095
      %v2852 = vadd.f32 %v2788, %v2100
      %v2853 = vadd.f32 %v2789, %v2103
      %v2854 = vadd.f32 %v2790, %v2108
      %v2855 = vadd.f32 %v2791, %v2111
      %v2856 = vadd.f32 %v2792, %v2116
      %v2857 = vadd.f32 %v2793, %v2119
      %v2858 = vadd.f32 %v2794, %v2124
      %v2859 = vadd.f32 %v2795, %v2127
      %v2860 = vadd.f32 %v2796, %v2132
      %v2861 = vadd.f32 %v2797, %v2135
      %v2862 = vadd.f32 %v2798, %v2140
      %v2863 = vadd.f32 %v2799, %v2143
      %v2864 = vadd.f32 %v2800, %v2148
      %v2865 = vadd.f32 %v2801, %v2151
      %v2866 = vadd.f32 %v2802, %v2156
      %v2867 = vadd.f32 %v2803, %v2159
      %v2868 = vadd.f32 %v2804, %v2164
      %v2869 = vadd.f32 %v2805, %v2167
      %v2870 = vadd.f32 %v2806, %v2172
      %v2871 = vadd.f32 %v2807, %v2175
      %v2872 = vadd.f32 %v2808, %v2180
      %v2873 = vadd.f32 %v2809, %v2183
      %v2874 = vadd.f32 %v2810, %v2188
      %v2875 = vadd.f32 %v2811, %v2191
      %v2876 = vadd.f32 %v2812, %v2196
      %v2877 = vadd.f32 %v2813, %v2199
      %v2878 = vadd.f32 %v2814, %v2204
      %v2879 = vadd.f32 %v2815, %v2207
      %v2880 = vadd.f32 %v2816, %v2212
      %v2881 = vadd.f32 %v2817, %v2215
      %v2882 = vadd.f32 %v2818, %v2220
      %v2883 = vadd.f32 %v2819, %v2223
      %v2884 = vadd.f32 %v2820, %v2228
      %v2885 = vadd.f32 %v2821, %v2231
      %v2886 = vadd.f32 %v2822, %v2236
      %v2887 = vadd.f32 %v2823, %v2239
      %v2888 = vadd.f32 %v2824, %v2244
      %v2889 = vadd.f32 %v2825, %v2247
      %v2890 = vmul.f32 %v2826, %v2826
      %v2891 = vmul.f32 %v2827, %v2827
      %v2892 = vmul.f32 %v2828, %v2828
      %v2893 = vmul.f32 %v2829, %v2829
      %v2894 = vmul.f32 %v2830, %v2830
      %v2895 = vmul.f32 %v2831, %v2831
      %v2896 = vmul.f32 %v2832, %v2832
      %v2897 = vmul.f32 %v2833, %v2833
      %v2898 = vmul.f32 %v2834, %v2834
      %v2899 = vmul.f32 %v2835, %v2835
      %v2900 = vmul.f32 %v2836, %v2836
      %v2901 = vmul.f32 %v2837, %v2837
      %v2902 = vmul.f32 %v2838, %v2838
      %v2903 = vmul.f32 %v2839, %v2839
      %v2904 = vmul.f32 %v2840, %v2840
      %v2905 = vmul.f32 %v2841, %v2841
      %v2906 = vmul.f32 %v2842, %v2842
      %v2907 = vmul.f32 %v2843, %v2843
      %v2908 = vmul.f32 %v2844, %v2844
      %v2909 = vmul.f32 %v2845, %v2845
      %v2910 = vmul.f32 %v2846, %v2846
      %v2911 = vmul.f32 %v2847, %v2847
      %v2912 = vmul.f32 %v2848, %v2848
      %v2913 = vmul.f32 %v2849, %v2849
      %v2914 = vmul.f32 %v2850, %v2850
      %v2915 = vmul.f32 %v2851, %v2851
      %v2916 = vmul.f32 %v2852, %v2852
      %v2917 = vmul.f32 %v2853, %v2853
      %v2918 = vmul.f32 %v2854, %v2854
      %v2919 = vmul.f32 %v2855, %v2855
      %v2920 = vmul.f32 %v2856, %v2856
      %v2921 = vmul.f32 %v2857, %v2857
      %v2922 = vmul.f32 %v2858, %v2858
      %v2923 = vmul.f32 %v2859, %v2859
      %v2924 = vmul.f32 %v2860, %v2860
      %v2925 = vmul.f32 %v2861, %v2861
      %v2926 = vmul.f32 %v2862, %v2862
      %v2927 = vmul.f32 %v2863, %v2863
      %v2928 = vmul.f32 %v2864, %v2864
      %v2929 = vmul.f32 %v2865, %v2865
      %v2930 = vmul.f32 %v2866, %v2866
      %v2931 = vmul.f32 %v2867, %v2867
      %v2932 = vmul.f32 %v2868, %v2868
      %v2933 = vmul.f32 %v2869, %v2869
      %v2934 = vmul.f32 %v2870, %v2870
      %v2935 = vmul.f32 %v2871, %v2871
      %v2936 = vmul.f32 %v2872, %v2872
      %v2937 = vmul.f32 %v2873, %v2873
      %v2938 = vmul.f32 %v2874, %v2874
      %v2939 = vmul.f32 %v2875, %v2875
      %v2940 = vmul.f32 %v2876, %v2876
      %v2941 = vmul.f32 %v2877, %v2877
      %v2942 = vmul.f32 %v2878, %v2878
      %v2943 = vmul.f32 %v2879, %v2879
      %v2944 = vmul.f32 %v2880, %v2880
      %v2945 = vmul.f32 %v2881, %v2881
      %v2946 = vmul.f32 %v2882, %v2882
      %v2947 = vmul.f32 %v2883, %v2883
      %v2948 = vmul.f32 %v2884, %v2884
      %v2949 = vmul.f32 %v2885, %v2885
      %v2950 = vmul.f32 %v2886, %v2886
      %v2951 = vmul.f32 %v2887, %v2887
      %v2952 = vmul.f32 %v2888, %v2888
      %v2953 = vmul.f32 %v2889, %v2889
      %vm2954 = vcmask 261120
      %v2955 = vsel %vm2954, %v2890, 0.0
      %2956 = vadd.xlane.f32.xlu0 %v2955
      %v2957 = vpop.xlane.xlu0 %2956
      %v2958 = vsel %vm2954, %v2891, 0.0
      %2959 = vadd.xlane.f32.xlu0 %v2958
      %v2960 = vpop.xlane.xlu0 %2959
      %v2961 = vsel %vm2954, %v2892, 0.0
      %2962 = vadd.xlane.f32.xlu0 %v2961
      %v2963 = vpop.xlane.xlu0 %2962
      %v2964 = vsel %vm2954, %v2893, 0.0
      %2965 = vadd.xlane.f32.xlu0 %v2964
      %v2966 = vpop.xlane.xlu0 %2965
      %v2967 = vsel %vm2954, %v2894, 0.0
      %2968 = vadd.xlane.f32.xlu0 %v2967
      %v2969 = vpop.xlane.xlu0 %2968
      %v2970 = vsel %vm2954, %v2895, 0.0
      %2971 = vadd.xlane.f32.xlu0 %v2970
      %v2972 = vpop.xlane.xlu0 %2971
      %v2973 = vsel %vm2954, %v2896, 0.0
      %2974 = vadd.xlane.f32.xlu0 %v2973
      %v2975 = vpop.xlane.xlu0 %2974
      %v2976 = vsel %vm2954, %v2897, 0.0
      %2977 = vadd.xlane.f32.xlu0 %v2976
      %v2978 = vpop.xlane.xlu0 %2977
      %v2979 = vsel %vm2954, %v2898, 0.0
      %2980 = vadd.xlane.f32.xlu0 %v2979
      %v2981 = vpop.xlane.xlu0 %2980
      %v2982 = vsel %vm2954, %v2899, 0.0
      %2983 = vadd.xlane.f32.xlu0 %v2982
      %v2984 = vpop.xlane.xlu0 %2983
      %v2985 = vsel %vm2954, %v2900, 0.0
      %2986 = vadd.xlane.f32.xlu0 %v2985
      %v2987 = vpop.xlane.xlu0 %2986
      %v2988 = vsel %vm2954, %v2901, 0.0
      %2989 = vadd.xlane.f32.xlu0 %v2988
      %v2990 = vpop.xlane.xlu0 %2989
      %v2991 = vsel %vm2954, %v2902, 0.0
      %2992 = vadd.xlane.f32.xlu0 %v2991
      %v2993 = vpop.xlane.xlu0 %2992
      %v2994 = vsel %vm2954, %v2903, 0.0
      %2995 = vadd.xlane.f32.xlu0 %v2994
      %v2996 = vpop.xlane.xlu0 %2995
      %v2997 = vsel %vm2954, %v2904, 0.0
      %2998 = vadd.xlane.f32.xlu0 %v2997
      %v2999 = vpop.xlane.xlu0 %2998
      %v3000 = vsel %vm2954, %v2905, 0.0
      %3001 = vadd.xlane.f32.xlu0 %v3000
      %v3002 = vpop.xlane.xlu0 %3001
      %v3003 = vsel %vm2954, %v2906, 0.0
      %3004 = vadd.xlane.f32.xlu0 %v3003
      %v3005 = vpop.xlane.xlu0 %3004
      %v3006 = vsel %vm2954, %v2907, 0.0
      %3007 = vadd.xlane.f32.xlu0 %v3006
      %v3008 = vpop.xlane.xlu0 %3007
      %v3009 = vsel %vm2954, %v2908, 0.0
      %3010 = vadd.xlane.f32.xlu0 %v3009
      %v3011 = vpop.xlane.xlu0 %3010
      %v3012 = vsel %vm2954, %v2909, 0.0
      %3013 = vadd.xlane.f32.xlu0 %v3012
      %v3014 = vpop.xlane.xlu0 %3013
      %v3015 = vsel %vm2954, %v2910, 0.0
      %3016 = vadd.xlane.f32.xlu0 %v3015
      %v3017 = vpop.xlane.xlu0 %3016
      %v3018 = vsel %vm2954, %v2911, 0.0
      %3019 = vadd.xlane.f32.xlu0 %v3018
      %v3020 = vpop.xlane.xlu0 %3019
      %v3021 = vsel %vm2954, %v2912, 0.0
      %3022 = vadd.xlane.f32.xlu0 %v3021
      %v3023 = vpop.xlane.xlu0 %3022
      %v3024 = vsel %vm2954, %v2913, 0.0
      %3025 = vadd.xlane.f32.xlu0 %v3024
      %v3026 = vpop.xlane.xlu0 %3025
      %v3027 = vsel %vm2954, %v2914, 0.0
      %3028 = vadd.xlane.f32.xlu0 %v3027
      %v3029 = vpop.xlane.xlu0 %3028
      %v3030 = vsel %vm2954, %v2915, 0.0
      %3031 = vadd.xlane.f32.xlu0 %v3030
      %v3032 = vpop.xlane.xlu0 %3031
      %v3033 = vsel %vm2954, %v2916, 0.0
      %3034 = vadd.xlane.f32.xlu0 %v3033
      %v3035 = vpop.xlane.xlu0 %3034
      %v3036 = vsel %vm2954, %v2917, 0.0
      %3037 = vadd.xlane.f32.xlu0 %v3036
      %v3038 = vpop.xlane.xlu0 %3037
      %v3039 = vsel %vm2954, %v2918, 0.0
      %3040 = vadd.xlane.f32.xlu0 %v3039
      %v3041 = vpop.xlane.xlu0 %3040
      %v3042 = vsel %vm2954, %v2919, 0.0
      %3043 = vadd.xlane.f32.xlu0 %v3042
      %v3044 = vpop.xlane.xlu0 %3043
      %v3045 = vsel %vm2954, %v2920, 0.0
      %3046 = vadd.xlane.f32.xlu0 %v3045
      %v3047 = vpop.xlane.xlu0 %3046
      %v3048 = vsel %vm2954, %v2921, 0.0
      %3049 = vadd.xlane.f32.xlu0 %v3048
      %v3050 = vpop.xlane.xlu0 %3049
      %v3051 = vsel %vm2954, %v2922, 0.0
      %3052 = vadd.xlane.f32.xlu0 %v3051
      %v3053 = vpop.xlane.xlu0 %3052
      %v3054 = vsel %vm2954, %v2923, 0.0
      %3055 = vadd.xlane.f32.xlu0 %v3054
      %v3056 = vpop.xlane.xlu0 %3055
      %v3057 = vsel %vm2954, %v2924, 0.0
      %3058 = vadd.xlane.f32.xlu0 %v3057
      %v3059 = vpop.xlane.xlu0 %3058
      %v3060 = vsel %vm2954, %v2925, 0.0
      %3061 = vadd.xlane.f32.xlu0 %v3060
      %v3062 = vpop.xlane.xlu0 %3061
      %v3063 = vsel %vm2954, %v2926, 0.0
      %3064 = vadd.xlane.f32.xlu0 %v3063
      %v3065 = vpop.xlane.xlu0 %3064
      %v3066 = vsel %vm2954, %v2927, 0.0
      %3067 = vadd.xlane.f32.xlu0 %v3066
      %v3068 = vpop.xlane.xlu0 %3067
      %v3069 = vsel %vm2954, %v2928, 0.0
      %3070 = vadd.xlane.f32.xlu0 %v3069
      %v3071 = vpop.xlane.xlu0 %3070
      %v3072 = vsel %vm2954, %v2929, 0.0
      %3073 = vadd.xlane.f32.xlu0 %v3072
      %v3074 = vpop.xlane.xlu0 %3073
      %v3075 = vsel %vm2954, %v2930, 0.0
      %3076 = vadd.xlane.f32.xlu0 %v3075
      %v3077 = vpop.xlane.xlu0 %3076
      %v3078 = vsel %vm2954, %v2931, 0.0
      %3079 = vadd.xlane.f32.xlu0 %v3078
      %v3080 = vpop.xlane.xlu0 %3079
      %v3081 = vsel %vm2954, %v2932, 0.0
      %3082 = vadd.xlane.f32.xlu0 %v3081
      %v3083 = vpop.xlane.xlu0 %3082
      %v3084 = vsel %vm2954, %v2933, 0.0
      %3085 = vadd.xlane.f32.xlu0 %v3084
      %v3086 = vpop.xlane.xlu0 %3085
      %v3087 = vsel %vm2954, %v2934, 0.0
      %3088 = vadd.xlane.f32.xlu0 %v3087
      %v3089 = vpop.xlane.xlu0 %3088
      %v3090 = vsel %vm2954, %v2935, 0.0
      %3091 = vadd.xlane.f32.xlu0 %v3090
      %v3092 = vpop.xlane.xlu0 %3091
      %v3093 = vsel %vm2954, %v2936, 0.0
      %3094 = vadd.xlane.f32.xlu0 %v3093
      %v3095 = vpop.xlane.xlu0 %3094
      %v3096 = vsel %vm2954, %v2937, 0.0
      %3097 = vadd.xlane.f32.xlu0 %v3096
      %v3098 = vpop.xlane.xlu0 %3097
      %v3099 = vsel %vm2954, %v2938, 0.0
      %3100 = vadd.xlane.f32.xlu0 %v3099
      %v3101 = vpop.xlane.xlu0 %3100
      %v3102 = vsel %vm2954, %v2939, 0.0
      %3103 = vadd.xlane.f32.xlu0 %v3102
      %v3104 = vpop.xlane.xlu0 %3103
      %v3105 = vsel %vm2954, %v2940, 0.0
      %3106 = vadd.xlane.f32.xlu0 %v3105
      %v3107 = vpop.xlane.xlu0 %3106
      %v3108 = vsel %vm2954, %v2941, 0.0
      %3109 = vadd.xlane.f32.xlu0 %v3108
      %v3110 = vpop.xlane.xlu0 %3109
      %v3111 = vsel %vm2954, %v2942, 0.0
      %3112 = vadd.xlane.f32.xlu0 %v3111
      %v3113 = vpop.xlane.xlu0 %3112
      %v3114 = vsel %vm2954, %v2943, 0.0
      %3115 = vadd.xlane.f32.xlu0 %v3114
      %v3116 = vpop.xlane.xlu0 %3115
      %v3117 = vsel %vm2954, %v2944, 0.0
      %3118 = vadd.xlane.f32.xlu0 %v3117
      %v3119 = vpop.xlane.xlu0 %3118
      %v3120 = vsel %vm2954, %v2945, 0.0
      %3121 = vadd.xlane.f32.xlu0 %v3120
      %v3122 = vpop.xlane.xlu0 %3121
      %v3123 = vsel %vm2954, %v2946, 0.0
      %3124 = vadd.xlane.f32.xlu0 %v3123
      %v3125 = vpop.xlane.xlu0 %3124
      %v3126 = vsel %vm2954, %v2947, 0.0
      %3127 = vadd.xlane.f32.xlu0 %v3126
      %v3128 = vpop.xlane.xlu0 %3127
      %v3129 = vsel %vm2954, %v2948, 0.0
      %3130 = vadd.xlane.f32.xlu0 %v3129
      %v3131 = vpop.xlane.xlu0 %3130
      %v3132 = vsel %vm2954, %v2949, 0.0
      %3133 = vadd.xlane.f32.xlu0 %v3132
      %v3134 = vpop.xlane.xlu0 %3133
      %v3135 = vsel %vm2954, %v2950, 0.0
      %3136 = vadd.xlane.f32.xlu0 %v3135
      %v3137 = vpop.xlane.xlu0 %3136
      %v3138 = vsel %vm2954, %v2951, 0.0
      %3139 = vadd.xlane.f32.xlu0 %v3138
      %v3140 = vpop.xlane.xlu0 %3139
      %v3141 = vsel %vm2954, %v2952, 0.0
      %3142 = vadd.xlane.f32.xlu0 %v3141
      %v3143 = vpop.xlane.xlu0 %3142
      %v3144 = vsel %vm2954, %v2953, 0.0
      %3145 = vadd.xlane.f32.xlu0 %v3144
      %v3146 = vpop.xlane.xlu0 %3145
      %v3147 = vrsqrt.pop %v2957
      %v3148 = vrsqrt.pop %v2960
      %v3149 = vrsqrt.pop %v2963
      %v3150 = vrsqrt.pop %v2966
      %v3151 = vrsqrt.pop %v2969
      %v3152 = vrsqrt.pop %v2972
      %v3153 = vrsqrt.pop %v2975
      %v3154 = vrsqrt.pop %v2978
      %v3155 = vrsqrt.pop %v2981
      %v3156 = vrsqrt.pop %v2984
      %v3157 = vrsqrt.pop %v2987
      %v3158 = vrsqrt.pop %v2990
      %v3159 = vrsqrt.pop %v2993
      %v3160 = vrsqrt.pop %v2996
      %v3161 = vrsqrt.pop %v2999
      %v3162 = vrsqrt.pop %v3002
      %v3163 = vrsqrt.pop %v3005
      %v3164 = vrsqrt.pop %v3008
      %v3165 = vrsqrt.pop %v3011
      %v3166 = vrsqrt.pop %v3014
      %v3167 = vrsqrt.pop %v3017
      %v3168 = vrsqrt.pop %v3020
      %v3169 = vrsqrt.pop %v3023
      %v3170 = vrsqrt.pop %v3026
      %v3171 = vrsqrt.pop %v3029
      %v3172 = vrsqrt.pop %v3032
      %v3173 = vrsqrt.pop %v3035
      %v3174 = vrsqrt.pop %v3038
      %v3175 = vrsqrt.pop %v3041
      %v3176 = vrsqrt.pop %v3044
      %v3177 = vrsqrt.pop %v3047
      %v3178 = vrsqrt.pop %v3050
      %v3179 = vrsqrt.pop %v3053
      %v3180 = vrsqrt.pop %v3056
      %v3181 = vrsqrt.pop %v3059
      %v3182 = vrsqrt.pop %v3062
      %v3183 = vrsqrt.pop %v3065
      %v3184 = vrsqrt.pop %v3068
      %v3185 = vrsqrt.pop %v3071
      %v3186 = vrsqrt.pop %v3074
      %v3187 = vrsqrt.pop %v3077
      %v3188 = vrsqrt.pop %v3080
      %v3189 = vrsqrt.pop %v3083
      %v3190 = vrsqrt.pop %v3086
      %v3191 = vrsqrt.pop %v3089
      %v3192 = vrsqrt.pop %v3092
      %v3193 = vrsqrt.pop %v3095
      %v3194 = vrsqrt.pop %v3098
      %v3195 = vrsqrt.pop %v3101
      %v3196 = vrsqrt.pop %v3104
      %v3197 = vrsqrt.pop %v3107
      %v3198 = vrsqrt.pop %v3110
      %v3199 = vrsqrt.pop %v3113
      %v3200 = vrsqrt.pop %v3116
      %v3201 = vrsqrt.pop %v3119
      %v3202 = vrsqrt.pop %v3122
      %v3203 = vrsqrt.pop %v3125
      %v3204 = vrsqrt.pop %v3128
      %v3205 = vrsqrt.pop %v3131
      %v3206 = vrsqrt.pop %v3134
      %v3207 = vrsqrt.pop %v3137
      %v3208 = vrsqrt.pop %v3140
      %v3209 = vrsqrt.pop %v3143
      %v3210 = vrsqrt.pop %v3146
      %v3211 = vmul.f32 %v2826, %v3147
      %v3212 = vmul.f32 %v2827, %v3148
      %v3213 = vmul.f32 %v2828, %v3149
      %v3214 = vmul.f32 %v2829, %v3150
      %v3215 = vmul.f32 %v2830, %v3151
      %v3216 = vmul.f32 %v2831, %v3152
      %v3217 = vmul.f32 %v2832, %v3153
      %v3218 = vmul.f32 %v2833, %v3154
      %v3219 = vmul.f32 %v2834, %v3155
      %v3220 = vmul.f32 %v2835, %v3156
      %v3221 = vmul.f32 %v2836, %v3157
      %v3222 = vmul.f32 %v2837, %v3158
      %v3223 = vmul.f32 %v2838, %v3159
      %v3224 = vmul.f32 %v2839, %v3160
      %v3225 = vmul.f32 %v2840, %v3161
      %v3226 = vmul.f32 %v2841, %v3162
      %v3227 = vmul.f32 %v2842, %v3163
      %v3228 = vmul.f32 %v2843, %v3164
      %v3229 = vmul.f32 %v2844, %v3165
      %v3230 = vmul.f32 %v2845, %v3166
      %v3231 = vmul.f32 %v2846, %v3167
      %v3232 = vmul.f32 %v2847, %v3168
      %v3233 = vmul.f32 %v2848, %v3169
      %v3234 = vmul.f32 %v2849, %v3170
      %v3235 = vmul.f32 %v2850, %v3171
      %v3236 = vmul.f32 %v2851, %v3172
      %v3237 = vmul.f32 %v2852, %v3173
      %v3238 = vmul.f32 %v2853, %v3174
      %v3239 = vmul.f32 %v2854, %v3175
      %v3240 = vmul.f32 %v2855, %v3176
      %v3241 = vmul.f32 %v2856, %v3177
      %v3242 = vmul.f32 %v2857, %v3178
      %v3243 = vmul.f32 %v2858, %v3179
      %v3244 = vmul.f32 %v2859, %v3180
      %v3245 = vmul.f32 %v2860, %v3181
      %v3246 = vmul.f32 %v2861, %v3182
      %v3247 = vmul.f32 %v2862, %v3183
      %v3248 = vmul.f32 %v2863, %v3184
      %v3249 = vmul.f32 %v2864, %v3185
      %v3250 = vmul.f32 %v2865, %v3186
      %v3251 = vmul.f32 %v2866, %v3187
      %v3252 = vmul.f32 %v2867, %v3188
      %v3253 = vmul.f32 %v2868, %v3189
      %v3254 = vmul.f32 %v2869, %v3190
      %v3255 = vmul.f32 %v2870, %v3191
      %v3256 = vmul.f32 %v2871, %v3192
      %v3257 = vmul.f32 %v2872, %v3193
      %v3258 = vmul.f32 %v2873, %v3194
      %v3259 = vmul.f32 %v2874, %v3195
      %v3260 = vmul.f32 %v2875, %v3196
      %v3261 = vmul.f32 %v2876, %v3197
      %v3262 = vmul.f32 %v2877, %v3198
      %v3263 = vmul.f32 %v2878, %v3199
      %v3264 = vmul.f32 %v2879, %v3200
      %v3265 = vmul.f32 %v2880, %v3201
      %v3266 = vmul.f32 %v2881, %v3202
      %v3267 = vmul.f32 %v2882, %v3203
      %v3268 = vmul.f32 %v2883, %v3204
      %v3269 = vmul.f32 %v2884, %v3205
      %v3270 = vmul.f32 %v2885, %v3206
      %v3271 = vmul.f32 %v2886, %v3207
      %v3272 = vmul.f32 %v2887, %v3208
      %v3273 = vmul.f32 %v2888, %v3209
      %v3274 = vmul.f32 %v2889, %v3210
      %v3275 = vld [vmem:[%s7] sm:$0xf]
      %v3276 = vld [vmem:[%s7 + $0x4] sm:$0xf]
      %v3277 = vld [vmem:[%s7 + $0x8] sm:$0xf]
      %v3278 = vld [vmem:[%s7 + $0xc] sm:$0xf]
      %v3279 = vpack.c.bf16 %v3212, %v3211
      %v3280 = vpack.c.bf16 %v3214, %v3213
      %v3281 = vpack.c.bf16 %v3216, %v3215
      %v3282 = vpack.c.bf16 %v3218, %v3217
      %v3283 = vpack.c.bf16 %v3220, %v3219
      %v3284 = vpack.c.bf16 %v3222, %v3221
      %v3285 = vpack.c.bf16 %v3224, %v3223
      %v3286 = vpack.c.bf16 %v3226, %v3225
      %v3287 = vpack.c.bf16 %v3228, %v3227
      %v3288 = vpack.c.bf16 %v3230, %v3229
      %v3289 = vpack.c.bf16 %v3232, %v3231
      %v3290 = vpack.c.bf16 %v3234, %v3233
      %v3291 = vpack.c.bf16 %v3236, %v3235
      %v3292 = vpack.c.bf16 %v3238, %v3237
      %v3293 = vpack.c.bf16 %v3240, %v3239
      %v3294 = vpack.c.bf16 %v3242, %v3241
      %v3295 = vpack.c.bf16 %v3244, %v3243
      %v3296 = vpack.c.bf16 %v3246, %v3245
      %v3297 = vpack.c.bf16 %v3248, %v3247
      %v3298 = vpack.c.bf16 %v3250, %v3249
      %v3299 = vpack.c.bf16 %v3252, %v3251
      %v3300 = vpack.c.bf16 %v3254, %v3253
      %v3301 = vpack.c.bf16 %v3256, %v3255
      %v3302 = vpack.c.bf16 %v3258, %v3257
      %v3303 = vpack.c.bf16 %v3260, %v3259
      %v3304 = vpack.c.bf16 %v3262, %v3261
      %v3305 = vpack.c.bf16 %v3264, %v3263
      %v3306 = vpack.c.bf16 %v3266, %v3265
      %v3307 = vpack.c.bf16 %v3268, %v3267
      %v3308 = vpack.c.bf16 %v3270, %v3269
      %v3309 = vpack.c.bf16 %v3272, %v3271
      %v3310 = vpack.c.bf16 %v3274, %v3273
      %v3311 = vld [vmem:[%s8] sm:$0x1]
      %v3313 = vlaneseq
      %v3314 = vshrl.u32 %v3313, 7
      %v3315 = vsub.s32 0, %v3314
      %v3316 = vrot.slane %v3311, %v3315
      %v3322 = vunpack.c.l.b16 %v3275
      %v3323 = vunpack.c.l.b16 %v3276
      %v3324 = vunpack.c.l.b16 %v3277
      %v3325 = vunpack.c.l.b16 %v3278
      %v3326 = vpack.c.b16 %v3323, %v3322
      %v3327 = vpack.c.b16 %v3325, %v3324
      %v3331 = vsel %vm2954, %v3279, 0
      %v3334 = vsel %vm2954, %v3280, 0
      %v3337 = vsel %vm2954, %v3281, 0
      %v3340 = vsel %vm2954, %v3282, 0
      %v3343 = vsel %vm2954, %v3283, 0
      %v3346 = vsel %vm2954, %v3284, 0
      %v3349 = vsel %vm2954, %v3285, 0
      %v3352 = vsel %vm2954, %v3286, 0
      %v3355 = vsel %vm2954, %v3287, 0
      %v3358 = vsel %vm2954, %v3288, 0
      %v3361 = vsel %vm2954, %v3289, 0
      %v3364 = vsel %vm2954, %v3290, 0
      %v3367 = vsel %vm2954, %v3291, 0
      %v3370 = vsel %vm2954, %v3292, 0
      %v3373 = vsel %vm2954, %v3293, 0
      %v3376 = vsel %vm2954, %v3294, 0
      %v3379 = vsel %vm2954, %v3295, 0
      %v3382 = vsel %vm2954, %v3296, 0
      %v3385 = vsel %vm2954, %v3297, 0
      %v3388 = vsel %vm2954, %v3298, 0
      %v3391 = vsel %vm2954, %v3299, 0
      %v3394 = vsel %vm2954, %v3300, 0
      %v3397 = vsel %vm2954, %v3301, 0
      %v3400 = vsel %vm2954, %v3302, 0
      %v3403 = vsel %vm2954, %v3303, 0
      %v3406 = vsel %vm2954, %v3304, 0
      %v3409 = vsel %vm2954, %v3305, 0
      %v3412 = vsel %vm2954, %v3306, 0
      %v3415 = vsel %vm2954, %v3307, 0
      %v3418 = vsel %vm2954, %v3308, 0
      %v3421 = vsel %vm2954, %v3309, 0
      %v3424 = vsel %vm2954, %v3310, 0
      %3426 = vmatprep.subr.bf16.mxu0 0
      %3427 = vmatpush1.bf16.msra.mxu0 %v3326
      %3428 = vmatprep.subr.bf16.mxu0 0
      %3429 = vmatpush1.bf16.msra.mxu0 %v3327
      %3430 = vmatprep.subr.bf16.mxu0 0
      %3431 = vmatpush1.bf16.msra.mxu0 0
      %3432 = vmatprep.subr.bf16.mxu0 0
      %3433 = vmatpush1.bf16.msra.mxu0 0
      %3434 = vmatprep.subr.bf16.mxu0 0
      %3435 = vmatpush1.bf16.msra.mxu0 0
      %3436 = vmatprep.subr.bf16.mxu0 0
      %3437 = vmatpush1.bf16.msra.mxu0 0
      %3438 = vmatprep.subr.bf16.mxu0 0
      %3439 = vmatpush1.bf16.msra.mxu0 0
      %3440 = vmatprep.subr.bf16.mxu0 0
      %3441 = vmatpush1.bf16.msra.mxu0 0
      %3442 = vmatprep.subr.bf16.mxu0 0
      %3443 = vmatpush1.bf16.msra.mxu0 0
      %3444 = vmatprep.subr.bf16.mxu0 0
      %3445 = vmatpush1.bf16.msra.mxu0 0
      %3446 = vmatprep.subr.bf16.mxu0 0
      %3447 = vmatpush1.bf16.msra.mxu0 0
      %3448 = vmatprep.subr.bf16.mxu0 0
      %3449 = vmatpush1.bf16.msra.mxu0 0
      %3450 = vmatprep.subr.bf16.mxu0 0
      %3451 = vmatpush1.bf16.msra.mxu0 0
      %3452 = vmatprep.subr.bf16.mxu0 0
      %3453 = vmatpush1.bf16.msra.mxu0 0
      %3454 = vmatprep.subr.bf16.mxu0 0
      %3455 = vmatpush1.bf16.msra.mxu0 0
      %3456 = vmatprep.subr.bf16.mxu0 0
      %3457 = vmatpush1.bf16.msra.mxu0 0
      %3458 = vmatprep.mubr.bf16.mxu0 0
      %3459 = vmatmul.mubr.bf16.gmra.mrb[0].mxu0 %v3331
      %v3460 = vpop.f32.mrb[0].mxu0
      %v3461 = vadd.f32 %v3316, %v3460
      %v3462 = vpop.f32.mrb[0].mxu0
      %v3463 = vpop.f32.mrb[0].mxu0
      %v3464 = vadd.f32 %v3316, %v3463
      %v3465 = vpop.f32.mrb[0].mxu0
      %3466 = vmatprep.mubr.bf16.mxu0 0
      %3467 = vmatmul.mubr.bf16.gmra.mrb[0].mxu0 %v3334
      %v3468 = vpop.f32.mrb[0].mxu0
      %v3469 = vadd.f32 %v3316, %v3468
      %v3470 = vpop.f32.mrb[0].mxu0
      %v3471 = vpop.f32.mrb[0].mxu0
      %v3472 = vadd.f32 %v3316, %v3471
      %v3473 = vpop.f32.mrb[0].mxu0
      %3474 = vmatprep.mubr.bf16.mxu0 0
      %3475 = vmatmul.mubr.bf16.gmra.mrb[0].mxu0 %v3337
      %v3476 = vpop.f32.mrb[0].mxu0
      %v3477 = vadd.f32 %v3316, %v3476
      %v3478 = vpop.f32.mrb[0].mxu0
      %v3479 = vpop.f32.mrb[0].mxu0
      %v3480 = vadd.f32 %v3316, %v3479
      %v3481 = vpop.f32.mrb[0].mxu0
      %3482 = vmatprep.mubr.bf16.mxu0 0
      %3483 = vmatmul.mubr.bf16.gmra.mrb[0].mxu0 %v3340
      %v3484 = vpop.f32.mrb[0].mxu0
      %v3485 = vadd.f32 %v3316, %v3484
      %v3486 = vpop.f32.mrb[0].mxu0
      %v3487 = vpop.f32.mrb[0].mxu0
      %v3488 = vadd.f32 %v3316, %v3487
      %v3489 = vpop.f32.mrb[0].mxu0
      %3490 = vmatprep.mubr.bf16.mxu0 0
      %3491 = vmatmul.mubr.bf16.gmra.mrb[0].mxu0 %v3343
      %v3492 = vpop.f32.mrb[0].mxu0
      %v3493 = vadd.f32 %v3316, %v3492
      %v3494 = vpop.f32.mrb[0].mxu0
      %v3495 = vpop.f32.mrb[0].mxu0
      %v3496 = vadd.f32 %v3316, %v3495
      %v3497 = vpop.f32.mrb[0].mxu0
      %3498 = vmatprep.mubr.bf16.mxu0 0
      %3499 = vmatmul.mubr.bf16.gmra.mrb[0].mxu0 %v3346
      %v3500 = vpop.f32.mrb[0].mxu0
      %v3501 = vadd.f32 %v3316, %v3500
      %v3502 = vpop.f32.mrb[0].mxu0
      %v3503 = vpop.f32.mrb[0].mxu0
      %v3504 = vadd.f32 %v3316, %v3503
      %v3505 = vpop.f32.mrb[0].mxu0
      %3506 = vmatprep.mubr.bf16.mxu0 0
      %3507 = vmatmul.mubr.bf16.gmra.mrb[0].mxu0 %v3349
      %v3508 = vpop.f32.mrb[0].mxu0
      %v3509 = vadd.f32 %v3316, %v3508
      %v3510 = vpop.f32.mrb[0].mxu0
      %v3511 = vpop.f32.mrb[0].mxu0
      %v3512 = vadd.f32 %v3316, %v3511
      %v3513 = vpop.f32.mrb[0].mxu0
      %3514 = vmatprep.mubr.bf16.mxu0 0
      %3515 = vmatmul.mubr.bf16.gmra.mrb[0].mxu0 %v3352
      %v3516 = vpop.f32.mrb[0].mxu0
      %v3517 = vadd.f32 %v3316, %v3516
      %v3518 = vpop.f32.mrb[0].mxu0
      %v3519 = vpop.f32.mrb[0].mxu0
      %v3520 = vadd.f32 %v3316, %v3519
      %v3521 = vpop.f32.mrb[0].mxu0
      %3522 = vmatprep.mubr.bf16.mxu0 0
      %3523 = vmatmul.mubr.bf16.gmra.mrb[0].mxu0 %v3355
      %v3524 = vpop.f32.mrb[0].mxu0
      %v3525 = vadd.f32 %v3316, %v3524
      %v3526 = vpop.f32.mrb[0].mxu0
      %v3527 = vpop.f32.mrb[0].mxu0
      %v3528 = vadd.f32 %v3316, %v3527
      %v3529 = vpop.f32.mrb[0].mxu0
      %3530 = vmatprep.mubr.bf16.mxu0 0
      %3531 = vmatmul.mubr.bf16.gmra.mrb[0].mxu0 %v3358
      %v3532 = vpop.f32.mrb[0].mxu0
      %v3533 = vadd.f32 %v3316, %v3532
      %v3534 = vpop.f32.mrb[0].mxu0
      %v3535 = vpop.f32.mrb[0].mxu0
      %v3536 = vadd.f32 %v3316, %v3535
      %v3537 = vpop.f32.mrb[0].mxu0
      %3538 = vmatprep.mubr.bf16.mxu0 0
      %3539 = vmatmul.mubr.bf16.gmra.mrb[0].mxu0 %v3361
      %v3540 = vpop.f32.mrb[0].mxu0
      %v3541 = vadd.f32 %v3316, %v3540
      %v3542 = vpop.f32.mrb[0].mxu0
      %v3543 = vpop.f32.mrb[0].mxu0
      %v3544 = vadd.f32 %v3316, %v3543
      %v3545 = vpop.f32.mrb[0].mxu0
      %3546 = vmatprep.mubr.bf16.mxu0 0
      %3547 = vmatmul.mubr.bf16.gmra.mrb[0].mxu0 %v3364
      %v3548 = vpop.f32.mrb[0].mxu0
      %v3549 = vadd.f32 %v3316, %v3548
      %v3550 = vpop.f32.mrb[0].mxu0
      %v3551 = vpop.f32.mrb[0].mxu0
      %v3552 = vadd.f32 %v3316, %v3551
      %v3553 = vpop.f32.mrb[0].mxu0
      %3554 = vmatprep.mubr.bf16.mxu0 0
      %3555 = vmatmul.mubr.bf16.gmra.mrb[0].mxu0 %v3367
      %v3556 = vpop.f32.mrb[0].mxu0
      %v3557 = vadd.f32 %v3316, %v3556
      %v3558 = vpop.f32.mrb[0].mxu0
      %v3559 = vpop.f32.mrb[0].mxu0
      %v3560 = vadd.f32 %v3316, %v3559
      %v3561 = vpop.f32.mrb[0].mxu0
      %3562 = vmatprep.mubr.bf16.mxu0 0
      %3563 = vmatmul.mubr.bf16.gmra.mrb[0].mxu0 %v3370
      %v3564 = vpop.f32.mrb[0].mxu0
      %v3565 = vadd.f32 %v3316, %v3564
      %v3566 = vpop.f32.mrb[0].mxu0
      %v3567 = vpop.f32.mrb[0].mxu0
      %v3568 = vadd.f32 %v3316, %v3567
      %v3569 = vpop.f32.mrb[0].mxu0
      %3570 = vmatprep.mubr.bf16.mxu0 0
      %3571 = vmatmul.mubr.bf16.gmra.mrb[0].mxu0 %v3373
      %v3572 = vpop.f32.mrb[0].mxu0
      %v3573 = vadd.f32 %v3316, %v3572
      %v3574 = vpop.f32.mrb[0].mxu0
      %v3575 = vpop.f32.mrb[0].mxu0
      %v3576 = vadd.f32 %v3316, %v3575
      %v3577 = vpop.f32.mrb[0].mxu0
      %3578 = vmatprep.mubr.bf16.mxu0 0
      %3579 = vmatmul.mubr.bf16.gmra.mrb[0].mxu0 %v3376
      %v3580 = vpop.f32.mrb[0].mxu0
      %v3581 = vadd.f32 %v3316, %v3580
      %v3582 = vpop.f32.mrb[0].mxu0
      %v3583 = vpop.f32.mrb[0].mxu0
      %v3584 = vadd.f32 %v3316, %v3583
      %v3585 = vpop.f32.mrb[0].mxu0
      %3586 = vmatprep.mubr.bf16.mxu0 0
      %3587 = vmatmul.mubr.bf16.gmra.mrb[0].mxu0 %v3379
      %v3588 = vpop.f32.mrb[0].mxu0
      %v3589 = vadd.f32 %v3316, %v3588
      %v3590 = vpop.f32.mrb[0].mxu0
      %v3591 = vpop.f32.mrb[0].mxu0
      %v3592 = vadd.f32 %v3316, %v3591
      %v3593 = vpop.f32.mrb[0].mxu0
      %3594 = vmatprep.mubr.bf16.mxu0 0
      %3595 = vmatmul.mubr.bf16.gmra.mrb[0].mxu0 %v3382
      %v3596 = vpop.f32.mrb[0].mxu0
      %v3597 = vadd.f32 %v3316, %v3596
      %v3598 = vpop.f32.mrb[0].mxu0
      %v3599 = vpop.f32.mrb[0].mxu0
      %v3600 = vadd.f32 %v3316, %v3599
      %v3601 = vpop.f32.mrb[0].mxu0
      %3602 = vmatprep.mubr.bf16.mxu0 0
      %3603 = vmatmul.mubr.bf16.gmra.mrb[0].mxu0 %v3385
      %v3604 = vpop.f32.mrb[0].mxu0
      %v3605 = vadd.f32 %v3316, %v3604
      %v3606 = vpop.f32.mrb[0].mxu0
      %v3607 = vpop.f32.mrb[0].mxu0
      %v3608 = vadd.f32 %v3316, %v3607
      %v3609 = vpop.f32.mrb[0].mxu0
      %3610 = vmatprep.mubr.bf16.mxu0 0
      %3611 = vmatmul.mubr.bf16.gmra.mrb[0].mxu0 %v3388
      %v3612 = vpop.f32.mrb[0].mxu0
      %v3613 = vadd.f32 %v3316, %v3612
      %v3614 = vpop.f32.mrb[0].mxu0
      %v3615 = vpop.f32.mrb[0].mxu0
      %v3616 = vadd.f32 %v3316, %v3615
      %v3617 = vpop.f32.mrb[0].mxu0
      %3618 = vmatprep.mubr.bf16.mxu0 0
      %3619 = vmatmul.mubr.bf16.gmra.mrb[0].mxu0 %v3391
      %v3620 = vpop.f32.mrb[0].mxu0
      %v3621 = vadd.f32 %v3316, %v3620
      %v3622 = vpop.f32.mrb[0].mxu0
      %v3623 = vpop.f32.mrb[0].mxu0
      %v3624 = vadd.f32 %v3316, %v3623
      %v3625 = vpop.f32.mrb[0].mxu0
      %3626 = vmatprep.mubr.bf16.mxu0 0
      %3627 = vmatmul.mubr.bf16.gmra.mrb[0].mxu0 %v3394
      %v3628 = vpop.f32.mrb[0].mxu0
      %v3629 = vadd.f32 %v3316, %v3628
      %v3630 = vpop.f32.mrb[0].mxu0
      %v3631 = vpop.f32.mrb[0].mxu0
      %v3632 = vadd.f32 %v3316, %v3631
      %v3633 = vpop.f32.mrb[0].mxu0
      %3634 = vmatprep.mubr.bf16.mxu0 0
      %3635 = vmatmul.mubr.bf16.gmra.mrb[0].mxu0 %v3397
      %v3636 = vpop.f32.mrb[0].mxu0
      %v3637 = vadd.f32 %v3316, %v3636
      %v3638 = vpop.f32.mrb[0].mxu0
      %v3639 = vpop.f32.mrb[0].mxu0
      %v3640 = vadd.f32 %v3316, %v3639
      %v3641 = vpop.f32.mrb[0].mxu0
      %3642 = vmatprep.mubr.bf16.mxu0 0
      %3643 = vmatmul.mubr.bf16.gmra.mrb[0].mxu0 %v3400
      %v3644 = vpop.f32.mrb[0].mxu0
      %v3645 = vadd.f32 %v3316, %v3644
      %v3646 = vpop.f32.mrb[0].mxu0
      %v3647 = vpop.f32.mrb[0].mxu0
      %v3648 = vadd.f32 %v3316, %v3647
      %v3649 = vpop.f32.mrb[0].mxu0
      %3650 = vmatprep.mubr.bf16.mxu0 0
      %3651 = vmatmul.mubr.bf16.gmra.mrb[0].mxu0 %v3403
      %v3652 = vpop.f32.mrb[0].mxu0
      %v3653 = vadd.f32 %v3316, %v3652
      %v3654 = vpop.f32.mrb[0].mxu0
      %v3655 = vpop.f32.mrb[0].mxu0
      %v3656 = vadd.f32 %v3316, %v3655
      %v3657 = vpop.f32.mrb[0].mxu0
      %3658 = vmatprep.mubr.bf16.mxu0 0
      %3659 = vmatmul.mubr.bf16.gmra.mrb[0].mxu0 %v3406
      %v3660 = vpop.f32.mrb[0].mxu0
      %v3661 = vadd.f32 %v3316, %v3660
      %v3662 = vpop.f32.mrb[0].mxu0
      %v3663 = vpop.f32.mrb[0].mxu0
      %v3664 = vadd.f32 %v3316, %v3663
      %v3665 = vpop.f32.mrb[0].mxu0
      %3666 = vmatprep.mubr.bf16.mxu0 0
      %3667 = vmatmul.mubr.bf16.gmra.mrb[0].mxu0 %v3409
      %v3668 = vpop.f32.mrb[0].mxu0
      %v3669 = vadd.f32 %v3316, %v3668
      %v3670 = vpop.f32.mrb[0].mxu0
      %v3671 = vpop.f32.mrb[0].mxu0
      %v3672 = vadd.f32 %v3316, %v3671
      %v3673 = vpop.f32.mrb[0].mxu0
      %3674 = vmatprep.mubr.bf16.mxu0 0
      %3675 = vmatmul.mubr.bf16.gmra.mrb[0].mxu0 %v3412
      %v3676 = vpop.f32.mrb[0].mxu0
      %v3677 = vadd.f32 %v3316, %v3676
      %v3678 = vpop.f32.mrb[0].mxu0
      %v3679 = vpop.f32.mrb[0].mxu0
      %v3680 = vadd.f32 %v3316, %v3679
      %v3681 = vpop.f32.mrb[0].mxu0
      %3682 = vmatprep.mubr.bf16.mxu0 0
      %3683 = vmatmul.mubr.bf16.gmra.mrb[0].mxu0 %v3415
      %v3684 = vpop.f32.mrb[0].mxu0
      %v3685 = vadd.f32 %v3316, %v3684
      %v3686 = vpop.f32.mrb[0].mxu0
      %v3687 = vpop.f32.mrb[0].mxu0
      %v3688 = vadd.f32 %v3316, %v3687
      %v3689 = vpop.f32.mrb[0].mxu0
      %3690 = vmatprep.mubr.bf16.mxu0 0
      %3691 = vmatmul.mubr.bf16.gmra.mrb[0].mxu0 %v3418
      %v3692 = vpop.f32.mrb[0].mxu0
      %v3693 = vadd.f32 %v3316, %v3692
      %v3694 = vpop.f32.mrb[0].mxu0
      %v3695 = vpop.f32.mrb[0].mxu0
      %v3696 = vadd.f32 %v3316, %v3695
      %v3697 = vpop.f32.mrb[0].mxu0
      %3698 = vmatprep.mubr.bf16.mxu0 0
      %3699 = vmatmul.mubr.bf16.gmra.mrb[0].mxu0 %v3421
      %v3700 = vpop.f32.mrb[0].mxu0
      %v3701 = vadd.f32 %v3316, %v3700
      %v3702 = vpop.f32.mrb[0].mxu0
      %v3703 = vpop.f32.mrb[0].mxu0
      %v3704 = vadd.f32 %v3316, %v3703
      %v3705 = vpop.f32.mrb[0].mxu0
      %3706 = vmatprep.mubr.bf16.mxu0 0
      %3707 = vmatmul.mubr.bf16.gmra.mrb[0].mxu0 %v3424
      %v3708 = vpop.f32.mrb[0].mxu0
      %v3709 = vadd.f32 %v3316, %v3708
      %v3710 = vpop.f32.mrb[0].mxu0
      %v3711 = vpop.f32.mrb[0].mxu0
      %v3712 = vadd.f32 %v3316, %v3711
      %v3713 = vpop.f32.mrb[0].mxu0
      %3714 = vdwg.mxu0
      %vm3715 = vcmp.ge.f32.partialorder %v3461, 0.0
      %vm3716 = vcmp.ge.f32.partialorder %v3464, 0.0
      %vm3717 = vcmp.ge.f32.partialorder %v3469, 0.0
      %vm3718 = vcmp.ge.f32.partialorder %v3472, 0.0
      %vm3719 = vcmp.ge.f32.partialorder %v3477, 0.0
      %vm3720 = vcmp.ge.f32.partialorder %v3480, 0.0
      %vm3721 = vcmp.ge.f32.partialorder %v3485, 0.0
      %vm3722 = vcmp.ge.f32.partialorder %v3488, 0.0
      %vm3723 = vcmp.ge.f32.partialorder %v3493, 0.0
      %vm3724 = vcmp.ge.f32.partialorder %v3496, 0.0
      %vm3725 = vcmp.ge.f32.partialorder %v3501, 0.0
      %vm3726 = vcmp.ge.f32.partialorder %v3504, 0.0
      %vm3727 = vcmp.ge.f32.partialorder %v3509, 0.0
      %vm3728 = vcmp.ge.f32.partialorder %v3512, 0.0
      %vm3729 = vcmp.ge.f32.partialorder %v3517, 0.0
      %vm3730 = vcmp.ge.f32.partialorder %v3520, 0.0
      %vm3731 = vcmp.ge.f32.partialorder %v3525, 0.0
      %vm3732 = vcmp.ge.f32.partialorder %v3528, 0.0
      %vm3733 = vcmp.ge.f32.partialorder %v3533, 0.0
      %vm3734 = vcmp.ge.f32.partialorder %v3536, 0.0
      %vm3735 = vcmp.ge.f32.partialorder %v3541, 0.0
      %vm3736 = vcmp.ge.f32.partialorder %v3544, 0.0
      %vm3737 = vcmp.ge.f32.partialorder %v3549, 0.0
      %vm3738 = vcmp.ge.f32.partialorder %v3552, 0.0
      %vm3739 = vcmp.ge.f32.partialorder %v3557, 0.0
      %vm3740 = vcmp.ge.f32.partialorder %v3560, 0.0
      %vm3741 = vcmp.ge.f32.partialorder %v3565, 0.0
      %vm3742 = vcmp.ge.f32.partialorder %v3568, 0.0
      %vm3743 = vcmp.ge.f32.partialorder %v3573, 0.0
      %vm3744 = vcmp.ge.f32.partialorder %v3576, 0.0
      %vm3745 = vcmp.ge.f32.partialorder %v3581, 0.0
      %vm3746 = vcmp.ge.f32.partialorder %v3584, 0.0
      %vm3747 = vcmp.ge.f32.partialorder %v3589, 0.0
      %vm3748 = vcmp.ge.f32.partialorder %v3592, 0.0
      %vm3749 = vcmp.ge.f32.partialorder %v3597, 0.0
      %vm3750 = vcmp.ge.f32.partialorder %v3600, 0.0
      %vm3751 = vcmp.ge.f32.partialorder %v3605, 0.0
      %vm3752 = vcmp.ge.f32.partialorder %v3608, 0.0
      %vm3753 = vcmp.ge.f32.partialorder %v3613, 0.0
      %vm3754 = vcmp.ge.f32.partialorder %v3616, 0.0
      %vm3755 = vcmp.ge.f32.partialorder %v3621, 0.0
      %vm3756 = vcmp.ge.f32.partialorder %v3624, 0.0
      %vm3757 = vcmp.ge.f32.partialorder %v3629, 0.0
      %vm3758 = vcmp.ge.f32.partialorder %v3632, 0.0
      %vm3759 = vcmp.ge.f32.partialorder %v3637, 0.0
      %vm3760 = vcmp.ge.f32.partialorder %v3640, 0.0
      %vm3761 = vcmp.ge.f32.partialorder %v3645, 0.0
      %vm3762 = vcmp.ge.f32.partialorder %v3648, 0.0
      %vm3763 = vcmp.ge.f32.partialorder %v3653, 0.0
      %vm3764 = vcmp.ge.f32.partialorder %v3656, 0.0
      %vm3765 = vcmp.ge.f32.partialorder %v3661, 0.0
      %vm3766 = vcmp.ge.f32.partialorder %v3664, 0.0
      %vm3767 = vcmp.ge.f32.partialorder %v3669, 0.0
      %vm3768 = vcmp.ge.f32.partialorder %v3672, 0.0
      %vm3769 = vcmp.ge.f32.partialorder %v3677, 0.0
      %vm3770 = vcmp.ge.f32.partialorder %v3680, 0.0
      %vm3771 = vcmp.ge.f32.partialorder %v3685, 0.0
      %vm3772 = vcmp.ge.f32.partialorder %v3688, 0.0
      %vm3773 = vcmp.ge.f32.partialorder %v3693, 0.0
      %vm3774 = vcmp.ge.f32.partialorder %v3696, 0.0
      %vm3775 = vcmp.ge.f32.partialorder %v3701, 0.0
      %vm3776 = vcmp.ge.f32.partialorder %v3704, 0.0
      %vm3777 = vcmp.ge.f32.partialorder %v3709, 0.0
      %vm3778 = vcmp.ge.f32.partialorder %v3712, 0.0
      %v3779 = vmul.f32 %v3461, 0.01
      %v3780 = vmul.f32 %v3464, 0.01
      %v3781 = vmul.f32 %v3469, 0.01
      %v3782 = vmul.f32 %v3472, 0.01
      %v3783 = vmul.f32 %v3477, 0.01
      %v3784 = vmul.f32 %v3480, 0.01
      %v3785 = vmul.f32 %v3485, 0.01
      %v3786 = vmul.f32 %v3488, 0.01
      %v3787 = vmul.f32 %v3493, 0.01
      %v3788 = vmul.f32 %v3496, 0.01
      %v3789 = vmul.f32 %v3501, 0.01
      %v3790 = vmul.f32 %v3504, 0.01
      %v3791 = vmul.f32 %v3509, 0.01
      %v3792 = vmul.f32 %v3512, 0.01
      %v3793 = vmul.f32 %v3517, 0.01
      %v3794 = vmul.f32 %v3520, 0.01
      %v3795 = vmul.f32 %v3525, 0.01
      %v3796 = vmul.f32 %v3528, 0.01
      %v3797 = vmul.f32 %v3533, 0.01
      %v3798 = vmul.f32 %v3536, 0.01
      %v3799 = vmul.f32 %v3541, 0.01
      %v3800 = vmul.f32 %v3544, 0.01
      %v3801 = vmul.f32 %v3549, 0.01
      %v3802 = vmul.f32 %v3552, 0.01
      %v3803 = vmul.f32 %v3557, 0.01
      %v3804 = vmul.f32 %v3560, 0.01
      %v3805 = vmul.f32 %v3565, 0.01
      %v3806 = vmul.f32 %v3568, 0.01
      %v3807 = vmul.f32 %v3573, 0.01
      %v3808 = vmul.f32 %v3576, 0.01
      %v3809 = vmul.f32 %v3581, 0.01
      %v3810 = vmul.f32 %v3584, 0.01
      %v3811 = vmul.f32 %v3589, 0.01
      %v3812 = vmul.f32 %v3592, 0.01
      %v3813 = vmul.f32 %v3597, 0.01
      %v3814 = vmul.f32 %v3600, 0.01
      %v3815 = vmul.f32 %v3605, 0.01
      %v3816 = vmul.f32 %v3608, 0.01
      %v3817 = vmul.f32 %v3613, 0.01
      %v3818 = vmul.f32 %v3616, 0.01
      %v3819 = vmul.f32 %v3621, 0.01
      %v3820 = vmul.f32 %v3624, 0.01
      %v3821 = vmul.f32 %v3629, 0.01
      %v3822 = vmul.f32 %v3632, 0.01
      %v3823 = vmul.f32 %v3637, 0.01
      %v3824 = vmul.f32 %v3640, 0.01
      %v3825 = vmul.f32 %v3645, 0.01
      %v3826 = vmul.f32 %v3648, 0.01
      %v3827 = vmul.f32 %v3653, 0.01
      %v3828 = vmul.f32 %v3656, 0.01
      %v3829 = vmul.f32 %v3661, 0.01
      %v3830 = vmul.f32 %v3664, 0.01
      %v3831 = vmul.f32 %v3669, 0.01
      %v3832 = vmul.f32 %v3672, 0.01
      %v3833 = vmul.f32 %v3677, 0.01
      %v3834 = vmul.f32 %v3680, 0.01
      %v3835 = vmul.f32 %v3685, 0.01
      %v3836 = vmul.f32 %v3688, 0.01
      %v3837 = vmul.f32 %v3693, 0.01
      %v3838 = vmul.f32 %v3696, 0.01
      %v3839 = vmul.f32 %v3701, 0.01
      %v3840 = vmul.f32 %v3704, 0.01
      %v3841 = vmul.f32 %v3709, 0.01
      %v3842 = vmul.f32 %v3712, 0.01
      %v3843 = vsel %vm3715, %v3461, %v3779
      %v3844 = vsel %vm3716, %v3464, %v3780
      %v3845 = vsel %vm3717, %v3469, %v3781
      %v3846 = vsel %vm3718, %v3472, %v3782
      %v3847 = vsel %vm3719, %v3477, %v3783
      %v3848 = vsel %vm3720, %v3480, %v3784
      %v3849 = vsel %vm3721, %v3485, %v3785
      %v3850 = vsel %vm3722, %v3488, %v3786
      %v3851 = vsel %vm3723, %v3493, %v3787
      %v3852 = vsel %vm3724, %v3496, %v3788
      %v3853 = vsel %vm3725, %v3501, %v3789
      %v3854 = vsel %vm3726, %v3504, %v3790
      %v3855 = vsel %vm3727, %v3509, %v3791
      %v3856 = vsel %vm3728, %v3512, %v3792
      %v3857 = vsel %vm3729, %v3517, %v3793
      %v3858 = vsel %vm3730, %v3520, %v3794
      %v3859 = vsel %vm3731, %v3525, %v3795
      %v3860 = vsel %vm3732, %v3528, %v3796
      %v3861 = vsel %vm3733, %v3533, %v3797
      %v3862 = vsel %vm3734, %v3536, %v3798
      %v3863 = vsel %vm3735, %v3541, %v3799
      %v3864 = vsel %vm3736, %v3544, %v3800
      %v3865 = vsel %vm3737, %v3549, %v3801
      %v3866 = vsel %vm3738, %v3552, %v3802
      %v3867 = vsel %vm3739, %v3557, %v3803
      %v3868 = vsel %vm3740, %v3560, %v3804
      %v3869 = vsel %vm3741, %v3565, %v3805
      %v3870 = vsel %vm3742, %v3568, %v3806
      %v3871 = vsel %vm3743, %v3573, %v3807
      %v3872 = vsel %vm3744, %v3576, %v3808
      %v3873 = vsel %vm3745, %v3581, %v3809
      %v3874 = vsel %vm3746, %v3584, %v3810
      %v3875 = vsel %vm3747, %v3589, %v3811
      %v3876 = vsel %vm3748, %v3592, %v3812
      %v3877 = vsel %vm3749, %v3597, %v3813
      %v3878 = vsel %vm3750, %v3600, %v3814
      %v3879 = vsel %vm3751, %v3605, %v3815
      %v3880 = vsel %vm3752, %v3608, %v3816
      %v3881 = vsel %vm3753, %v3613, %v3817
      %v3882 = vsel %vm3754, %v3616, %v3818
      %v3883 = vsel %vm3755, %v3621, %v3819
      %v3884 = vsel %vm3756, %v3624, %v3820
      %v3885 = vsel %vm3757, %v3629, %v3821
      %v3886 = vsel %vm3758, %v3632, %v3822
      %v3887 = vsel %vm3759, %v3637, %v3823
      %v3888 = vsel %vm3760, %v3640, %v3824
      %v3889 = vsel %vm3761, %v3645, %v3825
      %v3890 = vsel %vm3762, %v3648, %v3826
      %v3891 = vsel %vm3763, %v3653, %v3827
      %v3892 = vsel %vm3764, %v3656, %v3828
      %v3893 = vsel %vm3765, %v3661, %v3829
      %v3894 = vsel %vm3766, %v3664, %v3830
      %v3895 = vsel %vm3767, %v3669, %v3831
      %v3896 = vsel %vm3768, %v3672, %v3832
      %v3897 = vsel %vm3769, %v3677, %v3833
      %v3898 = vsel %vm3770, %v3680, %v3834
      %v3899 = vsel %vm3771, %v3685, %v3835
      %v3900 = vsel %vm3772, %v3688, %v3836
      %v3901 = vsel %vm3773, %v3693, %v3837
      %v3902 = vsel %vm3774, %v3696, %v3838
      %v3903 = vsel %vm3775, %v3701, %v3839
      %v3904 = vsel %vm3776, %v3704, %v3840
      %v3905 = vsel %vm3777, %v3709, %v3841
      %v3906 = vsel %vm3778, %v3712, %v3842
      %v3907 = vld [vmem:[%s9] sm:$0xff]
      %v3908 = vld [vmem:[%s9 + $0x8] sm:$0xff]
      %v3909 = vld [vmem:[%s9 + $0x10] sm:$0xff]
      %v3910 = vld [vmem:[%s9 + $0x18] sm:$0xff]
      %v3911 = vld [vmem:[%s9 + $0x20] sm:$0xff]
      %v3912 = vld [vmem:[%s9 + $0x28] sm:$0xff]
      %v3913 = vld [vmem:[%s9 + $0x30] sm:$0xff]
      %v3914 = vld [vmem:[%s9 + $0x38] sm:$0xff]
      %v3915 = vld [vmem:[%s9 + $0x40] sm:$0xff]
      %v3916 = vld [vmem:[%s9 + $0x48] sm:$0xff]
      %v3917 = vld [vmem:[%s9 + $0x50] sm:$0xff]
      %v3918 = vld [vmem:[%s9 + $0x58] sm:$0xff]
      %v3919 = vld [vmem:[%s9 + $0x60] sm:$0xff]
      %v3920 = vld [vmem:[%s9 + $0x68] sm:$0xff]
      %v3921 = vld [vmem:[%s9 + $0x70] sm:$0xff]
      %v3922 = vld [vmem:[%s9 + $0x78] sm:$0xff]
      %v3923 = vpack.c.bf16 %v3844, %v3843
      %v3924 = vpack.c.bf16 %v3846, %v3845
      %v3925 = vpack.c.bf16 %v3848, %v3847
      %v3926 = vpack.c.bf16 %v3850, %v3849
      %v3927 = vpack.c.bf16 %v3852, %v3851
      %v3928 = vpack.c.bf16 %v3854, %v3853
      %v3929 = vpack.c.bf16 %v3856, %v3855
      %v3930 = vpack.c.bf16 %v3858, %v3857
      %v3931 = vpack.c.bf16 %v3860, %v3859
      %v3932 = vpack.c.bf16 %v3862, %v3861
      %v3933 = vpack.c.bf16 %v3864, %v3863
      %v3934 = vpack.c.bf16 %v3866, %v3865
      %v3935 = vpack.c.bf16 %v3868, %v3867
      %v3936 = vpack.c.bf16 %v3870, %v3869
      %v3937 = vpack.c.bf16 %v3872, %v3871
      %v3938 = vpack.c.bf16 %v3874, %v3873
      %v3939 = vpack.c.bf16 %v3876, %v3875
      %v3940 = vpack.c.bf16 %v3878, %v3877
      %v3941 = vpack.c.bf16 %v3880, %v3879
      %v3942 = vpack.c.bf16 %v3882, %v3881
      %v3943 = vpack.c.bf16 %v3884, %v3883
      %v3944 = vpack.c.bf16 %v3886, %v3885
      %v3945 = vpack.c.bf16 %v3888, %v3887
      %v3946 = vpack.c.bf16 %v3890, %v3889
      %v3947 = vpack.c.bf16 %v3892, %v3891
      %v3948 = vpack.c.bf16 %v3894, %v3893
      %v3949 = vpack.c.bf16 %v3896, %v3895
      %v3950 = vpack.c.bf16 %v3898, %v3897
      %v3951 = vpack.c.bf16 %v3900, %v3899
      %v3952 = vpack.c.bf16 %v3902, %v3901
      %v3953 = vpack.c.bf16 %v3904, %v3903
      %v3954 = vpack.c.bf16 %v3906, %v3905
      %v3955 = vld [vmem:[%s10] sm:$0x3]
      %v3957 = vlaneseq
      %v3958 = vshrl.u32 %v3957, 7
      %v3959 = vsub.s32 0, %v3958
      %v3960 = vrot.slane %v3955, %v3959
      %v3961 = vlaneseq
      %v3962 = vshrl.u32 %v3961, 7
      %v3963 = vsub.s32 1, %v3962
      %v3964 = vrot.slane %v3955, %v3963
      %v3983 = vunpack.c.l.b16 %v3907
      %v3984 = vunpack.c.h.b16 %v3907
      %v3985 = vunpack.c.l.b16 %v3908
      %v3986 = vunpack.c.h.b16 %v3908
      %v3987 = vunpack.c.l.b16 %v3909
      %v3988 = vunpack.c.h.b16 %v3909
      %v3989 = vunpack.c.l.b16 %v3910
      %v3990 = vunpack.c.h.b16 %v3910
      %v3991 = vunpack.c.l.b16 %v3911
      %v3992 = vunpack.c.h.b16 %v3911
      %v3993 = vunpack.c.l.b16 %v3912
      %v3994 = vunpack.c.h.b16 %v3912
      %v3995 = vunpack.c.l.b16 %v3913
      %v3996 = vunpack.c.h.b16 %v3913
      %v3997 = vunpack.c.l.b16 %v3914
      %v3998 = vunpack.c.h.b16 %v3914
      %v3999 = vunpack.c.l.b16 %v3915
      %v4000 = vunpack.c.h.b16 %v3915
      %v4001 = vunpack.c.l.b16 %v3916
      %v4002 = vunpack.c.h.b16 %v3916
      %v4003 = vunpack.c.l.b16 %v3917
      %v4004 = vunpack.c.h.b16 %v3917
      %v4005 = vunpack.c.l.b16 %v3918
      %v4006 = vunpack.c.h.b16 %v3918
      %v4007 = vunpack.c.l.b16 %v3919
      %v4008 = vunpack.c.h.b16 %v3919
      %v4009 = vunpack.c.l.b16 %v3920
      %v4010 = vunpack.c.h.b16 %v3920
      %v4011 = vunpack.c.l.b16 %v3921
      %v4012 = vunpack.c.h.b16 %v3921
      %v4013 = vunpack.c.l.b16 %v3922
      %v4014 = vunpack.c.h.b16 %v3922
      %v4015 = vpack.c.b16 %v3985, %v3983
      %v4016 = vpack.c.b16 %v3986, %v3984
      %v4017 = vpack.c.b16 %v3989, %v3987
      %v4018 = vpack.c.b16 %v3990, %v3988
      %v4019 = vpack.c.b16 %v3993, %v3991
      %v4020 = vpack.c.b16 %v3994, %v3992
      %v4021 = vpack.c.b16 %v3997, %v3995
      %v4022 = vpack.c.b16 %v3998, %v3996
      %v4023 = vpack.c.b16 %v4001, %v3999
      %v4024 = vpack.c.b16 %v4002, %v4000
      %v4025 = vpack.c.b16 %v4005, %v4003
      %v4026 = vpack.c.b16 %v4006, %v4004
      %v4027 = vpack.c.b16 %v4009, %v4007
      %v4028 = vpack.c.b16 %v4010, %v4008
      %v4029 = vpack.c.b16 %v4013, %v4011
      %v4030 = vpack.c.b16 %v4014, %v4012
      %4047 = vmatprep.subr.bf16.mxu0 %v4016
      %4048 = vmatpush1.bf16.msra.mxu0 %v4015
      %4049 = vmatprep.subr.bf16.mxu0 %v4018
      %4050 = vmatpush1.bf16.msra.mxu0 %v4017
      %4051 = vmatprep.subr.bf16.mxu0 %v4020
      %4052 = vmatpush1.bf16.msra.mxu0 %v4019
      %4053 = vmatprep.subr.bf16.mxu0 %v4022
      %4054 = vmatpush1.bf16.msra.mxu0 %v4021
      %4055 = vmatprep.subr.bf16.mxu0 %v4024
      %4056 = vmatpush1.bf16.msra.mxu0 %v4023
      %4057 = vmatprep.subr.bf16.mxu0 %v4026
      %4058 = vmatpush1.bf16.msra.mxu0 %v4025
      %4059 = vmatprep.subr.bf16.mxu0 %v4028
      %4060 = vmatpush1.bf16.msra.mxu0 %v4027
      %4061 = vmatprep.subr.bf16.mxu0 %v4030
      %4062 = vmatpush1.bf16.msra.mxu0 %v4029
      %4063 = vmatprep.subr.bf16.mxu0 0
      %4064 = vmatpush1.bf16.msra.mxu0 0
      %4065 = vmatprep.subr.bf16.mxu0 0
      %4066 = vmatpush1.bf16.msra.mxu0 0
      %4067 = vmatprep.subr.bf16.mxu0 0
      %4068 = vmatpush1.bf16.msra.mxu0 0
      %4069 = vmatprep.subr.bf16.mxu0 0
      %4070 = vmatpush1.bf16.msra.mxu0 0
      %4071 = vmatprep.subr.bf16.mxu0 0
      %4072 = vmatpush1.bf16.msra.mxu0 0
      %4073 = vmatprep.subr.bf16.mxu0 0
      %4074 = vmatpush1.bf16.msra.mxu0 0
      %4075 = vmatprep.subr.bf16.mxu0 0
      %4076 = vmatpush1.bf16.msra.mxu0 0
      %4077 = vmatprep.subr.bf16.mxu0 0
      %4078 = vmatpush1.bf16.msra.mxu0 0
      %4079 = vmatprep.mubr.bf16.mxu0 0
      %4080 = vmatmul.mubr.bf16.gmra.mrb[0].mxu0 %v3923
      %v4081 = vpop.f32.mrb[0].mxu0
      %v4082 = vadd.f32 %v3960, %v4081
      %v4083 = vpop.f32.mrb[0].mxu0
      %v4084 = vadd.f32 %v3964, %v4083
      %v4085 = vpop.f32.mrb[0].mxu0
      %v4086 = vadd.f32 %v3960, %v4085
      %v4087 = vpop.f32.mrb[0].mxu0
      %v4088 = vadd.f32 %v3964, %v4087
      %4089 = vmatprep.mubr.bf16.mxu0 0
      %4090 = vmatmul.mubr.bf16.gmra.mrb[0].mxu0 %v3924
      %v4091 = vpop.f32.mrb[0].mxu0
      %v4092 = vadd.f32 %v3960, %v4091
      %v4093 = vpop.f32.mrb[0].mxu0
      %v4094 = vadd.f32 %v3964, %v4093
      %v4095 = vpop.f32.mrb[0].mxu0
      %v4096 = vadd.f32 %v3960, %v4095
      %v4097 = vpop.f32.mrb[0].mxu0
      %v4098 = vadd.f32 %v3964, %v4097
      %4099 = vmatprep.mubr.bf16.mxu0 0
      %4100 = vmatmul.mubr.bf16.gmra.mrb[0].mxu0 %v3925
      %v4101 = vpop.f32.mrb[0].mxu0
      %v4102 = vadd.f32 %v3960, %v4101
      %v4103 = vpop.f32.mrb[0].mxu0
      %v4104 = vadd.f32 %v3964, %v4103
      %v4105 = vpop.f32.mrb[0].mxu0
      %v4106 = vadd.f32 %v3960, %v4105
      %v4107 = vpop.f32.mrb[0].mxu0
      %v4108 = vadd.f32 %v3964, %v4107
      %4109 = vmatprep.mubr.bf16.mxu0 0
      %4110 = vmatmul.mubr.bf16.gmra.mrb[0].mxu0 %v3926
      %v4111 = vpop.f32.mrb[0].mxu0
      %v4112 = vadd.f32 %v3960, %v4111
      %v4113 = vpop.f32.mrb[0].mxu0
      %v4114 = vadd.f32 %v3964, %v4113
      %v4115 = vpop.f32.mrb[0].mxu0
      %v4116 = vadd.f32 %v3960, %v4115
      %v4117 = vpop.f32.mrb[0].mxu0
      %v4118 = vadd.f32 %v3964, %v4117
      %4119 = vmatprep.mubr.bf16.mxu0 0
      %4120 = vmatmul.mubr.bf16.gmra.mrb[0].mxu0 %v3927
      %v4121 = vpop.f32.mrb[0].mxu0
      %v4122 = vadd.f32 %v3960, %v4121
      %v4123 = vpop.f32.mrb[0].mxu0
      %v4124 = vadd.f32 %v3964, %v4123
      %v4125 = vpop.f32.mrb[0].mxu0
      %v4126 = vadd.f32 %v3960, %v4125
      %v4127 = vpop.f32.mrb[0].mxu0
      %v4128 = vadd.f32 %v3964, %v4127
      %4129 = vmatprep.mubr.bf16.mxu0 0
      %4130 = vmatmul.mubr.bf16.gmra.mrb[0].mxu0 %v3928
      %v4131 = vpop.f32.mrb[0].mxu0
      %v4132 = vadd.f32 %v3960, %v4131
      %v4133 = vpop.f32.mrb[0].mxu0
      %v4134 = vadd.f32 %v3964, %v4133
      %v4135 = vpop.f32.mrb[0].mxu0
      %v4136 = vadd.f32 %v3960, %v4135
      %v4137 = vpop.f32.mrb[0].mxu0
      %v4138 = vadd.f32 %v3964, %v4137
      %4139 = vmatprep.mubr.bf16.mxu0 0
      %4140 = vmatmul.mubr.bf16.gmra.mrb[0].mxu0 %v3929
      %v4141 = vpop.f32.mrb[0].mxu0
      %v4142 = vadd.f32 %v3960, %v4141
      %v4143 = vpop.f32.mrb[0].mxu0
      %v4144 = vadd.f32 %v3964, %v4143
      %v4145 = vpop.f32.mrb[0].mxu0
      %v4146 = vadd.f32 %v3960, %v4145
      %v4147 = vpop.f32.mrb[0].mxu0
      %v4148 = vadd.f32 %v3964, %v4147
      %4149 = vmatprep.mubr.bf16.mxu0 0
      %4150 = vmatmul.mubr.bf16.gmra.mrb[0].mxu0 %v3930
      %v4151 = vpop.f32.mrb[0].mxu0
      %v4152 = vadd.f32 %v3960, %v4151
      %v4153 = vpop.f32.mrb[0].mxu0
      %v4154 = vadd.f32 %v3964, %v4153
      %v4155 = vpop.f32.mrb[0].mxu0
      %v4156 = vadd.f32 %v3960, %v4155
      %v4157 = vpop.f32.mrb[0].mxu0
      %v4158 = vadd.f32 %v3964, %v4157
      %4159 = vmatprep.mubr.bf16.mxu0 0
      %4160 = vmatmul.mubr.bf16.gmra.mrb[0].mxu0 %v3931
      %v4161 = vpop.f32.mrb[0].mxu0
      %v4162 = vadd.f32 %v3960, %v4161
      %v4163 = vpop.f32.mrb[0].mxu0
      %v4164 = vadd.f32 %v3964, %v4163
      %v4165 = vpop.f32.mrb[0].mxu0
      %v4166 = vadd.f32 %v3960, %v4165
      %v4167 = vpop.f32.mrb[0].mxu0
      %v4168 = vadd.f32 %v3964, %v4167
      %4169 = vmatprep.mubr.bf16.mxu0 0
      %4170 = vmatmul.mubr.bf16.gmra.mrb[0].mxu0 %v3932
      %v4171 = vpop.f32.mrb[0].mxu0
      %v4172 = vadd.f32 %v3960, %v4171
      %v4173 = vpop.f32.mrb[0].mxu0
      %v4174 = vadd.f32 %v3964, %v4173
      %v4175 = vpop.f32.mrb[0].mxu0
      %v4176 = vadd.f32 %v3960, %v4175
      %v4177 = vpop.f32.mrb[0].mxu0
      %v4178 = vadd.f32 %v3964, %v4177
      %4179 = vmatprep.mubr.bf16.mxu0 0
      %4180 = vmatmul.mubr.bf16.gmra.mrb[0].mxu0 %v3933
      %v4181 = vpop.f32.mrb[0].mxu0
      %v4182 = vadd.f32 %v3960, %v4181
      %v4183 = vpop.f32.mrb[0].mxu0
      %v4184 = vadd.f32 %v3964, %v4183
      %v4185 = vpop.f32.mrb[0].mxu0
      %v4186 = vadd.f32 %v3960, %v4185
      %v4187 = vpop.f32.mrb[0].mxu0
      %v4188 = vadd.f32 %v3964, %v4187
      %4189 = vmatprep.mubr.bf16.mxu0 0
      %4190 = vmatmul.mubr.bf16.gmra.mrb[0].mxu0 %v3934
      %v4191 = vpop.f32.mrb[0].mxu0
      %v4192 = vadd.f32 %v3960, %v4191
      %v4193 = vpop.f32.mrb[0].mxu0
      %v4194 = vadd.f32 %v3964, %v4193
      %v4195 = vpop.f32.mrb[0].mxu0
      %v4196 = vadd.f32 %v3960, %v4195
      %v4197 = vpop.f32.mrb[0].mxu0
      %v4198 = vadd.f32 %v3964, %v4197
      %4199 = vmatprep.mubr.bf16.mxu0 0
      %4200 = vmatmul.mubr.bf16.gmra.mrb[0].mxu0 %v3935
      %v4201 = vpop.f32.mrb[0].mxu0
      %v4202 = vadd.f32 %v3960, %v4201
      %v4203 = vpop.f32.mrb[0].mxu0
      %v4204 = vadd.f32 %v3964, %v4203
      %v4205 = vpop.f32.mrb[0].mxu0
      %v4206 = vadd.f32 %v3960, %v4205
      %v4207 = vpop.f32.mrb[0].mxu0
      %v4208 = vadd.f32 %v3964, %v4207
      %4209 = vmatprep.mubr.bf16.mxu0 0
      %4210 = vmatmul.mubr.bf16.gmra.mrb[0].mxu0 %v3936
      %v4211 = vpop.f32.mrb[0].mxu0
      %v4212 = vadd.f32 %v3960, %v4211
      %v4213 = vpop.f32.mrb[0].mxu0
      %v4214 = vadd.f32 %v3964, %v4213
      %v4215 = vpop.f32.mrb[0].mxu0
      %v4216 = vadd.f32 %v3960, %v4215
      %v4217 = vpop.f32.mrb[0].mxu0
      %v4218 = vadd.f32 %v3964, %v4217
      %4219 = vmatprep.mubr.bf16.mxu0 0
      %4220 = vmatmul.mubr.bf16.gmra.mrb[0].mxu0 %v3937
      %v4221 = vpop.f32.mrb[0].mxu0
      %v4222 = vadd.f32 %v3960, %v4221
      %v4223 = vpop.f32.mrb[0].mxu0
      %v4224 = vadd.f32 %v3964, %v4223
      %v4225 = vpop.f32.mrb[0].mxu0
      %v4226 = vadd.f32 %v3960, %v4225
      %v4227 = vpop.f32.mrb[0].mxu0
      %v4228 = vadd.f32 %v3964, %v4227
      %4229 = vmatprep.mubr.bf16.mxu0 0
      %4230 = vmatmul.mubr.bf16.gmra.mrb[0].mxu0 %v3938
      %v4231 = vpop.f32.mrb[0].mxu0
      %v4232 = vadd.f32 %v3960, %v4231
      %v4233 = vpop.f32.mrb[0].mxu0
      %v4234 = vadd.f32 %v3964, %v4233
      %v4235 = vpop.f32.mrb[0].mxu0
      %v4236 = vadd.f32 %v3960, %v4235
      %v4237 = vpop.f32.mrb[0].mxu0
      %v4238 = vadd.f32 %v3964, %v4237
      %4239 = vmatprep.mubr.bf16.mxu0 0
      %4240 = vmatmul.mubr.bf16.gmra.mrb[0].mxu0 %v3939
      %v4241 = vpop.f32.mrb[0].mxu0
      %v4242 = vadd.f32 %v3960, %v4241
      %v4243 = vpop.f32.mrb[0].mxu0
      %v4244 = vadd.f32 %v3964, %v4243
      %v4245 = vpop.f32.mrb[0].mxu0
      %v4246 = vadd.f32 %v3960, %v4245
      %v4247 = vpop.f32.mrb[0].mxu0
      %v4248 = vadd.f32 %v3964, %v4247
      %4249 = vmatprep.mubr.bf16.mxu0 0
      %4250 = vmatmul.mubr.bf16.gmra.mrb[0].mxu0 %v3940
      %v4251 = vpop.f32.mrb[0].mxu0
      %v4252 = vadd.f32 %v3960, %v4251
      %v4253 = vpop.f32.mrb[0].mxu0
      %v4254 = vadd.f32 %v3964, %v4253
      %v4255 = vpop.f32.mrb[0].mxu0
      %v4256 = vadd.f32 %v3960, %v4255
      %v4257 = vpop.f32.mrb[0].mxu0
      %v4258 = vadd.f32 %v3964, %v4257
      %4259 = vmatprep.mubr.bf16.mxu0 0
      %4260 = vmatmul.mubr.bf16.gmra.mrb[0].mxu0 %v3941
      %v4261 = vpop.f32.mrb[0].mxu0
      %v4262 = vadd.f32 %v3960, %v4261
      %v4263 = vpop.f32.mrb[0].mxu0
      %v4264 = vadd.f32 %v3964, %v4263
      %v4265 = vpop.f32.mrb[0].mxu0
      %v4266 = vadd.f32 %v3960, %v4265
      %v4267 = vpop.f32.mrb[0].mxu0
      %v4268 = vadd.f32 %v3964, %v4267
      %4269 = vmatprep.mubr.bf16.mxu0 0
      %4270 = vmatmul.mubr.bf16.gmra.mrb[0].mxu0 %v3942
      %v4271 = vpop.f32.mrb[0].mxu0
      %v4272 = vadd.f32 %v3960, %v4271
      %v4273 = vpop.f32.mrb[0].mxu0
      %v4274 = vadd.f32 %v3964, %v4273
      %v4275 = vpop.f32.mrb[0].mxu0
      %v4276 = vadd.f32 %v3960, %v4275
      %v4277 = vpop.f32.mrb[0].mxu0
      %v4278 = vadd.f32 %v3964, %v4277
      %4279 = vmatprep.mubr.bf16.mxu0 0
      %4280 = vmatmul.mubr.bf16.gmra.mrb[0].mxu0 %v3943
      %v4281 = vpop.f32.mrb[0].mxu0
      %v4282 = vadd.f32 %v3960, %v4281
      %v4283 = vpop.f32.mrb[0].mxu0
      %v4284 = vadd.f32 %v3964, %v4283
      %v4285 = vpop.f32.mrb[0].mxu0
      %v4286 = vadd.f32 %v3960, %v4285
      %v4287 = vpop.f32.mrb[0].mxu0
      %v4288 = vadd.f32 %v3964, %v4287
      %4289 = vmatprep.mubr.bf16.mxu0 0
      %4290 = vmatmul.mubr.bf16.gmra.mrb[0].mxu0 %v3944
      %v4291 = vpop.f32.mrb[0].mxu0
      %v4292 = vadd.f32 %v3960, %v4291
      %v4293 = vpop.f32.mrb[0].mxu0
      %v4294 = vadd.f32 %v3964, %v4293
      %v4295 = vpop.f32.mrb[0].mxu0
      %v4296 = vadd.f32 %v3960, %v4295
      %v4297 = vpop.f32.mrb[0].mxu0
      %v4298 = vadd.f32 %v3964, %v4297
      %4299 = vmatprep.mubr.bf16.mxu0 0
      %4300 = vmatmul.mubr.bf16.gmra.mrb[0].mxu0 %v3945
      %v4301 = vpop.f32.mrb[0].mxu0
      %v4302 = vadd.f32 %v3960, %v4301
      %v4303 = vpop.f32.mrb[0].mxu0
      %v4304 = vadd.f32 %v3964, %v4303
      %v4305 = vpop.f32.mrb[0].mxu0
      %v4306 = vadd.f32 %v3960, %v4305
      %v4307 = vpop.f32.mrb[0].mxu0
      %v4308 = vadd.f32 %v3964, %v4307
      %4309 = vmatprep.mubr.bf16.mxu0 0
      %4310 = vmatmul.mubr.bf16.gmra.mrb[0].mxu0 %v3946
      %v4311 = vpop.f32.mrb[0].mxu0
      %v4312 = vadd.f32 %v3960, %v4311
      %v4313 = vpop.f32.mrb[0].mxu0
      %v4314 = vadd.f32 %v3964, %v4313
      %v4315 = vpop.f32.mrb[0].mxu0
      %v4316 = vadd.f32 %v3960, %v4315
      %v4317 = vpop.f32.mrb[0].mxu0
      %v4318 = vadd.f32 %v3964, %v4317
      %4319 = vmatprep.mubr.bf16.mxu0 0
      %4320 = vmatmul.mubr.bf16.gmra.mrb[0].mxu0 %v3947
      %v4321 = vpop.f32.mrb[0].mxu0
      %v4322 = vadd.f32 %v3960, %v4321
      %v4323 = vpop.f32.mrb[0].mxu0
      %v4324 = vadd.f32 %v3964, %v4323
      %v4325 = vpop.f32.mrb[0].mxu0
      %v4326 = vadd.f32 %v3960, %v4325
      %v4327 = vpop.f32.mrb[0].mxu0
      %v4328 = vadd.f32 %v3964, %v4327
      %4329 = vmatprep.mubr.bf16.mxu0 0
      %4330 = vmatmul.mubr.bf16.gmra.mrb[0].mxu0 %v3948
      %v4331 = vpop.f32.mrb[0].mxu0
      %v4332 = vadd.f32 %v3960, %v4331
      %v4333 = vpop.f32.mrb[0].mxu0
      %v4334 = vadd.f32 %v3964, %v4333
      %v4335 = vpop.f32.mrb[0].mxu0
      %v4336 = vadd.f32 %v3960, %v4335
      %v4337 = vpop.f32.mrb[0].mxu0
      %v4338 = vadd.f32 %v3964, %v4337
      %4339 = vmatprep.mubr.bf16.mxu0 0
      %4340 = vmatmul.mubr.bf16.gmra.mrb[0].mxu0 %v3949
      %v4341 = vpop.f32.mrb[0].mxu0
      %v4342 = vadd.f32 %v3960, %v4341
      %v4343 = vpop.f32.mrb[0].mxu0
      %v4344 = vadd.f32 %v3964, %v4343
      %v4345 = vpop.f32.mrb[0].mxu0
      %v4346 = vadd.f32 %v3960, %v4345
      %v4347 = vpop.f32.mrb[0].mxu0
      %v4348 = vadd.f32 %v3964, %v4347
      %4349 = vmatprep.mubr.bf16.mxu0 0
      %4350 = vmatmul.mubr.bf16.gmra.mrb[0].mxu0 %v3950
      %v4351 = vpop.f32.mrb[0].mxu0
      %v4352 = vadd.f32 %v3960, %v4351
      %v4353 = vpop.f32.mrb[0].mxu0
      %v4354 = vadd.f32 %v3964, %v4353
      %v4355 = vpop.f32.mrb[0].mxu0
      %v4356 = vadd.f32 %v3960, %v4355
      %v4357 = vpop.f32.mrb[0].mxu0
      %v4358 = vadd.f32 %v3964, %v4357
      %4359 = vmatprep.mubr.bf16.mxu0 0
      %4360 = vmatmul.mubr.bf16.gmra.mrb[0].mxu0 %v3951
      %v4361 = vpop.f32.mrb[0].mxu0
      %v4362 = vadd.f32 %v3960, %v4361
      %v4363 = vpop.f32.mrb[0].mxu0
      %v4364 = vadd.f32 %v3964, %v4363
      %v4365 = vpop.f32.mrb[0].mxu0
      %v4366 = vadd.f32 %v3960, %v4365
      %v4367 = vpop.f32.mrb[0].mxu0
      %v4368 = vadd.f32 %v3964, %v4367
      %4369 = vmatprep.mubr.bf16.mxu0 0
      %4370 = vmatmul.mubr.bf16.gmra.mrb[0].mxu0 %v3952
      %v4371 = vpop.f32.mrb[0].mxu0
      %v4372 = vadd.f32 %v3960, %v4371
      %v4373 = vpop.f32.mrb[0].mxu0
      %v4374 = vadd.f32 %v3964, %v4373
      %v4375 = vpop.f32.mrb[0].mxu0
      %v4376 = vadd.f32 %v3960, %v4375
      %v4377 = vpop.f32.mrb[0].mxu0
      %v4378 = vadd.f32 %v3964, %v4377
      %4379 = vmatprep.mubr.bf16.mxu0 0
      %4380 = vmatmul.mubr.bf16.gmra.mrb[0].mxu0 %v3953
      %v4381 = vpop.f32.mrb[0].mxu0
      %v4382 = vadd.f32 %v3960, %v4381
      %v4383 = vpop.f32.mrb[0].mxu0
      %v4384 = vadd.f32 %v3964, %v4383
      %v4385 = vpop.f32.mrb[0].mxu0
      %v4386 = vadd.f32 %v3960, %v4385
      %v4387 = vpop.f32.mrb[0].mxu0
      %v4388 = vadd.f32 %v3964, %v4387
      %4389 = vmatprep.mubr.bf16.mxu0 0
      %4390 = vmatmul.mubr.bf16.gmra.mrb[0].mxu0 %v3954
      %v4391 = vpop.f32.mrb[0].mxu0
      %v4392 = vadd.f32 %v3960, %v4391
      %v4393 = vpop.f32.mrb[0].mxu0
      %v4394 = vadd.f32 %v3964, %v4393
      %v4395 = vpop.f32.mrb[0].mxu0
      %v4396 = vadd.f32 %v3960, %v4395
      %v4397 = vpop.f32.mrb[0].mxu0
      %v4398 = vadd.f32 %v3964, %v4397
      %4399 = vdwg.mxu0
      %vm4400 = vcmp.ge.f32.partialorder %v4082, 0.0
      %vm4401 = vcmp.ge.f32.partialorder %v4084, 0.0
      %vm4402 = vcmp.ge.f32.partialorder %v4086, 0.0
      %vm4403 = vcmp.ge.f32.partialorder %v4088, 0.0
      %vm4404 = vcmp.ge.f32.partialorder %v4092, 0.0
      %vm4405 = vcmp.ge.f32.partialorder %v4094, 0.0
      %vm4406 = vcmp.ge.f32.partialorder %v4096, 0.0
      %vm4407 = vcmp.ge.f32.partialorder %v4098, 0.0
      %vm4408 = vcmp.ge.f32.partialorder %v4102, 0.0
      %vm4409 = vcmp.ge.f32.partialorder %v4104, 0.0
      %vm4410 = vcmp.ge.f32.partialorder %v4106, 0.0
      %vm4411 = vcmp.ge.f32.partialorder %v4108, 0.0
      %vm4412 = vcmp.ge.f32.partialorder %v4112, 0.0
      %vm4413 = vcmp.ge.f32.partialorder %v4114, 0.0
      %vm4414 = vcmp.ge.f32.partialorder %v4116, 0.0
      %vm4415 = vcmp.ge.f32.partialorder %v4118, 0.0
      %vm4416 = vcmp.ge.f32.partialorder %v4122, 0.0
      %vm4417 = vcmp.ge.f32.partialorder %v4124, 0.0
      %vm4418 = vcmp.ge.f32.partialorder %v4126, 0.0
      %vm4419 = vcmp.ge.f32.partialorder %v4128, 0.0
      %vm4420 = vcmp.ge.f32.partialorder %v4132, 0.0
      %vm4421 = vcmp.ge.f32.partialorder %v4134, 0.0
      %vm4422 = vcmp.ge.f32.partialorder %v4136, 0.0
      %vm4423 = vcmp.ge.f32.partialorder %v4138, 0.0
      %vm4424 = vcmp.ge.f32.partialorder %v4142, 0.0
      %vm4425 = vcmp.ge.f32.partialorder %v4144, 0.0
      %vm4426 = vcmp.ge.f32.partialorder %v4146, 0.0
      %vm4427 = vcmp.ge.f32.partialorder %v4148, 0.0
      %vm4428 = vcmp.ge.f32.partialorder %v4152, 0.0
      %vm4429 = vcmp.ge.f32.partialorder %v4154, 0.0
      %vm4430 = vcmp.ge.f32.partialorder %v4156, 0.0
      %vm4431 = vcmp.ge.f32.partialorder %v4158, 0.0
      %vm4432 = vcmp.ge.f32.partialorder %v4162, 0.0
      %vm4433 = vcmp.ge.f32.partialorder %v4164, 0.0
      %vm4434 = vcmp.ge.f32.partialorder %v4166, 0.0
      %vm4435 = vcmp.ge.f32.partialorder %v4168, 0.0
      %vm4436 = vcmp.ge.f32.partialorder %v4172, 0.0
      %vm4437 = vcmp.ge.f32.partialorder %v4174, 0.0
      %vm4438 = vcmp.ge.f32.partialorder %v4176, 0.0
      %vm4439 = vcmp.ge.f32.partialorder %v4178, 0.0
      %vm4440 = vcmp.ge.f32.partialorder %v4182, 0.0
      %vm4441 = vcmp.ge.f32.partialorder %v4184, 0.0
      %vm4442 = vcmp.ge.f32.partialorder %v4186, 0.0
      %vm4443 = vcmp.ge.f32.partialorder %v4188, 0.0
      %vm4444 = vcmp.ge.f32.partialorder %v4192, 0.0
      %vm4445 = vcmp.ge.f32.partialorder %v4194, 0.0
      %vm4446 = vcmp.ge.f32.partialorder %v4196, 0.0
      %vm4447 = vcmp.ge.f32.partialorder %v4198, 0.0
      %vm4448 = vcmp.ge.f32.partialorder %v4202, 0.0
      %vm4449 = vcmp.ge.f32.partialorder %v4204, 0.0
      %vm4450 = vcmp.ge.f32.partialorder %v4206, 0.0
      %vm4451 = vcmp.ge.f32.partialorder %v4208, 0.0
      %vm4452 = vcmp.ge.f32.partialorder %v4212, 0.0
      %vm4453 = vcmp.ge.f32.partialorder %v4214, 0.0
      %vm4454 = vcmp.ge.f32.partialorder %v4216, 0.0
      %vm4455 = vcmp.ge.f32.partialorder %v4218, 0.0
      %vm4456 = vcmp.ge.f32.partialorder %v4222, 0.0
      %vm4457 = vcmp.ge.f32.partialorder %v4224, 0.0
      %vm4458 = vcmp.ge.f32.partialorder %v4226, 0.0
      %vm4459 = vcmp.ge.f32.partialorder %v4228, 0.0
      %vm4460 = vcmp.ge.f32.partialorder %v4232, 0.0
      %vm4461 = vcmp.ge.f32.partialorder %v4234, 0.0
      %vm4462 = vcmp.ge.f32.partialorder %v4236, 0.0
      %vm4463 = vcmp.ge.f32.partialorder %v4238, 0.0
      %vm4464 = vcmp.ge.f32.partialorder %v4242, 0.0
      %vm4465 = vcmp.ge.f32.partialorder %v4244, 0.0
      %vm4466 = vcmp.ge.f32.partialorder %v4246, 0.0
      %vm4467 = vcmp.ge.f32.partialorder %v4248, 0.0
      %vm4468 = vcmp.ge.f32.partialorder %v4252, 0.0
      %vm4469 = vcmp.ge.f32.partialorder %v4254, 0.0
      %vm4470 = vcmp.ge.f32.partialorder %v4256, 0.0
      %vm4471 = vcmp.ge.f32.partialorder %v4258, 0.0
      %vm4472 = vcmp.ge.f32.partialorder %v4262, 0.0
      %vm4473 = vcmp.ge.f32.partialorder %v4264, 0.0
      %vm4474 = vcmp.ge.f32.partialorder %v4266, 0.0
      %vm4475 = vcmp.ge.f32.partialorder %v4268, 0.0
      %vm4476 = vcmp.ge.f32.partialorder %v4272, 0.0
      %vm4477 = vcmp.ge.f32.partialorder %v4274, 0.0
      %vm4478 = vcmp.ge.f32.partialorder %v4276, 0.0
      %vm4479 = vcmp.ge.f32.partialorder %v4278, 0.0
      %vm4480 = vcmp.ge.f32.partialorder %v4282, 0.0
      %vm4481 = vcmp.ge.f32.partialorder %v4284, 0.0
      %vm4482 = vcmp.ge.f32.partialorder %v4286, 0.0
      %vm4483 = vcmp.ge.f32.partialorder %v4288, 0.0
      %vm4484 = vcmp.ge.f32.partialorder %v4292, 0.0
      %vm4485 = vcmp.ge.f32.partialorder %v4294, 0.0
      %vm4486 = vcmp.ge.f32.partialorder %v4296, 0.0
      %vm4487 = vcmp.ge.f32.partialorder %v4298, 0.0
      %vm4488 = vcmp.ge.f32.partialorder %v4302, 0.0
      %vm4489 = vcmp.ge.f32.partialorder %v4304, 0.0
      %vm4490 = vcmp.ge.f32.partialorder %v4306, 0.0
      %vm4491 = vcmp.ge.f32.partialorder %v4308, 0.0
      %vm4492 = vcmp.ge.f32.partialorder %v4312, 0.0
      %vm4493 = vcmp.ge.f32.partialorder %v4314, 0.0
      %vm4494 = vcmp.ge.f32.partialorder %v4316, 0.0
      %vm4495 = vcmp.ge.f32.partialorder %v4318, 0.0
      %vm4496 = vcmp.ge.f32.partialorder %v4322, 0.0
      %vm4497 = vcmp.ge.f32.partialorder %v4324, 0.0
      %vm4498 = vcmp.ge.f32.partialorder %v4326, 0.0
      %vm4499 = vcmp.ge.f32.partialorder %v4328, 0.0
      %vm4500 = vcmp.ge.f32.partialorder %v4332, 0.0
      %vm4501 = vcmp.ge.f32.partialorder %v4334, 0.0
      %vm4502 = vcmp.ge.f32.partialorder %v4336, 0.0
      %vm4503 = vcmp.ge.f32.partialorder %v4338, 0.0
      %vm4504 = vcmp.ge.f32.partialorder %v4342, 0.0
      %vm4505 = vcmp.ge.f32.partialorder %v4344, 0.0
      %vm4506 = vcmp.ge.f32.partialorder %v4346, 0.0
      %vm4507 = vcmp.ge.f32.partialorder %v4348, 0.0
      %vm4508 = vcmp.ge.f32.partialorder %v4352, 0.0
      %vm4509 = vcmp.ge.f32.partialorder %v4354, 0.0
      %vm4510 = vcmp.ge.f32.partialorder %v4356, 0.0
      %vm4511 = vcmp.ge.f32.partialorder %v4358, 0.0
      %vm4512 = vcmp.ge.f32.partialorder %v4362, 0.0
      %vm4513 = vcmp.ge.f32.partialorder %v4364, 0.0
      %vm4514 = vcmp.ge.f32.partialorder %v4366, 0.0
      %vm4515 = vcmp.ge.f32.partialorder %v4368, 0.0
      %vm4516 = vcmp.ge.f32.partialorder %v4372, 0.0
      %vm4517 = vcmp.ge.f32.partialorder %v4374, 0.0
      %vm4518 = vcmp.ge.f32.partialorder %v4376, 0.0
      %vm4519 = vcmp.ge.f32.partialorder %v4378, 0.0
      %vm4520 = vcmp.ge.f32.partialorder %v4382, 0.0
      %vm4521 = vcmp.ge.f32.partialorder %v4384, 0.0
      %vm4522 = vcmp.ge.f32.partialorder %v4386, 0.0
      %vm4523 = vcmp.ge.f32.partialorder %v4388, 0.0
      %vm4524 = vcmp.ge.f32.partialorder %v4392, 0.0
      %vm4525 = vcmp.ge.f32.partialorder %v4394, 0.0
      %vm4526 = vcmp.ge.f32.partialorder %v4396, 0.0
      %vm4527 = vcmp.ge.f32.partialorder %v4398, 0.0
      %v4528 = vmul.f32 %v4082, 0.01
      %v4529 = vmul.f32 %v4084, 0.01
      %v4530 = vmul.f32 %v4086, 0.01
      %v4531 = vmul.f32 %v4088, 0.01
      %v4532 = vmul.f32 %v4092, 0.01
      %v4533 = vmul.f32 %v4094, 0.01
      %v4534 = vmul.f32 %v4096, 0.01
      %v4535 = vmul.f32 %v4098, 0.01
      %v4536 = vmul.f32 %v4102, 0.01
      %v4537 = vmul.f32 %v4104, 0.01
      %v4538 = vmul.f32 %v4106, 0.01
      %v4539 = vmul.f32 %v4108, 0.01
      %v4540 = vmul.f32 %v4112, 0.01
      %v4541 = vmul.f32 %v4114, 0.01
      %v4542 = vmul.f32 %v4116, 0.01
      %v4543 = vmul.f32 %v4118, 0.01
      %v4544 = vmul.f32 %v4122, 0.01
      %v4545 = vmul.f32 %v4124, 0.01
      %v4546 = vmul.f32 %v4126, 0.01
      %v4547 = vmul.f32 %v4128, 0.01
      %v4548 = vmul.f32 %v4132, 0.01
      %v4549 = vmul.f32 %v4134, 0.01
      %v4550 = vmul.f32 %v4136, 0.01
      %v4551 = vmul.f32 %v4138, 0.01
      %v4552 = vmul.f32 %v4142, 0.01
      %v4553 = vmul.f32 %v4144, 0.01
      %v4554 = vmul.f32 %v4146, 0.01
      %v4555 = vmul.f32 %v4148, 0.01
      %v4556 = vmul.f32 %v4152, 0.01
      %v4557 = vmul.f32 %v4154, 0.01
      %v4558 = vmul.f32 %v4156, 0.01
      %v4559 = vmul.f32 %v4158, 0.01
      %v4560 = vmul.f32 %v4162, 0.01
      %v4561 = vmul.f32 %v4164, 0.01
      %v4562 = vmul.f32 %v4166, 0.01
      %v4563 = vmul.f32 %v4168, 0.01
      %v4564 = vmul.f32 %v4172, 0.01
      %v4565 = vmul.f32 %v4174, 0.01
      %v4566 = vmul.f32 %v4176, 0.01
      %v4567 = vmul.f32 %v4178, 0.01
      %v4568 = vmul.f32 %v4182, 0.01
      %v4569 = vmul.f32 %v4184, 0.01
      %v4570 = vmul.f32 %v4186, 0.01
      %v4571 = vmul.f32 %v4188, 0.01
      %v4572 = vmul.f32 %v4192, 0.01
      %v4573 = vmul.f32 %v4194, 0.01
      %v4574 = vmul.f32 %v4196, 0.01
      %v4575 = vmul.f32 %v4198, 0.01
      %v4576 = vmul.f32 %v4202, 0.01
      %v4577 = vmul.f32 %v4204, 0.01
      %v4578 = vmul.f32 %v4206, 0.01
      %v4579 = vmul.f32 %v4208, 0.01
      %v4580 = vmul.f32 %v4212, 0.01
      %v4581 = vmul.f32 %v4214, 0.01
      %v4582 = vmul.f32 %v4216, 0.01
      %v4583 = vmul.f32 %v4218, 0.01
      %v4584 = vmul.f32 %v4222, 0.01
      %v4585 = vmul.f32 %v4224, 0.01
      %v4586 = vmul.f32 %v4226, 0.01
      %v4587 = vmul.f32 %v4228, 0.01
      %v4588 = vmul.f32 %v4232, 0.01
      %v4589 = vmul.f32 %v4234, 0.01
      %v4590 = vmul.f32 %v4236, 0.01
      %v4591 = vmul.f32 %v4238, 0.01
      %v4592 = vmul.f32 %v4242, 0.01
      %v4593 = vmul.f32 %v4244, 0.01
      %v4594 = vmul.f32 %v4246, 0.01
      %v4595 = vmul.f32 %v4248, 0.01
      %v4596 = vmul.f32 %v4252, 0.01
      %v4597 = vmul.f32 %v4254, 0.01
      %v4598 = vmul.f32 %v4256, 0.01
      %v4599 = vmul.f32 %v4258, 0.01
      %v4600 = vmul.f32 %v4262, 0.01
      %v4601 = vmul.f32 %v4264, 0.01
      %v4602 = vmul.f32 %v4266, 0.01
      %v4603 = vmul.f32 %v4268, 0.01
      %v4604 = vmul.f32 %v4272, 0.01
      %v4605 = vmul.f32 %v4274, 0.01
      %v4606 = vmul.f32 %v4276, 0.01
      %v4607 = vmul.f32 %v4278, 0.01
      %v4608 = vmul.f32 %v4282, 0.01
      %v4609 = vmul.f32 %v4284, 0.01
      %v4610 = vmul.f32 %v4286, 0.01
      %v4611 = vmul.f32 %v4288, 0.01
      %v4612 = vmul.f32 %v4292, 0.01
      %v4613 = vmul.f32 %v4294, 0.01
      %v4614 = vmul.f32 %v4296, 0.01
      %v4615 = vmul.f32 %v4298, 0.01
      %v4616 = vmul.f32 %v4302, 0.01
      %v4617 = vmul.f32 %v4304, 0.01
      %v4618 = vmul.f32 %v4306, 0.01
      %v4619 = vmul.f32 %v4308, 0.01
      %v4620 = vmul.f32 %v4312, 0.01
      %v4621 = vmul.f32 %v4314, 0.01
      %v4622 = vmul.f32 %v4316, 0.01
      %v4623 = vmul.f32 %v4318, 0.01
      %v4624 = vmul.f32 %v4322, 0.01
      %v4625 = vmul.f32 %v4324, 0.01
      %v4626 = vmul.f32 %v4326, 0.01
      %v4627 = vmul.f32 %v4328, 0.01
      %v4628 = vmul.f32 %v4332, 0.01
      %v4629 = vmul.f32 %v4334, 0.01
      %v4630 = vmul.f32 %v4336, 0.01
      %v4631 = vmul.f32 %v4338, 0.01
      %v4632 = vmul.f32 %v4342, 0.01
      %v4633 = vmul.f32 %v4344, 0.01
      %v4634 = vmul.f32 %v4346, 0.01
      %v4635 = vmul.f32 %v4348, 0.01
      %v4636 = vmul.f32 %v4352, 0.01
      %v4637 = vmul.f32 %v4354, 0.01
      %v4638 = vmul.f32 %v4356, 0.01
      %v4639 = vmul.f32 %v4358, 0.01
      %v4640 = vmul.f32 %v4362, 0.01
      %v4641 = vmul.f32 %v4364, 0.01
      %v4642 = vmul.f32 %v4366, 0.01
      %v4643 = vmul.f32 %v4368, 0.01
      %v4644 = vmul.f32 %v4372, 0.01
      %v4645 = vmul.f32 %v4374, 0.01
      %v4646 = vmul.f32 %v4376, 0.01
      %v4647 = vmul.f32 %v4378, 0.01
      %v4648 = vmul.f32 %v4382, 0.01
      %v4649 = vmul.f32 %v4384, 0.01
      %v4650 = vmul.f32 %v4386, 0.01
      %v4651 = vmul.f32 %v4388, 0.01
      %v4652 = vmul.f32 %v4392, 0.01
      %v4653 = vmul.f32 %v4394, 0.01
      %v4654 = vmul.f32 %v4396, 0.01
      %v4655 = vmul.f32 %v4398, 0.01
      %v4656 = vsel %vm4400, %v4082, %v4528
      %v4657 = vsel %vm4401, %v4084, %v4529
      %v4658 = vsel %vm4402, %v4086, %v4530
      %v4659 = vsel %vm4403, %v4088, %v4531
      %v4660 = vsel %vm4404, %v4092, %v4532
      %v4661 = vsel %vm4405, %v4094, %v4533
      %v4662 = vsel %vm4406, %v4096, %v4534
      %v4663 = vsel %vm4407, %v4098, %v4535
      %v4664 = vsel %vm4408, %v4102, %v4536
      %v4665 = vsel %vm4409, %v4104, %v4537
      %v4666 = vsel %vm4410, %v4106, %v4538
      %v4667 = vsel %vm4411, %v4108, %v4539
      %v4668 = vsel %vm4412, %v4112, %v4540
      %v4669 = vsel %vm4413, %v4114, %v4541
      %v4670 = vsel %vm4414, %v4116, %v4542
      %v4671 = vsel %vm4415, %v4118, %v4543
      %v4672 = vsel %vm4416, %v4122, %v4544
      %v4673 = vsel %vm4417, %v4124, %v4545
      %v4674 = vsel %vm4418, %v4126, %v4546
      %v4675 = vsel %vm4419, %v4128, %v4547
      %v4676 = vsel %vm4420, %v4132, %v4548
      %v4677 = vsel %vm4421, %v4134, %v4549
      %v4678 = vsel %vm4422, %v4136, %v4550
      %v4679 = vsel %vm4423, %v4138, %v4551
      %v4680 = vsel %vm4424, %v4142, %v4552
      %v4681 = vsel %vm4425, %v4144, %v4553
      %v4682 = vsel %vm4426, %v4146, %v4554
      %v4683 = vsel %vm4427, %v4148, %v4555
      %v4684 = vsel %vm4428, %v4152, %v4556
      %v4685 = vsel %vm4429, %v4154, %v4557
      %v4686 = vsel %vm4430, %v4156, %v4558
      %v4687 = vsel %vm4431, %v4158, %v4559
      %v4688 = vsel %vm4432, %v4162, %v4560
      %v4689 = vsel %vm4433, %v4164, %v4561
      %v4690 = vsel %vm4434, %v4166, %v4562
      %v4691 = vsel %vm4435, %v4168, %v4563
      %v4692 = vsel %vm4436, %v4172, %v4564
      %v4693 = vsel %vm4437, %v4174, %v4565
      %v4694 = vsel %vm4438, %v4176, %v4566
      %v4695 = vsel %vm4439, %v4178, %v4567
      %v4696 = vsel %vm4440, %v4182, %v4568
      %v4697 = vsel %vm4441, %v4184, %v4569
      %v4698 = vsel %vm4442, %v4186, %v4570
      %v4699 = vsel %vm4443, %v4188, %v4571
      %v4700 = vsel %vm4444, %v4192, %v4572
      %v4701 = vsel %vm4445, %v4194, %v4573
      %v4702 = vsel %vm4446, %v4196, %v4574
      %v4703 = vsel %vm4447, %v4198, %v4575
      %v4704 = vsel %vm4448, %v4202, %v4576
      %v4705 = vsel %vm4449, %v4204, %v4577
      %v4706 = vsel %vm4450, %v4206, %v4578
      %v4707 = vsel %vm4451, %v4208, %v4579
      %v4708 = vsel %vm4452, %v4212, %v4580
      %v4709 = vsel %vm4453, %v4214, %v4581
      %v4710 = vsel %vm4454, %v4216, %v4582
      %v4711 = vsel %vm4455, %v4218, %v4583
      %v4712 = vsel %vm4456, %v4222, %v4584
      %v4713 = vsel %vm4457, %v4224, %v4585
      %v4714 = vsel %vm4458, %v4226, %v4586
      %v4715 = vsel %vm4459, %v4228, %v4587
      %v4716 = vsel %vm4460, %v4232, %v4588
      %v4717 = vsel %vm4461, %v4234, %v4589
      %v4718 = vsel %vm4462, %v4236, %v4590
      %v4719 = vsel %vm4463, %v4238, %v4591
      %v4720 = vsel %vm4464, %v4242, %v4592
      %v4721 = vsel %vm4465, %v4244, %v4593
      %v4722 = vsel %vm4466, %v4246, %v4594
      %v4723 = vsel %vm4467, %v4248, %v4595
      %v4724 = vsel %vm4468, %v4252, %v4596
      %v4725 = vsel %vm4469, %v4254, %v4597
      %v4726 = vsel %vm4470, %v4256, %v4598
      %v4727 = vsel %vm4471, %v4258, %v4599
      %v4728 = vsel %vm4472, %v4262, %v4600
      %v4729 = vsel %vm4473, %v4264, %v4601
      %v4730 = vsel %vm4474, %v4266, %v4602
      %v4731 = vsel %vm4475, %v4268, %v4603
      %v4732 = vsel %vm4476, %v4272, %v4604
      %v4733 = vsel %vm4477, %v4274, %v4605
      %v4734 = vsel %vm4478, %v4276, %v4606
      %v4735 = vsel %vm4479, %v4278, %v4607
      %v4736 = vsel %vm4480, %v4282, %v4608
      %v4737 = vsel %vm4481, %v4284, %v4609
      %v4738 = vsel %vm4482, %v4286, %v4610
      %v4739 = vsel %vm4483, %v4288, %v4611
      %v4740 = vsel %vm4484, %v4292, %v4612
      %v4741 = vsel %vm4485, %v4294, %v4613
      %v4742 = vsel %vm4486, %v4296, %v4614
      %v4743 = vsel %vm4487, %v4298, %v4615
      %v4744 = vsel %vm4488, %v4302, %v4616
      %v4745 = vsel %vm4489, %v4304, %v4617
      %v4746 = vsel %vm4490, %v4306, %v4618
      %v4747 = vsel %vm4491, %v4308, %v4619
      %v4748 = vsel %vm4492, %v4312, %v4620
      %v4749 = vsel %vm4493, %v4314, %v4621
      %v4750 = vsel %vm4494, %v4316, %v4622
      %v4751 = vsel %vm4495, %v4318, %v4623
      %v4752 = vsel %vm4496, %v4322, %v4624
      %v4753 = vsel %vm4497, %v4324, %v4625
      %v4754 = vsel %vm4498, %v4326, %v4626
      %v4755 = vsel %vm4499, %v4328, %v4627
      %v4756 = vsel %vm4500, %v4332, %v4628
      %v4757 = vsel %vm4501, %v4334, %v4629
      %v4758 = vsel %vm4502, %v4336, %v4630
      %v4759 = vsel %vm4503, %v4338, %v4631
      %v4760 = vsel %vm4504, %v4342, %v4632
      %v4761 = vsel %vm4505, %v4344, %v4633
      %v4762 = vsel %vm4506, %v4346, %v4634
      %v4763 = vsel %vm4507, %v4348, %v4635
      %v4764 = vsel %vm4508, %v4352, %v4636
      %v4765 = vsel %vm4509, %v4354, %v4637
      %v4766 = vsel %vm4510, %v4356, %v4638
      %v4767 = vsel %vm4511, %v4358, %v4639
      %v4768 = vsel %vm4512, %v4362, %v4640
      %v4769 = vsel %vm4513, %v4364, %v4641
      %v4770 = vsel %vm4514, %v4366, %v4642
      %v4771 = vsel %vm4515, %v4368, %v4643
      %v4772 = vsel %vm4516, %v4372, %v4644
      %v4773 = vsel %vm4517, %v4374, %v4645
      %v4774 = vsel %vm4518, %v4376, %v4646
      %v4775 = vsel %vm4519, %v4378, %v4647
      %v4776 = vsel %vm4520, %v4382, %v4648
      %v4777 = vsel %vm4521, %v4384, %v4649
      %v4778 = vsel %vm4522, %v4386, %v4650
      %v4779 = vsel %vm4523, %v4388, %v4651
      %v4780 = vsel %vm4524, %v4392, %v4652
      %v4781 = vsel %vm4525, %v4394, %v4653
      %v4782 = vsel %vm4526, %v4396, %v4654
      %v4783 = vsel %vm4527, %v4398, %v4655
      %v4784 = vld [vmem:[%s11] sm:$0xff]
      %v4785 = vld [vmem:[%s11 + $0x8] sm:$0xff]
      %v4786 = vld [vmem:[%s11 + $0x10] sm:$0xff]
      %v4787 = vld [vmem:[%s11 + $0x18] sm:$0xff]
      %v4788 = vld [vmem:[%s11 + $0x20] sm:$0xff]
      %v4789 = vld [vmem:[%s11 + $0x28] sm:$0xff]
      %v4790 = vld [vmem:[%s11 + $0x30] sm:$0xff]
      %v4791 = vld [vmem:[%s11 + $0x38] sm:$0xff]
      %v4792 = vld [vmem:[%s11 + $0x40] sm:$0xff]
      %v4793 = vld [vmem:[%s11 + $0x48] sm:$0xff]
      %v4794 = vld [vmem:[%s11 + $0x50] sm:$0xff]
      %v4795 = vld [vmem:[%s11 + $0x58] sm:$0xff]
      %v4796 = vld [vmem:[%s11 + $0x60] sm:$0xff]
      %v4797 = vld [vmem:[%s11 + $0x68] sm:$0xff]
      %v4798 = vld [vmem:[%s11 + $0x70] sm:$0xff]
      %v4799 = vld [vmem:[%s11 + $0x78] sm:$0xff]
      %v4800 = vld [vmem:[%s11 + $0x80] sm:$0xff]
      %v4801 = vld [vmem:[%s11 + $0x88] sm:$0xff]
      %v4802 = vld [vmem:[%s11 + $0x90] sm:$0xff]
      %v4803 = vld [vmem:[%s11 + $0x98] sm:$0xff]
      %v4804 = vld [vmem:[%s11 + $0xa0] sm:$0xff]
      %v4805 = vld [vmem:[%s11 + $0xa8] sm:$0xff]
      %v4806 = vld [vmem:[%s11 + $0xb0] sm:$0xff]
      %v4807 = vld [vmem:[%s11 + $0xb8] sm:$0xff]
      %v4808 = vld [vmem:[%s11 + $0xc0] sm:$0xff]
      %v4809 = vld [vmem:[%s11 + $0xc8] sm:$0xff]
      %v4810 = vld [vmem:[%s11 + $0xd0] sm:$0xff]
      %v4811 = vld [vmem:[%s11 + $0xd8] sm:$0xff]
      %v4812 = vld [vmem:[%s11 + $0xe0] sm:$0xff]
      %v4813 = vld [vmem:[%s11 + $0xe8] sm:$0xff]
      %v4814 = vld [vmem:[%s11 + $0xf0] sm:$0xff]
      %v4815 = vld [vmem:[%s11 + $0xf8] sm:$0xff]
      %v4816 = vld [vmem:[%s11 + $0x100] sm:$0xff]
      %v4817 = vld [vmem:[%s11 + $0x108] sm:$0xff]
      %v4818 = vld [vmem:[%s11 + $0x110] sm:$0xff]
      %v4819 = vld [vmem:[%s11 + $0x118] sm:$0xff]
      %v4820 = vld [vmem:[%s11 + $0x120] sm:$0xff]
      %v4821 = vld [vmem:[%s11 + $0x128] sm:$0xff]
      %v4822 = vld [vmem:[%s11 + $0x130] sm:$0xff]
      %v4823 = vld [vmem:[%s11 + $0x138] sm:$0xff]
      %v4824 = vld [vmem:[%s11 + $0x140] sm:$0xff]
      %v4825 = vld [vmem:[%s11 + $0x148] sm:$0xff]
      %v4826 = vld [vmem:[%s11 + $0x150] sm:$0xff]
      %v4827 = vld [vmem:[%s11 + $0x158] sm:$0xff]
      %v4828 = vld [vmem:[%s11 + $0x160] sm:$0xff]
      %v4829 = vld [vmem:[%s11 + $0x168] sm:$0xff]
      %v4830 = vld [vmem:[%s11 + $0x170] sm:$0xff]
      %v4831 = vld [vmem:[%s11 + $0x178] sm:$0xff]
      %v4832 = vld [vmem:[%s11 + $0x180] sm:$0xff]
      %v4833 = vld [vmem:[%s11 + $0x188] sm:$0xff]
      %v4834 = vld [vmem:[%s11 + $0x190] sm:$0xff]
      %v4835 = vld [vmem:[%s11 + $0x198] sm:$0xff]
      %v4836 = vld [vmem:[%s11 + $0x1a0] sm:$0xff]
      %v4837 = vld [vmem:[%s11 + $0x1a8] sm:$0xff]
      %v4838 = vld [vmem:[%s11 + $0x1b0] sm:$0xff]
      %v4839 = vld [vmem:[%s11 + $0x1b8] sm:$0xff]
      %v4840 = vld [vmem:[%s11 + $0x1c0] sm:$0xff]
      %v4841 = vld [vmem:[%s11 + $0x1c8] sm:$0xff]
      %v4842 = vld [vmem:[%s11 + $0x1d0] sm:$0xff]
      %v4843 = vld [vmem:[%s11 + $0x1d8] sm:$0xff]
      %v4844 = vld [vmem:[%s11 + $0x1e0] sm:$0xff]
      %v4845 = vld [vmem:[%s11 + $0x1e8] sm:$0xff]
      %v4846 = vld [vmem:[%s11 + $0x1f0] sm:$0xff]
      %v4847 = vld [vmem:[%s11 + $0x1f8] sm:$0xff]
      %v4848 = vpack.c.bf16 %v4658, %v4656
      %v4849 = vpack.c.bf16 %v4659, %v4657
      %v4850 = vpack.c.bf16 %v4662, %v4660
      %v4851 = vpack.c.bf16 %v4663, %v4661
      %v4852 = vpack.c.bf16 %v4666, %v4664
      %v4853 = vpack.c.bf16 %v4667, %v4665
      %v4854 = vpack.c.bf16 %v4670, %v4668
      %v4855 = vpack.c.bf16 %v4671, %v4669
      %v4856 = vpack.c.bf16 %v4674, %v4672
      %v4857 = vpack.c.bf16 %v4675, %v4673
      %v4858 = vpack.c.bf16 %v4678, %v4676
      %v4859 = vpack.c.bf16 %v4679, %v4677
      %v4860 = vpack.c.bf16 %v4682, %v4680
      %v4861 = vpack.c.bf16 %v4683, %v4681
      %v4862 = vpack.c.bf16 %v4686, %v4684
      %v4863 = vpack.c.bf16 %v4687, %v4685
      %v4864 = vpack.c.bf16 %v4690, %v4688
      %v4865 = vpack.c.bf16 %v4691, %v4689
      %v4866 = vpack.c.bf16 %v4694, %v4692
      %v4867 = vpack.c.bf16 %v4695, %v4693
      %v4868 = vpack.c.bf16 %v4698, %v4696
      %v4869 = vpack.c.bf16 %v4699, %v4697
      %v4870 = vpack.c.bf16 %v4702, %v4700
      %v4871 = vpack.c.bf16 %v4703, %v4701
      %v4872 = vpack.c.bf16 %v4706, %v4704
      %v4873 = vpack.c.bf16 %v4707, %v4705
      %v4874 = vpack.c.bf16 %v4710, %v4708
      %v4875 = vpack.c.bf16 %v4711, %v4709
      %v4876 = vpack.c.bf16 %v4714, %v4712
      %v4877 = vpack.c.bf16 %v4715, %v4713
      %v4878 = vpack.c.bf16 %v4718, %v4716
      %v4879 = vpack.c.bf16 %v4719, %v4717
      %v4880 = vpack.c.bf16 %v4722, %v4720
      %v4881 = vpack.c.bf16 %v4723, %v4721
      %v4882 = vpack.c.bf16 %v4726, %v4724
      %v4883 = vpack.c.bf16 %v4727, %v4725
      %v4884 = vpack.c.bf16 %v4730, %v4728
      %v4885 = vpack.c.bf16 %v4731, %v4729
      %v4886 = vpack.c.bf16 %v4734, %v4732
      %v4887 = vpack.c.bf16 %v4735, %v4733
      %v4888 = vpack.c.bf16 %v4738, %v4736
      %v4889 = vpack.c.bf16 %v4739, %v4737
      %v4890 = vpack.c.bf16 %v4742, %v4740
      %v4891 = vpack.c.bf16 %v4743, %v4741
      %v4892 = vpack.c.bf16 %v4746, %v4744
      %v4893 = vpack.c.bf16 %v4747, %v4745
      %v4894 = vpack.c.bf16 %v4750, %v4748
      %v4895 = vpack.c.bf16 %v4751, %v4749
      %v4896 = vpack.c.bf16 %v4754, %v4752
      %v4897 = vpack.c.bf16 %v4755, %v4753
      %v4898 = vpack.c.bf16 %v4758, %v4756
      %v4899 = vpack.c.bf16 %v4759, %v4757
      %v4900 = vpack.c.bf16 %v4762, %v4760
      %v4901 = vpack.c.bf16 %v4763, %v4761
      %v4902 = vpack.c.bf16 %v4766, %v4764
      %v4903 = vpack.c.bf16 %v4767, %v4765
      %v4904 = vpack.c.bf16 %v4770, %v4768
      %v4905 = vpack.c.bf16 %v4771, %v4769
      %v4906 = vpack.c.bf16 %v4774, %v4772
      %v4907 = vpack.c.bf16 %v4775, %v4773
      %v4908 = vpack.c.bf16 %v4778, %v4776
      %v4909 = vpack.c.bf16 %v4779, %v4777
      %v4910 = vpack.c.bf16 %v4782, %v4780
      %v4911 = vpack.c.bf16 %v4783, %v4781
      %v4912 = vld [vmem:[%s12] sm:$0xf]
      %v4914 = vlaneseq
      %v4915 = vshrl.u32 %v4914, 7
      %v4916 = vsub.s32 0, %v4915
      %v4917 = vrot.slane %v4912, %v4916
      %v4918 = vlaneseq
      %v4919 = vshrl.u32 %v4918, 7
      %v4920 = vsub.s32 1, %v4919
      %v4921 = vrot.slane %v4912, %v4920
      %v4922 = vlaneseq
      %v4923 = vshrl.u32 %v4922, 7
      %v4924 = vsub.s32 2, %v4923
      %v4925 = vrot.slane %v4912, %v4924
      %v4926 = vlaneseq
      %v4927 = vshrl.u32 %v4926, 7
      %v4928 = vsub.s32 3, %v4927
      %v4929 = vrot.slane %v4912, %v4928
      %v4998 = vunpack.c.l.b16 %v4784
      %v4999 = vunpack.c.h.b16 %v4784
      %v5000 = vunpack.c.l.b16 %v4785
      %v5001 = vunpack.c.h.b16 %v4785
      %v5002 = vunpack.c.l.b16 %v4786
      %v5003 = vunpack.c.h.b16 %v4786
      %v5004 = vunpack.c.l.b16 %v4787
      %v5005 = vunpack.c.h.b16 %v4787
      %v5006 = vunpack.c.l.b16 %v4788
      %v5007 = vunpack.c.h.b16 %v4788
      %v5008 = vunpack.c.l.b16 %v4789
      %v5009 = vunpack.c.h.b16 %v4789
      %v5010 = vunpack.c.l.b16 %v4790
      %v5011 = vunpack.c.h.b16 %v4790
      %v5012 = vunpack.c.l.b16 %v4791
      %v5013 = vunpack.c.h.b16 %v4791
      %v5014 = vunpack.c.l.b16 %v4792
      %v5015 = vunpack.c.h.b16 %v4792
      %v5016 = vunpack.c.l.b16 %v4793
      %v5017 = vunpack.c.h.b16 %v4793
      %v5018 = vunpack.c.l.b16 %v4794
      %v5019 = vunpack.c.h.b16 %v4794
      %v5020 = vunpack.c.l.b16 %v4795
      %v5021 = vunpack.c.h.b16 %v4795
      %v5022 = vunpack.c.l.b16 %v4796
      %v5023 = vunpack.c.h.b16 %v4796
      %v5024 = vunpack.c.l.b16 %v4797
      %v5025 = vunpack.c.h.b16 %v4797
      %v5026 = vunpack.c.l.b16 %v4798
      %v5027 = vunpack.c.h.b16 %v4798
      %v5028 = vunpack.c.l.b16 %v4799
      %v5029 = vunpack.c.h.b16 %v4799
      %v5030 = vunpack.c.l.b16 %v4800
      %v5031 = vunpack.c.h.b16 %v4800
      %v5032 = vunpack.c.l.b16 %v4801
      %v5033 = vunpack.c.h.b16 %v4801
      %v5034 = vunpack.c.l.b16 %v4802
      %v5035 = vunpack.c.h.b16 %v4802
      %v5036 = vunpack.c.l.b16 %v4803
      %v5037 = vunpack.c.h.b16 %v4803
      %v5038 = vunpack.c.l.b16 %v4804
      %v5039 = vunpack.c.h.b16 %v4804
      %v5040 = vunpack.c.l.b16 %v4805
      %v5041 = vunpack.c.h.b16 %v4805
      %v5042 = vunpack.c.l.b16 %v4806
      %v5043 = vunpack.c.h.b16 %v4806
      %v5044 = vunpack.c.l.b16 %v4807
      %v5045 = vunpack.c.h.b16 %v4807
      %v5046 = vunpack.c.l.b16 %v4808
      %v5047 = vunpack.c.h.b16 %v4808
      %v5048 = vunpack.c.l.b16 %v4809
      %v5049 = vunpack.c.h.b16 %v4809
      %v5050 = vunpack.c.l.b16 %v4810
      %v5051 = vunpack.c.h.b16 %v4810
      %v5052 = vunpack.c.l.b16 %v4811
      %v5053 = vunpack.c.h.b16 %v4811
      %v5054 = vunpack.c.l.b16 %v4812
      %v5055 = vunpack.c.h.b16 %v4812
      %v5056 = vunpack.c.l.b16 %v4813
      %v5057 = vunpack.c.h.b16 %v4813
      %v5058 = vunpack.c.l.b16 %v4814
      %v5059 = vunpack.c.h.b16 %v4814
      %v5060 = vunpack.c.l.b16 %v4815
      %v5061 = vunpack.c.h.b16 %v4815
      %v5062 = vunpack.c.l.b16 %v4816
      %v5063 = vunpack.c.h.b16 %v4816
      %v5064 = vunpack.c.l.b16 %v4817
      %v5065 = vunpack.c.h.b16 %v4817
      %v5066 = vunpack.c.l.b16 %v4818
      %v5067 = vunpack.c.h.b16 %v4818
      %v5068 = vunpack.c.l.b16 %v4819
      %v5069 = vunpack.c.h.b16 %v4819
      %v5070 = vunpack.c.l.b16 %v4820
      %v5071 = vunpack.c.h.b16 %v4820
      %v5072 = vunpack.c.l.b16 %v4821
      %v5073 = vunpack.c.h.b16 %v4821
      %v5074 = vunpack.c.l.b16 %v4822
      %v5075 = vunpack.c.h.b16 %v4822
      %v5076 = vunpack.c.l.b16 %v4823
      %v5077 = vunpack.c.h.b16 %v4823
      %v5078 = vunpack.c.l.b16 %v4824
      %v5079 = vunpack.c.h.b16 %v4824
      %v5080 = vunpack.c.l.b16 %v4825
      %v5081 = vunpack.c.h.b16 %v4825
      %v5082 = vunpack.c.l.b16 %v4826
      %v5083 = vunpack.c.h.b16 %v4826
      %v5084 = vunpack.c.l.b16 %v4827
      %v5085 = vunpack.c.h.b16 %v4827
      %v5086 = vunpack.c.l.b16 %v4828
      %v5087 = vunpack.c.h.b16 %v4828
      %v5088 = vunpack.c.l.b16 %v4829
      %v5089 = vunpack.c.h.b16 %v4829
      %v5090 = vunpack.c.l.b16 %v4830
      %v5091 = vunpack.c.h.b16 %v4830
      %v5092 = vunpack.c.l.b16 %v4831
      %v5093 = vunpack.c.h.b16 %v4831
      %v5094 = vunpack.c.l.b16 %v4832
      %v5095 = vunpack.c.h.b16 %v4832
      %v5096 = vunpack.c.l.b16 %v4833
      %v5097 = vunpack.c.h.b16 %v4833
      %v5098 = vunpack.c.l.b16 %v4834
      %v5099 = vunpack.c.h.b16 %v4834
      %v5100 = vunpack.c.l.b16 %v4835
      %v5101 = vunpack.c.h.b16 %v4835
      %v5102 = vunpack.c.l.b16 %v4836
      %v5103 = vunpack.c.h.b16 %v4836
      %v5104 = vunpack.c.l.b16 %v4837
      %v5105 = vunpack.c.h.b16 %v4837
      %v5106 = vunpack.c.l.b16 %v4838
      %v5107 = vunpack.c.h.b16 %v4838
      %v5108 = vunpack.c.l.b16 %v4839
      %v5109 = vunpack.c.h.b16 %v4839
      %v5110 = vunpack.c.l.b16 %v4840
      %v5111 = vunpack.c.h.b16 %v4840
      %v5112 = vunpack.c.l.b16 %v4841
      %v5113 = vunpack.c.h.b16 %v4841
      %v5114 = vunpack.c.l.b16 %v4842
      %v5115 = vunpack.c.h.b16 %v4842
      %v5116 = vunpack.c.l.b16 %v4843
      %v5117 = vunpack.c.h.b16 %v4843
      %v5118 = vunpack.c.l.b16 %v4844
      %v5119 = vunpack.c.h.b16 %v4844
      %v5120 = vunpack.c.l.b16 %v4845
      %v5121 = vunpack.c.h.b16 %v4845
      %v5122 = vunpack.c.l.b16 %v4846
      %v5123 = vunpack.c.h.b16 %v4846
      %v5124 = vunpack.c.l.b16 %v4847
      %v5125 = vunpack.c.h.b16 %v4847
      %v5126 = vpack.c.b16 %v5002, %v4998
      %v5127 = vpack.c.b16 %v5003, %v4999
      %v5128 = vpack.c.b16 %v5004, %v5000
      %v5129 = vpack.c.b16 %v5005, %v5001
      %v5130 = vpack.c.b16 %v5010, %v5006
      %v5131 = vpack.c.b16 %v5011, %v5007
      %v5132 = vpack.c.b16 %v5012, %v5008
      %v5133 = vpack.c.b16 %v5013, %v5009
      %v5134 = vpack.c.b16 %v5018, %v5014
      %v5135 = vpack.c.b16 %v5019, %v5015
      %v5136 = vpack.c.b16 %v5020, %v5016
      %v5137 = vpack.c.b16 %v5021, %v5017
      %v5138 = vpack.c.b16 %v5026, %v5022
      %v5139 = vpack.c.b16 %v5027, %v5023
      %v5140 = vpack.c.b16 %v5028, %v5024
      %v5141 = vpack.c.b16 %v5029, %v5025
      %v5142 = vpack.c.b16 %v5034, %v5030
      %v5143 = vpack.c.b16 %v5035, %v5031
      %v5144 = vpack.c.b16 %v5036, %v5032
      %v5145 = vpack.c.b16 %v5037, %v5033
      %v5146 = vpack.c.b16 %v5042, %v5038
      %v5147 = vpack.c.b16 %v5043, %v5039
      %v5148 = vpack.c.b16 %v5044, %v5040
      %v5149 = vpack.c.b16 %v5045, %v5041
      %v5150 = vpack.c.b16 %v5050, %v5046
      %v5151 = vpack.c.b16 %v5051, %v5047
      %v5152 = vpack.c.b16 %v5052, %v5048
      %v5153 = vpack.c.b16 %v5053, %v5049
      %v5154 = vpack.c.b16 %v5058, %v5054
      %v5155 = vpack.c.b16 %v5059, %v5055
      %v5156 = vpack.c.b16 %v5060, %v5056
      %v5157 = vpack.c.b16 %v5061, %v5057
      %v5158 = vpack.c.b16 %v5066, %v5062
      %v5159 = vpack.c.b16 %v5067, %v5063
      %v5160 = vpack.c.b16 %v5068, %v5064
      %v5161 = vpack.c.b16 %v5069, %v5065
      %v5162 = vpack.c.b16 %v5074, %v5070
      %v5163 = vpack.c.b16 %v5075, %v5071
      %v5164 = vpack.c.b16 %v5076, %v5072
      %v5165 = vpack.c.b16 %v5077, %v5073
      %v5166 = vpack.c.b16 %v5082, %v5078
      %v5167 = vpack.c.b16 %v5083, %v5079
      %v5168 = vpack.c.b16 %v5084, %v5080
      %v5169 = vpack.c.b16 %v5085, %v5081
      %v5170 = vpack.c.b16 %v5090, %v5086
      %v5171 = vpack.c.b16 %v5091, %v5087
      %v5172 = vpack.c.b16 %v5092, %v5088
      %v5173 = vpack.c.b16 %v5093, %v5089
      %v5174 = vpack.c.b16 %v5098, %v5094
      %v5175 = vpack.c.b16 %v5099, %v5095
      %v5176 = vpack.c.b16 %v5100, %v5096
      %v5177 = vpack.c.b16 %v5101, %v5097
      %v5178 = vpack.c.b16 %v5106, %v5102
      %v5179 = vpack.c.b16 %v5107, %v5103
      %v5180 = vpack.c.b16 %v5108, %v5104
      %v5181 = vpack.c.b16 %v5109, %v5105
      %v5182 = vpack.c.b16 %v5114, %v5110
      %v5183 = vpack.c.b16 %v5115, %v5111
      %v5184 = vpack.c.b16 %v5116, %v5112
      %v5185 = vpack.c.b16 %v5117, %v5113
      %v5186 = vpack.c.b16 %v5122, %v5118
      %v5187 = vpack.c.b16 %v5123, %v5119
      %v5188 = vpack.c.b16 %v5124, %v5120
      %v5189 = vpack.c.b16 %v5125, %v5121
      %5254 = vmatprep.subr.bf16.mxu0 %v5127
      %5255 = vmatpush1.bf16.msra.mxu0 %v5126
      %5256 = vmatprep.subr.bf16.mxu0 %v5131
      %5257 = vmatpush1.bf16.msra.mxu0 %v5130
      %5258 = vmatprep.subr.bf16.mxu0 %v5135
      %5259 = vmatpush1.bf16.msra.mxu0 %v5134
      %5260 = vmatprep.subr.bf16.mxu0 %v5139
      %5261 = vmatpush1.bf16.msra.mxu0 %v5138
      %5262 = vmatprep.subr.bf16.mxu0 %v5143
      %5263 = vmatpush1.bf16.msra.mxu0 %v5142
      %5264 = vmatprep.subr.bf16.mxu0 %v5147
      %5265 = vmatpush1.bf16.msra.mxu0 %v5146
      %5266 = vmatprep.subr.bf16.mxu0 %v5151
      %5267 = vmatpush1.bf16.msra.mxu0 %v5150
      %5268 = vmatprep.subr.bf16.mxu0 %v5155
      %5269 = vmatpush1.bf16.msra.mxu0 %v5154
      %5270 = vmatprep.subr.bf16.mxu0 %v5159
      %5271 = vmatpush1.bf16.msra.mxu0 %v5158
      %5272 = vmatprep.subr.bf16.mxu0 %v5163
      %5273 = vmatpush1.bf16.msra.mxu0 %v5162
      %5274 = vmatprep.subr.bf16.mxu0 %v5167
      %5275 = vmatpush1.bf16.msra.mxu0 %v5166
      %5276 = vmatprep.subr.bf16.mxu0 %v5171
      %5277 = vmatpush1.bf16.msra.mxu0 %v5170
      %5278 = vmatprep.subr.bf16.mxu0 %v5175
      %5279 = vmatpush1.bf16.msra.mxu0 %v5174
      %5280 = vmatprep.subr.bf16.mxu0 %v5179
      %5281 = vmatpush1.bf16.msra.mxu0 %v5178
      %5282 = vmatprep.subr.bf16.mxu0 %v5183
      %5283 = vmatpush1.bf16.msra.mxu0 %v5182
      %5284 = vmatprep.subr.bf16.mxu0 %v5187
      %5285 = vmatpush1.bf16.msra.mxu0 %v5186
      %5286 = vmatprep.mubr.bf16.mxu0 %v4849
      %5287 = vmatmul.mubr.bf16.gmra.mrb[0].mxu0 %v4848
      %v5288 = vpop.f32.mrb[0].mxu0
      %v5289 = vadd.f32 %v4917, %v5288
      %v5290 = vpop.f32.mrb[0].mxu0
      %v5291 = vadd.f32 %v4921, %v5290
      %v5292 = vpop.f32.mrb[0].mxu0
      %v5293 = vadd.f32 %v4917, %v5292
      %v5294 = vpop.f32.mrb[0].mxu0
      %v5295 = vadd.f32 %v4921, %v5294
      %5296 = vmatprep.mubr.bf16.mxu0 %v4851
      %5297 = vmatmul.mubr.bf16.gmra.mrb[0].mxu0 %v4850
      %v5298 = vpop.f32.mrb[0].mxu0
      %v5299 = vadd.f32 %v4917, %v5298
      %v5300 = vpop.f32.mrb[0].mxu0
      %v5301 = vadd.f32 %v4921, %v5300
      %v5302 = vpop.f32.mrb[0].mxu0
      %v5303 = vadd.f32 %v4917, %v5302
      %v5304 = vpop.f32.mrb[0].mxu0
      %v5305 = vadd.f32 %v4921, %v5304
      %5306 = vmatprep.mubr.bf16.mxu0 %v4853
      %5307 = vmatmul.mubr.bf16.gmra.mrb[0].mxu0 %v4852
      %v5308 = vpop.f32.mrb[0].mxu0
      %v5309 = vadd.f32 %v4917, %v5308
      %v5310 = vpop.f32.mrb[0].mxu0
      %v5311 = vadd.f32 %v4921, %v5310
      %v5312 = vpop.f32.mrb[0].mxu0
      %v5313 = vadd.f32 %v4917, %v5312
      %v5314 = vpop.f32.mrb[0].mxu0
      %v5315 = vadd.f32 %v4921, %v5314
      %5316 = vmatprep.mubr.bf16.mxu0 %v4855
      %5317 = vmatmul.mubr.bf16.gmra.mrb[0].mxu0 %v4854
      %v5318 = vpop.f32.mrb[0].mxu0
      %v5319 = vadd.f32 %v4917, %v5318
      %v5320 = vpop.f32.mrb[0].mxu0
      %v5321 = vadd.f32 %v4921, %v5320
      %v5322 = vpop.f32.mrb[0].mxu0
      %v5323 = vadd.f32 %v4917, %v5322
      %v5324 = vpop.f32.mrb[0].mxu0
      %v5325 = vadd.f32 %v4921, %v5324
      %5326 = vmatprep.mubr.bf16.mxu0 %v4857
      %5327 = vmatmul.mubr.bf16.gmra.mrb[0].mxu0 %v4856
      %v5328 = vpop.f32.mrb[0].mxu0
      %v5329 = vadd.f32 %v4917, %v5328
      %v5330 = vpop.f32.mrb[0].mxu0
      %v5331 = vadd.f32 %v4921, %v5330
      %v5332 = vpop.f32.mrb[0].mxu0
      %v5333 = vadd.f32 %v4917, %v5332
      %v5334 = vpop.f32.mrb[0].mxu0
      %v5335 = vadd.f32 %v4921, %v5334
      %5336 = vmatprep.mubr.bf16.mxu0 %v4859
      %5337 = vmatmul.mubr.bf16.gmra.mrb[0].mxu0 %v4858
      %v5338 = vpop.f32.mrb[0].mxu0
      %v5339 = vadd.f32 %v4917, %v5338
      %v5340 = vpop.f32.mrb[0].mxu0
      %v5341 = vadd.f32 %v4921, %v5340
      %v5342 = vpop.f32.mrb[0].mxu0
      %v5343 = vadd.f32 %v4917, %v5342
      %v5344 = vpop.f32.mrb[0].mxu0
      %v5345 = vadd.f32 %v4921, %v5344
      %5346 = vmatprep.mubr.bf16.mxu0 %v4861
      %5347 = vmatmul.mubr.bf16.gmra.mrb[0].mxu0 %v4860
      %v5348 = vpop.f32.mrb[0].mxu0
      %v5349 = vadd.f32 %v4917, %v5348
      %v5350 = vpop.f32.mrb[0].mxu0
      %v5351 = vadd.f32 %v4921, %v5350
      %v5352 = vpop.f32.mrb[0].mxu0
      %v5353 = vadd.f32 %v4917, %v5352
      %v5354 = vpop.f32.mrb[0].mxu0
      %v5355 = vadd.f32 %v4921, %v5354
      %5356 = vmatprep.mubr.bf16.mxu0 %v4863
      %5357 = vmatmul.mubr.bf16.gmra.mrb[0].mxu0 %v4862
      %v5358 = vpop.f32.mrb[0].mxu0
      %v5359 = vadd.f32 %v4917, %v5358
      %v5360 = vpop.f32.mrb[0].mxu0
      %v5361 = vadd.f32 %v4921, %v5360
      %v5362 = vpop.f32.mrb[0].mxu0
      %v5363 = vadd.f32 %v4917, %v5362
      %v5364 = vpop.f32.mrb[0].mxu0
      %v5365 = vadd.f32 %v4921, %v5364
      %5366 = vmatprep.mubr.bf16.mxu0 %v4865
      %5367 = vmatmul.mubr.bf16.gmra.mrb[0].mxu0 %v4864
      %v5368 = vpop.f32.mrb[0].mxu0
      %v5369 = vadd.f32 %v4917, %v5368
      %v5370 = vpop.f32.mrb[0].mxu0
      %v5371 = vadd.f32 %v4921, %v5370
      %v5372 = vpop.f32.mrb[0].mxu0
      %v5373 = vadd.f32 %v4917, %v5372
      %v5374 = vpop.f32.mrb[0].mxu0
      %v5375 = vadd.f32 %v4921, %v5374
      %5376 = vmatprep.mubr.bf16.mxu0 %v4867
      %5377 = vmatmul.mubr.bf16.gmra.mrb[0].mxu0 %v4866
      %v5378 = vpop.f32.mrb[0].mxu0
      %v5379 = vadd.f32 %v4917, %v5378
      %v5380 = vpop.f32.mrb[0].mxu0
      %v5381 = vadd.f32 %v4921, %v5380
      %v5382 = vpop.f32.mrb[0].mxu0
      %v5383 = vadd.f32 %v4917, %v5382
      %v5384 = vpop.f32.mrb[0].mxu0
      %v5385 = vadd.f32 %v4921, %v5384
      %5386 = vmatprep.mubr.bf16.mxu0 %v4869
      %5387 = vmatmul.mubr.bf16.gmra.mrb[0].mxu0 %v4868
      %v5388 = vpop.f32.mrb[0].mxu0
      %v5389 = vadd.f32 %v4917, %v5388
      %v5390 = vpop.f32.mrb[0].mxu0
      %v5391 = vadd.f32 %v4921, %v5390
      %v5392 = vpop.f32.mrb[0].mxu0
      %v5393 = vadd.f32 %v4917, %v5392
      %v5394 = vpop.f32.mrb[0].mxu0
      %v5395 = vadd.f32 %v4921, %v5394
      %5396 = vmatprep.mubr.bf16.mxu0 %v4871
      %5397 = vmatmul.mubr.bf16.gmra.mrb[0].mxu0 %v4870
      %v5398 = vpop.f32.mrb[0].mxu0
      %v5399 = vadd.f32 %v4917, %v5398
      %v5400 = vpop.f32.mrb[0].mxu0
      %v5401 = vadd.f32 %v4921, %v5400
      %v5402 = vpop.f32.mrb[0].mxu0
      %v5403 = vadd.f32 %v4917, %v5402
      %v5404 = vpop.f32.mrb[0].mxu0
      %v5405 = vadd.f32 %v4921, %v5404
      %5406 = vmatprep.mubr.bf16.mxu0 %v4873
      %5407 = vmatmul.mubr.bf16.gmra.mrb[0].mxu0 %v4872
      %v5408 = vpop.f32.mrb[0].mxu0
      %v5409 = vadd.f32 %v4917, %v5408
      %v5410 = vpop.f32.mrb[0].mxu0
      %v5411 = vadd.f32 %v4921, %v5410
      %v5412 = vpop.f32.mrb[0].mxu0
      %v5413 = vadd.f32 %v4917, %v5412
      %v5414 = vpop.f32.mrb[0].mxu0
      %v5415 = vadd.f32 %v4921, %v5414
      %5416 = vmatprep.mubr.bf16.mxu0 %v4875
      %5417 = vmatmul.mubr.bf16.gmra.mrb[0].mxu0 %v4874
      %v5418 = vpop.f32.mrb[0].mxu0
      %v5419 = vadd.f32 %v4917, %v5418
      %v5420 = vpop.f32.mrb[0].mxu0
      %v5421 = vadd.f32 %v4921, %v5420
      %v5422 = vpop.f32.mrb[0].mxu0
      %v5423 = vadd.f32 %v4917, %v5422
      %v5424 = vpop.f32.mrb[0].mxu0
      %v5425 = vadd.f32 %v4921, %v5424
      %5426 = vmatprep.mubr.bf16.mxu0 %v4877
      %5427 = vmatmul.mubr.bf16.gmra.mrb[0].mxu0 %v4876
      %v5428 = vpop.f32.mrb[0].mxu0
      %v5429 = vadd.f32 %v4917, %v5428
      %v5430 = vpop.f32.mrb[0].mxu0
      %v5431 = vadd.f32 %v4921, %v5430
      %v5432 = vpop.f32.mrb[0].mxu0
      %v5433 = vadd.f32 %v4917, %v5432
      %v5434 = vpop.f32.mrb[0].mxu0
      %v5435 = vadd.f32 %v4921, %v5434
      %5436 = vmatprep.mubr.bf16.mxu0 %v4879
      %5437 = vmatmul.mubr.bf16.gmra.mrb[0].mxu0 %v4878
      %v5438 = vpop.f32.mrb[0].mxu0
      %v5439 = vadd.f32 %v4917, %v5438
      %v5440 = vpop.f32.mrb[0].mxu0
      %v5441 = vadd.f32 %v4921, %v5440
      %v5442 = vpop.f32.mrb[0].mxu0
      %v5443 = vadd.f32 %v4917, %v5442
      %v5444 = vpop.f32.mrb[0].mxu0
      %v5445 = vadd.f32 %v4921, %v5444
      %5446 = vmatprep.mubr.bf16.mxu0 %v4881
      %5447 = vmatmul.mubr.bf16.gmra.mrb[0].mxu0 %v4880
      %v5448 = vpop.f32.mrb[0].mxu0
      %v5449 = vadd.f32 %v4917, %v5448
      %v5450 = vpop.f32.mrb[0].mxu0
      %v5451 = vadd.f32 %v4921, %v5450
      %v5452 = vpop.f32.mrb[0].mxu0
      %v5453 = vadd.f32 %v4917, %v5452
      %v5454 = vpop.f32.mrb[0].mxu0
      %v5455 = vadd.f32 %v4921, %v5454
      %5456 = vmatprep.mubr.bf16.mxu0 %v4883
      %5457 = vmatmul.mubr.bf16.gmra.mrb[0].mxu0 %v4882
      %v5458 = vpop.f32.mrb[0].mxu0
      %v5459 = vadd.f32 %v4917, %v5458
      %v5460 = vpop.f32.mrb[0].mxu0
      %v5461 = vadd.f32 %v4921, %v5460
      %v5462 = vpop.f32.mrb[0].mxu0
      %v5463 = vadd.f32 %v4917, %v5462
      %v5464 = vpop.f32.mrb[0].mxu0
      %v5465 = vadd.f32 %v4921, %v5464
      %5466 = vmatprep.mubr.bf16.mxu0 %v4885
      %5467 = vmatmul.mubr.bf16.gmra.mrb[0].mxu0 %v4884
      %v5468 = vpop.f32.mrb[0].mxu0
      %v5469 = vadd.f32 %v4917, %v5468
      %v5470 = vpop.f32.mrb[0].mxu0
      %v5471 = vadd.f32 %v4921, %v5470
      %v5472 = vpop.f32.mrb[0].mxu0
      %v5473 = vadd.f32 %v4917, %v5472
      %v5474 = vpop.f32.mrb[0].mxu0
      %v5475 = vadd.f32 %v4921, %v5474
      %5476 = vmatprep.mubr.bf16.mxu0 %v4887
      %5477 = vmatmul.mubr.bf16.gmra.mrb[0].mxu0 %v4886
      %v5478 = vpop.f32.mrb[0].mxu0
      %v5479 = vadd.f32 %v4917, %v5478
      %v5480 = vpop.f32.mrb[0].mxu0
      %v5481 = vadd.f32 %v4921, %v5480
      %v5482 = vpop.f32.mrb[0].mxu0
      %v5483 = vadd.f32 %v4917, %v5482
      %v5484 = vpop.f32.mrb[0].mxu0
      %v5485 = vadd.f32 %v4921, %v5484
      %5486 = vmatprep.mubr.bf16.mxu0 %v4889
      %5487 = vmatmul.mubr.bf16.gmra.mrb[0].mxu0 %v4888
      %v5488 = vpop.f32.mrb[0].mxu0
      %v5489 = vadd.f32 %v4917, %v5488
      %v5490 = vpop.f32.mrb[0].mxu0
      %v5491 = vadd.f32 %v4921, %v5490
      %v5492 = vpop.f32.mrb[0].mxu0
      %v5493 = vadd.f32 %v4917, %v5492
      %v5494 = vpop.f32.mrb[0].mxu0
      %v5495 = vadd.f32 %v4921, %v5494
      %5496 = vmatprep.mubr.bf16.mxu0 %v4891
      %5497 = vmatmul.mubr.bf16.gmra.mrb[0].mxu0 %v4890
      %v5498 = vpop.f32.mrb[0].mxu0
      %v5499 = vadd.f32 %v4917, %v5498
      %v5500 = vpop.f32.mrb[0].mxu0
      %v5501 = vadd.f32 %v4921, %v5500
      %v5502 = vpop.f32.mrb[0].mxu0
      %v5503 = vadd.f32 %v4917, %v5502
      %v5504 = vpop.f32.mrb[0].mxu0
      %v5505 = vadd.f32 %v4921, %v5504
      %5506 = vmatprep.mubr.bf16.mxu0 %v4893
      %5507 = vmatmul.mubr.bf16.gmra.mrb[0].mxu0 %v4892
      %v5508 = vpop.f32.mrb[0].mxu0
      %v5509 = vadd.f32 %v4917, %v5508
      %v5510 = vpop.f32.mrb[0].mxu0
      %v5511 = vadd.f32 %v4921, %v5510
      %v5512 = vpop.f32.mrb[0].mxu0
      %v5513 = vadd.f32 %v4917, %v5512
      %v5514 = vpop.f32.mrb[0].mxu0
      %v5515 = vadd.f32 %v4921, %v5514
      %5516 = vmatprep.mubr.bf16.mxu0 %v4895
      %5517 = vmatmul.mubr.bf16.gmra.mrb[0].mxu0 %v4894
      %v5518 = vpop.f32.mrb[0].mxu0
      %v5519 = vadd.f32 %v4917, %v5518
      %v5520 = vpop.f32.mrb[0].mxu0
      %v5521 = vadd.f32 %v4921, %v5520
      %v5522 = vpop.f32.mrb[0].mxu0
      %v5523 = vadd.f32 %v4917, %v5522
      %v5524 = vpop.f32.mrb[0].mxu0
      %v5525 = vadd.f32 %v4921, %v5524
      %5526 = vmatprep.mubr.bf16.mxu0 %v4897
      %5527 = vmatmul.mubr.bf16.gmra.mrb[0].mxu0 %v4896
      %v5528 = vpop.f32.mrb[0].mxu0
      %v5529 = vadd.f32 %v4917, %v5528
      %v5530 = vpop.f32.mrb[0].mxu0
      %v5531 = vadd.f32 %v4921, %v5530
      %v5532 = vpop.f32.mrb[0].mxu0
      %v5533 = vadd.f32 %v4917, %v5532
      %v5534 = vpop.f32.mrb[0].mxu0
      %v5535 = vadd.f32 %v4921, %v5534
      %5536 = vmatprep.mubr.bf16.mxu0 %v4899
      %5537 = vmatmul.mubr.bf16.gmra.mrb[0].mxu0 %v4898
      %v5538 = vpop.f32.mrb[0].mxu0
      %v5539 = vadd.f32 %v4917, %v5538
      %v5540 = vpop.f32.mrb[0].mxu0
      %v5541 = vadd.f32 %v4921, %v5540
      %v5542 = vpop.f32.mrb[0].mxu0
      %v5543 = vadd.f32 %v4917, %v5542
      %v5544 = vpop.f32.mrb[0].mxu0
      %v5545 = vadd.f32 %v4921, %v5544
      %5546 = vmatprep.mubr.bf16.mxu0 %v4901
      %5547 = vmatmul.mubr.bf16.gmra.mrb[0].mxu0 %v4900
      %v5548 = vpop.f32.mrb[0].mxu0
      %v5549 = vadd.f32 %v4917, %v5548
      %v5550 = vpop.f32.mrb[0].mxu0
      %v5551 = vadd.f32 %v4921, %v5550
      %v5552 = vpop.f32.mrb[0].mxu0
      %v5553 = vadd.f32 %v4917, %v5552
      %v5554 = vpop.f32.mrb[0].mxu0
      %v5555 = vadd.f32 %v4921, %v5554
      %5556 = vmatprep.mubr.bf16.mxu0 %v4903
      %5557 = vmatmul.mubr.bf16.gmra.mrb[0].mxu0 %v4902
      %v5558 = vpop.f32.mrb[0].mxu0
      %v5559 = vadd.f32 %v4917, %v5558
      %v5560 = vpop.f32.mrb[0].mxu0
      %v5561 = vadd.f32 %v4921, %v5560
      %v5562 = vpop.f32.mrb[0].mxu0
      %v5563 = vadd.f32 %v4917, %v5562
      %v5564 = vpop.f32.mrb[0].mxu0
      %v5565 = vadd.f32 %v4921, %v5564
      %5566 = vmatprep.mubr.bf16.mxu0 %v4905
      %5567 = vmatmul.mubr.bf16.gmra.mrb[0].mxu0 %v4904
      %v5568 = vpop.f32.mrb[0].mxu0
      %v5569 = vadd.f32 %v4917, %v5568
      %v5570 = vpop.f32.mrb[0].mxu0
      %v5571 = vadd.f32 %v4921, %v5570
      %v5572 = vpop.f32.mrb[0].mxu0
      %v5573 = vadd.f32 %v4917, %v5572
      %v5574 = vpop.f32.mrb[0].mxu0
      %v5575 = vadd.f32 %v4921, %v5574
      %5576 = vmatprep.mubr.bf16.mxu0 %v4907
      %5577 = vmatmul.mubr.bf16.gmra.mrb[0].mxu0 %v4906
      %v5578 = vpop.f32.mrb[0].mxu0
      %v5579 = vadd.f32 %v4917, %v5578
      %v5580 = vpop.f32.mrb[0].mxu0
      %v5581 = vadd.f32 %v4921, %v5580
      %v5582 = vpop.f32.mrb[0].mxu0
      %v5583 = vadd.f32 %v4917, %v5582
      %v5584 = vpop.f32.mrb[0].mxu0
      %v5585 = vadd.f32 %v4921, %v5584
      %5586 = vmatprep.mubr.bf16.mxu0 %v4909
      %5587 = vmatmul.mubr.bf16.gmra.mrb[0].mxu0 %v4908
      %v5588 = vpop.f32.mrb[0].mxu0
      %v5589 = vadd.f32 %v4917, %v5588
      %v5590 = vpop.f32.mrb[0].mxu0
      %v5591 = vadd.f32 %v4921, %v5590
      %v5592 = vpop.f32.mrb[0].mxu0
      %v5593 = vadd.f32 %v4917, %v5592
      %v5594 = vpop.f32.mrb[0].mxu0
      %v5595 = vadd.f32 %v4921, %v5594
      %5596 = vmatprep.mubr.bf16.mxu0 %v4911
      %5597 = vmatmul.mubr.bf16.gmra.mrb[0].mxu0 %v4910
      %v5598 = vpop.f32.mrb[0].mxu0
      %v5599 = vadd.f32 %v4917, %v5598
      %v5600 = vpop.f32.mrb[0].mxu0
      %v5601 = vadd.f32 %v4921, %v5600
      %v5602 = vpop.f32.mrb[0].mxu0
      %v5603 = vadd.f32 %v4917, %v5602
      %v5604 = vpop.f32.mrb[0].mxu0
      %v5605 = vadd.f32 %v4921, %v5604
      %5606 = vdwg.mxu0
      %5607 = vmatprep.subr.bf16.mxu0 %v5129
      %5608 = vmatpush1.bf16.msra.mxu0 %v5128
      %5609 = vmatprep.subr.bf16.mxu0 %v5133
      %5610 = vmatpush1.bf16.msra.mxu0 %v5132
      %5611 = vmatprep.subr.bf16.mxu0 %v5137
      %5612 = vmatpush1.bf16.msra.mxu0 %v5136
      %5613 = vmatprep.subr.bf16.mxu0 %v5141
      %5614 = vmatpush1.bf16.msra.mxu0 %v5140
      %5615 = vmatprep.subr.bf16.mxu0 %v5145
      %5616 = vmatpush1.bf16.msra.mxu0 %v5144
      %5617 = vmatprep.subr.bf16.mxu0 %v5149
      %5618 = vmatpush1.bf16.msra.mxu0 %v5148
      %5619 = vmatprep.subr.bf16.mxu0 %v5153
      %5620 = vmatpush1.bf16.msra.mxu0 %v5152
      %5621 = vmatprep.subr.bf16.mxu0 %v5157
      %5622 = vmatpush1.bf16.msra.mxu0 %v5156
      %5623 = vmatprep.subr.bf16.mxu0 %v5161
      %5624 = vmatpush1.bf16.msra.mxu0 %v5160
      %5625 = vmatprep.subr.bf16.mxu0 %v5165
      %5626 = vmatpush1.bf16.msra.mxu0 %v5164
      %5627 = vmatprep.subr.bf16.mxu0 %v5169
      %5628 = vmatpush1.bf16.msra.mxu0 %v5168
      %5629 = vmatprep.subr.bf16.mxu0 %v5173
      %5630 = vmatpush1.bf16.msra.mxu0 %v5172
      %5631 = vmatprep.subr.bf16.mxu0 %v5177
      %5632 = vmatpush1.bf16.msra.mxu0 %v5176
      %5633 = vmatprep.subr.bf16.mxu0 %v5181
      %5634 = vmatpush1.bf16.msra.mxu0 %v5180
      %5635 = vmatprep.subr.bf16.mxu0 %v5185
      %5636 = vmatpush1.bf16.msra.mxu0 %v5184
      %5637 = vmatprep.subr.bf16.mxu0 %v5189
      %5638 = vmatpush1.bf16.msra.mxu0 %v5188
      %5639 = vmatprep.mubr.bf16.mxu0 %v4849
      %5640 = vmatmul.mubr.bf16.gmra.mrb[0].mxu0 %v4848
      %v5641 = vpop.f32.mrb[0].mxu0
      %v5642 = vadd.f32 %v4925, %v5641
      %v5643 = vpop.f32.mrb[0].mxu0
      %v5644 = vadd.f32 %v4929, %v5643
      %v5645 = vpop.f32.mrb[0].mxu0
      %v5646 = vadd.f32 %v4925, %v5645
      %v5647 = vpop.f32.mrb[0].mxu0
      %v5648 = vadd.f32 %v4929, %v5647
      %5649 = vmatprep.mubr.bf16.mxu0 %v4851
      %5650 = vmatmul.mubr.bf16.gmra.mrb[0].mxu0 %v4850
      %v5651 = vpop.f32.mrb[0].mxu0
      %v5652 = vadd.f32 %v4925, %v5651
      %v5653 = vpop.f32.mrb[0].mxu0
      %v5654 = vadd.f32 %v4929, %v5653
      %v5655 = vpop.f32.mrb[0].mxu0
      %v5656 = vadd.f32 %v4925, %v5655
      %v5657 = vpop.f32.mrb[0].mxu0
      %v5658 = vadd.f32 %v4929, %v5657
      %5659 = vmatprep.mubr.bf16.mxu0 %v4853
      %5660 = vmatmul.mubr.bf16.gmra.mrb[0].mxu0 %v4852
      %v5661 = vpop.f32.mrb[0].mxu0
      %v5662 = vadd.f32 %v4925, %v5661
      %v5663 = vpop.f32.mrb[0].mxu0
      %v5664 = vadd.f32 %v4929, %v5663
      %v5665 = vpop.f32.mrb[0].mxu0
      %v5666 = vadd.f32 %v4925, %v5665
      %v5667 = vpop.f32.mrb[0].mxu0
      %v5668 = vadd.f32 %v4929, %v5667
      %5669 = vmatprep.mubr.bf16.mxu0 %v4855
      %5670 = vmatmul.mubr.bf16.gmra.mrb[0].mxu0 %v4854
      %v5671 = vpop.f32.mrb[0].mxu0
      %v5672 = vadd.f32 %v4925, %v5671
      %v5673 = vpop.f32.mrb[0].mxu0
      %v5674 = vadd.f32 %v4929, %v5673
      %v5675 = vpop.f32.mrb[0].mxu0
      %v5676 = vadd.f32 %v4925, %v5675
      %v5677 = vpop.f32.mrb[0].mxu0
      %v5678 = vadd.f32 %v4929, %v5677
      %5679 = vmatprep.mubr.bf16.mxu0 %v4857
      %5680 = vmatmul.mubr.bf16.gmra.mrb[0].mxu0 %v4856
      %v5681 = vpop.f32.mrb[0].mxu0
      %v5682 = vadd.f32 %v4925, %v5681
      %v5683 = vpop.f32.mrb[0].mxu0
      %v5684 = vadd.f32 %v4929, %v5683
      %v5685 = vpop.f32.mrb[0].mxu0
      %v5686 = vadd.f32 %v4925, %v5685
      %v5687 = vpop.f32.mrb[0].mxu0
      %v5688 = vadd.f32 %v4929, %v5687
      %5689 = vmatprep.mubr.bf16.mxu0 %v4859
      %5690 = vmatmul.mubr.bf16.gmra.mrb[0].mxu0 %v4858
      %v5691 = vpop.f32.mrb[0].mxu0
      %v5692 = vadd.f32 %v4925, %v5691
      %v5693 = vpop.f32.mrb[0].mxu0
      %v5694 = vadd.f32 %v4929, %v5693
      %v5695 = vpop.f32.mrb[0].mxu0
      %v5696 = vadd.f32 %v4925, %v5695
      %v5697 = vpop.f32.mrb[0].mxu0
      %v5698 = vadd.f32 %v4929, %v5697
      %5699 = vmatprep.mubr.bf16.mxu0 %v4861
      %5700 = vmatmul.mubr.bf16.gmra.mrb[0].mxu0 %v4860
      %v5701 = vpop.f32.mrb[0].mxu0
      %v5702 = vadd.f32 %v4925, %v5701
      %v5703 = vpop.f32.mrb[0].mxu0
      %v5704 = vadd.f32 %v4929, %v5703
      %v5705 = vpop.f32.mrb[0].mxu0
      %v5706 = vadd.f32 %v4925, %v5705
      %v5707 = vpop.f32.mrb[0].mxu0
      %v5708 = vadd.f32 %v4929, %v5707
      %5709 = vmatprep.mubr.bf16.mxu0 %v4863
      %5710 = vmatmul.mubr.bf16.gmra.mrb[0].mxu0 %v4862
      %v5711 = vpop.f32.mrb[0].mxu0
      %v5712 = vadd.f32 %v4925, %v5711
      %v5713 = vpop.f32.mrb[0].mxu0
      %v5714 = vadd.f32 %v4929, %v5713
      %v5715 = vpop.f32.mrb[0].mxu0
      %v5716 = vadd.f32 %v4925, %v5715
      %v5717 = vpop.f32.mrb[0].mxu0
      %v5718 = vadd.f32 %v4929, %v5717
      %5719 = vmatprep.mubr.bf16.mxu0 %v4865
      %5720 = vmatmul.mubr.bf16.gmra.mrb[0].mxu0 %v4864
      %v5721 = vpop.f32.mrb[0].mxu0
      %v5722 = vadd.f32 %v4925, %v5721
      %v5723 = vpop.f32.mrb[0].mxu0
      %v5724 = vadd.f32 %v4929, %v5723
      %v5725 = vpop.f32.mrb[0].mxu0
      %v5726 = vadd.f32 %v4925, %v5725
      %v5727 = vpop.f32.mrb[0].mxu0
      %v5728 = vadd.f32 %v4929, %v5727
      %5729 = vmatprep.mubr.bf16.mxu0 %v4867
      %5730 = vmatmul.mubr.bf16.gmra.mrb[0].mxu0 %v4866
      %v5731 = vpop.f32.mrb[0].mxu0
      %v5732 = vadd.f32 %v4925, %v5731
      %v5733 = vpop.f32.mrb[0].mxu0
      %v5734 = vadd.f32 %v4929, %v5733
      %v5735 = vpop.f32.mrb[0].mxu0
      %v5736 = vadd.f32 %v4925, %v5735
      %v5737 = vpop.f32.mrb[0].mxu0
      %v5738 = vadd.f32 %v4929, %v5737
      %5739 = vmatprep.mubr.bf16.mxu0 %v4869
      %5740 = vmatmul.mubr.bf16.gmra.mrb[0].mxu0 %v4868
      %v5741 = vpop.f32.mrb[0].mxu0
      %v5742 = vadd.f32 %v4925, %v5741
      %v5743 = vpop.f32.mrb[0].mxu0
      %v5744 = vadd.f32 %v4929, %v5743
      %v5745 = vpop.f32.mrb[0].mxu0
      %v5746 = vadd.f32 %v4925, %v5745
      %v5747 = vpop.f32.mrb[0].mxu0
      %v5748 = vadd.f32 %v4929, %v5747
      %5749 = vmatprep.mubr.bf16.mxu0 %v4871
      %5750 = vmatmul.mubr.bf16.gmra.mrb[0].mxu0 %v4870
      %v5751 = vpop.f32.mrb[0].mxu0
      %v5752 = vadd.f32 %v4925, %v5751
      %v5753 = vpop.f32.mrb[0].mxu0
      %v5754 = vadd.f32 %v4929, %v5753
      %v5755 = vpop.f32.mrb[0].mxu0
      %v5756 = vadd.f32 %v4925, %v5755
      %v5757 = vpop.f32.mrb[0].mxu0
      %v5758 = vadd.f32 %v4929, %v5757
      %5759 = vmatprep.mubr.bf16.mxu0 %v4873
      %5760 = vmatmul.mubr.bf16.gmra.mrb[0].mxu0 %v4872
      %v5761 = vpop.f32.mrb[0].mxu0
      %v5762 = vadd.f32 %v4925, %v5761
      %v5763 = vpop.f32.mrb[0].mxu0
      %v5764 = vadd.f32 %v4929, %v5763
      %v5765 = vpop.f32.mrb[0].mxu0
      %v5766 = vadd.f32 %v4925, %v5765
      %v5767 = vpop.f32.mrb[0].mxu0
      %v5768 = vadd.f32 %v4929, %v5767
      %5769 = vmatprep.mubr.bf16.mxu0 %v4875
      %5770 = vmatmul.mubr.bf16.gmra.mrb[0].mxu0 %v4874
      %v5771 = vpop.f32.mrb[0].mxu0
      %v5772 = vadd.f32 %v4925, %v5771
      %v5773 = vpop.f32.mrb[0].mxu0
      %v5774 = vadd.f32 %v4929, %v5773
      %v5775 = vpop.f32.mrb[0].mxu0
      %v5776 = vadd.f32 %v4925, %v5775
      %v5777 = vpop.f32.mrb[0].mxu0
      %v5778 = vadd.f32 %v4929, %v5777
      %5779 = vmatprep.mubr.bf16.mxu0 %v4877
      %5780 = vmatmul.mubr.bf16.gmra.mrb[0].mxu0 %v4876
      %v5781 = vpop.f32.mrb[0].mxu0
      %v5782 = vadd.f32 %v4925, %v5781
      %v5783 = vpop.f32.mrb[0].mxu0
      %v5784 = vadd.f32 %v4929, %v5783
      %v5785 = vpop.f32.mrb[0].mxu0
      %v5786 = vadd.f32 %v4925, %v5785
      %v5787 = vpop.f32.mrb[0].mxu0
      %v5788 = vadd.f32 %v4929, %v5787
      %5789 = vmatprep.mubr.bf16.mxu0 %v4879
      %5790 = vmatmul.mubr.bf16.gmra.mrb[0].mxu0 %v4878
      %v5791 = vpop.f32.mrb[0].mxu0
      %v5792 = vadd.f32 %v4925, %v5791
      %v5793 = vpop.f32.mrb[0].mxu0
      %v5794 = vadd.f32 %v4929, %v5793
      %v5795 = vpop.f32.mrb[0].mxu0
      %v5796 = vadd.f32 %v4925, %v5795
      %v5797 = vpop.f32.mrb[0].mxu0
      %v5798 = vadd.f32 %v4929, %v5797
      %5799 = vmatprep.mubr.bf16.mxu0 %v4881
      %5800 = vmatmul.mubr.bf16.gmra.mrb[0].mxu0 %v4880
      %v5801 = vpop.f32.mrb[0].mxu0
      %v5802 = vadd.f32 %v4925, %v5801
      %v5803 = vpop.f32.mrb[0].mxu0
      %v5804 = vadd.f32 %v4929, %v5803
      %v5805 = vpop.f32.mrb[0].mxu0
      %v5806 = vadd.f32 %v4925, %v5805
      %v5807 = vpop.f32.mrb[0].mxu0
      %v5808 = vadd.f32 %v4929, %v5807
      %5809 = vmatprep.mubr.bf16.mxu0 %v4883
      %5810 = vmatmul.mubr.bf16.gmra.mrb[0].mxu0 %v4882
      %v5811 = vpop.f32.mrb[0].mxu0
      %v5812 = vadd.f32 %v4925, %v5811
      %v5813 = vpop.f32.mrb[0].mxu0
      %v5814 = vadd.f32 %v4929, %v5813
      %v5815 = vpop.f32.mrb[0].mxu0
      %v5816 = vadd.f32 %v4925, %v5815
      %v5817 = vpop.f32.mrb[0].mxu0
      %v5818 = vadd.f32 %v4929, %v5817
      %5819 = vmatprep.mubr.bf16.mxu0 %v4885
      %5820 = vmatmul.mubr.bf16.gmra.mrb[0].mxu0 %v4884
      %v5821 = vpop.f32.mrb[0].mxu0
      %v5822 = vadd.f32 %v4925, %v5821
      %v5823 = vpop.f32.mrb[0].mxu0
      %v5824 = vadd.f32 %v4929, %v5823
      %v5825 = vpop.f32.mrb[0].mxu0
      %v5826 = vadd.f32 %v4925, %v5825
      %v5827 = vpop.f32.mrb[0].mxu0
      %v5828 = vadd.f32 %v4929, %v5827
      %5829 = vmatprep.mubr.bf16.mxu0 %v4887
      %5830 = vmatmul.mubr.bf16.gmra.mrb[0].mxu0 %v4886
      %v5831 = vpop.f32.mrb[0].mxu0
      %v5832 = vadd.f32 %v4925, %v5831
      %v5833 = vpop.f32.mrb[0].mxu0
      %v5834 = vadd.f32 %v4929, %v5833
      %v5835 = vpop.f32.mrb[0].mxu0
      %v5836 = vadd.f32 %v4925, %v5835
      %v5837 = vpop.f32.mrb[0].mxu0
      %v5838 = vadd.f32 %v4929, %v5837
      %5839 = vmatprep.mubr.bf16.mxu0 %v4889
      %5840 = vmatmul.mubr.bf16.gmra.mrb[0].mxu0 %v4888
      %v5841 = vpop.f32.mrb[0].mxu0
      %v5842 = vadd.f32 %v4925, %v5841
      %v5843 = vpop.f32.mrb[0].mxu0
      %v5844 = vadd.f32 %v4929, %v5843
      %v5845 = vpop.f32.mrb[0].mxu0
      %v5846 = vadd.f32 %v4925, %v5845
      %v5847 = vpop.f32.mrb[0].mxu0
      %v5848 = vadd.f32 %v4929, %v5847
      %5849 = vmatprep.mubr.bf16.mxu0 %v4891
      %5850 = vmatmul.mubr.bf16.gmra.mrb[0].mxu0 %v4890
      %v5851 = vpop.f32.mrb[0].mxu0
      %v5852 = vadd.f32 %v4925, %v5851
      %v5853 = vpop.f32.mrb[0].mxu0
      %v5854 = vadd.f32 %v4929, %v5853
      %v5855 = vpop.f32.mrb[0].mxu0
      %v5856 = vadd.f32 %v4925, %v5855
      %v5857 = vpop.f32.mrb[0].mxu0
      %v5858 = vadd.f32 %v4929, %v5857
      %5859 = vmatprep.mubr.bf16.mxu0 %v4893
      %5860 = vmatmul.mubr.bf16.gmra.mrb[0].mxu0 %v4892
      %v5861 = vpop.f32.mrb[0].mxu0
      %v5862 = vadd.f32 %v4925, %v5861
      %v5863 = vpop.f32.mrb[0].mxu0
      %v5864 = vadd.f32 %v4929, %v5863
      %v5865 = vpop.f32.mrb[0].mxu0
      %v5866 = vadd.f32 %v4925, %v5865
      %v5867 = vpop.f32.mrb[0].mxu0
      %v5868 = vadd.f32 %v4929, %v5867
      %5869 = vmatprep.mubr.bf16.mxu0 %v4895
      %5870 = vmatmul.mubr.bf16.gmra.mrb[0].mxu0 %v4894
      %v5871 = vpop.f32.mrb[0].mxu0
      %v5872 = vadd.f32 %v4925, %v5871
      %v5873 = vpop.f32.mrb[0].mxu0
      %v5874 = vadd.f32 %v4929, %v5873
      %v5875 = vpop.f32.mrb[0].mxu0
      %v5876 = vadd.f32 %v4925, %v5875
      %v5877 = vpop.f32.mrb[0].mxu0
      %v5878 = vadd.f32 %v4929, %v5877
      %5879 = vmatprep.mubr.bf16.mxu0 %v4897
      %5880 = vmatmul.mubr.bf16.gmra.mrb[0].mxu0 %v4896
      %v5881 = vpop.f32.mrb[0].mxu0
      %v5882 = vadd.f32 %v4925, %v5881
      %v5883 = vpop.f32.mrb[0].mxu0
      %v5884 = vadd.f32 %v4929, %v5883
      %v5885 = vpop.f32.mrb[0].mxu0
      %v5886 = vadd.f32 %v4925, %v5885
      %v5887 = vpop.f32.mrb[0].mxu0
      %v5888 = vadd.f32 %v4929, %v5887
      %5889 = vmatprep.mubr.bf16.mxu0 %v4899
      %5890 = vmatmul.mubr.bf16.gmra.mrb[0].mxu0 %v4898
      %v5891 = vpop.f32.mrb[0].mxu0
      %v5892 = vadd.f32 %v4925, %v5891
      %v5893 = vpop.f32.mrb[0].mxu0
      %v5894 = vadd.f32 %v4929, %v5893
      %v5895 = vpop.f32.mrb[0].mxu0
      %v5896 = vadd.f32 %v4925, %v5895
      %v5897 = vpop.f32.mrb[0].mxu0
      %v5898 = vadd.f32 %v4929, %v5897
      %5899 = vmatprep.mubr.bf16.mxu0 %v4901
      %5900 = vmatmul.mubr.bf16.gmra.mrb[0].mxu0 %v4900
      %v5901 = vpop.f32.mrb[0].mxu0
      %v5902 = vadd.f32 %v4925, %v5901
      %v5903 = vpop.f32.mrb[0].mxu0
      %v5904 = vadd.f32 %v4929, %v5903
      %v5905 = vpop.f32.mrb[0].mxu0
      %v5906 = vadd.f32 %v4925, %v5905
      %v5907 = vpop.f32.mrb[0].mxu0
      %v5908 = vadd.f32 %v4929, %v5907
      %5909 = vmatprep.mubr.bf16.mxu0 %v4903
      %5910 = vmatmul.mubr.bf16.gmra.mrb[0].mxu0 %v4902
      %v5911 = vpop.f32.mrb[0].mxu0
      %v5912 = vadd.f32 %v4925, %v5911
      %v5913 = vpop.f32.mrb[0].mxu0
      %v5914 = vadd.f32 %v4929, %v5913
      %v5915 = vpop.f32.mrb[0].mxu0
      %v5916 = vadd.f32 %v4925, %v5915
      %v5917 = vpop.f32.mrb[0].mxu0
      %v5918 = vadd.f32 %v4929, %v5917
      %5919 = vmatprep.mubr.bf16.mxu0 %v4905
      %5920 = vmatmul.mubr.bf16.gmra.mrb[0].mxu0 %v4904
      %v5921 = vpop.f32.mrb[0].mxu0
      %v5922 = vadd.f32 %v4925, %v5921
      %v5923 = vpop.f32.mrb[0].mxu0
      %v5924 = vadd.f32 %v4929, %v5923
      %v5925 = vpop.f32.mrb[0].mxu0
      %v5926 = vadd.f32 %v4925, %v5925
      %v5927 = vpop.f32.mrb[0].mxu0
      %v5928 = vadd.f32 %v4929, %v5927
      %5929 = vmatprep.mubr.bf16.mxu0 %v4907
      %5930 = vmatmul.mubr.bf16.gmra.mrb[0].mxu0 %v4906
      %v5931 = vpop.f32.mrb[0].mxu0
      %v5932 = vadd.f32 %v4925, %v5931
      %v5933 = vpop.f32.mrb[0].mxu0
      %v5934 = vadd.f32 %v4929, %v5933
      %v5935 = vpop.f32.mrb[0].mxu0
      %v5936 = vadd.f32 %v4925, %v5935
      %v5937 = vpop.f32.mrb[0].mxu0
      %v5938 = vadd.f32 %v4929, %v5937
      %5939 = vmatprep.mubr.bf16.mxu0 %v4909
      %5940 = vmatmul.mubr.bf16.gmra.mrb[0].mxu0 %v4908
      %v5941 = vpop.f32.mrb[0].mxu0
      %v5942 = vadd.f32 %v4925, %v5941
      %v5943 = vpop.f32.mrb[0].mxu0
      %v5944 = vadd.f32 %v4929, %v5943
      %v5945 = vpop.f32.mrb[0].mxu0
      %v5946 = vadd.f32 %v4925, %v5945
      %v5947 = vpop.f32.mrb[0].mxu0
      %v5948 = vadd.f32 %v4929, %v5947
      %5949 = vmatprep.mubr.bf16.mxu0 %v4911
      %5950 = vmatmul.mubr.bf16.gmra.mrb[0].mxu0 %v4910
      %v5951 = vpop.f32.mrb[0].mxu0
      %v5952 = vadd.f32 %v4925, %v5951
      %v5953 = vpop.f32.mrb[0].mxu0
      %v5954 = vadd.f32 %v4929, %v5953
      %v5955 = vpop.f32.mrb[0].mxu0
      %v5956 = vadd.f32 %v4925, %v5955
      %v5957 = vpop.f32.mrb[0].mxu0
      %v5958 = vadd.f32 %v4929, %v5957
      %5959 = vdwg.mxu0
      %v5960 = vmul.f32 %v5289, %v5289
      %v5961 = vmul.f32 %v5291, %v5291
      %v5962 = vmul.f32 %v5642, %v5642
      %v5963 = vmul.f32 %v5644, %v5644
      %v5964 = vmul.f32 %v5293, %v5293
      %v5965 = vmul.f32 %v5295, %v5295
      %v5966 = vmul.f32 %v5646, %v5646
      %v5967 = vmul.f32 %v5648, %v5648
      %v5968 = vmul.f32 %v5299, %v5299
      %v5969 = vmul.f32 %v5301, %v5301
      %v5970 = vmul.f32 %v5652, %v5652
      %v5971 = vmul.f32 %v5654, %v5654
      %v5972 = vmul.f32 %v5303, %v5303
      %v5973 = vmul.f32 %v5305, %v5305
      %v5974 = vmul.f32 %v5656, %v5656
      %v5975 = vmul.f32 %v5658, %v5658
      %v5976 = vmul.f32 %v5309, %v5309
      %v5977 = vmul.f32 %v5311, %v5311
      %v5978 = vmul.f32 %v5662, %v5662
      %v5979 = vmul.f32 %v5664, %v5664
      %v5980 = vmul.f32 %v5313, %v5313
      %v5981 = vmul.f32 %v5315, %v5315
      %v5982 = vmul.f32 %v5666, %v5666
      %v5983 = vmul.f32 %v5668, %v5668
      %v5984 = vmul.f32 %v5319, %v5319
      %v5985 = vmul.f32 %v5321, %v5321
      %v5986 = vmul.f32 %v5672, %v5672
      %v5987 = vmul.f32 %v5674, %v5674
      %v5988 = vmul.f32 %v5323, %v5323
      %v5989 = vmul.f32 %v5325, %v5325
      %v5990 = vmul.f32 %v5676, %v5676
      %v5991 = vmul.f32 %v5678, %v5678
      %v5992 = vmul.f32 %v5329, %v5329
      %v5993 = vmul.f32 %v5331, %v5331
      %v5994 = vmul.f32 %v5682, %v5682
      %v5995 = vmul.f32 %v5684, %v5684
      %v5996 = vmul.f32 %v5333, %v5333
      %v5997 = vmul.f32 %v5335, %v5335
      %v5998 = vmul.f32 %v5686, %v5686
      %v5999 = vmul.f32 %v5688, %v5688
      %v6000 = vmul.f32 %v5339, %v5339
      %v6001 = vmul.f32 %v5341, %v5341
      %v6002 = vmul.f32 %v5692, %v5692
      %v6003 = vmul.f32 %v5694, %v5694
      %v6004 = vmul.f32 %v5343, %v5343
      %v6005 = vmul.f32 %v5345, %v5345
      %v6006 = vmul.f32 %v5696, %v5696
      %v6007 = vmul.f32 %v5698, %v5698
      %v6008 = vmul.f32 %v5349, %v5349
      %v6009 = vmul.f32 %v5351, %v5351
      %v6010 = vmul.f32 %v5702, %v5702
      %v6011 = vmul.f32 %v5704, %v5704
      %v6012 = vmul.f32 %v5353, %v5353
      %v6013 = vmul.f32 %v5355, %v5355
      %v6014 = vmul.f32 %v5706, %v5706
      %v6015 = vmul.f32 %v5708, %v5708
      %v6016 = vmul.f32 %v5359, %v5359
      %v6017 = vmul.f32 %v5361, %v5361
      %v6018 = vmul.f32 %v5712, %v5712
      %v6019 = vmul.f32 %v5714, %v5714
      %v6020 = vmul.f32 %v5363, %v5363
      %v6021 = vmul.f32 %v5365, %v5365
      %v6022 = vmul.f32 %v5716, %v5716
      %v6023 = vmul.f32 %v5718, %v5718
      %v6024 = vmul.f32 %v5369, %v5369
      %v6025 = vmul.f32 %v5371, %v5371
      %v6026 = vmul.f32 %v5722, %v5722
      %v6027 = vmul.f32 %v5724, %v5724
      %v6028 = vmul.f32 %v5373, %v5373
      %v6029 = vmul.f32 %v5375, %v5375
      %v6030 = vmul.f32 %v5726, %v5726
      %v6031 = vmul.f32 %v5728, %v5728
      %v6032 = vmul.f32 %v5379, %v5379
      %v6033 = vmul.f32 %v5381, %v5381
      %v6034 = vmul.f32 %v5732, %v5732
      %v6035 = vmul.f32 %v5734, %v5734
      %v6036 = vmul.f32 %v5383, %v5383
      %v6037 = vmul.f32 %v5385, %v5385
      %v6038 = vmul.f32 %v5736, %v5736
      %v6039 = vmul.f32 %v5738, %v5738
      %v6040 = vmul.f32 %v5389, %v5389
      %v6041 = vmul.f32 %v5391, %v5391
      %v6042 = vmul.f32 %v5742, %v5742
      %v6043 = vmul.f32 %v5744, %v5744
      %v6044 = vmul.f32 %v5393, %v5393
      %v6045 = vmul.f32 %v5395, %v5395
      %v6046 = vmul.f32 %v5746, %v5746
      %v6047 = vmul.f32 %v5748, %v5748
      %v6048 = vmul.f32 %v5399, %v5399
      %v6049 = vmul.f32 %v5401, %v5401
      %v6050 = vmul.f32 %v5752, %v5752
      %v6051 = vmul.f32 %v5754, %v5754
      %v6052 = vmul.f32 %v5403, %v5403
      %v6053 = vmul.f32 %v5405, %v5405
      %v6054 = vmul.f32 %v5756, %v5756
      %v6055 = vmul.f32 %v5758, %v5758
      %v6056 = vmul.f32 %v5409, %v5409
      %v6057 = vmul.f32 %v5411, %v5411
      %v6058 = vmul.f32 %v5762, %v5762
      %v6059 = vmul.f32 %v5764, %v5764
      %v6060 = vmul.f32 %v5413, %v5413
      %v6061 = vmul.f32 %v5415, %v5415
      %v6062 = vmul.f32 %v5766, %v5766
      %v6063 = vmul.f32 %v5768, %v5768
      %v6064 = vmul.f32 %v5419, %v5419
      %v6065 = vmul.f32 %v5421, %v5421
      %v6066 = vmul.f32 %v5772, %v5772
      %v6067 = vmul.f32 %v5774, %v5774
      %v6068 = vmul.f32 %v5423, %v5423
      %v6069 = vmul.f32 %v5425, %v5425
      %v6070 = vmul.f32 %v5776, %v5776
      %v6071 = vmul.f32 %v5778, %v5778
      %v6072 = vmul.f32 %v5429, %v5429
      %v6073 = vmul.f32 %v5431, %v5431
      %v6074 = vmul.f32 %v5782, %v5782
      %v6075 = vmul.f32 %v5784, %v5784
      %v6076 = vmul.f32 %v5433, %v5433
      %v6077 = vmul.f32 %v5435, %v5435
      %v6078 = vmul.f32 %v5786, %v5786
      %v6079 = vmul.f32 %v5788, %v5788
      %v6080 = vmul.f32 %v5439, %v5439
      %v6081 = vmul.f32 %v5441, %v5441
      %v6082 = vmul.f32 %v5792, %v5792
      %v6083 = vmul.f32 %v5794, %v5794
      %v6084 = vmul.f32 %v5443, %v5443
      %v6085 = vmul.f32 %v5445, %v5445
      %v6086 = vmul.f32 %v5796, %v5796
      %v6087 = vmul.f32 %v5798, %v5798
      %v6088 = vmul.f32 %v5449, %v5449
      %v6089 = vmul.f32 %v5451, %v5451
      %v6090 = vmul.f32 %v5802, %v5802
      %v6091 = vmul.f32 %v5804, %v5804
      %v6092 = vmul.f32 %v5453, %v5453
      %v6093 = vmul.f32 %v5455, %v5455
      %v6094 = vmul.f32 %v5806, %v5806
      %v6095 = vmul.f32 %v5808, %v5808
      %v6096 = vmul.f32 %v5459, %v5459
      %v6097 = vmul.f32 %v5461, %v5461
      %v6098 = vmul.f32 %v5812, %v5812
      %v6099 = vmul.f32 %v5814, %v5814
      %v6100 = vmul.f32 %v5463, %v5463
      %v6101 = vmul.f32 %v5465, %v5465
      %v6102 = vmul.f32 %v5816, %v5816
      %v6103 = vmul.f32 %v5818, %v5818
      %v6104 = vmul.f32 %v5469, %v5469
      %v6105 = vmul.f32 %v5471, %v5471
      %v6106 = vmul.f32 %v5822, %v5822
      %v6107 = vmul.f32 %v5824, %v5824
      %v6108 = vmul.f32 %v5473, %v5473
      %v6109 = vmul.f32 %v5475, %v5475
      %v6110 = vmul.f32 %v5826, %v5826
      %v6111 = vmul.f32 %v5828, %v5828
      %v6112 = vmul.f32 %v5479, %v5479
      %v6113 = vmul.f32 %v5481, %v5481
      %v6114 = vmul.f32 %v5832, %v5832
      %v6115 = vmul.f32 %v5834, %v5834
      %v6116 = vmul.f32 %v5483, %v5483
      %v6117 = vmul.f32 %v5485, %v5485
      %v6118 = vmul.f32 %v5836, %v5836
      %v6119 = vmul.f32 %v5838, %v5838
      %v6120 = vmul.f32 %v5489, %v5489
      %v6121 = vmul.f32 %v5491, %v5491
      %v6122 = vmul.f32 %v5842, %v5842
      %v6123 = vmul.f32 %v5844, %v5844
      %v6124 = vmul.f32 %v5493, %v5493
      %v6125 = vmul.f32 %v5495, %v5495
      %v6126 = vmul.f32 %v5846, %v5846
      %v6127 = vmul.f32 %v5848, %v5848
      %v6128 = vmul.f32 %v5499, %v5499
      %v6129 = vmul.f32 %v5501, %v5501
      %v6130 = vmul.f32 %v5852, %v5852
      %v6131 = vmul.f32 %v5854, %v5854
      %v6132 = vmul.f32 %v5503, %v5503
      %v6133 = vmul.f32 %v5505, %v5505
      %v6134 = vmul.f32 %v5856, %v5856
      %v6135 = vmul.f32 %v5858, %v5858
      %v6136 = vmul.f32 %v5509, %v5509
      %v6137 = vmul.f32 %v5511, %v5511
      %v6138 = vmul.f32 %v5862, %v5862
      %v6139 = vmul.f32 %v5864, %v5864
      %v6140 = vmul.f32 %v5513, %v5513
      %v6141 = vmul.f32 %v5515, %v5515
      %v6142 = vmul.f32 %v5866, %v5866
      %v6143 = vmul.f32 %v5868, %v5868
      %v6144 = vmul.f32 %v5519, %v5519
      %v6145 = vmul.f32 %v5521, %v5521
      %v6146 = vmul.f32 %v5872, %v5872
      %v6147 = vmul.f32 %v5874, %v5874
      %v6148 = vmul.f32 %v5523, %v5523
      %v6149 = vmul.f32 %v5525, %v5525
      %v6150 = vmul.f32 %v5876, %v5876
      %v6151 = vmul.f32 %v5878, %v5878
      %v6152 = vmul.f32 %v5529, %v5529
      %v6153 = vmul.f32 %v5531, %v5531
      %v6154 = vmul.f32 %v5882, %v5882
      %v6155 = vmul.f32 %v5884, %v5884
      %v6156 = vmul.f32 %v5533, %v5533
      %v6157 = vmul.f32 %v5535, %v5535
      %v6158 = vmul.f32 %v5886, %v5886
      %v6159 = vmul.f32 %v5888, %v5888
      %v6160 = vmul.f32 %v5539, %v5539
      %v6161 = vmul.f32 %v5541, %v5541
      %v6162 = vmul.f32 %v5892, %v5892
      %v6163 = vmul.f32 %v5894, %v5894
      %v6164 = vmul.f32 %v5543, %v5543
      %v6165 = vmul.f32 %v5545, %v5545
      %v6166 = vmul.f32 %v5896, %v5896
      %v6167 = vmul.f32 %v5898, %v5898
      %v6168 = vmul.f32 %v5549, %v5549
      %v6169 = vmul.f32 %v5551, %v5551
      %v6170 = vmul.f32 %v5902, %v5902
      %v6171 = vmul.f32 %v5904, %v5904
      %v6172 = vmul.f32 %v5553, %v5553
      %v6173 = vmul.f32 %v5555, %v5555
      %v6174 = vmul.f32 %v5906, %v5906
      %v6175 = vmul.f32 %v5908, %v5908
      %v6176 = vmul.f32 %v5559, %v5559
      %v6177 = vmul.f32 %v5561, %v5561
      %v6178 = vmul.f32 %v5912, %v5912
      %v6179 = vmul.f32 %v5914, %v5914
      %v6180 = vmul.f32 %v5563, %v5563
      %v6181 = vmul.f32 %v5565, %v5565
      %v6182 = vmul.f32 %v5916, %v5916
      %v6183 = vmul.f32 %v5918, %v5918
      %v6184 = vmul.f32 %v5569, %v5569
      %v6185 = vmul.f32 %v5571, %v5571
      %v6186 = vmul.f32 %v5922, %v5922
      %v6187 = vmul.f32 %v5924, %v5924
      %v6188 = vmul.f32 %v5573, %v5573
      %v6189 = vmul.f32 %v5575, %v5575
      %v6190 = vmul.f32 %v5926, %v5926
      %v6191 = vmul.f32 %v5928, %v5928
      %v6192 = vmul.f32 %v5579, %v5579
      %v6193 = vmul.f32 %v5581, %v5581
      %v6194 = vmul.f32 %v5932, %v5932
      %v6195 = vmul.f32 %v5934, %v5934
      %v6196 = vmul.f32 %v5583, %v5583
      %v6197 = vmul.f32 %v5585, %v5585
      %v6198 = vmul.f32 %v5936, %v5936
      %v6199 = vmul.f32 %v5938, %v5938
      %v6200 = vmul.f32 %v5589, %v5589
      %v6201 = vmul.f32 %v5591, %v5591
      %v6202 = vmul.f32 %v5942, %v5942
      %v6203 = vmul.f32 %v5944, %v5944
      %v6204 = vmul.f32 %v5593, %v5593
      %v6205 = vmul.f32 %v5595, %v5595
      %v6206 = vmul.f32 %v5946, %v5946
      %v6207 = vmul.f32 %v5948, %v5948
      %v6208 = vmul.f32 %v5599, %v5599
      %v6209 = vmul.f32 %v5601, %v5601
      %v6210 = vmul.f32 %v5952, %v5952
      %v6211 = vmul.f32 %v5954, %v5954
      %v6212 = vmul.f32 %v5603, %v5603
      %v6213 = vmul.f32 %v5605, %v5605
      %v6214 = vmul.f32 %v5956, %v5956
      %v6215 = vmul.f32 %v5958, %v5958
      %v6216 = vadd.f32 %v5960, %v5961
      %v6217 = vadd.f32 %v6216, %v5962
      %v6218 = vadd.f32 %v6217, %v5963
      %6219 = vadd.xlane.f32.xlu0 %v6218
      %v6220 = vpop.xlane.xlu0 %6219
      %v6221 = vadd.f32 %v5964, %v5965
      %v6222 = vadd.f32 %v6221, %v5966
      %v6223 = vadd.f32 %v6222, %v5967
      %6224 = vadd.xlane.f32.xlu0 %v6223
      %v6225 = vpop.xlane.xlu0 %6224
      %v6226 = vadd.f32 %v5968, %v5969
      %v6227 = vadd.f32 %v6226, %v5970
      %v6228 = vadd.f32 %v6227, %v5971
      %6229 = vadd.xlane.f32.xlu0 %v6228
      %v6230 = vpop.xlane.xlu0 %6229
      %v6231 = vadd.f32 %v5972, %v5973
      %v6232 = vadd.f32 %v6231, %v5974
      %v6233 = vadd.f32 %v6232, %v5975
      %6234 = vadd.xlane.f32.xlu0 %v6233
      %v6235 = vpop.xlane.xlu0 %6234
      %v6236 = vadd.f32 %v5976, %v5977
      %v6237 = vadd.f32 %v6236, %v5978
      %v6238 = vadd.f32 %v6237, %v5979
      %6239 = vadd.xlane.f32.xlu0 %v6238
      %v6240 = vpop.xlane.xlu0 %6239
      %v6241 = vadd.f32 %v5980, %v5981
      %v6242 = vadd.f32 %v6241, %v5982
      %v6243 = vadd.f32 %v6242, %v5983
      %6244 = vadd.xlane.f32.xlu0 %v6243
      %v6245 = vpop.xlane.xlu0 %6244
      %v6246 = vadd.f32 %v5984, %v5985
      %v6247 = vadd.f32 %v6246, %v5986
      %v6248 = vadd.f32 %v6247, %v5987
      %6249 = vadd.xlane.f32.xlu0 %v6248
      %v6250 = vpop.xlane.xlu0 %6249
      %v6251 = vadd.f32 %v5988, %v5989
      %v6252 = vadd.f32 %v6251, %v5990
      %v6253 = vadd.f32 %v6252, %v5991
      %6254 = vadd.xlane.f32.xlu0 %v6253
      %v6255 = vpop.xlane.xlu0 %6254
      %v6256 = vadd.f32 %v5992, %v5993
      %v6257 = vadd.f32 %v6256, %v5994
      %v6258 = vadd.f32 %v6257, %v5995
      %6259 = vadd.xlane.f32.xlu0 %v6258
      %v6260 = vpop.xlane.xlu0 %6259
      %v6261 = vadd.f32 %v5996, %v5997
      %v6262 = vadd.f32 %v6261, %v5998
      %v6263 = vadd.f32 %v6262, %v5999
      %6264 = vadd.xlane.f32.xlu0 %v6263
      %v6265 = vpop.xlane.xlu0 %6264
      %v6266 = vadd.f32 %v6000, %v6001
      %v6267 = vadd.f32 %v6266, %v6002
      %v6268 = vadd.f32 %v6267, %v6003
      %6269 = vadd.xlane.f32.xlu0 %v6268
      %v6270 = vpop.xlane.xlu0 %6269
      %v6271 = vadd.f32 %v6004, %v6005
      %v6272 = vadd.f32 %v6271, %v6006
      %v6273 = vadd.f32 %v6272, %v6007
      %6274 = vadd.xlane.f32.xlu0 %v6273
      %v6275 = vpop.xlane.xlu0 %6274
      %v6276 = vadd.f32 %v6008, %v6009
      %v6277 = vadd.f32 %v6276, %v6010
      %v6278 = vadd.f32 %v6277, %v6011
      %6279 = vadd.xlane.f32.xlu0 %v6278
      %v6280 = vpop.xlane.xlu0 %6279
      %v6281 = vadd.f32 %v6012, %v6013
      %v6282 = vadd.f32 %v6281, %v6014
      %v6283 = vadd.f32 %v6282, %v6015
      %6284 = vadd.xlane.f32.xlu0 %v6283
      %v6285 = vpop.xlane.xlu0 %6284
      %v6286 = vadd.f32 %v6016, %v6017
      %v6287 = vadd.f32 %v6286, %v6018
      %v6288 = vadd.f32 %v6287, %v6019
      %6289 = vadd.xlane.f32.xlu0 %v6288
      %v6290 = vpop.xlane.xlu0 %6289
      %v6291 = vadd.f32 %v6020, %v6021
      %v6292 = vadd.f32 %v6291, %v6022
      %v6293 = vadd.f32 %v6292, %v6023
      %6294 = vadd.xlane.f32.xlu0 %v6293
      %v6295 = vpop.xlane.xlu0 %6294
      %v6296 = vadd.f32 %v6024, %v6025
      %v6297 = vadd.f32 %v6296, %v6026
      %v6298 = vadd.f32 %v6297, %v6027
      %6299 = vadd.xlane.f32.xlu0 %v6298
      %v6300 = vpop.xlane.xlu0 %6299
      %v6301 = vadd.f32 %v6028, %v6029
      %v6302 = vadd.f32 %v6301, %v6030
      %v6303 = vadd.f32 %v6302, %v6031
      %6304 = vadd.xlane.f32.xlu0 %v6303
      %v6305 = vpop.xlane.xlu0 %6304
      %v6306 = vadd.f32 %v6032, %v6033
      %v6307 = vadd.f32 %v6306, %v6034
      %v6308 = vadd.f32 %v6307, %v6035
      %6309 = vadd.xlane.f32.xlu0 %v6308
      %v6310 = vpop.xlane.xlu0 %6309
      %v6311 = vadd.f32 %v6036, %v6037
      %v6312 = vadd.f32 %v6311, %v6038
      %v6313 = vadd.f32 %v6312, %v6039
      %6314 = vadd.xlane.f32.xlu0 %v6313
      %v6315 = vpop.xlane.xlu0 %6314
      %v6316 = vadd.f32 %v6040, %v6041
      %v6317 = vadd.f32 %v6316, %v6042
      %v6318 = vadd.f32 %v6317, %v6043
      %6319 = vadd.xlane.f32.xlu0 %v6318
      %v6320 = vpop.xlane.xlu0 %6319
      %v6321 = vadd.f32 %v6044, %v6045
      %v6322 = vadd.f32 %v6321, %v6046
      %v6323 = vadd.f32 %v6322, %v6047
      %6324 = vadd.xlane.f32.xlu0 %v6323
      %v6325 = vpop.xlane.xlu0 %6324
      %v6326 = vadd.f32 %v6048, %v6049
      %v6327 = vadd.f32 %v6326, %v6050
      %v6328 = vadd.f32 %v6327, %v6051
      %6329 = vadd.xlane.f32.xlu0 %v6328
      %v6330 = vpop.xlane.xlu0 %6329
      %v6331 = vadd.f32 %v6052, %v6053
      %v6332 = vadd.f32 %v6331, %v6054
      %v6333 = vadd.f32 %v6332, %v6055
      %6334 = vadd.xlane.f32.xlu0 %v6333
      %v6335 = vpop.xlane.xlu0 %6334
      %v6336 = vadd.f32 %v6056, %v6057
      %v6337 = vadd.f32 %v6336, %v6058
      %v6338 = vadd.f32 %v6337, %v6059
      %6339 = vadd.xlane.f32.xlu0 %v6338
      %v6340 = vpop.xlane.xlu0 %6339
      %v6341 = vadd.f32 %v6060, %v6061
      %v6342 = vadd.f32 %v6341, %v6062
      %v6343 = vadd.f32 %v6342, %v6063
      %6344 = vadd.xlane.f32.xlu0 %v6343
      %v6345 = vpop.xlane.xlu0 %6344
      %v6346 = vadd.f32 %v6064, %v6065
      %v6347 = vadd.f32 %v6346, %v6066
      %v6348 = vadd.f32 %v6347, %v6067
      %6349 = vadd.xlane.f32.xlu0 %v6348
      %v6350 = vpop.xlane.xlu0 %6349
      %v6351 = vadd.f32 %v6068, %v6069
      %v6352 = vadd.f32 %v6351, %v6070
      %v6353 = vadd.f32 %v6352, %v6071
      %6354 = vadd.xlane.f32.xlu0 %v6353
      %v6355 = vpop.xlane.xlu0 %6354
      %v6356 = vadd.f32 %v6072, %v6073
      %v6357 = vadd.f32 %v6356, %v6074
      %v6358 = vadd.f32 %v6357, %v6075
      %6359 = vadd.xlane.f32.xlu0 %v6358
      %v6360 = vpop.xlane.xlu0 %6359
      %v6361 = vadd.f32 %v6076, %v6077
      %v6362 = vadd.f32 %v6361, %v6078
      %v6363 = vadd.f32 %v6362, %v6079
      %6364 = vadd.xlane.f32.xlu0 %v6363
      %v6365 = vpop.xlane.xlu0 %6364
      %v6366 = vadd.f32 %v6080, %v6081
      %v6367 = vadd.f32 %v6366, %v6082
      %v6368 = vadd.f32 %v6367, %v6083
      %6369 = vadd.xlane.f32.xlu0 %v6368
      %v6370 = vpop.xlane.xlu0 %6369
      %v6371 = vadd.f32 %v6084, %v6085
      %v6372 = vadd.f32 %v6371, %v6086
      %v6373 = vadd.f32 %v6372, %v6087
      %6374 = vadd.xlane.f32.xlu0 %v6373
      %v6375 = vpop.xlane.xlu0 %6374
      %v6376 = vadd.f32 %v6088, %v6089
      %v6377 = vadd.f32 %v6376, %v6090
      %v6378 = vadd.f32 %v6377, %v6091
      %6379 = vadd.xlane.f32.xlu0 %v6378
      %v6380 = vpop.xlane.xlu0 %6379
      %v6381 = vadd.f32 %v6092, %v6093
      %v6382 = vadd.f32 %v6381, %v6094
      %v6383 = vadd.f32 %v6382, %v6095
      %6384 = vadd.xlane.f32.xlu0 %v6383
      %v6385 = vpop.xlane.xlu0 %6384
      %v6386 = vadd.f32 %v6096, %v6097
      %v6387 = vadd.f32 %v6386, %v6098
      %v6388 = vadd.f32 %v6387, %v6099
      %6389 = vadd.xlane.f32.xlu0 %v6388
      %v6390 = vpop.xlane.xlu0 %6389
      %v6391 = vadd.f32 %v6100, %v6101
      %v6392 = vadd.f32 %v6391, %v6102
      %v6393 = vadd.f32 %v6392, %v6103
      %6394 = vadd.xlane.f32.xlu0 %v6393
      %v6395 = vpop.xlane.xlu0 %6394
      %v6396 = vadd.f32 %v6104, %v6105
      %v6397 = vadd.f32 %v6396, %v6106
      %v6398 = vadd.f32 %v6397, %v6107
      %6399 = vadd.xlane.f32.xlu0 %v6398
      %v6400 = vpop.xlane.xlu0 %6399
      %v6401 = vadd.f32 %v6108, %v6109
      %v6402 = vadd.f32 %v6401, %v6110
      %v6403 = vadd.f32 %v6402, %v6111
      %6404 = vadd.xlane.f32.xlu0 %v6403
      %v6405 = vpop.xlane.xlu0 %6404
      %v6406 = vadd.f32 %v6112, %v6113
      %v6407 = vadd.f32 %v6406, %v6114
      %v6408 = vadd.f32 %v6407, %v6115
      %6409 = vadd.xlane.f32.xlu0 %v6408
      %v6410 = vpop.xlane.xlu0 %6409
      %v6411 = vadd.f32 %v6116, %v6117
      %v6412 = vadd.f32 %v6411, %v6118
      %v6413 = vadd.f32 %v6412, %v6119
      %6414 = vadd.xlane.f32.xlu0 %v6413
      %v6415 = vpop.xlane.xlu0 %6414
      %v6416 = vadd.f32 %v6120, %v6121
      %v6417 = vadd.f32 %v6416, %v6122
      %v6418 = vadd.f32 %v6417, %v6123
      %6419 = vadd.xlane.f32.xlu0 %v6418
      %v6420 = vpop.xlane.xlu0 %6419
      %v6421 = vadd.f32 %v6124, %v6125
      %v6422 = vadd.f32 %v6421, %v6126
      %v6423 = vadd.f32 %v6422, %v6127
      %6424 = vadd.xlane.f32.xlu0 %v6423
      %v6425 = vpop.xlane.xlu0 %6424
      %v6426 = vadd.f32 %v6128, %v6129
      %v6427 = vadd.f32 %v6426, %v6130
      %v6428 = vadd.f32 %v6427, %v6131
      %6429 = vadd.xlane.f32.xlu0 %v6428
      %v6430 = vpop.xlane.xlu0 %6429
      %v6431 = vadd.f32 %v6132, %v6133
      %v6432 = vadd.f32 %v6431, %v6134
      %v6433 = vadd.f32 %v6432, %v6135
      %6434 = vadd.xlane.f32.xlu0 %v6433
      %v6435 = vpop.xlane.xlu0 %6434
      %v6436 = vadd.f32 %v6136, %v6137
      %v6437 = vadd.f32 %v6436, %v6138
      %v6438 = vadd.f32 %v6437, %v6139
      %6439 = vadd.xlane.f32.xlu0 %v6438
      %v6440 = vpop.xlane.xlu0 %6439
      %v6441 = vadd.f32 %v6140, %v6141
      %v6442 = vadd.f32 %v6441, %v6142
      %v6443 = vadd.f32 %v6442, %v6143
      %6444 = vadd.xlane.f32.xlu0 %v6443
      %v6445 = vpop.xlane.xlu0 %6444
      %v6446 = vadd.f32 %v6144, %v6145
      %v6447 = vadd.f32 %v6446, %v6146
      %v6448 = vadd.f32 %v6447, %v6147
      %6449 = vadd.xlane.f32.xlu0 %v6448
      %v6450 = vpop.xlane.xlu0 %6449
      %v6451 = vadd.f32 %v6148, %v6149
      %v6452 = vadd.f32 %v6451, %v6150
      %v6453 = vadd.f32 %v6452, %v6151
      %6454 = vadd.xlane.f32.xlu0 %v6453
      %v6455 = vpop.xlane.xlu0 %6454
      %v6456 = vadd.f32 %v6152, %v6153
      %v6457 = vadd.f32 %v6456, %v6154
      %v6458 = vadd.f32 %v6457, %v6155
      %6459 = vadd.xlane.f32.xlu0 %v6458
      %v6460 = vpop.xlane.xlu0 %6459
      %v6461 = vadd.f32 %v6156, %v6157
      %v6462 = vadd.f32 %v6461, %v6158
      %v6463 = vadd.f32 %v6462, %v6159
      %6464 = vadd.xlane.f32.xlu0 %v6463
      %v6465 = vpop.xlane.xlu0 %6464
      %v6466 = vadd.f32 %v6160, %v6161
      %v6467 = vadd.f32 %v6466, %v6162
      %v6468 = vadd.f32 %v6467, %v6163
      %6469 = vadd.xlane.f32.xlu0 %v6468
      %v6470 = vpop.xlane.xlu0 %6469
      %v6471 = vadd.f32 %v6164, %v6165
      %v6472 = vadd.f32 %v6471, %v6166
      %v6473 = vadd.f32 %v6472, %v6167
      %6474 = vadd.xlane.f32.xlu0 %v6473
      %v6475 = vpop.xlane.xlu0 %6474
      %v6476 = vadd.f32 %v6168, %v6169
      %v6477 = vadd.f32 %v6476, %v6170
      %v6478 = vadd.f32 %v6477, %v6171
      %6479 = vadd.xlane.f32.xlu0 %v6478
      %v6480 = vpop.xlane.xlu0 %6479
      %v6481 = vadd.f32 %v6172, %v6173
      %v6482 = vadd.f32 %v6481, %v6174
      %v6483 = vadd.f32 %v6482, %v6175
      %6484 = vadd.xlane.f32.xlu0 %v6483
      %v6485 = vpop.xlane.xlu0 %6484
      %v6486 = vadd.f32 %v6176, %v6177
      %v6487 = vadd.f32 %v6486, %v6178
      %v6488 = vadd.f32 %v6487, %v6179
      %6489 = vadd.xlane.f32.xlu0 %v6488
      %v6490 = vpop.xlane.xlu0 %6489
      %v6491 = vadd.f32 %v6180, %v6181
      %v6492 = vadd.f32 %v6491, %v6182
      %v6493 = vadd.f32 %v6492, %v6183
      %6494 = vadd.xlane.f32.xlu0 %v6493
      %v6495 = vpop.xlane.xlu0 %6494
      %v6496 = vadd.f32 %v6184, %v6185
      %v6497 = vadd.f32 %v6496, %v6186
      %v6498 = vadd.f32 %v6497, %v6187
      %6499 = vadd.xlane.f32.xlu0 %v6498
      %v6500 = vpop.xlane.xlu0 %6499
      %v6501 = vadd.f32 %v6188, %v6189
      %v6502 = vadd.f32 %v6501, %v6190
      %v6503 = vadd.f32 %v6502, %v6191
      %6504 = vadd.xlane.f32.xlu0 %v6503
      %v6505 = vpop.xlane.xlu0 %6504
      %v6506 = vadd.f32 %v6192, %v6193
      %v6507 = vadd.f32 %v6506, %v6194
      %v6508 = vadd.f32 %v6507, %v6195
      %6509 = vadd.xlane.f32.xlu0 %v6508
      %v6510 = vpop.xlane.xlu0 %6509
      %v6511 = vadd.f32 %v6196, %v6197
      %v6512 = vadd.f32 %v6511, %v6198
      %v6513 = vadd.f32 %v6512, %v6199
      %6514 = vadd.xlane.f32.xlu0 %v6513
      %v6515 = vpop.xlane.xlu0 %6514
      %v6516 = vadd.f32 %v6200, %v6201
      %v6517 = vadd.f32 %v6516, %v6202
      %v6518 = vadd.f32 %v6517, %v6203
      %6519 = vadd.xlane.f32.xlu0 %v6518
      %v6520 = vpop.xlane.xlu0 %6519
      %v6521 = vadd.f32 %v6204, %v6205
      %v6522 = vadd.f32 %v6521, %v6206
      %v6523 = vadd.f32 %v6522, %v6207
      %6524 = vadd.xlane.f32.xlu0 %v6523
      %v6525 = vpop.xlane.xlu0 %6524
      %v6526 = vadd.f32 %v6208, %v6209
      %v6527 = vadd.f32 %v6526, %v6210
      %v6528 = vadd.f32 %v6527, %v6211
      %6529 = vadd.xlane.f32.xlu0 %v6528
      %v6530 = vpop.xlane.xlu0 %6529
      %v6531 = vadd.f32 %v6212, %v6213
      %v6532 = vadd.f32 %v6531, %v6214
      %v6533 = vadd.f32 %v6532, %v6215
      %6534 = vadd.xlane.f32.xlu0 %v6533
      %v6535 = vpop.xlane.xlu0 %6534
      %v6536 = vrsqrt.pop %v6220
      %v6537 = vrsqrt.pop %v6225
      %v6538 = vrsqrt.pop %v6230
      %v6539 = vrsqrt.pop %v6235
      %v6540 = vrsqrt.pop %v6240
      %v6541 = vrsqrt.pop %v6245
      %v6542 = vrsqrt.pop %v6250
      %v6543 = vrsqrt.pop %v6255
      %v6544 = vrsqrt.pop %v6260
      %v6545 = vrsqrt.pop %v6265
      %v6546 = vrsqrt.pop %v6270
      %v6547 = vrsqrt.pop %v6275
      %v6548 = vrsqrt.pop %v6280
      %v6549 = vrsqrt.pop %v6285
      %v6550 = vrsqrt.pop %v6290
      %v6551 = vrsqrt.pop %v6295
      %v6552 = vrsqrt.pop %v6300
      %v6553 = vrsqrt.pop %v6305
      %v6554 = vrsqrt.pop %v6310
      %v6555 = vrsqrt.pop %v6315
      %v6556 = vrsqrt.pop %v6320
      %v6557 = vrsqrt.pop %v6325
      %v6558 = vrsqrt.pop %v6330
      %v6559 = vrsqrt.pop %v6335
      %v6560 = vrsqrt.pop %v6340
      %v6561 = vrsqrt.pop %v6345
      %v6562 = vrsqrt.pop %v6350
      %v6563 = vrsqrt.pop %v6355
      %v6564 = vrsqrt.pop %v6360
      %v6565 = vrsqrt.pop %v6365
      %v6566 = vrsqrt.pop %v6370
      %v6567 = vrsqrt.pop %v6375
      %v6568 = vrsqrt.pop %v6380
      %v6569 = vrsqrt.pop %v6385
      %v6570 = vrsqrt.pop %v6390
      %v6571 = vrsqrt.pop %v6395
      %v6572 = vrsqrt.pop %v6400
      %v6573 = vrsqrt.pop %v6405
      %v6574 = vrsqrt.pop %v6410
      %v6575 = vrsqrt.pop %v6415
      %v6576 = vrsqrt.pop %v6420
      %v6577 = vrsqrt.pop %v6425
      %v6578 = vrsqrt.pop %v6430
      %v6579 = vrsqrt.pop %v6435
      %v6580 = vrsqrt.pop %v6440
      %v6581 = vrsqrt.pop %v6445
      %v6582 = vrsqrt.pop %v6450
      %v6583 = vrsqrt.pop %v6455
      %v6584 = vrsqrt.pop %v6460
      %v6585 = vrsqrt.pop %v6465
      %v6586 = vrsqrt.pop %v6470
      %v6587 = vrsqrt.pop %v6475
      %v6588 = vrsqrt.pop %v6480
      %v6589 = vrsqrt.pop %v6485
      %v6590 = vrsqrt.pop %v6490
      %v6591 = vrsqrt.pop %v6495
      %v6592 = vrsqrt.pop %v6500
      %v6593 = vrsqrt.pop %v6505
      %v6594 = vrsqrt.pop %v6510
      %v6595 = vrsqrt.pop %v6515
      %v6596 = vrsqrt.pop %v6520
      %v6597 = vrsqrt.pop %v6525
      %v6598 = vrsqrt.pop %v6530
      %v6599 = vrsqrt.pop %v6535
      %v6600 = vmul.f32 %v5289, %v6536
      %v6601 = vmul.f32 %v5291, %v6536
      %v6602 = vmul.f32 %v5642, %v6536
      %v6603 = vmul.f32 %v5644, %v6536
      %v6604 = vmul.f32 %v5293, %v6537
      %v6605 = vmul.f32 %v5295, %v6537
      %v6606 = vmul.f32 %v5646, %v6537
      %v6607 = vmul.f32 %v5648, %v6537
      %v6608 = vmul.f32 %v5299, %v6538
      %v6609 = vmul.f32 %v5301, %v6538
      %v6610 = vmul.f32 %v5652, %v6538
      %v6611 = vmul.f32 %v5654, %v6538
      %v6612 = vmul.f32 %v5303, %v6539
      %v6613 = vmul.f32 %v5305, %v6539
      %v6614 = vmul.f32 %v5656, %v6539
      %v6615 = vmul.f32 %v5658, %v6539
      %v6616 = vmul.f32 %v5309, %v6540
      %v6617 = vmul.f32 %v5311, %v6540
      %v6618 = vmul.f32 %v5662, %v6540
      %v6619 = vmul.f32 %v5664, %v6540
      %v6620 = vmul.f32 %v5313, %v6541
      %v6621 = vmul.f32 %v5315, %v6541
      %v6622 = vmul.f32 %v5666, %v6541
      %v6623 = vmul.f32 %v5668, %v6541
      %v6624 = vmul.f32 %v5319, %v6542
      %v6625 = vmul.f32 %v5321, %v6542
      %v6626 = vmul.f32 %v5672, %v6542
      %v6627 = vmul.f32 %v5674, %v6542
      %v6628 = vmul.f32 %v5323, %v6543
      %v6629 = vmul.f32 %v5325, %v6543
      %v6630 = vmul.f32 %v5676, %v6543
      %v6631 = vmul.f32 %v5678, %v6543
      %v6632 = vmul.f32 %v5329, %v6544
      %v6633 = vmul.f32 %v5331, %v6544
      %v6634 = vmul.f32 %v5682, %v6544
      %v6635 = vmul.f32 %v5684, %v6544
      %v6636 = vmul.f32 %v5333, %v6545
      %v6637 = vmul.f32 %v5335, %v6545
      %v6638 = vmul.f32 %v5686, %v6545
      %v6639 = vmul.f32 %v5688, %v6545
      %v6640 = vmul.f32 %v5339, %v6546
      %v6641 = vmul.f32 %v5341, %v6546
      %v6642 = vmul.f32 %v5692, %v6546
      %v6643 = vmul.f32 %v5694, %v6546
      %v6644 = vmul.f32 %v5343, %v6547
      %v6645 = vmul.f32 %v5345, %v6547
      %v6646 = vmul.f32 %v5696, %v6547
      %v6647 = vmul.f32 %v5698, %v6547
      %v6648 = vmul.f32 %v5349, %v6548
      %v6649 = vmul.f32 %v5351, %v6548
      %v6650 = vmul.f32 %v5702, %v6548
      %v6651 = vmul.f32 %v5704, %v6548
      %v6652 = vmul.f32 %v5353, %v6549
      %v6653 = vmul.f32 %v5355, %v6549
      %v6654 = vmul.f32 %v5706, %v6549
      %v6655 = vmul.f32 %v5708, %v6549
      %v6656 = vmul.f32 %v5359, %v6550
      %v6657 = vmul.f32 %v5361, %v6550
      %v6658 = vmul.f32 %v5712, %v6550
      %v6659 = vmul.f32 %v5714, %v6550
      %v6660 = vmul.f32 %v5363, %v6551
      %v6661 = vmul.f32 %v5365, %v6551
      %v6662 = vmul.f32 %v5716, %v6551
      %v6663 = vmul.f32 %v5718, %v6551
      %v6664 = vmul.f32 %v5369, %v6552
      %v6665 = vmul.f32 %v5371, %v6552
      %v6666 = vmul.f32 %v5722, %v6552
      %v6667 = vmul.f32 %v5724, %v6552
      %v6668 = vmul.f32 %v5373, %v6553
      %v6669 = vmul.f32 %v5375, %v6553
      %v6670 = vmul.f32 %v5726, %v6553
      %v6671 = vmul.f32 %v5728, %v6553
      %v6672 = vmul.f32 %v5379, %v6554
      %v6673 = vmul.f32 %v5381, %v6554
      %v6674 = vmul.f32 %v5732, %v6554
      %v6675 = vmul.f32 %v5734, %v6554
      %v6676 = vmul.f32 %v5383, %v6555
      %v6677 = vmul.f32 %v5385, %v6555
      %v6678 = vmul.f32 %v5736, %v6555
      %v6679 = vmul.f32 %v5738, %v6555
      %v6680 = vmul.f32 %v5389, %v6556
      %v6681 = vmul.f32 %v5391, %v6556
      %v6682 = vmul.f32 %v5742, %v6556
      %v6683 = vmul.f32 %v5744, %v6556
      %v6684 = vmul.f32 %v5393, %v6557
      %v6685 = vmul.f32 %v5395, %v6557
      %v6686 = vmul.f32 %v5746, %v6557
      %v6687 = vmul.f32 %v5748, %v6557
      %v6688 = vmul.f32 %v5399, %v6558
      %v6689 = vmul.f32 %v5401, %v6558
      %v6690 = vmul.f32 %v5752, %v6558
      %v6691 = vmul.f32 %v5754, %v6558
      %v6692 = vmul.f32 %v5403, %v6559
      %v6693 = vmul.f32 %v5405, %v6559
      %v6694 = vmul.f32 %v5756, %v6559
      %v6695 = vmul.f32 %v5758, %v6559
      %v6696 = vmul.f32 %v5409, %v6560
      %v6697 = vmul.f32 %v5411, %v6560
      %v6698 = vmul.f32 %v5762, %v6560
      %v6699 = vmul.f32 %v5764, %v6560
      %v6700 = vmul.f32 %v5413, %v6561
      %v6701 = vmul.f32 %v5415, %v6561
      %v6702 = vmul.f32 %v5766, %v6561
      %v6703 = vmul.f32 %v5768, %v6561
      %v6704 = vmul.f32 %v5419, %v6562
      %v6705 = vmul.f32 %v5421, %v6562
      %v6706 = vmul.f32 %v5772, %v6562
      %v6707 = vmul.f32 %v5774, %v6562
      %v6708 = vmul.f32 %v5423, %v6563
      %v6709 = vmul.f32 %v5425, %v6563
      %v6710 = vmul.f32 %v5776, %v6563
      %v6711 = vmul.f32 %v5778, %v6563
      %v6712 = vmul.f32 %v5429, %v6564
      %v6713 = vmul.f32 %v5431, %v6564
      %v6714 = vmul.f32 %v5782, %v6564
      %v6715 = vmul.f32 %v5784, %v6564
      %v6716 = vmul.f32 %v5433, %v6565
      %v6717 = vmul.f32 %v5435, %v6565
      %v6718 = vmul.f32 %v5786, %v6565
      %v6719 = vmul.f32 %v5788, %v6565
      %v6720 = vmul.f32 %v5439, %v6566
      %v6721 = vmul.f32 %v5441, %v6566
      %v6722 = vmul.f32 %v5792, %v6566
      %v6723 = vmul.f32 %v5794, %v6566
      %v6724 = vmul.f32 %v5443, %v6567
      %v6725 = vmul.f32 %v5445, %v6567
      %v6726 = vmul.f32 %v5796, %v6567
      %v6727 = vmul.f32 %v5798, %v6567
      %v6728 = vmul.f32 %v5449, %v6568
      %v6729 = vmul.f32 %v5451, %v6568
      %v6730 = vmul.f32 %v5802, %v6568
      %v6731 = vmul.f32 %v5804, %v6568
      %v6732 = vmul.f32 %v5453, %v6569
      %v6733 = vmul.f32 %v5455, %v6569
      %v6734 = vmul.f32 %v5806, %v6569
      %v6735 = vmul.f32 %v5808, %v6569
      %v6736 = vmul.f32 %v5459, %v6570
      %v6737 = vmul.f32 %v5461, %v6570
      %v6738 = vmul.f32 %v5812, %v6570
      %v6739 = vmul.f32 %v5814, %v6570
      %v6740 = vmul.f32 %v5463, %v6571
      %v6741 = vmul.f32 %v5465, %v6571
      %v6742 = vmul.f32 %v5816, %v6571
      %v6743 = vmul.f32 %v5818, %v6571
      %v6744 = vmul.f32 %v5469, %v6572
      %v6745 = vmul.f32 %v5471, %v6572
      %v6746 = vmul.f32 %v5822, %v6572
      %v6747 = vmul.f32 %v5824, %v6572
      %v6748 = vmul.f32 %v5473, %v6573
      %v6749 = vmul.f32 %v5475, %v6573
      %v6750 = vmul.f32 %v5826, %v6573
      %v6751 = vmul.f32 %v5828, %v6573
      %v6752 = vmul.f32 %v5479, %v6574
      %v6753 = vmul.f32 %v5481, %v6574
      %v6754 = vmul.f32 %v5832, %v6574
      %v6755 = vmul.f32 %v5834, %v6574
      %v6756 = vmul.f32 %v5483, %v6575
      %v6757 = vmul.f32 %v5485, %v6575
      %v6758 = vmul.f32 %v5836, %v6575
      %v6759 = vmul.f32 %v5838, %v6575
      %v6760 = vmul.f32 %v5489, %v6576
      %v6761 = vmul.f32 %v5491, %v6576
      %v6762 = vmul.f32 %v5842, %v6576
      %v6763 = vmul.f32 %v5844, %v6576
      %v6764 = vmul.f32 %v5493, %v6577
      %v6765 = vmul.f32 %v5495, %v6577
      %v6766 = vmul.f32 %v5846, %v6577
      %v6767 = vmul.f32 %v5848, %v6577
      %v6768 = vmul.f32 %v5499, %v6578
      %v6769 = vmul.f32 %v5501, %v6578
      %v6770 = vmul.f32 %v5852, %v6578
      %v6771 = vmul.f32 %v5854, %v6578
      %v6772 = vmul.f32 %v5503, %v6579
      %v6773 = vmul.f32 %v5505, %v6579
      %v6774 = vmul.f32 %v5856, %v6579
      %v6775 = vmul.f32 %v5858, %v6579
      %v6776 = vmul.f32 %v5509, %v6580
      %v6777 = vmul.f32 %v5511, %v6580
      %v6778 = vmul.f32 %v5862, %v6580
      %v6779 = vmul.f32 %v5864, %v6580
      %v6780 = vmul.f32 %v5513, %v6581
      %v6781 = vmul.f32 %v5515, %v6581
      %v6782 = vmul.f32 %v5866, %v6581
      %v6783 = vmul.f32 %v5868, %v6581
      %v6784 = vmul.f32 %v5519, %v6582
      %v6785 = vmul.f32 %v5521, %v6582
      %v6786 = vmul.f32 %v5872, %v6582
      %v6787 = vmul.f32 %v5874, %v6582
      %v6788 = vmul.f32 %v5523, %v6583
      %v6789 = vmul.f32 %v5525, %v6583
      %v6790 = vmul.f32 %v5876, %v6583
      %v6791 = vmul.f32 %v5878, %v6583
      %v6792 = vmul.f32 %v5529, %v6584
      %v6793 = vmul.f32 %v5531, %v6584
      %v6794 = vmul.f32 %v5882, %v6584
      %v6795 = vmul.f32 %v5884, %v6584
      %v6796 = vmul.f32 %v5533, %v6585
      %v6797 = vmul.f32 %v5535, %v6585
      %v6798 = vmul.f32 %v5886, %v6585
      %v6799 = vmul.f32 %v5888, %v6585
      %v6800 = vmul.f32 %v5539, %v6586
      %v6801 = vmul.f32 %v5541, %v6586
      %v6802 = vmul.f32 %v5892, %v6586
      %v6803 = vmul.f32 %v5894, %v6586
      %v6804 = vmul.f32 %v5543, %v6587
      %v6805 = vmul.f32 %v5545, %v6587
      %v6806 = vmul.f32 %v5896, %v6587
      %v6807 = vmul.f32 %v5898, %v6587
      %v6808 = vmul.f32 %v5549, %v6588
      %v6809 = vmul.f32 %v5551, %v6588
      %v6810 = vmul.f32 %v5902, %v6588
      %v6811 = vmul.f32 %v5904, %v6588
      %v6812 = vmul.f32 %v5553, %v6589
      %v6813 = vmul.f32 %v5555, %v6589
      %v6814 = vmul.f32 %v5906, %v6589
      %v6815 = vmul.f32 %v5908, %v6589
      %v6816 = vmul.f32 %v5559, %v6590
      %v6817 = vmul.f32 %v5561, %v6590
      %v6818 = vmul.f32 %v5912, %v6590
      %v6819 = vmul.f32 %v5914, %v6590
      %v6820 = vmul.f32 %v5563, %v6591
      %v6821 = vmul.f32 %v5565, %v6591
      %v6822 = vmul.f32 %v5916, %v6591
      %v6823 = vmul.f32 %v5918, %v6591
      %v6824 = vmul.f32 %v5569, %v6592
      %v6825 = vmul.f32 %v5571, %v6592
      %v6826 = vmul.f32 %v5922, %v6592
      %v6827 = vmul.f32 %v5924, %v6592
      %v6828 = vmul.f32 %v5573, %v6593
      %v6829 = vmul.f32 %v5575, %v6593
      %v6830 = vmul.f32 %v5926, %v6593
      %v6831 = vmul.f32 %v5928, %v6593
      %v6832 = vmul.f32 %v5579, %v6594
      %v6833 = vmul.f32 %v5581, %v6594
      %v6834 = vmul.f32 %v5932, %v6594
      %v6835 = vmul.f32 %v5934, %v6594
      %v6836 = vmul.f32 %v5583, %v6595
      %v6837 = vmul.f32 %v5585, %v6595
      %v6838 = vmul.f32 %v5936, %v6595
      %v6839 = vmul.f32 %v5938, %v6595
      %v6840 = vmul.f32 %v5589, %v6596
      %v6841 = vmul.f32 %v5591, %v6596
      %v6842 = vmul.f32 %v5942, %v6596
      %v6843 = vmul.f32 %v5944, %v6596
      %v6844 = vmul.f32 %v5593, %v6597
      %v6845 = vmul.f32 %v5595, %v6597
      %v6846 = vmul.f32 %v5946, %v6597
      %v6847 = vmul.f32 %v5948, %v6597
      %v6848 = vmul.f32 %v5599, %v6598
      %v6849 = vmul.f32 %v5601, %v6598
      %v6850 = vmul.f32 %v5952, %v6598
      %v6851 = vmul.f32 %v5954, %v6598
      %v6852 = vmul.f32 %v5603, %v6599
      %v6853 = vmul.f32 %v5605, %v6599
      %v6854 = vmul.f32 %v5956, %v6599
      %v6855 = vmul.f32 %v5958, %v6599
      %6856 = vst [vmem:[%s504] sm:$0xff] %v6600
      %6857 = vst [vmem:[%s504 + $0x8] sm:$0xff] %v6601
      %6858 = vst [vmem:[%s504 + $0x10] sm:$0xff] %v6602
      %6859 = vst [vmem:[%s504 + $0x18] sm:$0xff] %v6603
      %6860 = vst [vmem:[%s504 + $0x20] sm:$0xff] %v6604
      %6861 = vst [vmem:[%s504 + $0x28] sm:$0xff] %v6605
      %6862 = vst [vmem:[%s504 + $0x30] sm:$0xff] %v6606
      %6863 = vst [vmem:[%s504 + $0x38] sm:$0xff] %v6607
      %6864 = vst [vmem:[%s504 + $0x40] sm:$0xff] %v6608
      %6865 = vst [vmem:[%s504 + $0x48] sm:$0xff] %v6609
      %6866 = vst [vmem:[%s504 + $0x50] sm:$0xff] %v6610
      %6867 = vst [vmem:[%s504 + $0x58] sm:$0xff] %v6611
      %6868 = vst [vmem:[%s504 + $0x60] sm:$0xff] %v6612
      %6869 = vst [vmem:[%s504 + $0x68] sm:$0xff] %v6613
      %6870 = vst [vmem:[%s504 + $0x70] sm:$0xff] %v6614
      %6871 = vst [vmem:[%s504 + $0x78] sm:$0xff] %v6615
      %6872 = vst [vmem:[%s504 + $0x80] sm:$0xff] %v6616
      %6873 = vst [vmem:[%s504 + $0x88] sm:$0xff] %v6617
      %6874 = vst [vmem:[%s504 + $0x90] sm:$0xff] %v6618
      %6875 = vst [vmem:[%s504 + $0x98] sm:$0xff] %v6619
      %6876 = vst [vmem:[%s504 + $0xa0] sm:$0xff] %v6620
      %6877 = vst [vmem:[%s504 + $0xa8] sm:$0xff] %v6621
      %6878 = vst [vmem:[%s504 + $0xb0] sm:$0xff] %v6622
      %6879 = vst [vmem:[%s504 + $0xb8] sm:$0xff] %v6623
      %6880 = vst [vmem:[%s504 + $0xc0] sm:$0xff] %v6624
      %6881 = vst [vmem:[%s504 + $0xc8] sm:$0xff] %v6625
      %6882 = vst [vmem:[%s504 + $0xd0] sm:$0xff] %v6626
      %6883 = vst [vmem:[%s504 + $0xd8] sm:$0xff] %v6627
      %6884 = vst [vmem:[%s504 + $0xe0] sm:$0xff] %v6628
      %6885 = vst [vmem:[%s504 + $0xe8] sm:$0xff] %v6629
      %6886 = vst [vmem:[%s504 + $0xf0] sm:$0xff] %v6630
      %6887 = vst [vmem:[%s504 + $0xf8] sm:$0xff] %v6631
      %6888 = vst [vmem:[%s504 + $0x100] sm:$0xff] %v6632
      %6889 = vst [vmem:[%s504 + $0x108] sm:$0xff] %v6633
      %6890 = vst [vmem:[%s504 + $0x110] sm:$0xff] %v6634
      %6891 = vst [vmem:[%s504 + $0x118] sm:$0xff] %v6635
      %6892 = vst [vmem:[%s504 + $0x120] sm:$0xff] %v6636
      %6893 = vst [vmem:[%s504 + $0x128] sm:$0xff] %v6637
      %6894 = vst [vmem:[%s504 + $0x130] sm:$0xff] %v6638
      %6895 = vst [vmem:[%s504 + $0x138] sm:$0xff] %v6639
      %6896 = vst [vmem:[%s504 + $0x140] sm:$0xff] %v6640
      %6897 = vst [vmem:[%s504 + $0x148] sm:$0xff] %v6641
      %6898 = vst [vmem:[%s504 + $0x150] sm:$0xff] %v6642
      %6899 = vst [vmem:[%s504 + $0x158] sm:$0xff] %v6643
      %6900 = vst [vmem:[%s504 + $0x160] sm:$0xff] %v6644
      %6901 = vst [vmem:[%s504 + $0x168] sm:$0xff] %v6645
      %6902 = vst [vmem:[%s504 + $0x170] sm:$0xff] %v6646
      %6903 = vst [vmem:[%s504 + $0x178] sm:$0xff] %v6647
      %6904 = vst [vmem:[%s504 + $0x180] sm:$0xff] %v6648
      %6905 = vst [vmem:[%s504 + $0x188] sm:$0xff] %v6649
      %6906 = vst [vmem:[%s504 + $0x190] sm:$0xff] %v6650
      %6907 = vst [vmem:[%s504 + $0x198] sm:$0xff] %v6651
      %6908 = vst [vmem:[%s504 + $0x1a0] sm:$0xff] %v6652
      %6909 = vst [vmem:[%s504 + $0x1a8] sm:$0xff] %v6653
      %6910 = vst [vmem:[%s504 + $0x1b0] sm:$0xff] %v6654
      %6911 = vst [vmem:[%s504 + $0x1b8] sm:$0xff] %v6655
      %6912 = vst [vmem:[%s504 + $0x1c0] sm:$0xff] %v6656
      %6913 = vst [vmem:[%s504 + $0x1c8] sm:$0xff] %v6657
      %6914 = vst [vmem:[%s504 + $0x1d0] sm:$0xff] %v6658
      %6915 = vst [vmem:[%s504 + $0x1d8] sm:$0xff] %v6659
      %6916 = vst [vmem:[%s504 + $0x1e0] sm:$0xff] %v6660
      %6917 = vst [vmem:[%s504 + $0x1e8] sm:$0xff] %v6661
      %6918 = vst [vmem:[%s504 + $0x1f0] sm:$0xff] %v6662
      %6919 = vst [vmem:[%s504 + $0x1f8] sm:$0xff] %v6663
      %6920 = vst [vmem:[%s504 + $0x200] sm:$0xff] %v6664
      %6921 = vst [vmem:[%s504 + $0x208] sm:$0xff] %v6665
      %6922 = vst [vmem:[%s504 + $0x210] sm:$0xff] %v6666
      %6923 = vst [vmem:[%s504 + $0x218] sm:$0xff] %v6667
      %6924 = vst [vmem:[%s504 + $0x220] sm:$0xff] %v6668
      %6925 = vst [vmem:[%s504 + $0x228] sm:$0xff] %v6669
      %6926 = vst [vmem:[%s504 + $0x230] sm:$0xff] %v6670
      %6927 = vst [vmem:[%s504 + $0x238] sm:$0xff] %v6671
      %6928 = vst [vmem:[%s504 + $0x240] sm:$0xff] %v6672
      %6929 = vst [vmem:[%s504 + $0x248] sm:$0xff] %v6673
      %6930 = vst [vmem:[%s504 + $0x250] sm:$0xff] %v6674
      %6931 = vst [vmem:[%s504 + $0x258] sm:$0xff] %v6675
      %6932 = vst [vmem:[%s504 + $0x260] sm:$0xff] %v6676
      %6933 = vst [vmem:[%s504 + $0x268] sm:$0xff] %v6677
      %6934 = vst [vmem:[%s504 + $0x270] sm:$0xff] %v6678
      %6935 = vst [vmem:[%s504 + $0x278] sm:$0xff] %v6679
      %6936 = vst [vmem:[%s504 + $0x280] sm:$0xff] %v6680
      %6937 = vst [vmem:[%s504 + $0x288] sm:$0xff] %v6681
      %6938 = vst [vmem:[%s504 + $0x290] sm:$0xff] %v6682
      %6939 = vst [vmem:[%s504 + $0x298] sm:$0xff] %v6683
      %6940 = vst [vmem:[%s504 + $0x2a0] sm:$0xff] %v6684
      %6941 = vst [vmem:[%s504 + $0x2a8] sm:$0xff] %v6685
      %6942 = vst [vmem:[%s504 + $0x2b0] sm:$0xff] %v6686
      %6943 = vst [vmem:[%s504 + $0x2b8] sm:$0xff] %v6687
      %6944 = vst [vmem:[%s504 + $0x2c0] sm:$0xff] %v6688
      %6945 = vst [vmem:[%s504 + $0x2c8] sm:$0xff] %v6689
      %6946 = vst [vmem:[%s504 + $0x2d0] sm:$0xff] %v6690
      %6947 = vst [vmem:[%s504 + $0x2d8] sm:$0xff] %v6691
      %6948 = vst [vmem:[%s504 + $0x2e0] sm:$0xff] %v6692
      %6949 = vst [vmem:[%s504 + $0x2e8] sm:$0xff] %v6693
      %6950 = vst [vmem:[%s504 + $0x2f0] sm:$0xff] %v6694
      %6951 = vst [vmem:[%s504 + $0x2f8] sm:$0xff] %v6695
      %6952 = vst [vmem:[%s504 + $0x300] sm:$0xff] %v6696
      %6953 = vst [vmem:[%s504 + $0x308] sm:$0xff] %v6697
      %6954 = vst [vmem:[%s504 + $0x310] sm:$0xff] %v6698
      %6955 = vst [vmem:[%s504 + $0x318] sm:$0xff] %v6699
      %6956 = vst [vmem:[%s504 + $0x320] sm:$0xff] %v6700
      %6957 = vst [vmem:[%s504 + $0x328] sm:$0xff] %v6701
      %6958 = vst [vmem:[%s504 + $0x330] sm:$0xff] %v6702
      %6959 = vst [vmem:[%s504 + $0x338] sm:$0xff] %v6703
      %6960 = vst [vmem:[%s504 + $0x340] sm:$0xff] %v6704
      %6961 = vst [vmem:[%s504 + $0x348] sm:$0xff] %v6705
      %6962 = vst [vmem:[%s504 + $0x350] sm:$0xff] %v6706
      %6963 = vst [vmem:[%s504 + $0x358] sm:$0xff] %v6707
      %6964 = vst [vmem:[%s504 + $0x360] sm:$0xff] %v6708
      %6965 = vst [vmem:[%s504 + $0x368] sm:$0xff] %v6709
      %6966 = vst [vmem:[%s504 + $0x370] sm:$0xff] %v6710
      %6967 = vst [vmem:[%s504 + $0x378] sm:$0xff] %v6711
      %6968 = vst [vmem:[%s504 + $0x380] sm:$0xff] %v6712
      %6969 = vst [vmem:[%s504 + $0x388] sm:$0xff] %v6713
      %6970 = vst [vmem:[%s504 + $0x390] sm:$0xff] %v6714
      %6971 = vst [vmem:[%s504 + $0x398] sm:$0xff] %v6715
      %6972 = vst [vmem:[%s504 + $0x3a0] sm:$0xff] %v6716
      %6973 = vst [vmem:[%s504 + $0x3a8] sm:$0xff] %v6717
      %6974 = vst [vmem:[%s504 + $0x3b0] sm:$0xff] %v6718
      %6975 = vst [vmem:[%s504 + $0x3b8] sm:$0xff] %v6719
      %6976 = vst [vmem:[%s504 + $0x3c0] sm:$0xff] %v6720
      %6977 = vst [vmem:[%s504 + $0x3c8] sm:$0xff] %v6721
      %6978 = vst [vmem:[%s504 + $0x3d0] sm:$0xff] %v6722
      %6979 = vst [vmem:[%s504 + $0x3d8] sm:$0xff] %v6723
      %6980 = vst [vmem:[%s504 + $0x3e0] sm:$0xff] %v6724
      %6981 = vst [vmem:[%s504 + $0x3e8] sm:$0xff] %v6725
      %6982 = vst [vmem:[%s504 + $0x3f0] sm:$0xff] %v6726
      %6983 = vst [vmem:[%s504 + $0x3f8] sm:$0xff] %v6727
      %6984 = vst [vmem:[%s504 + $0x400] sm:$0xff] %v6728
      %6985 = vst [vmem:[%s504 + $0x408] sm:$0xff] %v6729
      %6986 = vst [vmem:[%s504 + $0x410] sm:$0xff] %v6730
      %6987 = vst [vmem:[%s504 + $0x418] sm:$0xff] %v6731
      %6988 = vst [vmem:[%s504 + $0x420] sm:$0xff] %v6732
      %6989 = vst [vmem:[%s504 + $0x428] sm:$0xff] %v6733
      %6990 = vst [vmem:[%s504 + $0x430] sm:$0xff] %v6734
      %6991 = vst [vmem:[%s504 + $0x438] sm:$0xff] %v6735
      %6992 = vst [vmem:[%s504 + $0x440] sm:$0xff] %v6736
      %6993 = vst [vmem:[%s504 + $0x448] sm:$0xff] %v6737
      %6994 = vst [vmem:[%s504 + $0x450] sm:$0xff] %v6738
      %6995 = vst [vmem:[%s504 + $0x458] sm:$0xff] %v6739
      %6996 = vst [vmem:[%s504 + $0x460] sm:$0xff] %v6740
      %6997 = vst [vmem:[%s504 + $0x468] sm:$0xff] %v6741
      %6998 = vst [vmem:[%s504 + $0x470] sm:$0xff] %v6742
      %6999 = vst [vmem:[%s504 + $0x478] sm:$0xff] %v6743
      %7000 = vst [vmem:[%s504 + $0x480] sm:$0xff] %v6744
      %7001 = vst [vmem:[%s504 + $0x488] sm:$0xff] %v6745
      %7002 = vst [vmem:[%s504 + $0x490] sm:$0xff] %v6746
      %7003 = vst [vmem:[%s504 + $0x498] sm:$0xff] %v6747
      %7004 = vst [vmem:[%s504 + $0x4a0] sm:$0xff] %v6748
      %7005 = vst [vmem:[%s504 + $0x4a8] sm:$0xff] %v6749
      %7006 = vst [vmem:[%s504 + $0x4b0] sm:$0xff] %v6750
      %7007 = vst [vmem:[%s504 + $0x4b8] sm:$0xff] %v6751
      %7008 = vst [vmem:[%s504 + $0x4c0] sm:$0xff] %v6752
      %7009 = vst [vmem:[%s504 + $0x4c8] sm:$0xff] %v6753
      %7010 = vst [vmem:[%s504 + $0x4d0] sm:$0xff] %v6754
      %7011 = vst [vmem:[%s504 + $0x4d8] sm:$0xff] %v6755
      %7012 = vst [vmem:[%s504 + $0x4e0] sm:$0xff] %v6756
      %7013 = vst [vmem:[%s504 + $0x4e8] sm:$0xff] %v6757
      %7014 = vst [vmem:[%s504 + $0x4f0] sm:$0xff] %v6758
      %7015 = vst [vmem:[%s504 + $0x4f8] sm:$0xff] %v6759
      %7016 = vst [vmem:[%s504 + $0x500] sm:$0xff] %v6760
      %7017 = vst [vmem:[%s504 + $0x508] sm:$0xff] %v6761
      %7018 = vst [vmem:[%s504 + $0x510] sm:$0xff] %v6762
      %7019 = vst [vmem:[%s504 + $0x518] sm:$0xff] %v6763
      %7020 = vst [vmem:[%s504 + $0x520] sm:$0xff] %v6764
      %7021 = vst [vmem:[%s504 + $0x528] sm:$0xff] %v6765
      %7022 = vst [vmem:[%s504 + $0x530] sm:$0xff] %v6766
      %7023 = vst [vmem:[%s504 + $0x538] sm:$0xff] %v6767
      %7024 = vst [vmem:[%s504 + $0x540] sm:$0xff] %v6768
      %7025 = vst [vmem:[%s504 + $0x548] sm:$0xff] %v6769
      %7026 = vst [vmem:[%s504 + $0x550] sm:$0xff] %v6770
      %7027 = vst [vmem:[%s504 + $0x558] sm:$0xff] %v6771
      %7028 = vst [vmem:[%s504 + $0x560] sm:$0xff] %v6772
      %7029 = vst [vmem:[%s504 + $0x568] sm:$0xff] %v6773
      %7030 = vst [vmem:[%s504 + $0x570] sm:$0xff] %v6774
      %7031 = vst [vmem:[%s504 + $0x578] sm:$0xff] %v6775
      %7032 = vst [vmem:[%s504 + $0x580] sm:$0xff] %v6776
      %7033 = vst [vmem:[%s504 + $0x588] sm:$0xff] %v6777
      %7034 = vst [vmem:[%s504 + $0x590] sm:$0xff] %v6778
      %7035 = vst [vmem:[%s504 + $0x598] sm:$0xff] %v6779
      %7036 = vst [vmem:[%s504 + $0x5a0] sm:$0xff] %v6780
      %7037 = vst [vmem:[%s504 + $0x5a8] sm:$0xff] %v6781
      %7038 = vst [vmem:[%s504 + $0x5b0] sm:$0xff] %v6782
      %7039 = vst [vmem:[%s504 + $0x5b8] sm:$0xff] %v6783
      %7040 = vst [vmem:[%s504 + $0x5c0] sm:$0xff] %v6784
      %7041 = vst [vmem:[%s504 + $0x5c8] sm:$0xff] %v6785
      %7042 = vst [vmem:[%s504 + $0x5d0] sm:$0xff] %v6786
      %7043 = vst [vmem:[%s504 + $0x5d8] sm:$0xff] %v6787
      %7044 = vst [vmem:[%s504 + $0x5e0] sm:$0xff] %v6788
      %7045 = vst [vmem:[%s504 + $0x5e8] sm:$0xff] %v6789
      %7046 = vst [vmem:[%s504 + $0x5f0] sm:$0xff] %v6790
      %7047 = vst [vmem:[%s504 + $0x5f8] sm:$0xff] %v6791
      %7048 = vst [vmem:[%s504 + $0x600] sm:$0xff] %v6792
      %7049 = vst [vmem:[%s504 + $0x608] sm:$0xff] %v6793
      %7050 = vst [vmem:[%s504 + $0x610] sm:$0xff] %v6794
      %7051 = vst [vmem:[%s504 + $0x618] sm:$0xff] %v6795
      %7052 = vst [vmem:[%s504 + $0x620] sm:$0xff] %v6796
      %7053 = vst [vmem:[%s504 + $0x628] sm:$0xff] %v6797
      %7054 = vst [vmem:[%s504 + $0x630] sm:$0xff] %v6798
      %7055 = vst [vmem:[%s504 + $0x638] sm:$0xff] %v6799
      %7056 = vst [vmem:[%s504 + $0x640] sm:$0xff] %v6800
      %7057 = vst [vmem:[%s504 + $0x648] sm:$0xff] %v6801
      %7058 = vst [vmem:[%s504 + $0x650] sm:$0xff] %v6802
      %7059 = vst [vmem:[%s504 + $0x658] sm:$0xff] %v6803
      %7060 = vst [vmem:[%s504 + $0x660] sm:$0xff] %v6804
      %7061 = vst [vmem:[%s504 + $0x668] sm:$0xff] %v6805
      %7062 = vst [vmem:[%s504 + $0x670] sm:$0xff] %v6806
      %7063 = vst [vmem:[%s504 + $0x678] sm:$0xff] %v6807
      %7064 = vst [vmem:[%s504 + $0x680] sm:$0xff] %v6808
      %7065 = vst [vmem:[%s504 + $0x688] sm:$0xff] %v6809
      %7066 = vst [vmem:[%s504 + $0x690] sm:$0xff] %v6810
      %7067 = vst [vmem:[%s504 + $0x698] sm:$0xff] %v6811
      %7068 = vst [vmem:[%s504 + $0x6a0] sm:$0xff] %v6812
      %7069 = vst [vmem:[%s504 + $0x6a8] sm:$0xff] %v6813
      %7070 = vst [vmem:[%s504 + $0x6b0] sm:$0xff] %v6814
      %7071 = vst [vmem:[%s504 + $0x6b8] sm:$0xff] %v6815
      %7072 = vst [vmem:[%s504 + $0x6c0] sm:$0xff] %v6816
      %7073 = vst [vmem:[%s504 + $0x6c8] sm:$0xff] %v6817
      %7074 = vst [vmem:[%s504 + $0x6d0] sm:$0xff] %v6818
      %7075 = vst [vmem:[%s504 + $0x6d8] sm:$0xff] %v6819
      %7076 = vst [vmem:[%s504 + $0x6e0] sm:$0xff] %v6820
      %7077 = vst [vmem:[%s504 + $0x6e8] sm:$0xff] %v6821
      %7078 = vst [vmem:[%s504 + $0x6f0] sm:$0xff] %v6822
      %7079 = vst [vmem:[%s504 + $0x6f8] sm:$0xff] %v6823
      %7080 = vst [vmem:[%s504 + $0x700] sm:$0xff] %v6824
      %7081 = vst [vmem:[%s504 + $0x708] sm:$0xff] %v6825
      %7082 = vst [vmem:[%s504 + $0x710] sm:$0xff] %v6826
      %7083 = vst [vmem:[%s504 + $0x718] sm:$0xff] %v6827
      %7084 = vst [vmem:[%s504 + $0x720] sm:$0xff] %v6828
      %7085 = vst [vmem:[%s504 + $0x728] sm:$0xff] %v6829
      %7086 = vst [vmem:[%s504 + $0x730] sm:$0xff] %v6830
      %7087 = vst [vmem:[%s504 + $0x738] sm:$0xff] %v6831
      %7088 = vst [vmem:[%s504 + $0x740] sm:$0xff] %v6832
      %7089 = vst [vmem:[%s504 + $0x748] sm:$0xff] %v6833
      %7090 = vst [vmem:[%s504 + $0x750] sm:$0xff] %v6834
      %7091 = vst [vmem:[%s504 + $0x758] sm:$0xff] %v6835
      %7092 = vst [vmem:[%s504 + $0x760] sm:$0xff] %v6836
      %7093 = vst [vmem:[%s504 + $0x768] sm:$0xff] %v6837
      %7094 = vst [vmem:[%s504 + $0x770] sm:$0xff] %v6838
      %7095 = vst [vmem:[%s504 + $0x778] sm:$0xff] %v6839
      %7096 = vst [vmem:[%s504 + $0x780] sm:$0xff] %v6840
      %7097 = vst [vmem:[%s504 + $0x788] sm:$0xff] %v6841
      %7098 = vst [vmem:[%s504 + $0x790] sm:$0xff] %v6842
      %7099 = vst [vmem:[%s504 + $0x798] sm:$0xff] %v6843
      %7100 = vst [vmem:[%s504 + $0x7a0] sm:$0xff] %v6844
      %7101 = vst [vmem:[%s504 + $0x7a8] sm:$0xff] %v6845
      %7102 = vst [vmem:[%s504 + $0x7b0] sm:$0xff] %v6846
      %7103 = vst [vmem:[%s504 + $0x7b8] sm:$0xff] %v6847
      %7104 = vst [vmem:[%s504 + $0x7c0] sm:$0xff] %v6848
      %7105 = vst [vmem:[%s504 + $0x7c8] sm:$0xff] %v6849
      %7106 = vst [vmem:[%s504 + $0x7d0] sm:$0xff] %v6850
      %7107 = vst [vmem:[%s504 + $0x7d8] sm:$0xff] %v6851
      %7108 = vst [vmem:[%s504 + $0x7e0] sm:$0xff] %v6852
      %7109 = vst [vmem:[%s504 + $0x7e8] sm:$0xff] %v6853
      %7110 = vst [vmem:[%s504 + $0x7f0] sm:$0xff] %v6854
      %7111 = vst [vmem:[%s504 + $0x7f8] sm:$0xff] %v6855
      %7112 = vst [vmem:[%s510] sm:$0xff] %v1996
      %7113 = vst [vmem:[%s510 + $0x8] sm:$0xff] %v1999
      %7114 = vst [vmem:[%s510 + $0x10] sm:$0xff] %v2004
      %7115 = vst [vmem:[%s510 + $0x18] sm:$0xff] %v2007
      %7116 = vst [vmem:[%s510 + $0x20] sm:$0xff] %v2012
      %7117 = vst [vmem:[%s510 + $0x28] sm:$0xff] %v2015
      %7118 = vst [vmem:[%s510 + $0x30] sm:$0xff] %v2020
      %7119 = vst [vmem:[%s510 + $0x38] sm:$0xff] %v2023
      %7120 = vst [vmem:[%s510 + $0x40] sm:$0xff] %v2028
      %7121 = vst [vmem:[%s510 + $0x48] sm:$0xff] %v2031
      %7122 = vst [vmem:[%s510 + $0x50] sm:$0xff] %v2036
      %7123 = vst [vmem:[%s510 + $0x58] sm:$0xff] %v2039
      %7124 = vst [vmem:[%s510 + $0x60] sm:$0xff] %v2044
      %7125 = vst [vmem:[%s510 + $0x68] sm:$0xff] %v2047
      %7126 = vst [vmem:[%s510 + $0x70] sm:$0xff] %v2052
      %7127 = vst [vmem:[%s510 + $0x78] sm:$0xff] %v2055
      %7128 = vst [vmem:[%s510 + $0x80] sm:$0xff] %v2060
      %7129 = vst [vmem:[%s510 + $0x88] sm:$0xff] %v2063
      %7130 = vst [vmem:[%s510 + $0x90] sm:$0xff] %v2068
      %7131 = vst [vmem:[%s510 + $0x98] sm:$0xff] %v2071
      %7132 = vst [vmem:[%s510 + $0xa0] sm:$0xff] %v2076
      %7133 = vst [vmem:[%s510 + $0xa8] sm:$0xff] %v2079
      %7134 = vst [vmem:[%s510 + $0xb0] sm:$0xff] %v2084
      %7135 = vst [vmem:[%s510 + $0xb8] sm:$0xff] %v2087
      %7136 = vst [vmem:[%s510 + $0xc0] sm:$0xff] %v2092
      %7137 = vst [vmem:[%s510 + $0xc8] sm:$0xff] %v2095
      %7138 = vst [vmem:[%s510 + $0xd0] sm:$0xff] %v2100
      %7139 = vst [vmem:[%s510 + $0xd8] sm:$0xff] %v2103
      %7140 = vst [vmem:[%s510 + $0xe0] sm:$0xff] %v2108
      %7141 = vst [vmem:[%s510 + $0xe8] sm:$0xff] %v2111
      %7142 = vst [vmem:[%s510 + $0xf0] sm:$0xff] %v2116
      %7143 = vst [vmem:[%s510 + $0xf8] sm:$0xff] %v2119
      %7144 = vst [vmem:[%s510 + $0x100] sm:$0xff] %v2124
      %7145 = vst [vmem:[%s510 + $0x108] sm:$0xff] %v2127
      %7146 = vst [vmem:[%s510 + $0x110] sm:$0xff] %v2132
      %7147 = vst [vmem:[%s510 + $0x118] sm:$0xff] %v2135
      %7148 = vst [vmem:[%s510 + $0x120] sm:$0xff] %v2140
      %7149 = vst [vmem:[%s510 + $0x128] sm:$0xff] %v2143
      %7150 = vst [vmem:[%s510 + $0x130] sm:$0xff] %v2148
      %7151 = vst [vmem:[%s510 + $0x138] sm:$0xff] %v2151
      %7152 = vst [vmem:[%s510 + $0x140] sm:$0xff] %v2156
      %7153 = vst [vmem:[%s510 + $0x148] sm:$0xff] %v2159
      %7154 = vst [vmem:[%s510 + $0x150] sm:$0xff] %v2164
      %7155 = vst [vmem:[%s510 + $0x158] sm:$0xff] %v2167
      %7156 = vst [vmem:[%s510 + $0x160] sm:$0xff] %v2172
      %7157 = vst [vmem:[%s510 + $0x168] sm:$0xff] %v2175
      %7158 = vst [vmem:[%s510 + $0x170] sm:$0xff] %v2180
      %7159 = vst [vmem:[%s510 + $0x178] sm:$0xff] %v2183
      %7160 = vst [vmem:[%s510 + $0x180] sm:$0xff] %v2188
      %7161 = vst [vmem:[%s510 + $0x188] sm:$0xff] %v2191
      %7162 = vst [vmem:[%s510 + $0x190] sm:$0xff] %v2196
      %7163 = vst [vmem:[%s510 + $0x198] sm:$0xff] %v2199
      %7164 = vst [vmem:[%s510 + $0x1a0] sm:$0xff] %v2204
      %7165 = vst [vmem:[%s510 + $0x1a8] sm:$0xff] %v2207
      %7166 = vst [vmem:[%s510 + $0x1b0] sm:$0xff] %v2212
      %7167 = vst [vmem:[%s510 + $0x1b8] sm:$0xff] %v2215
      %7168 = vst [vmem:[%s510 + $0x1c0] sm:$0xff] %v2220
      %7169 = vst [vmem:[%s510 + $0x1c8] sm:$0xff] %v2223
      %7170 = vst [vmem:[%s510 + $0x1d0] sm:$0xff] %v2228
      %7171 = vst [vmem:[%s510 + $0x1d8] sm:$0xff] %v2231
      %7172 = vst [vmem:[%s510 + $0x1e0] sm:$0xff] %v2236
      %7173 = vst [vmem:[%s510 + $0x1e8] sm:$0xff] %v2239
      %7174 = vst [vmem:[%s510 + $0x1f0] sm:$0xff] %v2244
      %7175 = vst [vmem:[%s510 + $0x1f8] sm:$0xff] %v2247
      %s7176 = smul.u32 64, %s26
      %p7177 = scmp.lt.s32.totalorder %s7176, 127
      %s7178 = scalar_select %p7177, %s7176, 127
      %s7179 = smul.addr %s7178, 4
      %s7180 = smul.addr %s7179, 8
      %s7181 = scalar_lea.vmem %s13, %s7180
      %s7182 = smul.u32 64, %s26
      %p7183 = scmp.lt.s32.totalorder %s7182, 127
      %s7184 = scalar_select %p7183, %s7182, 127
      %s7185 = smul.addr %s7184, 8
      %s7186 = scalar_lea.vmem %s14, %s7185
      // Predicated region
      $region73: #{vae_forward.3} parent=71 // pred_check
        %p7187 = pneg %p327
      $region74: #{vae_forward.3} parent=71 // pred_check_branch
        %7189 = sbr.rel (%p7187) target = $region76
      $region75: #{vae_forward.3} parent=71 // pred_region
        %s7190 = smul.u32 64, %s26
      $region76: #{vae_forward.3} parent=71 // pred_fallthru
        _
      // Predicated region
      $region77: #{vae_forward.3} parent=71 // pred_check
        %p7191 = pneg %p353
      $region78: #{vae_forward.3} parent=71 // pred_check_branch
        %7193 = sbr.rel (%p7191) target = $region80
      $region79: #{vae_forward.3} parent=71 // pred_region
        %s7194 = smul.u32 64, %s26
      $region80: #{vae_forward.3} parent=71 // pred_fallthru
        _
    $region72: #{vae_forward.3} parent=5 // pred_fallthru
      _
    %p7195 = scmp.le.s32.totalorder 2, %s21
    // Predicated region
    $region81: #{vae_forward.3} parent=5 // pred_check
      %p7196 = pneg %p7195
    $region82: #{vae_forward.3} parent=5 // pred_check_branch
      %7198 = sbr.rel (%p7196) target = $region84
    $region83: #{vae_forward.3} parent=5 // pred_region
      %s7199 = ssub.s32 %s21, 2
      // Predicated region
      $region85: #{vae_forward.3} parent=83 // pred_check
        %p7200 = pneg %p333
      $region86: #{vae_forward.3} parent=83 // pred_check_branch
        %7202 = sbr.rel (%p7200) target = $region88
      $region87: #{vae_forward.3} parent=83 // pred_region
        %s7203 = smul.u32 64, %s27
        %p7204 = scmp.lt.s32.totalorder %s7203, 127
        %s7205 = scalar_select %p7204, %s7203, 127
        %s7206 = smul.addr %s7205, 4
        %s7207 = smul.addr %s7206, 8
        %s7208 = scalar_lea.vmem %s13, %s7207
      $region88: #{vae_forward.3} parent=83 // pred_fallthru
        _
      // Predicated region
      $region89: #{vae_forward.3} parent=83 // pred_check
        %p7209 = pneg %p359
      $region90: #{vae_forward.3} parent=83 // pred_check_branch
        %7211 = sbr.rel (%p7209) target = $region92
      $region91: #{vae_forward.3} parent=83 // pred_region
        %s7212 = smul.u32 64, %s27
        %p7213 = scmp.lt.s32.totalorder %s7212, 127
        %s7214 = scalar_select %p7213, %s7212, 127
        %s7215 = smul.addr %s7214, 8
        %s7216 = scalar_lea.vmem %s14, %s7215
      $region92: #{vae_forward.3} parent=83 // pred_fallthru
        _
    $region84: #{vae_forward.3} parent=5 // pred_fallthru
      _
  $region6: #{vae_forward.3} parent=0 // loop_footer
    %s25 = sadd.s32 1, %s21
  $region7: #{vae_forward.3} parent=0 // loop_footer_branch
    %20 = sbr.rel target = $region3
  $region8: #{vae_forward.3} parent=0 // loop_exit
    _

</llo_original>
